<compile_context>
chip_gen: v7x
topology: tpu7x:2x2x1
jax: 0.10.0
libtpu: 0.0.40
codegen_flags: <defaults>
</compile_context>

<pallas_src>
import functools

import jax
import jax.numpy as jnp
from jax import lax
from jax.experimental import pallas as pl
from jax.experimental.pallas import tpu as pltpu


def _divisor_tile(m, target, mult=1):
    """Largest divisor of m that is <= target and a multiple of `mult`,
    else m itself (a full-extent block is always legal)."""
    target = min(m, max(target, 1))
    if m <= target:
        return m
    for t in range(target, 0, -1):
        if m % t == 0 and t % mult == 0:
            return t
    return m


def _row_tile(nrows, bytes_per_row, budget_bytes=4 << 20, mult=1):
    """Row tile derived from an explicit per-stage VMEM budget (double-buffered)."""
    target = max(mult, budget_bytes // max(2 * bytes_per_row, 1))
    return _divisor_tile(nrows, target, mult)


# --------------------------------------------------------------------------- #
# Stage 1: fused (conv1-center | rescale) matmul + per-block BN batch stats.
# --------------------------------------------------------------------------- #
def _matmul_stats_kernel(x_ref, s_ref, wx_ref, ws_ref, o_ref, sum_ref, sq_ref):
    y = jnp.dot(x_ref[...], wx_ref[...], preferred_element_type=jnp.float32)
    y = y + jnp.dot(s_ref[...], ws_ref[...], preferred_element_type=jnp.float32)
    o_ref[...] = y.astype(o_ref.dtype)
    # Per-block BN statistics (reduced across blocks in the wrapper), so the grid
    # axis stays "parallel" and can split across TensorCores on v7x.
    s = jnp.sum(y, axis=0, keepdims=True)
    q = jnp.sum(y * y, axis=0, keepdims=True)
    sum_ref[...] = jnp.broadcast_to(s, sum_ref.shape)
    sq_ref[...] = jnp.broadcast_to(q, sq_ref.shape)


def matmul_with_stats(xa, sa, wx, ws):
    """(x, skip) [M, Cin] bf16 each; (wx, ws) [Cin, 2Co] bf16 -> bf16 [M, 2Co] + stats."""
    M, Cin = xa.shape
    C2 = wx.shape[1]
    tm = _row_tile(M, bytes_per_row=2 * (2 * Cin + C2) + 4 * C2, mult=8)
    g = M // tm
    out, s, q = pl.pallas_call(
        _matmul_stats_kernel,
        out_shape=(jax.ShapeDtypeStruct((M, C2), jnp.bfloat16),
                   jax.ShapeDtypeStruct((g, 8, C2), jnp.float32),
                   jax.ShapeDtypeStruct((g, 8, C2), jnp.float32)),
        grid=(g,),
        in_specs=[pl.BlockSpec((tm, Cin), lambda i: (i, 0)),
                  pl.BlockSpec((tm, Cin), lambda i: (i, 0)),
                  pl.BlockSpec((Cin, C2), lambda i: (0, 0)),
                  pl.BlockSpec((Cin, C2), lambda i: (0, 0))],
        out_specs=(pl.BlockSpec((tm, C2), lambda i: (i, 0)),
                   pl.BlockSpec((None, 8, C2), lambda i: (i, 0, 0)),
                   pl.BlockSpec((None, 8, C2), lambda i: (i, 0, 0))),
        compiler_params=pltpu.CompilerParams(dimension_semantics=("parallel",)),
    )(xa, sa, wx, ws)
    return out, s, q


# --------------------------------------------------------------------------- #
# Stage 2: BN + ReLU, split into the conv2 operand (with horizontal halo) and
# the identity branch.  Removes the XLA pad pass for the conv2 input.
# --------------------------------------------------------------------------- #
def _bn_relu_split_kernel(pre_ref, scale_ref, shift_ref, c1h_ref, id_ref, *, W, C):
    y = jnp.maximum(pre_ref[...].astype(jnp.float32) * scale_ref[...]
                    + shift_ref[...], 0.0)
    th = y.shape[0]
    zcol = jnp.zeros((th, 1, C), jnp.bfloat16)
    # conv2 operand written with zero left/right halo columns already in place.
    c1h_ref[:, 0:1, :] = zcol
    c1h_ref[:, 1:W + 1, :] = y[:, :, :C].astype(jnp.bfloat16)
    c1h_ref[:, W + 1:W + 2, :] = zcol
    # identity (rescale) branch.
    id_ref[...] = y[:, :, C:].astype(jnp.bfloat16)


def bn_relu_split(pre_rows, scale, shift, C):
    R, W, C2 = pre_rows.shape                       # R = N*H image rows
    th = _row_tile(R, bytes_per_row=W * (2 * C2 + 4 * C2 + 4 * C))
    c1h, ident = pl.pallas_call(
        functools.partial(_bn_relu_split_kernel, W=W, C=C),
        out_shape=(jax.ShapeDtypeStruct((R, W + 2, C), jnp.bfloat16),
                   jax.ShapeDtypeStruct((R, W, C), jnp.bfloat16)),
        grid=(R // th,),
        in_specs=[pl.BlockSpec((th, W, C2), lambda i: (i, 0, 0)),
                  pl.BlockSpec((1, 1, C2), lambda i: (0, 0, 0)),
                  pl.BlockSpec((1, 1, C2), lambda i: (0, 0, 0))],
        out_specs=(pl.BlockSpec((th, W + 2, C), lambda i: (i, 0, 0)),
                   pl.BlockSpec((th, W, C), lambda i: (i, 0, 0))),
        compiler_params=pltpu.CompilerParams(dimension_semantics=("parallel",)),
    )(pre_rows, scale.reshape(1, 1, C2), shift.reshape(1, 1, C2))
    return c1h, ident


# --------------------------------------------------------------------------- #
# Stage 3: conv2 (3x3, s=1, p=1) per image plane with fused BN batch stats.
# Output rows live in a row-padded space q = h*(W+2)+w; the two junk columns
# per row are masked out of the stats (iota) and dropped by a lane slice later.
# --------------------------------------------------------------------------- #
def _conv3x3_stats_kernel(x_ref, w_ref, o_ref, sum_ref, sq_ref, xp_ref, acc_ref,
                          *, H, W, C):
    Wp = W + 2
    L = H * Wp
    S = xp_ref.shape[0]                             # (H+2)*(W+2) + slack
    # Build the padded plane in VMEM: one interior copy, zeroed vertical halo
    # (horizontal halo columns arrive pre-zeroed from stage 2).  Re-zeroed every
    # step so the kernel stays correct when the grid is split across cores.
    xp_ref[0:Wp, :] = jnp.zeros((Wp, C), jnp.bfloat16)
    xp_ref[Wp + L:S, :] = jnp.zeros((S - Wp - L, C), jnp.bfloat16)
    xp_ref[Wp:Wp + L, :] = x_ref[...]

    # 9 taps: bf16 row-shifted ref slices fed straight to the MXU, accumulated in
    # an f32 VMEM scratch (bounded live ranges, no f32 widen / re-cast of the plane).
    # TODO(synk): for larger channel counts, build an in-VMEM im2col [L, 9C] and
    # issue a single wide-K matmul instead of 9 narrow-K ones.
    acc_ref[...] = jnp.zeros_like(acc_ref)
    for t in range(9):
        di, dj = divmod(t, 3)
        off = di * Wp + dj
        acc_ref[...] += jnp.dot(xp_ref[off:off + L, :],
                                w_ref[t * C:(t + 1) * C, :],
                                preferred_element_type=jnp.float32)
    acc = acc_ref[...]
    o_ref[...] = acc.astype(o_ref.dtype)

    # BN batch stats over valid output columns only; mask built in-kernel (free
    # VPU filler), no DMA'd mask input.
    col = lax.broadcasted_iota(jnp.int32, acc.shape, 0) % Wp
    yv = jnp.where(col < W, acc, 0.0)
    s = jnp.sum(yv, axis=0, keepdims=True)
    q = jnp.sum(yv * yv, axis=0, keepdims=True)
    sum_ref[...] = jnp.broadcast_to(s, sum_ref.shape)
    sq_ref[...] = jnp.broadcast_to(q, sq_ref.shape)


def conv3x3_with_stats(c1h_planes, w_mat, H, W):
    # Whole-image-plane blocks (fine at these sizes).
    # TODO(synk): for large H*W (or v7x's 64 MiB VMEM) tile H with a 1-row halo.
    N, L, C = c1h_planes.shape
    Co = w_mat.shape[1]
    P = (H + 2) * (W + 2)
    pre, s, q = pl.pallas_call(
        functools.partial(_conv3x3_stats_kernel, H=H, W=W, C=C),
        out_shape=(jax.ShapeDtypeStruct((N, L, Co), jnp.bfloat16),
                   jax.ShapeDtypeStruct((N, 8, Co), jnp.float32),
                   jax.ShapeDtypeStruct((N, 8, Co), jnp.float32)),
        grid=(N,),
        in_specs=[pl.BlockSpec((None, L, C), lambda n: (n, 0, 0)),
                  pl.BlockSpec((9 * C, Co), lambda n: (0, 0))],
        out_specs=(pl.BlockSpec((None, L, Co), lambda n: (n, 0, 0)),
                   pl.BlockSpec((None, 8, Co), lambda n: (n, 0, 0)),
                   pl.BlockSpec((None, 8, Co), lambda n: (n, 0, 0))),
        scratch_shapes=[pltpu.VMEM((P + 8, C), jnp.bfloat16),
                        pltpu.VMEM((L, Co), jnp.float32)],
        compiler_params=pltpu.CompilerParams(dimension_semantics=("parallel",)),
    )(c1h_planes, w_mat)
    return pre, s, q


# --------------------------------------------------------------------------- #
# Stage 4: BN + ReLU + residual add, fully lane-dense ([rows, W*C] layout);
# junk columns of the conv2 output are dropped with a lane slice.
# --------------------------------------------------------------------------- #
def _bn_relu_add_kernel(pre_ref, scale_ref, shift_ref, id_ref, o_ref, *, WC):
    p = pre_ref[:, :WC].astype(jnp.float32)         # drop junk cols: lane slice
    y = jnp.maximum(p * scale_ref[...] + shift_ref[...], 0.0)
    o_ref[...] = y + id_ref[...].astype(jnp.float32)


def bn_relu_add(pre2_ld, scale_ld, shift_ld, ident_ld):
    R, WpC = pre2_ld.shape                          # R = N*H, WpC = (W+2)*C
    WC = ident_ld.shape[1]                          # W*C (lane-dense)
    th = _row_tile(R, bytes_per_row=2 * WpC + 2 * WC + 4 * WC, mult=8)
    out = pl.pallas_call(
        functools.partial(_bn_relu_add_kernel, WC=WC),
        out_shape=jax.ShapeDtypeStruct((R, WC), jnp.float32),
        grid=(R // th,),
        in_specs=[pl.BlockSpec((th, WpC), lambda i: (i, 0)),
                  pl.BlockSpec((1, WC), lambda i: (0, 0)),
                  pl.BlockSpec((1, WC), lambda i: (0, 0)),
                  pl.BlockSpec((th, WC), lambda i: (i, 0))],
        out_specs=pl.BlockSpec((th, WC), lambda i: (i, 0)),
        compiler_params=pltpu.CompilerParams(dimension_semantics=("parallel",)),
    )(pre2_ld, scale_ld, shift_ld, ident_ld)
    return out


# ------------------------------- JAX glue ---------------------------------- #
def _bn_affine(s, sq, count, eps):
    """Training-mode BN with gamma=1, beta=0 -> per-channel scale / shift."""
    mean = s / count
    var = jnp.maximum(sq / count - mean * mean, 0.0)   # clamp the E[x^2]-mean^2 cancellation
    scale = lax.rsqrt(var + eps)
    shift = -mean * scale
    return scale, shift


def skip_upsample_forward(x_nchw, skip_nchw, params, eps=1e-5):
    N, Cin, H, W = x_nchw.shape
    w_up, w_c1, w_c2, w_rs = (params["w_up"], params["w_c1"],
                              params["w_c2"], params["w_rs"])
    Co = w_up.shape[1]
    M = N * H * W

    # Layout glue: cast to bf16 before the NHWC transpose (halves bytes moved);
    # x / skip stay separate — the torch.cat is folded into split weight halves.
    xa = jnp.transpose(x_nchw.astype(jnp.bfloat16), (0, 2, 3, 1)).reshape(M, Cin)
    sa = jnp.transpose(skip_nchw.astype(jnp.bfloat16), (0, 2, 3, 1)).reshape(M, Cin)

    # Fold ConvTranspose2d(k=1, s=2) with the Residual's stride-2 convs: both only
    # read the non-zero (even) taps of the dilated tensor, and those hit a single
    # kernel position, so
    #   conv1(u)   == y @ Wc1[:, :, 1, 1].T      rescale(u) == y @ Wrs[:, :, 0, 0].T
    # with y = cat(x, skip) @ W_up.  One folded [2Cin, 2Co] matrix, split per input.
    w_up_m = w_up[:, :, 0, 0].astype(jnp.float32)                   # [2Cin, Co]
    w1 = w_up_m @ w_c1[:, :, 1, 1].astype(jnp.float32).T
    wr = w_up_m @ w_rs[:, :, 0, 0].astype(jnp.float32).T
    w1r = jnp.concatenate([w1, wr], axis=1)                         # [2Cin, 2Co]
    wx = w1r[:Cin].astype(jnp.bfloat16)
    ws = w1r[Cin:].astype(jnp.bfloat16)

    # Stage 1: folded matmul + per-block BN batch stats.
    pre1, s1b, q1b = matmul_with_stats(xa, sa, wx, ws)
    s1 = jnp.sum(s1b[:, 0, :], axis=0)
    q1 = jnp.sum(q1b[:, 0, :], axis=0)
    scale1, shift1 = _bn_affine(s1, q1, float(M), eps)              # [2Co]

    # Stage 2: BN + ReLU, split into conv2 operand (with horizontal halo) + identity.
    c1h, ident = bn_relu_split(pre1.reshape(N * H, W, 2 * Co), scale1, shift1, Co)

    # Stage 3: conv2 3x3 s=1 p=1 per image plane, fused BN stats.
    w2 = jnp.transpose(w_c2, (2, 3, 1, 0)).reshape(9 * Co, Co).astype(jnp.bfloat16)
    pre2, s2b, q2b = conv3x3_with_stats(c1h.reshape(N, H * (W + 2), Co), w2, H, W)
    s2 = jnp.sum(s2b[:, 0, :], axis=0)
    q2 = jnp.sum(q2b[:, 0, :], axis=0)
    scale2, shift2 = _bn_affine(s2, q2, float(M), eps)              # [Co]

    # Stage 4: BN + ReLU + residual add (lane-dense in/out, junk cols lane-sliced away).
    out_ld = bn_relu_add(pre2.reshape(N * H, (W + 2) * Co),
                         jnp.tile(scale2, W).reshape(1, W * Co),
                         jnp.tile(shift2, W).reshape(1, W * Co),
                         ident.reshape(N * H, W * Co))

    return jnp.transpose(out_ld.reshape(N, H, W, Co), (0, 3, 1, 2))  # NCHW


def init_params(key, cin, cout):
    k1, k2, k3, k4 = jax.random.split(key, 4)

    def norm(k, shape, fan_in):
        return jax.random.normal(k, shape, jnp.float32) * (2.0 / fan_in) ** 0.5

    return {
        # ConvTranspose2d(2*cin, cout, 1, 2) weight: [in, out, kH, kW]
        "w_up": norm(k1, (2 * cin, cout, 1, 1), 2 * cin),
        "w_c1": norm(k2, (cout, cout, 3, 3), cout * 9),   # conv1 3x3 s=2 p=1
        "w_c2": norm(k3, (cout, cout, 3, 3), cout * 9),   # conv2 3x3 s=1 p=1
        # TODO(synk): the reference `ConvINReLU(in, out, 1, stride)` omits the
        # required `padding` positional arg (would raise in PyTorch); padding=0
        # assumed for the rescale branch.
        "w_rs": norm(k4, (cout, cout, 1, 1), cout),       # rescale 1x1 s=2
    }


if __name__ == "__main__":
    key = jax.random.PRNGKey(0)
    kp, kx, ks = jax.random.split(key, 3)

    # in_channels == out_channels is required for the reference Residual block to
    # type-check; stride=2 is fixed by the module.
    N, C, H, W = 2, 8, 16, 16
    params = init_params(kp, C, C)
    x = jax.random.normal(kx, (N, C, H, W), jnp.float32)
    skip = jax.random.normal(ks, (N, C, H, W), jnp.float32)

    fwd = jax.jit(skip_upsample_forward)
    out = jax.block_until_ready(fwd(x, skip, params))

    assert out.shape == (N, C, H, W), out.shape
    assert bool(jnp.all(jnp.isfinite(out)))
    print("KERNEL_OK")
</pallas_src>

<mosaic_0001>
module attributes {stable_mosaic.version = 11 : i64} {
  func.func @_matmul_stats_kernel(%arg0: i32, %arg1: memref<512x8xbf16, #tpu.memory_space<vmem>>, %arg2: memref<512x8xbf16, #tpu.memory_space<vmem>>, %arg3: memref<8x16xbf16, #tpu.memory_space<vmem>>, %arg4: memref<8x16xbf16, #tpu.memory_space<vmem>>, %arg5: memref<512x16xbf16, #tpu.memory_space<vmem>>, %arg6: memref<1x8x16xf32, #tpu.memory_space<vmem>>, %arg7: memref<1x8x16xf32, #tpu.memory_space<vmem>>) attributes {dimension_semantics = [#tpu.dimension_semantics<parallel>], iteration_bounds = array<i64: 1>, scalar_prefetch = 0 : i64, scratch_operands = 0 : i64, tpu.core_type = #tpu.core_type<tc>, window_params = [{transform_indices = @transform_0, window_bounds = array<i64: 512, 8>}, {transform_indices = @transform_1, window_bounds = array<i64: 512, 8>}, {pipeline_mode = #tpu.pipeline_mode<synchronous>, transform_indices = @transform_2, window_bounds = array<i64: 8, 16>}, {pipeline_mode = #tpu.pipeline_mode<synchronous>, transform_indices = @transform_3, window_bounds = array<i64: 8, 16>}, {transform_indices = @transform_4, window_bounds = array<i64: 512, 16>}, {transform_indices = @transform_5, window_bounds = array<i64: 1, 8, 16>}, {transform_indices = @transform_6, window_bounds = array<i64: 1, 8, 16>}]} {
    %c0 = arith.constant 0 : index
    %c0_0 = arith.constant 0 : index
    %0 = vector.load %arg1[%c0, %c0_0] : memref<512x8xbf16, #tpu.memory_space<vmem>>, vector<512x8xbf16>
    %c0_1 = arith.constant 0 : index
    %c0_2 = arith.constant 0 : index
    %1 = vector.load %arg3[%c0_1, %c0_2] : memref<8x16xbf16, #tpu.memory_space<vmem>>, vector<8x16xbf16>
    %cst = arith.constant dense<0.000000e+00> : vector<512x16xf32>
    %2 = tpu.matmul %0, %1, %cst {dimension_numbers = #tpu.dot_dimension_numbers<[1], [0], [0], [1], [0, 0, 1, 1], [], []>} : vector<512x8xbf16>, vector<8x16xbf16>, vector<512x16xf32> -> vector<512x16xf32>
    %c0_3 = arith.constant 0 : index
    %c0_4 = arith.constant 0 : index
    %3 = vector.load %arg2[%c0_3, %c0_4] : memref<512x8xbf16, #tpu.memory_space<vmem>>, vector<512x8xbf16>
    %c0_5 = arith.constant 0 : index
    %c0_6 = arith.constant 0 : index
    %4 = vector.load %arg4[%c0_5, %c0_6] : memref<8x16xbf16, #tpu.memory_space<vmem>>, vector<8x16xbf16>
    %cst_7 = arith.constant dense<0.000000e+00> : vector<512x16xf32>
    %5 = tpu.matmul %3, %4, %cst_7 {dimension_numbers = #tpu.dot_dimension_numbers<[1], [0], [0], [1], [0, 0, 1, 1], [], []>} : vector<512x8xbf16>, vector<8x16xbf16>, vector<512x16xf32> -> vector<512x16xf32>
    %6 = arith.addf %2, %5 : vector<512x16xf32>
    %7 = arith.truncf %6 : vector<512x16xf32> to vector<512x16xbf16>
    %c0_8 = arith.constant 0 : index
    %c0_9 = arith.constant 0 : index
    %8 = vector.load %arg5[%c0_8, %c0_9] : memref<512x16xbf16, #tpu.memory_space<vmem>>, vector<512x16xbf16>
    tpu.vector_store %arg5[%c0_8, %c0_9], %7 {strides = array<i32>} : memref<512x16xbf16, #tpu.memory_space<vmem>>, vector<512x16xbf16>,
    %cst_10 = arith.constant dense<0.000000e+00> : vector<16xf32>
    %9 = vector.multi_reduction <add>, %6, %cst_10 [0] : vector<512x16xf32> to vector<16xf32>
    %10 = vector.shape_cast %9 : vector<16xf32> to vector<1x16xf32>
    %11 = arith.mulf %6, %6 : vector<512x16xf32>
    %cst_11 = arith.constant dense<0.000000e+00> : vector<16xf32>
    %12 = vector.multi_reduction <add>, %11, %cst_11 [0] : vector<512x16xf32> to vector<16xf32>
    %13 = vector.shape_cast %12 : vector<16xf32> to vector<1x16xf32>
    %14 = vector.shape_cast %10 : vector<1x16xf32> to vector<1x16xf32>
    %15 = vector.broadcast %14 : vector<1x16xf32> to vector<8x16xf32>
    %c0_12 = arith.constant 0 : index
    %c0_13 = arith.constant 0 : index
    %c0_14 = arith.constant 0 : index
    %16 = vector.load %arg6[%c0_12, %c0_13, %c0_14] : memref<1x8x16xf32, #tpu.memory_space<vmem>>, vector<1x8x16xf32>
    %17 = vector.shape_cast %16 : vector<1x8x16xf32> to vector<8x16xf32>
    %18 = vector.shape_cast %15 : vector<8x16xf32> to vector<1x8x16xf32>
    tpu.vector_store %arg6[%c0_12, %c0_13, %c0_14], %18 {strides = array<i32>} : memref<1x8x16xf32, #tpu.memory_space<vmem>>, vector<1x8x16xf32>,
    %19 = vector.shape_cast %13 : vector<1x16xf32> to vector<1x16xf32>
    %20 = vector.broadcast %19 : vector<1x16xf32> to vector<8x16xf32>
    %c0_15 = arith.constant 0 : index
    %c0_16 = arith.constant 0 : index
    %c0_17 = arith.constant 0 : index
    %21 = vector.load %arg7[%c0_15, %c0_16, %c0_17] : memref<1x8x16xf32, #tpu.memory_space<vmem>>, vector<1x8x16xf32>
    %22 = vector.shape_cast %21 : vector<1x8x16xf32> to vector<8x16xf32>
    %23 = vector.shape_cast %20 : vector<8x16xf32> to vector<1x8x16xf32>
    tpu.vector_store %arg7[%c0_15, %c0_16, %c0_17], %23 {strides = array<i32>} : memref<1x8x16xf32, #tpu.memory_space<vmem>>, vector<1x8x16xf32>,
    return
  }
  func.func @transform_0(%arg0: i32) -> (i32, i32) {
    %c0_i32 = arith.constant 0 : i32
    %c0_i32_0 = arith.constant 0 : i32
    return %arg0, %c0_i32 : i32, i32
  }
  func.func @transform_1(%arg0: i32) -> (i32, i32) {
    %c0_i32 = arith.constant 0 : i32
    %c0_i32_0 = arith.constant 0 : i32
    return %arg0, %c0_i32 : i32, i32
  }
  func.func @transform_2(%arg0: i32) -> (i32, i32) {
    %c0_i32 = arith.constant 0 : i32
    %c0_i32_0 = arith.constant 0 : i32
    %c0_i32_1 = arith.constant 0 : i32
    return %c0_i32, %c0_i32_0 : i32, i32
  }
  func.func @transform_3(%arg0: i32) -> (i32, i32) {
    %c0_i32 = arith.constant 0 : i32
    %c0_i32_0 = arith.constant 0 : i32
    %c0_i32_1 = arith.constant 0 : i32
    return %c0_i32, %c0_i32_0 : i32, i32
  }
  func.func @transform_4(%arg0: i32) -> (i32, i32) {
    %c0_i32 = arith.constant 0 : i32
    %c0_i32_0 = arith.constant 0 : i32
    return %arg0, %c0_i32 : i32, i32
  }
  func.func @transform_5(%arg0: i32) -> (i32, i32, i32) {
    %c0_i32 = arith.constant 0 : i32
    %c0_i32_0 = arith.constant 0 : i32
    %c0_i32_1 = arith.constant 0 : i32
    return %arg0, %c0_i32, %c0_i32_0 : i32, i32, i32
  }
  func.func @transform_6(%arg0: i32) -> (i32, i32, i32) {
    %c0_i32 = arith.constant 0 : i32
    %c0_i32_0 = arith.constant 0 : i32
    %c0_i32_1 = arith.constant 0 : i32
    return %arg0, %c0_i32, %c0_i32_0 : i32, i32, i32
  }
}

module attributes {stable_mosaic.version = 11 : i64} {
  func.func @_bn_relu_split_kernel(%arg0: i32, %arg1: memref<32x16x16xbf16, #tpu.memory_space<vmem>>, %arg2: memref<1x1x16xf32, #tpu.memory_space<vmem>>, %arg3: memref<1x1x16xf32, #tpu.memory_space<vmem>>, %arg4: memref<32x18x8xbf16, #tpu.memory_space<vmem>>, %arg5: memref<32x16x8xbf16, #tpu.memory_space<vmem>>) attributes {dimension_semantics = [#tpu.dimension_semantics<parallel>], iteration_bounds = array<i64: 1>, scalar_prefetch = 0 : i64, scratch_operands = 0 : i64, tpu.core_type = #tpu.core_type<tc>, window_params = [{transform_indices = @transform_0, window_bounds = array<i64: 32, 16, 16>}, {pipeline_mode = #tpu.pipeline_mode<synchronous>, transform_indices = @transform_1, window_bounds = array<i64: 1, 1, 16>}, {pipeline_mode = #tpu.pipeline_mode<synchronous>, transform_indices = @transform_2, window_bounds = array<i64: 1, 1, 16>}, {transform_indices = @transform_3, window_bounds = array<i64: 32, 18, 8>}, {transform_indices = @transform_4, window_bounds = array<i64: 32, 16, 8>}]} {
    %c0 = arith.constant 0 : index
    %c0_0 = arith.constant 0 : index
    %c0_1 = arith.constant 0 : index
    %0 = vector.load %arg1[%c0, %c0_0, %c0_1] : memref<32x16x16xbf16, #tpu.memory_space<vmem>>, vector<32x16x16xbf16>
    %1 = arith.extf %0 : vector<32x16x16xbf16> to vector<32x16x16xf32>
    %c0_2 = arith.constant 0 : index
    %c0_3 = arith.constant 0 : index
    %c0_4 = arith.constant 0 : index
    %2 = vector.load %arg2[%c0_2, %c0_3, %c0_4] : memref<1x1x16xf32, #tpu.memory_space<vmem>>, vector<1x1x16xf32>
    %3 = vector.broadcast %2 : vector<1x1x16xf32> to vector<32x16x16xf32>
    %4 = arith.mulf %1, %3 : vector<32x16x16xf32>
    %c0_5 = arith.constant 0 : index
    %c0_6 = arith.constant 0 : index
    %c0_7 = arith.constant 0 : index
    %5 = vector.load %arg3[%c0_5, %c0_6, %c0_7] : memref<1x1x16xf32, #tpu.memory_space<vmem>>, vector<1x1x16xf32>
    %6 = vector.broadcast %5 : vector<1x1x16xf32> to vector<32x16x16xf32>
    %7 = arith.addf %4, %6 : vector<32x16x16xf32>
    %cst = arith.constant 0.000000e+00 : f32
    %8 = vector.broadcast %cst : f32 to vector<32x16x16xf32>
    %9 = arith.maximumf %7, %8 : vector<32x16x16xf32>
    %cst_8 = arith.constant 0.000000e+00 : bf16
    %10 = vector.broadcast %cst_8 : bf16 to vector<32x1x8xbf16>
    %c0_9 = arith.constant 0 : index
    %c0_10 = arith.constant 0 : index
    %c0_11 = arith.constant 0 : index
    %11 = vector.load %arg4[%c0_9, %c0_10, %c0_11] : memref<32x18x8xbf16, #tpu.memory_space<vmem>>, vector<32x1x8xbf16>
    tpu.vector_store %arg4[%c0_9, %c0_10, %c0_11], %10 {strides = array<i32>} : memref<32x18x8xbf16, #tpu.memory_space<vmem>>, vector<32x1x8xbf16>,
    %12 = vector.extract_strided_slice %9 {offsets = [0, 0, 0], sizes = [32, 16, 8], strides = [1, 1, 1]} : vector<32x16x16xf32> to vector<32x16x8xf32>
    %13 = arith.truncf %12 : vector<32x16x8xf32> to vector<32x16x8xbf16>
    %c0_12 = arith.constant 0 : index
    %c1 = arith.constant 1 : index
    %c0_13 = arith.constant 0 : index
    %14 = vector.load %arg4[%c0_12, %c1, %c0_13] : memref<32x18x8xbf16, #tpu.memory_space<vmem>>, vector<32x16x8xbf16>
    tpu.vector_store %arg4[%c0_12, %c1, %c0_13], %13 {strides = array<i32>} : memref<32x18x8xbf16, #tpu.memory_space<vmem>>, vector<32x16x8xbf16>,
    %c0_14 = arith.constant 0 : index
    %c17 = arith.constant 17 : index
    %c0_15 = arith.constant 0 : index
    %15 = vector.load %arg4[%c0_14, %c17, %c0_15] : memref<32x18x8xbf16, #tpu.memory_space<vmem>>, vector<32x1x8xbf16>
    tpu.vector_store %arg4[%c0_14, %c17, %c0_15], %10 {strides = array<i32>} : memref<32x18x8xbf16, #tpu.memory_space<vmem>>, vector<32x1x8xbf16>,
    %16 = vector.extract_strided_slice %9 {offsets = [0, 0, 8], sizes = [32, 16, 8], strides = [1, 1, 1]} : vector<32x16x16xf32> to vector<32x16x8xf32>
    %17 = arith.truncf %16 : vector<32x16x8xf32> to vector<32x16x8xbf16>
    %c0_16 = arith.constant 0 : index
    %c0_17 = arith.constant 0 : index
    %c0_18 = arith.constant 0 : index
    %18 = vector.load %arg5[%c0_16, %c0_17, %c0_18] : memref<32x16x8xbf16, #tpu.memory_space<vmem>>, vector<32x16x8xbf16>
    tpu.vector_store %arg5[%c0_16, %c0_17, %c0_18], %17 {strides = array<i32>} : memref<32x16x8xbf16, #tpu.memory_space<vmem>>, vector<32x16x8xbf16>,
    return
  }
  func.func @transform_0(%arg0: i32) -> (i32, i32, i32) {
    %c0_i32 = arith.constant 0 : i32
    %c0_i32_0 = arith.constant 0 : i32
    %c0_i32_1 = arith.constant 0 : i32
    return %arg0, %c0_i32, %c0_i32_0 : i32, i32, i32
  }
  func.func @transform_1(%arg0: i32) -> (i32, i32, i32) {
    %c0_i32 = arith.constant 0 : i32
    %c0_i32_0 = arith.constant 0 : i32
    %c0_i32_1 = arith.constant 0 : i32
    %c0_i32_2 = arith.constant 0 : i32
    return %c0_i32, %c0_i32_0, %c0_i32_1 : i32, i32, i32
  }
  func.func @transform_2(%arg0: i32) -> (i32, i32, i32) {
    %c0_i32 = arith.constant 0 : i32
    %c0_i32_0 = arith.constant 0 : i32
    %c0_i32_1 = arith.constant 0 : i32
    %c0_i32_2 = arith.constant 0 : i32
    return %c0_i32, %c0_i32_0, %c0_i32_1 : i32, i32, i32
  }
  func.func @transform_3(%arg0: i32) -> (i32, i32, i32) {
    %c0_i32 = arith.constant 0 : i32
    %c0_i32_0 = arith.constant 0 : i32
    %c0_i32_1 = arith.constant 0 : i32
    return %arg0, %c0_i32, %c0_i32_0 : i32, i32, i32
  }
  func.func @transform_4(%arg0: i32) -> (i32, i32, i32) {
    %c0_i32 = arith.constant 0 : i32
    %c0_i32_0 = arith.constant 0 : i32
    %c0_i32_1 = arith.constant 0 : i32
    return %arg0, %c0_i32, %c0_i32_0 : i32, i32, i32
  }
}

module attributes {stable_mosaic.version = 11 : i64} {
  func.func @_conv3x3_stats_kernel(%arg0: i32, %arg1: memref<1x288x8xbf16, #tpu.memory_space<vmem>>, %arg2: memref<72x8xbf16, #tpu.memory_space<vmem>>, %arg3: memref<1x288x8xbf16, #tpu.memory_space<vmem>>, %arg4: memref<1x8x8xf32, #tpu.memory_space<vmem>>, %arg5: memref<1x8x8xf32, #tpu.memory_space<vmem>>, %arg6: memref<332x8xbf16, #tpu.memory_space<vmem>>, %arg7: memref<288x8xf32, #tpu.memory_space<vmem>>) attributes {dimension_semantics = [#tpu.dimension_semantics<parallel>], iteration_bounds = array<i64: 2>, scalar_prefetch = 0 : i64, scratch_operands = 2 : i64, tpu.core_type = #tpu.core_type<tc>, window_params = [{transform_indices = @transform_0, window_bounds = array<i64: 1, 288, 8>}, {pipeline_mode = #tpu.pipeline_mode<synchronous>, transform_indices = @transform_1, window_bounds = array<i64: 72, 8>}, {transform_indices = @transform_2, window_bounds = array<i64: 1, 288, 8>}, {transform_indices = @transform_3, window_bounds = array<i64: 1, 8, 8>}, {transform_indices = @transform_4, window_bounds = array<i64: 1, 8, 8>}]} {
    %cst = arith.constant 0.000000e+00 : bf16
    %0 = vector.broadcast %cst : bf16 to vector<18x8xbf16>
    %c0 = arith.constant 0 : index
    %c0_0 = arith.constant 0 : index
    %1 = vector.load %arg6[%c0, %c0_0] : memref<332x8xbf16, #tpu.memory_space<vmem>>, vector<18x8xbf16>
    tpu.vector_store %arg6[%c0, %c0_0], %0 {strides = array<i32>} : memref<332x8xbf16, #tpu.memory_space<vmem>>, vector<18x8xbf16>,
    %cst_1 = arith.constant 0.000000e+00 : bf16
    %2 = vector.broadcast %cst_1 : bf16 to vector<26x8xbf16>
    %c306 = arith.constant 306 : index
    %c0_2 = arith.constant 0 : index
    %3 = vector.load %arg6[%c306, %c0_2] : memref<332x8xbf16, #tpu.memory_space<vmem>>, vector<26x8xbf16>
    tpu.vector_store %arg6[%c306, %c0_2], %2 {strides = array<i32>} : memref<332x8xbf16, #tpu.memory_space<vmem>>, vector<26x8xbf16>,
    %c0_3 = arith.constant 0 : index
    %c0_4 = arith.constant 0 : index
    %c0_5 = arith.constant 0 : index
    %4 = vector.load %arg1[%c0_3, %c0_4, %c0_5] : memref<1x288x8xbf16, #tpu.memory_space<vmem>>, vector<1x288x8xbf16>
    %5 = vector.shape_cast %4 : vector<1x288x8xbf16> to vector<288x8xbf16>
    %c18 = arith.constant 18 : index
    %c0_6 = arith.constant 0 : index
    %6 = vector.load %arg6[%c18, %c0_6] : memref<332x8xbf16, #tpu.memory_space<vmem>>, vector<288x8xbf16>
    tpu.vector_store %arg6[%c18, %c0_6], %5 {strides = array<i32>} : memref<332x8xbf16, #tpu.memory_space<vmem>>, vector<288x8xbf16>,
    %cst_7 = arith.constant 0.000000e+00 : f32
    %7 = vector.broadcast %cst_7 : f32 to vector<288x8xf32>
    %c0_8 = arith.constant 0 : index
    %c0_9 = arith.constant 0 : index
    %8 = vector.load %arg7[%c0_8, %c0_9] : memref<288x8xf32, #tpu.memory_space<vmem>>, vector<288x8xf32>
    tpu.vector_store %arg7[%c0_8, %c0_9], %7 {strides = array<i32>} : memref<288x8xf32, #tpu.memory_space<vmem>>, vector<288x8xf32>,
    %c0_10 = arith.constant 0 : index
    %c0_11 = arith.constant 0 : index
    %9 = vector.load %arg7[%c0_10, %c0_11] : memref<288x8xf32, #tpu.memory_space<vmem>>, vector<288x8xf32>
    %c0_12 = arith.constant 0 : index
    %c0_13 = arith.constant 0 : index
    %10 = vector.load %arg6[%c0_12, %c0_13] : memref<332x8xbf16, #tpu.memory_space<vmem>>, vector<288x8xbf16>
    %c0_14 = arith.constant 0 : index
    %c0_15 = arith.constant 0 : index
    %11 = vector.load %arg2[%c0_14, %c0_15] : memref<72x8xbf16, #tpu.memory_space<vmem>>, vector<8x8xbf16>
    %cst_16 = arith.constant dense<0.000000e+00> : vector<288x8xf32>
    %12 = tpu.matmul %10, %11, %cst_16 {dimension_numbers = #tpu.dot_dimension_numbers<[1], [0], [0], [1], [0, 0, 1, 1], [], []>} : vector<288x8xbf16>, vector<8x8xbf16>, vector<288x8xf32> -> vector<288x8xf32>
    %13 = arith.addf %9, %12 : vector<288x8xf32>
    %c0_17 = arith.constant 0 : index
    %c0_18 = arith.constant 0 : index
    %14 = vector.load %arg7[%c0_17, %c0_18] : memref<288x8xf32, #tpu.memory_space<vmem>>, vector<288x8xf32>
    tpu.vector_store %arg7[%c0_17, %c0_18], %13 {strides = array<i32>} : memref<288x8xf32, #tpu.memory_space<vmem>>, vector<288x8xf32>,
    %c0_19 = arith.constant 0 : index
    %c0_20 = arith.constant 0 : index
    %15 = vector.load %arg7[%c0_19, %c0_20] : memref<288x8xf32, #tpu.memory_space<vmem>>, vector<288x8xf32>
    %c1 = arith.constant 1 : index
    %c0_21 = arith.constant 0 : index
    %16 = vector.load %arg6[%c1, %c0_21] : memref<332x8xbf16, #tpu.memory_space<vmem>>, vector<288x8xbf16>
    %c8 = arith.constant 8 : index
    %c0_22 = arith.constant 0 : index
    %17 = vector.load %arg2[%c8, %c0_22] : memref<72x8xbf16, #tpu.memory_space<vmem>>, vector<8x8xbf16>
    %cst_23 = arith.constant dense<0.000000e+00> : vector<288x8xf32>
    %18 = tpu.matmul %16, %17, %cst_23 {dimension_numbers = #tpu.dot_dimension_numbers<[1], [0], [0], [1], [0, 0, 1, 1], [], []>} : vector<288x8xbf16>, vector<8x8xbf16>, vector<288x8xf32> -> vector<288x8xf32>
    %19 = arith.addf %15, %18 : vector<288x8xf32>
    %c0_24 = arith.constant 0 : index
    %c0_25 = arith.constant 0 : index
    %20 = vector.load %arg7[%c0_24, %c0_25] : memref<288x8xf32, #tpu.memory_space<vmem>>, vector<288x8xf32>
    tpu.vector_store %arg7[%c0_24, %c0_25], %19 {strides = array<i32>} : memref<288x8xf32, #tpu.memory_space<vmem>>, vector<288x8xf32>,
    %c0_26 = arith.constant 0 : index
    %c0_27 = arith.constant 0 : index
    %21 = vector.load %arg7[%c0_26, %c0_27] : memref<288x8xf32, #tpu.memory_space<vmem>>, vector<288x8xf32>
    %c2 = arith.constant 2 : index
    %c0_28 = arith.constant 0 : index
    %22 = vector.load %arg6[%c2, %c0_28] : memref<332x8xbf16, #tpu.memory_space<vmem>>, vector<288x8xbf16>
    %c16 = arith.constant 16 : index
    %c0_29 = arith.constant 0 : index
    %23 = vector.load %arg2[%c16, %c0_29] : memref<72x8xbf16, #tpu.memory_space<vmem>>, vector<8x8xbf16>
    %cst_30 = arith.constant dense<0.000000e+00> : vector<288x8xf32>
    %24 = tpu.matmul %22, %23, %cst_30 {dimension_numbers = #tpu.dot_dimension_numbers<[1], [0], [0], [1], [0, 0, 1, 1], [], []>} : vector<288x8xbf16>, vector<8x8xbf16>, vector<288x8xf32> -> vector<288x8xf32>
    %25 = arith.addf %21, %24 : vector<288x8xf32>
    %c0_31 = arith.constant 0 : index
    %c0_32 = arith.constant 0 : index
    %26 = vector.load %arg7[%c0_31, %c0_32] : memref<288x8xf32, #tpu.memory_space<vmem>>, vector<288x8xf32>
    tpu.vector_store %arg7[%c0_31, %c0_32], %25 {strides = array<i32>} : memref<288x8xf32, #tpu.memory_space<vmem>>, vector<288x8xf32>,
    %c0_33 = arith.constant 0 : index
    %c0_34 = arith.constant 0 : index
    %27 = vector.load %arg7[%c0_33, %c0_34] : memref<288x8xf32, #tpu.memory_space<vmem>>, vector<288x8xf32>
    %c18_35 = arith.constant 18 : index
    %c0_36 = arith.constant 0 : index
    %28 = vector.load %arg6[%c18_35, %c0_36] : memref<332x8xbf16, #tpu.memory_space<vmem>>, vector<288x8xbf16>
    %c24 = arith.constant 24 : index
    %c0_37 = arith.constant 0 : index
    %29 = vector.load %arg2[%c24, %c0_37] : memref<72x8xbf16, #tpu.memory_space<vmem>>, vector<8x8xbf16>
    %cst_38 = arith.constant dense<0.000000e+00> : vector<288x8xf32>
    %30 = tpu.matmul %28, %29, %cst_38 {dimension_numbers = #tpu.dot_dimension_numbers<[1], [0], [0], [1], [0, 0, 1, 1], [], []>} : vector<288x8xbf16>, vector<8x8xbf16>, vector<288x8xf32> -> vector<288x8xf32>
    %31 = arith.addf %27, %30 : vector<288x8xf32>
    %c0_39 = arith.constant 0 : index
    %c0_40 = arith.constant 0 : index
    %32 = vector.load %arg7[%c0_39, %c0_40] : memref<288x8xf32, #tpu.memory_space<vmem>>, vector<288x8xf32>
    tpu.vector_store %arg7[%c0_39, %c0_40], %31 {strides = array<i32>} : memref<288x8xf32, #tpu.memory_space<vmem>>, vector<288x8xf32>,
    %c0_41 = arith.constant 0 : index
    %c0_42 = arith.constant 0 : index
    %33 = vector.load %arg7[%c0_41, %c0_42] : memref<288x8xf32, #tpu.memory_space<vmem>>, vector<288x8xf32>
    %c19 = arith.constant 19 : index
    %c0_43 = arith.constant 0 : index
    %34 = vector.load %arg6[%c19, %c0_43] : memref<332x8xbf16, #tpu.memory_space<vmem>>, vector<288x8xbf16>
    %c32 = arith.constant 32 : index
    %c0_44 = arith.constant 0 : index
    %35 = vector.load %arg2[%c32, %c0_44] : memref<72x8xbf16, #tpu.memory_space<vmem>>, vector<8x8xbf16>
    %cst_45 = arith.constant dense<0.000000e+00> : vector<288x8xf32>
    %36 = tpu.matmul %34, %35, %cst_45 {dimension_numbers = #tpu.dot_dimension_numbers<[1], [0], [0], [1], [0, 0, 1, 1], [], []>} : vector<288x8xbf16>, vector<8x8xbf16>, vector<288x8xf32> -> vector<288x8xf32>
    %37 = arith.addf %33, %36 : vector<288x8xf32>
    %c0_46 = arith.constant 0 : index
    %c0_47 = arith.constant 0 : index
    %38 = vector.load %arg7[%c0_46, %c0_47] : memref<288x8xf32, #tpu.memory_space<vmem>>, vector<288x8xf32>
    tpu.vector_store %arg7[%c0_46, %c0_47], %37 {strides = array<i32>} : memref<288x8xf32, #tpu.memory_space<vmem>>, vector<288x8xf32>,
    %c0_48 = arith.constant 0 : index
    %c0_49 = arith.constant 0 : index
    %39 = vector.load %arg7[%c0_48, %c0_49] : memref<288x8xf32, #tpu.memory_space<vmem>>, vector<288x8xf32>
    %c20 = arith.constant 20 : index
    %c0_50 = arith.constant 0 : index
    %40 = vector.load %arg6[%c20, %c0_50] : memref<332x8xbf16, #tpu.memory_space<vmem>>, vector<288x8xbf16>
    %c40 = arith.constant 40 : index
    %c0_51 = arith.constant 0 : index
    %41 = vector.load %arg2[%c40, %c0_51] : memref<72x8xbf16, #tpu.memory_space<vmem>>, vector<8x8xbf16>
    %cst_52 = arith.constant dense<0.000000e+00> : vector<288x8xf32>
    %42 = tpu.matmul %40, %41, %cst_52 {dimension_numbers = #tpu.dot_dimension_numbers<[1], [0], [0], [1], [0, 0, 1, 1], [], []>} : vector<288x8xbf16>, vector<8x8xbf16>, vector<288x8xf32> -> vector<288x8xf32>
    %43 = arith.addf %39, %42 : vector<288x8xf32>
    %c0_53 = arith.constant 0 : index
    %c0_54 = arith.constant 0 : index
    %44 = vector.load %arg7[%c0_53, %c0_54] : memref<288x8xf32, #tpu.memory_space<vmem>>, vector<288x8xf32>
    tpu.vector_store %arg7[%c0_53, %c0_54], %43 {strides = array<i32>} : memref<288x8xf32, #tpu.memory_space<vmem>>, vector<288x8xf32>,
    %c0_55 = arith.constant 0 : index
    %c0_56 = arith.constant 0 : index
    %45 = vector.load %arg7[%c0_55, %c0_56] : memref<288x8xf32, #tpu.memory_space<vmem>>, vector<288x8xf32>
    %c36 = arith.constant 36 : index
    %c0_57 = arith.constant 0 : index
    %46 = vector.load %arg6[%c36, %c0_57] : memref<332x8xbf16, #tpu.memory_space<vmem>>, vector<288x8xbf16>
    %c48 = arith.constant 48 : index
    %c0_58 = arith.constant 0 : index
    %47 = vector.load %arg2[%c48, %c0_58] : memref<72x8xbf16, #tpu.memory_space<vmem>>, vector<8x8xbf16>
    %cst_59 = arith.constant dense<0.000000e+00> : vector<288x8xf32>
    %48 = tpu.matmul %46, %47, %cst_59 {dimension_numbers = #tpu.dot_dimension_numbers<[1], [0], [0], [1], [0, 0, 1, 1], [], []>} : vector<288x8xbf16>, vector<8x8xbf16>, vector<288x8xf32> -> vector<288x8xf32>
    %49 = arith.addf %45, %48 : vector<288x8xf32>
    %c0_60 = arith.constant 0 : index
    %c0_61 = arith.constant 0 : index
    %50 = vector.load %arg7[%c0_60, %c0_61] : memref<288x8xf32, #tpu.memory_space<vmem>>, vector<288x8xf32>
    tpu.vector_store %arg7[%c0_60, %c0_61], %49 {strides = array<i32>} : memref<288x8xf32, #tpu.memory_space<vmem>>, vector<288x8xf32>,
    %c0_62 = arith.constant 0 : index
    %c0_63 = arith.constant 0 : index
    %51 = vector.load %arg7[%c0_62, %c0_63] : memref<288x8xf32, #tpu.memory_space<vmem>>, vector<288x8xf32>
    %c37 = arith.constant 37 : index
    %c0_64 = arith.constant 0 : index
    %52 = vector.load %arg6[%c37, %c0_64] : memref<332x8xbf16, #tpu.memory_space<vmem>>, vector<288x8xbf16>
    %c56 = arith.constant 56 : index
    %c0_65 = arith.constant 0 : index
    %53 = vector.load %arg2[%c56, %c0_65] : memref<72x8xbf16, #tpu.memory_space<vmem>>, vector<8x8xbf16>
    %cst_66 = arith.constant dense<0.000000e+00> : vector<288x8xf32>
    %54 = tpu.matmul %52, %53, %cst_66 {dimension_numbers = #tpu.dot_dimension_numbers<[1], [0], [0], [1], [0, 0, 1, 1], [], []>} : vector<288x8xbf16>, vector<8x8xbf16>, vector<288x8xf32> -> vector<288x8xf32>
    %55 = arith.addf %51, %54 : vector<288x8xf32>
    %c0_67 = arith.constant 0 : index
    %c0_68 = arith.constant 0 : index
    %56 = vector.load %arg7[%c0_67, %c0_68] : memref<288x8xf32, #tpu.memory_space<vmem>>, vector<288x8xf32>
    tpu.vector_store %arg7[%c0_67, %c0_68], %55 {strides = array<i32>} : memref<288x8xf32, #tpu.memory_space<vmem>>, vector<288x8xf32>,
    %c0_69 = arith.constant 0 : index
    %c0_70 = arith.constant 0 : index
    %57 = vector.load %arg7[%c0_69, %c0_70] : memref<288x8xf32, #tpu.memory_space<vmem>>, vector<288x8xf32>
    %c38 = arith.constant 38 : index
    %c0_71 = arith.constant 0 : index
    %58 = vector.load %arg6[%c38, %c0_71] : memref<332x8xbf16, #tpu.memory_space<vmem>>, vector<288x8xbf16>
    %c64 = arith.constant 64 : index
    %c0_72 = arith.constant 0 : index
    %59 = vector.load %arg2[%c64, %c0_72] : memref<72x8xbf16, #tpu.memory_space<vmem>>, vector<8x8xbf16>
    %cst_73 = arith.constant dense<0.000000e+00> : vector<288x8xf32>
    %60 = tpu.matmul %58, %59, %cst_73 {dimension_numbers = #tpu.dot_dimension_numbers<[1], [0], [0], [1], [0, 0, 1, 1], [], []>} : vector<288x8xbf16>, vector<8x8xbf16>, vector<288x8xf32> -> vector<288x8xf32>
    %61 = arith.addf %57, %60 : vector<288x8xf32>
    %c0_74 = arith.constant 0 : index
    %c0_75 = arith.constant 0 : index
    %62 = vector.load %arg7[%c0_74, %c0_75] : memref<288x8xf32, #tpu.memory_space<vmem>>, vector<288x8xf32>
    tpu.vector_store %arg7[%c0_74, %c0_75], %61 {strides = array<i32>} : memref<288x8xf32, #tpu.memory_space<vmem>>, vector<288x8xf32>,
    %c0_76 = arith.constant 0 : index
    %c0_77 = arith.constant 0 : index
    %63 = vector.load %arg7[%c0_76, %c0_77] : memref<288x8xf32, #tpu.memory_space<vmem>>, vector<288x8xf32>
    %64 = arith.truncf %63 : vector<288x8xf32> to vector<288x8xbf16>
    %c0_78 = arith.constant 0 : index
    %c0_79 = arith.constant 0 : index
    %c0_80 = arith.constant 0 : index
    %65 = vector.load %arg3[%c0_78, %c0_79, %c0_80] : memref<1x288x8xbf16, #tpu.memory_space<vmem>>, vector<1x288x8xbf16>
    %66 = vector.shape_cast %65 : vector<1x288x8xbf16> to vector<288x8xbf16>
    %67 = vector.shape_cast %64 : vector<288x8xbf16> to vector<1x288x8xbf16>
    tpu.vector_store %arg3[%c0_78, %c0_79, %c0_80], %67 {strides = array<i32>} : memref<1x288x8xbf16, #tpu.memory_space<vmem>>, vector<1x288x8xbf16>,
    %68 = tpu.iota {dimensions = array<i32: 0>} : vector<288x8xi32>
    %c18_i32 = arith.constant 18 : i32
    %c0_i32 = arith.constant 0 : i32
    %69 = arith.cmpi eq, %c18_i32, %c0_i32 : i32
    %c1_i32 = arith.constant 1 : i32
    %70 = arith.select %69, %c1_i32, %c18_i32 : i32
    %71 = vector.broadcast %70 : i32 to vector<288x8xi32>
    %72 = arith.remsi %68, %71 : vector<288x8xi32>
    %c0_i32_81 = arith.constant 0 : i32
    %73 = vector.broadcast %c0_i32_81 : i32 to vector<288x8xi32>
    %74 = arith.cmpi ne, %72, %73 : vector<288x8xi32>
    %c0_i32_82 = arith.constant 0 : i32
    %75 = vector.broadcast %c0_i32_82 : i32 to vector<288x8xi32>
    %76 = arith.cmpi slt, %72, %75 : vector<288x8xi32>
    %c0_i32_83 = arith.constant 0 : i32
    %77 = arith.cmpi slt, %70, %c0_i32_83 : i32
    %78 = vector.broadcast %77 : i1 to vector<288x8xi1>
    %79 = vector.broadcast %78 : vector<288x8xi1> to vector<288x8xi1>
    %80 = arith.xori %76, %79 : vector<288x8xi1>
    %81 = arith.andi %80, %74 : vector<288x8xi1>
    %82 = vector.broadcast %70 : i32 to vector<288x8xi32>
    %83 = arith.addi %72, %82 : vector<288x8xi32>
    %84 = arith.select %81, %83, %72 : vector<288x8xi1>, vector<288x8xi32>
    %c16_i32 = arith.constant 16 : i32
    %85 = vector.broadcast %c16_i32 : i32 to vector<288x8xi32>
    %86 = arith.cmpi slt, %84, %85 : vector<288x8xi32>
    %cst_84 = arith.constant 0.000000e+00 : f32
    %87 = vector.broadcast %cst_84 : f32 to vector<288x8xf32>
    %88 = arith.select %86, %63, %87 : vector<288x8xi1>, vector<288x8xf32>
    %cst_85 = arith.constant dense<0.000000e+00> : vector<8xf32>
    %89 = vector.multi_reduction <add>, %88, %cst_85 [0] : vector<288x8xf32> to vector<8xf32>
    %90 = vector.shape_cast %89 : vector<8xf32> to vector<1x8xf32>
    %91 = arith.mulf %88, %88 : vector<288x8xf32>
    %cst_86 = arith.constant dense<0.000000e+00> : vector<8xf32>
    %92 = vector.multi_reduction <add>, %91, %cst_86 [0] : vector<288x8xf32> to vector<8xf32>
    %93 = vector.shape_cast %92 : vector<8xf32> to vector<1x8xf32>
    %94 = vector.shape_cast %90 : vector<1x8xf32> to vector<1x8xf32>
    %95 = vector.broadcast %94 : vector<1x8xf32> to vector<8x8xf32>
    %c0_87 = arith.constant 0 : index
    %c0_88 = arith.constant 0 : index
    %c0_89 = arith.constant 0 : index
    %96 = vector.load %arg4[%c0_87, %c0_88, %c0_89] : memref<1x8x8xf32, #tpu.memory_space<vmem>>, vector<1x8x8xf32>
    %97 = vector.shape_cast %96 : vector<1x8x8xf32> to vector<8x8xf32>
    %98 = vector.shape_cast %95 : vector<8x8xf32> to vector<1x8x8xf32>
    tpu.vector_store %arg4[%c0_87, %c0_88, %c0_89], %98 {strides = array<i32>} : memref<1x8x8xf32, #tpu.memory_space<vmem>>, vector<1x8x8xf32>,
    %99 = vector.shape_cast %93 : vector<1x8xf32> to vector<1x8xf32>
    %100 = vector.broadcast %99 : vector<1x8xf32> to vector<8x8xf32>
    %c0_90 = arith.constant 0 : index
    %c0_91 = arith.constant 0 : index
    %c0_92 = arith.constant 0 : index
    %101 = vector.load %arg5[%c0_90, %c0_91, %c0_92] : memref<1x8x8xf32, #tpu.memory_space<vmem>>, vector<1x8x8xf32>
    %102 = vector.shape_cast %101 : vector<1x8x8xf32> to vector<8x8xf32>
    %103 = vector.shape_cast %100 : vector<8x8xf32> to vector<1x8x8xf32>
    tpu.vector_store %arg5[%c0_90, %c0_91, %c0_92], %103 {strides = array<i32>} : memref<1x8x8xf32, #tpu.memory_space<vmem>>, vector<1x8x8xf32>,
    return
  }
  func.func @transform_0(%arg0: i32) -> (i32, i32, i32) {
    %c0_i32 = arith.constant 0 : i32
    %c0_i32_0 = arith.constant 0 : i32
    %c0_i32_1 = arith.constant 0 : i32
    return %arg0, %c0_i32, %c0_i32_0 : i32, i32, i32
  }
  func.func @transform_1(%arg0: i32) -> (i32, i32) {
    %c0_i32 = arith.constant 0 : i32
    %c0_i32_0 = arith.constant 0 : i32
    %c0_i32_1 = arith.constant 0 : i32
    return %c0_i32, %c0_i32_0 : i32, i32
  }
  func.func @transform_2(%arg0: i32) -> (i32, i32, i32) {
    %c0_i32 = arith.constant 0 : i32
    %c0_i32_0 = arith.constant 0 : i32
    %c0_i32_1 = arith.constant 0 : i32
    return %arg0, %c0_i32, %c0_i32_0 : i32, i32, i32
  }
  func.func @transform_3(%arg0: i32) -> (i32, i32, i32) {
    %c0_i32 = arith.constant 0 : i32
    %c0_i32_0 = arith.constant 0 : i32
    %c0_i32_1 = arith.constant 0 : i32
    return %arg0, %c0_i32, %c0_i32_0 : i32, i32, i32
  }
  func.func @transform_4(%arg0: i32) -> (i32, i32, i32) {
    %c0_i32 = arith.constant 0 : i32
    %c0_i32_0 = arith.constant 0 : i32
    %c0_i32_1 = arith.constant 0 : i32
    return %arg0, %c0_i32, %c0_i32_0 : i32, i32, i32
  }
}

module attributes {stable_mosaic.version = 11 : i64} {
  func.func @_bn_relu_add_kernel(%arg0: i32, %arg1: memref<32x144xbf16, #tpu.memory_space<vmem>>, %arg2: memref<1x128xf32, #tpu.memory_space<vmem>>, %arg3: memref<1x128xf32, #tpu.memory_space<vmem>>, %arg4: memref<32x128xbf16, #tpu.memory_space<vmem>>, %arg5: memref<32x128xf32, #tpu.memory_space<vmem>>) attributes {dimension_semantics = [#tpu.dimension_semantics<parallel>], iteration_bounds = array<i64: 1>, scalar_prefetch = 0 : i64, scratch_operands = 0 : i64, tpu.core_type = #tpu.core_type<tc>, window_params = [{transform_indices = @transform_0, window_bounds = array<i64: 32, 144>}, {pipeline_mode = #tpu.pipeline_mode<synchronous>, transform_indices = @transform_1, window_bounds = array<i64: 1, 128>}, {pipeline_mode = #tpu.pipeline_mode<synchronous>, transform_indices = @transform_2, window_bounds = array<i64: 1, 128>}, {transform_indices = @transform_3, window_bounds = array<i64: 32, 128>}, {transform_indices = @transform_4, window_bounds = array<i64: 32, 128>}]} {
    %c0 = arith.constant 0 : index
    %c0_0 = arith.constant 0 : index
    %0 = vector.load %arg1[%c0, %c0_0] : memref<32x144xbf16, #tpu.memory_space<vmem>>, vector<32x128xbf16>
    %1 = arith.extf %0 : vector<32x128xbf16> to vector<32x128xf32>
    %c0_1 = arith.constant 0 : index
    %c0_2 = arith.constant 0 : index
    %2 = vector.load %arg2[%c0_1, %c0_2] : memref<1x128xf32, #tpu.memory_space<vmem>>, vector<1x128xf32>
    %3 = vector.broadcast %2 : vector<1x128xf32> to vector<32x128xf32>
    %4 = arith.mulf %1, %3 : vector<32x128xf32>
    %c0_3 = arith.constant 0 : index
    %c0_4 = arith.constant 0 : index
    %5 = vector.load %arg3[%c0_3, %c0_4] : memref<1x128xf32, #tpu.memory_space<vmem>>, vector<1x128xf32>
    %6 = vector.broadcast %5 : vector<1x128xf32> to vector<32x128xf32>
    %7 = arith.addf %4, %6 : vector<32x128xf32>
    %cst = arith.constant 0.000000e+00 : f32
    %8 = vector.broadcast %cst : f32 to vector<32x128xf32>
    %9 = arith.maximumf %7, %8 : vector<32x128xf32>
    %c0_5 = arith.constant 0 : index
    %c0_6 = arith.constant 0 : index
    %10 = vector.load %arg4[%c0_5, %c0_6] : memref<32x128xbf16, #tpu.memory_space<vmem>>, vector<32x128xbf16>
    %11 = arith.extf %10 : vector<32x128xbf16> to vector<32x128xf32>
    %12 = arith.addf %9, %11 : vector<32x128xf32>
    %c0_7 = arith.constant 0 : index
    %c0_8 = arith.constant 0 : index
    %13 = vector.load %arg5[%c0_7, %c0_8] : memref<32x128xf32, #tpu.memory_space<vmem>>, vector<32x128xf32>
    tpu.vector_store %arg5[%c0_7, %c0_8], %12 {strides = array<i32>} : memref<32x128xf32, #tpu.memory_space<vmem>>, vector<32x128xf32>,
    return
  }
  func.func @transform_0(%arg0: i32) -> (i32, i32) {
    %c0_i32 = arith.constant 0 : i32
    %c0_i32_0 = arith.constant 0 : i32
    return %arg0, %c0_i32 : i32, i32
  }
  func.func @transform_1(%arg0: i32) -> (i32, i32) {
    %c0_i32 = arith.constant 0 : i32
    %c0_i32_0 = arith.constant 0 : i32
    %c0_i32_1 = arith.constant 0 : i32
    return %c0_i32, %c0_i32_0 : i32, i32
  }
  func.func @transform_2(%arg0: i32) -> (i32, i32) {
    %c0_i32 = arith.constant 0 : i32
    %c0_i32_0 = arith.constant 0 : i32
    %c0_i32_1 = arith.constant 0 : i32
    return %c0_i32, %c0_i32_0 : i32, i32
  }
  func.func @transform_3(%arg0: i32) -> (i32, i32) {
    %c0_i32 = arith.constant 0 : i32
    %c0_i32_0 = arith.constant 0 : i32
    return %arg0, %c0_i32 : i32, i32
  }
  func.func @transform_4(%arg0: i32) -> (i32, i32) {
    %c0_i32 = arith.constant 0 : i32
    %c0_i32_0 = arith.constant 0 : i32
    return %arg0, %c0_i32 : i32, i32
  }
}

</mosaic_0001>

<llo_original>
// kernel: tile.13
$region0: #{tile.13}
  #allocation0 [shape = 's32[1]{0}', space=sflag, size = 0x4, scoped, tag = 'scoped memory for tile.13']
  %s0 = inlined_call_operand.vmem [shape: f32[8], index: 0, kind: input, shape index: {}]
  %s1 = inlined_call_operand.vmem [shape: f32[16,8], index: 1, kind: output, shape index: {}]
  // Predicated region
  $region2: #{tile.13} parent=0 // pred_check
    _
  $region3: #{tile.13} parent=0 // pred_check_branch
    %3 = sbr.rel (0) target = $region5
  $region4: #{tile.13} parent=0 // pred_region
    _
  $region5: #{tile.13} parent=0 // pred_fallthru
    _
  %v4 = vld [vmem:[%s0] ss:$0 sm:$0xff]
  %5 = vst [vmem:[%s1] sm:$0xff] %v4
  %s6 = scalar_lea.vmem %s1, 8
  %7 = vst [vmem:[%s6] sm:$0xff] %v4

// kernel: tile.14
$region0: #{tile.14}
  %s0 = inlined_call_operand.vmem [shape: f32[16,8], index: 0, kind: input, shape index: {}]
  %s1 = inlined_call_operand.vmem [shape: f32[1,128], index: 1, kind: output, shape index: {}]
  $region1: #{tile.14} parent=0
    #allocation0 [shape = 'u8[4096]{0}', space=vmem, size = 0x1000, scoped, tag = 'scoped mem for output reshape']
    %v2 = vld [vmem:[%s0] sm:$0x1]
    %vm3 = vcmask 64512
    %4 = vst.msk [vmem:[#allocation0] sm:$0x1] %vm3, %v2
    %s5 = scalar_lea.vmem %s0, 15
    %v6 = vld [vmem:[%s5] sm:$0x1]
    %7 = vrot.lane.b32.xlu0 %v6, 120
    %v8 = vpop.permute.xlu0 %7
    %vm9 = vcmask 1048512
    %10 = vst.msk [vmem:[#allocation0] sm:$0x1] %vm9, %v8
    %s11 = scalar_lea.vmem %s0, 14
    %v12 = vld [vmem:[%s11] sm:$0x1]
    %13 = vrot.lane.b32.xlu0 %v12, 112
    %v14 = vpop.permute.xlu0 %13
    %vm15 = vcmask 982912
    %16 = vst.msk [vmem:[#allocation0] sm:$0x1] %vm15, %v14
    %s17 = scalar_lea.vmem %s0, 13
    %v18 = vld [vmem:[%s17] sm:$0x1]
    %19 = vrot.lane.b32.xlu0 %v18, 104
    %v20 = vpop.permute.xlu0 %19
    %vm21 = vcmask 917312
    %22 = vst.msk [vmem:[#allocation0] sm:$0x1] %vm21, %v20
    %s23 = scalar_lea.vmem %s0, 12
    %v24 = vld [vmem:[%s23] sm:$0x1]
    %25 = vrot.lane.b32.xlu0 %v24, 96
    %v26 = vpop.permute.xlu0 %25
    %vm27 = vcmask 851712
    %28 = vst.msk [vmem:[#allocation0] sm:$0x1] %vm27, %v26
    %s29 = scalar_lea.vmem %s0, 11
    %v30 = vld [vmem:[%s29] sm:$0x1]
    %31 = vrot.lane.b32.xlu0 %v30, 88
    %v32 = vpop.permute.xlu0 %31
    %vm33 = vcmask 786112
    %34 = vst.msk [vmem:[#allocation0] sm:$0x1] %vm33, %v32
    %s35 = scalar_lea.vmem %s0, 10
    %v36 = vld [vmem:[%s35] sm:$0x1]
    %37 = vrot.lane.b32.xlu0 %v36, 80
    %v38 = vpop.permute.xlu0 %37
    %vm39 = vcmask 720512
    %40 = vst.msk [vmem:[#allocation0] sm:$0x1] %vm39, %v38
    %s41 = scalar_lea.vmem %s0, 9
    %v42 = vld [vmem:[%s41] sm:$0x1]
    %43 = vrot.lane.b32.xlu0 %v42, 72
    %v44 = vpop.permute.xlu0 %43
    %vm45 = vcmask 654912
    %46 = vst.msk [vmem:[#allocation0] sm:$0x1] %vm45, %v44
    %s47 = scalar_lea.vmem %s0, 8
    %v48 = vld [vmem:[%s47] sm:$0x1]
    %49 = vrot.lane.b32.xlu0 %v48, 64
    %v50 = vpop.permute.xlu0 %49
    %vm51 = vcmask 589312
    %52 = vst.msk [vmem:[#allocation0] sm:$0x1] %vm51, %v50
    %s53 = scalar_lea.vmem %s0, 7
    %v54 = vld [vmem:[%s53] sm:$0x1]
    %55 = vrot.lane.b32.xlu0 %v54, 56
    %v56 = vpop.permute.xlu0 %55
    %vm57 = vcmask 523712
    %58 = vst.msk [vmem:[#allocation0] sm:$0x1] %vm57, %v56
    %s59 = scalar_lea.vmem %s0, 6
    %v60 = vld [vmem:[%s59] sm:$0x1]
    %61 = vrot.lane.b32.xlu0 %v60, 48
    %v62 = vpop.permute.xlu0 %61
    %vm63 = vcmask 458112
    %64 = vst.msk [vmem:[#allocation0] sm:$0x1] %vm63, %v62
    %s65 = scalar_lea.vmem %s0, 5
    %v66 = vld [vmem:[%s65] sm:$0x1]
    %67 = vrot.lane.b32.xlu0 %v66, 40
    %v68 = vpop.permute.xlu0 %67
    %vm69 = vcmask 392512
    %70 = vst.msk [vmem:[#allocation0] sm:$0x1] %vm69, %v68
    %s71 = scalar_lea.vmem %s0, 4
    %v72 = vld [vmem:[%s71] sm:$0x1]
    %73 = vrot.lane.b32.xlu0 %v72, 32
    %v74 = vpop.permute.xlu0 %73
    %vm75 = vcmask 326912
    %76 = vst.msk [vmem:[#allocation0] sm:$0x1] %vm75, %v74
    %s77 = scalar_lea.vmem %s0, 3
    %v78 = vld [vmem:[%s77] sm:$0x1]
    %79 = vrot.lane.b32.xlu0 %v78, 24
    %v80 = vpop.permute.xlu0 %79
    %vm81 = vcmask 261312
    %82 = vst.msk [vmem:[#allocation0] sm:$0x1] %vm81, %v80
    %s83 = scalar_lea.vmem %s0, 2
    %v84 = vld [vmem:[%s83] sm:$0x1]
    %85 = vrot.lane.b32.xlu0 %v84, 16
    %v86 = vpop.permute.xlu0 %85
    %vm87 = vcmask 195712
    %88 = vst.msk [vmem:[#allocation0] sm:$0x1] %vm87, %v86
    %s89 = scalar_lea.vmem %s0, 1
    %v90 = vld [vmem:[%s89] sm:$0x1]
    %91 = vrot.lane.b32.xlu0 %v90, 8
    %v92 = vpop.permute.xlu0 %91
    %vm93 = vcmask 130112
    %94 = vst.msk [vmem:[#allocation0] sm:$0x1] %vm93, %v92
    %s96 = sshllo.u32 0, 1
    %v98 = vld [vmem:[#allocation0] sm:%s96]
    %s99 = sshllo.u32 0, 1
    %100 = vst [vmem:[%s1] sm:%s99] %v98

// kernel: skip_upsample_forward.4
$region0: #{skip_upsample_forward.4}
  #allocation0 [shape = 'u32[]', space=smem, size = 0x4, offset = 0x4, fixed_abs, tag = 'smem constant byte address 0x4 - core index']
  #allocation1 [shape = 'u32[144,128]{1,0:T(1,128)}', space=vmem, size = 0x12000, scoped, tag = 'internal scratch']
  %s0 = inlined_call_operand.vmem [shape: bf16[512,8], index: 0, kind: input, shape index: {}]
  %s1 = inlined_call_operand.vmem [shape: bf16[512,8], index: 1, kind: input, shape index: {}]
  %s2 = inlined_call_operand.vmem [shape: bf16[8,16], index: 2, kind: input, shape index: {}]
  %s3 = inlined_call_operand.vmem [shape: bf16[8,16], index: 3, kind: input, shape index: {}]
  %s4 = inlined_call_operand.vmem [shape: bf16[512,16], index: 4, kind: output, shape index: {0}]
  %s5 = inlined_call_operand.vmem [shape: f32[1,8,16], index: 5, kind: output, shape index: {1}]
  %s6 = inlined_call_operand.vmem [shape: f32[1,8,16], index: 6, kind: output, shape index: {2}]
  %7 = xla_tuple %s4, %s5, %s6
  %s8 = sld [smem:[#allocation0]]
  $region42: #{skip_upsample_forward.4} parent=0
    _
  %s10 = ssub.s32 1, %s8
  %s11 = scalar_select 0, %s10, %s8
  // Predicated region
  $region2: #{skip_upsample_forward.4} parent=0 // pred_check
    _
  $region3: #{skip_upsample_forward.4} parent=0 // pred_check_branch
    %13 = sbr.rel (0) target = $region5
  $region4: #{skip_upsample_forward.4} parent=0 // pred_region
    _
  $region5: #{skip_upsample_forward.4} parent=0 // pred_fallthru
    _
  // Predicated region
  $region6: #{skip_upsample_forward.4} parent=0 // pred_check
    _
  $region7: #{skip_upsample_forward.4} parent=0 // pred_check_branch
    %15 = sbr.rel (0) target = $region9
  $region8: #{skip_upsample_forward.4} parent=0 // pred_region
    _
  $region9: #{skip_upsample_forward.4} parent=0 // pred_fallthru
    _
  // Predicated region
  $region10: #{skip_upsample_forward.4} parent=0 // pred_check
    _
  $region11: #{skip_upsample_forward.4} parent=0 // pred_check_branch
    %17 = sbr.rel (0) target = $region13
  $region12: #{skip_upsample_forward.4} parent=0 // pred_region
    _
  $region13: #{skip_upsample_forward.4} parent=0 // pred_fallthru
    _
  // Predicated region
  $region14: #{skip_upsample_forward.4} parent=0 // pred_check
    _
  $region15: #{skip_upsample_forward.4} parent=0 // pred_check_branch
    %19 = sbr.rel (0) target = $region17
  $region16: #{skip_upsample_forward.4} parent=0 // pred_region
    _
  $region17: #{skip_upsample_forward.4} parent=0 // pred_fallthru
    _
  %v21 = vld [vmem:[%s0] sm:$0xf]
  %v22 = vld [vmem:[%s0 + $0x4] sm:$0xf]
  %v23 = vld [vmem:[%s0 + $0x8] sm:$0xf]
  %v24 = vld [vmem:[%s0 + $0xc] sm:$0xf]
  %v25 = vld [vmem:[%s0 + $0x10] sm:$0xf]
  %v26 = vld [vmem:[%s0 + $0x14] sm:$0xf]
  %v27 = vld [vmem:[%s0 + $0x18] sm:$0xf]
  %v28 = vld [vmem:[%s0 + $0x1c] sm:$0xf]
  %v29 = vld [vmem:[%s0 + $0x20] sm:$0xf]
  %v30 = vld [vmem:[%s0 + $0x24] sm:$0xf]
  %v31 = vld [vmem:[%s0 + $0x28] sm:$0xf]
  %v32 = vld [vmem:[%s0 + $0x2c] sm:$0xf]
  %v33 = vld [vmem:[%s0 + $0x30] sm:$0xf]
  %v34 = vld [vmem:[%s0 + $0x34] sm:$0xf]
  %v35 = vld [vmem:[%s0 + $0x38] sm:$0xf]
  %v36 = vld [vmem:[%s0 + $0x3c] sm:$0xf]
  %v37 = vld [vmem:[%s0 + $0x40] sm:$0xf]
  %v38 = vld [vmem:[%s0 + $0x44] sm:$0xf]
  %v39 = vld [vmem:[%s0 + $0x48] sm:$0xf]
  %v40 = vld [vmem:[%s0 + $0x4c] sm:$0xf]
  %v41 = vld [vmem:[%s0 + $0x50] sm:$0xf]
  %v42 = vld [vmem:[%s0 + $0x54] sm:$0xf]
  %v43 = vld [vmem:[%s0 + $0x58] sm:$0xf]
  %v44 = vld [vmem:[%s0 + $0x5c] sm:$0xf]
  %v45 = vld [vmem:[%s0 + $0x60] sm:$0xf]
  %v46 = vld [vmem:[%s0 + $0x64] sm:$0xf]
  %v47 = vld [vmem:[%s0 + $0x68] sm:$0xf]
  %v48 = vld [vmem:[%s0 + $0x6c] sm:$0xf]
  %v49 = vld [vmem:[%s0 + $0x70] sm:$0xf]
  %v50 = vld [vmem:[%s0 + $0x74] sm:$0xf]
  %v51 = vld [vmem:[%s0 + $0x78] sm:$0xf]
  %v52 = vld [vmem:[%s0 + $0x7c] sm:$0xf]
  %v53 = vld [vmem:[%s0 + $0x80] sm:$0xf]
  %v54 = vld [vmem:[%s0 + $0x84] sm:$0xf]
  %v55 = vld [vmem:[%s0 + $0x88] sm:$0xf]
  %v56 = vld [vmem:[%s0 + $0x8c] sm:$0xf]
  %v57 = vld [vmem:[%s0 + $0x90] sm:$0xf]
  %v58 = vld [vmem:[%s0 + $0x94] sm:$0xf]
  %v59 = vld [vmem:[%s0 + $0x98] sm:$0xf]
  %v60 = vld [vmem:[%s0 + $0x9c] sm:$0xf]
  %v61 = vld [vmem:[%s0 + $0xa0] sm:$0xf]
  %v62 = vld [vmem:[%s0 + $0xa4] sm:$0xf]
  %v63 = vld [vmem:[%s0 + $0xa8] sm:$0xf]
  %v64 = vld [vmem:[%s0 + $0xac] sm:$0xf]
  %v65 = vld [vmem:[%s0 + $0xb0] sm:$0xf]
  %v66 = vld [vmem:[%s0 + $0xb4] sm:$0xf]
  %v67 = vld [vmem:[%s0 + $0xb8] sm:$0xf]
  %v68 = vld [vmem:[%s0 + $0xbc] sm:$0xf]
  %v69 = vld [vmem:[%s0 + $0xc0] sm:$0xf]
  %v70 = vld [vmem:[%s0 + $0xc4] sm:$0xf]
  %v71 = vld [vmem:[%s0 + $0xc8] sm:$0xf]
  %v72 = vld [vmem:[%s0 + $0xcc] sm:$0xf]
  %v73 = vld [vmem:[%s0 + $0xd0] sm:$0xf]
  %v74 = vld [vmem:[%s0 + $0xd4] sm:$0xf]
  %v75 = vld [vmem:[%s0 + $0xd8] sm:$0xf]
  %v76 = vld [vmem:[%s0 + $0xdc] sm:$0xf]
  %v77 = vld [vmem:[%s0 + $0xe0] sm:$0xf]
  %v78 = vld [vmem:[%s0 + $0xe4] sm:$0xf]
  %v79 = vld [vmem:[%s0 + $0xe8] sm:$0xf]
  %v80 = vld [vmem:[%s0 + $0xec] sm:$0xf]
  %v81 = vld [vmem:[%s0 + $0xf0] sm:$0xf]
  %v82 = vld [vmem:[%s0 + $0xf4] sm:$0xf]
  %v83 = vld [vmem:[%s0 + $0xf8] sm:$0xf]
  %v84 = vld [vmem:[%s0 + $0xfc] sm:$0xf]
  %v85 = vld [vmem:[%s2] sm:$0xf]
  %v86 = vld [vmem:[%s1] sm:$0xf]
  %v87 = vld [vmem:[%s1 + $0x4] sm:$0xf]
  %v88 = vld [vmem:[%s1 + $0x8] sm:$0xf]
  %v89 = vld [vmem:[%s1 + $0xc] sm:$0xf]
  %v90 = vld [vmem:[%s1 + $0x10] sm:$0xf]
  %v91 = vld [vmem:[%s1 + $0x14] sm:$0xf]
  %v92 = vld [vmem:[%s1 + $0x18] sm:$0xf]
  %v93 = vld [vmem:[%s1 + $0x1c] sm:$0xf]
  %v94 = vld [vmem:[%s1 + $0x20] sm:$0xf]
  %v95 = vld [vmem:[%s1 + $0x24] sm:$0xf]
  %v96 = vld [vmem:[%s1 + $0x28] sm:$0xf]
  %v97 = vld [vmem:[%s1 + $0x2c] sm:$0xf]
  %v98 = vld [vmem:[%s1 + $0x30] sm:$0xf]
  %v99 = vld [vmem:[%s1 + $0x34] sm:$0xf]
  %v100 = vld [vmem:[%s1 + $0x38] sm:$0xf]
  %v101 = vld [vmem:[%s1 + $0x3c] sm:$0xf]
  %v102 = vld [vmem:[%s1 + $0x40] sm:$0xf]
  %v103 = vld [vmem:[%s1 + $0x44] sm:$0xf]
  %v104 = vld [vmem:[%s1 + $0x48] sm:$0xf]
  %v105 = vld [vmem:[%s1 + $0x4c] sm:$0xf]
  %v106 = vld [vmem:[%s1 + $0x50] sm:$0xf]
  %v107 = vld [vmem:[%s1 + $0x54] sm:$0xf]
  %v108 = vld [vmem:[%s1 + $0x58] sm:$0xf]
  %v109 = vld [vmem:[%s1 + $0x5c] sm:$0xf]
  %v110 = vld [vmem:[%s1 + $0x60] sm:$0xf]
  %v111 = vld [vmem:[%s1 + $0x64] sm:$0xf]
  %v112 = vld [vmem:[%s1 + $0x68] sm:$0xf]
  %v113 = vld [vmem:[%s1 + $0x6c] sm:$0xf]
  %v114 = vld [vmem:[%s1 + $0x70] sm:$0xf]
  %v115 = vld [vmem:[%s1 + $0x74] sm:$0xf]
  %v116 = vld [vmem:[%s1 + $0x78] sm:$0xf]
  %v117 = vld [vmem:[%s1 + $0x7c] sm:$0xf]
  %v118 = vld [vmem:[%s1 + $0x80] sm:$0xf]
  %v119 = vld [vmem:[%s1 + $0x84] sm:$0xf]
  %v120 = vld [vmem:[%s1 + $0x88] sm:$0xf]
  %v121 = vld [vmem:[%s1 + $0x8c] sm:$0xf]
  %v122 = vld [vmem:[%s1 + $0x90] sm:$0xf]
  %v123 = vld [vmem:[%s1 + $0x94] sm:$0xf]
  %v124 = vld [vmem:[%s1 + $0x98] sm:$0xf]
  %v125 = vld [vmem:[%s1 + $0x9c] sm:$0xf]
  %v126 = vld [vmem:[%s1 + $0xa0] sm:$0xf]
  %v127 = vld [vmem:[%s1 + $0xa4] sm:$0xf]
  %v128 = vld [vmem:[%s1 + $0xa8] sm:$0xf]
  %v129 = vld [vmem:[%s1 + $0xac] sm:$0xf]
  %v130 = vld [vmem:[%s1 + $0xb0] sm:$0xf]
  %v131 = vld [vmem:[%s1 + $0xb4] sm:$0xf]
  %v132 = vld [vmem:[%s1 + $0xb8] sm:$0xf]
  %v133 = vld [vmem:[%s1 + $0xbc] sm:$0xf]
  %v134 = vld [vmem:[%s1 + $0xc0] sm:$0xf]
  %v135 = vld [vmem:[%s1 + $0xc4] sm:$0xf]
  %v136 = vld [vmem:[%s1 + $0xc8] sm:$0xf]
  %v137 = vld [vmem:[%s1 + $0xcc] sm:$0xf]
  %v138 = vld [vmem:[%s1 + $0xd0] sm:$0xf]
  %v139 = vld [vmem:[%s1 + $0xd4] sm:$0xf]
  %v140 = vld [vmem:[%s1 + $0xd8] sm:$0xf]
  %v141 = vld [vmem:[%s1 + $0xdc] sm:$0xf]
  %v142 = vld [vmem:[%s1 + $0xe0] sm:$0xf]
  %v143 = vld [vmem:[%s1 + $0xe4] sm:$0xf]
  %v144 = vld [vmem:[%s1 + $0xe8] sm:$0xf]
  %v145 = vld [vmem:[%s1 + $0xec] sm:$0xf]
  %v146 = vld [vmem:[%s1 + $0xf0] sm:$0xf]
  %v147 = vld [vmem:[%s1 + $0xf4] sm:$0xf]
  %v148 = vld [vmem:[%s1 + $0xf8] sm:$0xf]
  %v149 = vld [vmem:[%s1 + $0xfc] sm:$0xf]
  %v150 = vld [vmem:[%s3] sm:$0xf]
  %v215 = vunpack.c.l.b16 %v86
  %v216 = vunpack.c.l.b16 %v87
  %v217 = vunpack.c.l.b16 %v88
  %v218 = vunpack.c.l.b16 %v89
  %v219 = vunpack.c.l.b16 %v90
  %v220 = vunpack.c.l.b16 %v91
  %v221 = vunpack.c.l.b16 %v92
  %v222 = vunpack.c.l.b16 %v93
  %v223 = vunpack.c.l.b16 %v94
  %v224 = vunpack.c.l.b16 %v95
  %v225 = vunpack.c.l.b16 %v96
  %v226 = vunpack.c.l.b16 %v97
  %v227 = vunpack.c.l.b16 %v98
  %v228 = vunpack.c.l.b16 %v99
  %v229 = vunpack.c.l.b16 %v100
  %v230 = vunpack.c.l.b16 %v101
  %v231 = vunpack.c.l.b16 %v102
  %v232 = vunpack.c.l.b16 %v103
  %v233 = vunpack.c.l.b16 %v104
  %v234 = vunpack.c.l.b16 %v105
  %v235 = vunpack.c.l.b16 %v106
  %v236 = vunpack.c.l.b16 %v107
  %v237 = vunpack.c.l.b16 %v108
  %v238 = vunpack.c.l.b16 %v109
  %v239 = vunpack.c.l.b16 %v110
  %v240 = vunpack.c.l.b16 %v111
  %v241 = vunpack.c.l.b16 %v112
  %v242 = vunpack.c.l.b16 %v113
  %v243 = vunpack.c.l.b16 %v114
  %v244 = vunpack.c.l.b16 %v115
  %v245 = vunpack.c.l.b16 %v116
  %v246 = vunpack.c.l.b16 %v117
  %v247 = vunpack.c.l.b16 %v118
  %v248 = vunpack.c.l.b16 %v119
  %v249 = vunpack.c.l.b16 %v120
  %v250 = vunpack.c.l.b16 %v121
  %v251 = vunpack.c.l.b16 %v122
  %v252 = vunpack.c.l.b16 %v123
  %v253 = vunpack.c.l.b16 %v124
  %v254 = vunpack.c.l.b16 %v125
  %v255 = vunpack.c.l.b16 %v126
  %v256 = vunpack.c.l.b16 %v127
  %v257 = vunpack.c.l.b16 %v128
  %v258 = vunpack.c.l.b16 %v129
  %v259 = vunpack.c.l.b16 %v130
  %v260 = vunpack.c.l.b16 %v131
  %v261 = vunpack.c.l.b16 %v132
  %v262 = vunpack.c.l.b16 %v133
  %v263 = vunpack.c.l.b16 %v134
  %v264 = vunpack.c.l.b16 %v135
  %v265 = vunpack.c.l.b16 %v136
  %v266 = vunpack.c.l.b16 %v137
  %v267 = vunpack.c.l.b16 %v138
  %v268 = vunpack.c.l.b16 %v139
  %v269 = vunpack.c.l.b16 %v140
  %v270 = vunpack.c.l.b16 %v141
  %v271 = vunpack.c.l.b16 %v142
  %v272 = vunpack.c.l.b16 %v143
  %v273 = vunpack.c.l.b16 %v144
  %v274 = vunpack.c.l.b16 %v145
  %v275 = vunpack.c.l.b16 %v146
  %v276 = vunpack.c.l.b16 %v147
  %v277 = vunpack.c.l.b16 %v148
  %v278 = vunpack.c.l.b16 %v149
  %v279 = vpack.c.b16 %v216, %v215
  %v280 = vpack.c.b16 %v218, %v217
  %v281 = vpack.c.b16 %v220, %v219
  %v282 = vpack.c.b16 %v222, %v221
  %v283 = vpack.c.b16 %v224, %v223
  %v284 = vpack.c.b16 %v226, %v225
  %v285 = vpack.c.b16 %v228, %v227
  %v286 = vpack.c.b16 %v230, %v229
  %v287 = vpack.c.b16 %v232, %v231
  %v288 = vpack.c.b16 %v234, %v233
  %v289 = vpack.c.b16 %v236, %v235
  %v290 = vpack.c.b16 %v238, %v237
  %v291 = vpack.c.b16 %v240, %v239
  %v292 = vpack.c.b16 %v242, %v241
  %v293 = vpack.c.b16 %v244, %v243
  %v294 = vpack.c.b16 %v246, %v245
  %v295 = vpack.c.b16 %v248, %v247
  %v296 = vpack.c.b16 %v250, %v249
  %v297 = vpack.c.b16 %v252, %v251
  %v298 = vpack.c.b16 %v254, %v253
  %v299 = vpack.c.b16 %v256, %v255
  %v300 = vpack.c.b16 %v258, %v257
  %v301 = vpack.c.b16 %v260, %v259
  %v302 = vpack.c.b16 %v262, %v261
  %v303 = vpack.c.b16 %v264, %v263
  %v304 = vpack.c.b16 %v266, %v265
  %v305 = vpack.c.b16 %v268, %v267
  %v306 = vpack.c.b16 %v270, %v269
  %v307 = vpack.c.b16 %v272, %v271
  %v308 = vpack.c.b16 %v274, %v273
  %v309 = vpack.c.b16 %v276, %v275
  %v310 = vpack.c.b16 %v278, %v277
  %vm311 = vcmask 64512
  %v313 = vsel %vm311, %v279, 0
  %v316 = vsel %vm311, %v280, 0
  %v319 = vsel %vm311, %v281, 0
  %v322 = vsel %vm311, %v282, 0
  %v325 = vsel %vm311, %v283, 0
  %v328 = vsel %vm311, %v284, 0
  %v331 = vsel %vm311, %v285, 0
  %v334 = vsel %vm311, %v286, 0
  %v337 = vsel %vm311, %v287, 0
  %v340 = vsel %vm311, %v288, 0
  %v343 = vsel %vm311, %v289, 0
  %v346 = vsel %vm311, %v290, 0
  %v349 = vsel %vm311, %v291, 0
  %v352 = vsel %vm311, %v292, 0
  %v355 = vsel %vm311, %v293, 0
  %v358 = vsel %vm311, %v294, 0
  %v361 = vsel %vm311, %v295, 0
  %v364 = vsel %vm311, %v296, 0
  %v367 = vsel %vm311, %v297, 0
  %v370 = vsel %vm311, %v298, 0
  %v373 = vsel %vm311, %v299, 0
  %v376 = vsel %vm311, %v300, 0
  %v379 = vsel %vm311, %v301, 0
  %v382 = vsel %vm311, %v302, 0
  %v385 = vsel %vm311, %v303, 0
  %v388 = vsel %vm311, %v304, 0
  %v391 = vsel %vm311, %v305, 0
  %v394 = vsel %vm311, %v306, 0
  %v397 = vsel %vm311, %v307, 0
  %v400 = vsel %vm311, %v308, 0
  %v403 = vsel %vm311, %v309, 0
  %v406 = vsel %vm311, %v310, 0
  %vm408 = vcmask 1043456
  %v410 = vsel %vm408, %v150, 0
  %412 = vmatprep.subr.bf16.mxu0 0
  %413 = vmatpush1.bf16.msra.mxu0 %v410
  %414 = vmatprep.subr.bf16.mxu0 0
  %415 = vmatpush1.bf16.msra.mxu0 0
  %416 = vmatprep.subr.bf16.mxu0 0
  %417 = vmatpush1.bf16.msra.mxu0 0
  %418 = vmatprep.subr.bf16.mxu0 0
  %419 = vmatpush1.bf16.msra.mxu0 0
  %420 = vmatprep.subr.bf16.mxu0 0
  %421 = vmatpush1.bf16.msra.mxu0 0
  %422 = vmatprep.subr.bf16.mxu0 0
  %423 = vmatpush1.bf16.msra.mxu0 0
  %424 = vmatprep.subr.bf16.mxu0 0
  %425 = vmatpush1.bf16.msra.mxu0 0
  %426 = vmatprep.subr.bf16.mxu0 0
  %427 = vmatpush1.bf16.msra.mxu0 0
  %428 = vmatprep.subr.bf16.mxu0 0
  %429 = vmatpush1.bf16.msra.mxu0 0
  %430 = vmatprep.subr.bf16.mxu0 0
  %431 = vmatpush1.bf16.msra.mxu0 0
  %432 = vmatprep.subr.bf16.mxu0 0
  %433 = vmatpush1.bf16.msra.mxu0 0
  %434 = vmatprep.subr.bf16.mxu0 0
  %435 = vmatpush1.bf16.msra.mxu0 0
  %436 = vmatprep.subr.bf16.mxu0 0
  %437 = vmatpush1.bf16.msra.mxu0 0
  %438 = vmatprep.subr.bf16.mxu0 0
  %439 = vmatpush1.bf16.msra.mxu0 0
  %440 = vmatprep.subr.bf16.mxu0 0
  %441 = vmatpush1.bf16.msra.mxu0 0
  %442 = vmatprep.subr.bf16.mxu0 0
  %443 = vmatpush1.bf16.msra.mxu0 0
  %444 = vmatprep.mubr.bf16.mxu0 0
  %445 = vmatmul.mubr.bf16.gmra.mrb[0].mxu0 %v313
  %v446 = vpop.f32.mrb[0].mxu0
  %v447 = vadd.f32 0.0, %v446
  %v448 = vpop.f32.mrb[0].mxu0
  %v449 = vpop.f32.mrb[0].mxu0
  %v450 = vadd.f32 0.0, %v449
  %v451 = vpop.f32.mrb[0].mxu0
  %452 = vmatprep.mubr.bf16.mxu0 0
  %453 = vmatmul.mubr.bf16.gmra.mrb[0].mxu0 %v316
  %v454 = vpop.f32.mrb[0].mxu0
  %v455 = vadd.f32 0.0, %v454
  %v456 = vpop.f32.mrb[0].mxu0
  %v457 = vpop.f32.mrb[0].mxu0
  %v458 = vadd.f32 0.0, %v457
  %v459 = vpop.f32.mrb[0].mxu0
  %460 = vmatprep.mubr.bf16.mxu0 0
  %461 = vmatmul.mubr.bf16.gmra.mrb[0].mxu0 %v319
  %v462 = vpop.f32.mrb[0].mxu0
  %v463 = vadd.f32 0.0, %v462
  %v464 = vpop.f32.mrb[0].mxu0
  %v465 = vpop.f32.mrb[0].mxu0
  %v466 = vadd.f32 0.0, %v465
  %v467 = vpop.f32.mrb[0].mxu0
  %468 = vmatprep.mubr.bf16.mxu0 0
  %469 = vmatmul.mubr.bf16.gmra.mrb[0].mxu0 %v322
  %v470 = vpop.f32.mrb[0].mxu0
  %v471 = vadd.f32 0.0, %v470
  %v472 = vpop.f32.mrb[0].mxu0
  %v473 = vpop.f32.mrb[0].mxu0
  %v474 = vadd.f32 0.0, %v473
  %v475 = vpop.f32.mrb[0].mxu0
  %476 = vmatprep.mubr.bf16.mxu0 0
  %477 = vmatmul.mubr.bf16.gmra.mrb[0].mxu0 %v325
  %v478 = vpop.f32.mrb[0].mxu0
  %v479 = vadd.f32 0.0, %v478
  %v480 = vpop.f32.mrb[0].mxu0
  %v481 = vpop.f32.mrb[0].mxu0
  %v482 = vadd.f32 0.0, %v481
  %v483 = vpop.f32.mrb[0].mxu0
  %484 = vmatprep.mubr.bf16.mxu0 0
  %485 = vmatmul.mubr.bf16.gmra.mrb[0].mxu0 %v328
  %v486 = vpop.f32.mrb[0].mxu0
  %v487 = vadd.f32 0.0, %v486
  %v488 = vpop.f32.mrb[0].mxu0
  %v489 = vpop.f32.mrb[0].mxu0
  %v490 = vadd.f32 0.0, %v489
  %v491 = vpop.f32.mrb[0].mxu0
  %492 = vmatprep.mubr.bf16.mxu0 0
  %493 = vmatmul.mubr.bf16.gmra.mrb[0].mxu0 %v331
  %v494 = vpop.f32.mrb[0].mxu0
  %v495 = vadd.f32 0.0, %v494
  %v496 = vpop.f32.mrb[0].mxu0
  %v497 = vpop.f32.mrb[0].mxu0
  %v498 = vadd.f32 0.0, %v497
  %v499 = vpop.f32.mrb[0].mxu0
  %500 = vmatprep.mubr.bf16.mxu0 0
  %501 = vmatmul.mubr.bf16.gmra.mrb[0].mxu0 %v334
  %v502 = vpop.f32.mrb[0].mxu0
  %v503 = vadd.f32 0.0, %v502
  %v504 = vpop.f32.mrb[0].mxu0
  %v505 = vpop.f32.mrb[0].mxu0
  %v506 = vadd.f32 0.0, %v505
  %v507 = vpop.f32.mrb[0].mxu0
  %508 = vmatprep.mubr.bf16.mxu0 0
  %509 = vmatmul.mubr.bf16.gmra.mrb[0].mxu0 %v337
  %v510 = vpop.f32.mrb[0].mxu0
  %v511 = vadd.f32 0.0, %v510
  %v512 = vpop.f32.mrb[0].mxu0
  %v513 = vpop.f32.mrb[0].mxu0
  %v514 = vadd.f32 0.0, %v513
  %v515 = vpop.f32.mrb[0].mxu0
  %516 = vmatprep.mubr.bf16.mxu0 0
  %517 = vmatmul.mubr.bf16.gmra.mrb[0].mxu0 %v340
  %v518 = vpop.f32.mrb[0].mxu0
  %v519 = vadd.f32 0.0, %v518
  %v520 = vpop.f32.mrb[0].mxu0
  %v521 = vpop.f32.mrb[0].mxu0
  %v522 = vadd.f32 0.0, %v521
  %v523 = vpop.f32.mrb[0].mxu0
  %524 = vmatprep.mubr.bf16.mxu0 0
  %525 = vmatmul.mubr.bf16.gmra.mrb[0].mxu0 %v343
  %v526 = vpop.f32.mrb[0].mxu0
  %v527 = vadd.f32 0.0, %v526
  %v528 = vpop.f32.mrb[0].mxu0
  %v529 = vpop.f32.mrb[0].mxu0
  %v530 = vadd.f32 0.0, %v529
  %v531 = vpop.f32.mrb[0].mxu0
  %532 = vmatprep.mubr.bf16.mxu0 0
  %533 = vmatmul.mubr.bf16.gmra.mrb[0].mxu0 %v346
  %v534 = vpop.f32.mrb[0].mxu0
  %v535 = vadd.f32 0.0, %v534
  %v536 = vpop.f32.mrb[0].mxu0
  %v537 = vpop.f32.mrb[0].mxu0
  %v538 = vadd.f32 0.0, %v537
  %v539 = vpop.f32.mrb[0].mxu0
  %540 = vmatprep.mubr.bf16.mxu0 0
  %541 = vmatmul.mubr.bf16.gmra.mrb[0].mxu0 %v349
  %v542 = vpop.f32.mrb[0].mxu0
  %v543 = vadd.f32 0.0, %v542
  %v544 = vpop.f32.mrb[0].mxu0
  %v545 = vpop.f32.mrb[0].mxu0
  %v546 = vadd.f32 0.0, %v545
  %v547 = vpop.f32.mrb[0].mxu0
  %548 = vmatprep.mubr.bf16.mxu0 0
  %549 = vmatmul.mubr.bf16.gmra.mrb[0].mxu0 %v352
  %v550 = vpop.f32.mrb[0].mxu0
  %v551 = vadd.f32 0.0, %v550
  %v552 = vpop.f32.mrb[0].mxu0
  %v553 = vpop.f32.mrb[0].mxu0
  %v554 = vadd.f32 0.0, %v553
  %v555 = vpop.f32.mrb[0].mxu0
  %556 = vmatprep.mubr.bf16.mxu0 0
  %557 = vmatmul.mubr.bf16.gmra.mrb[0].mxu0 %v355
  %v558 = vpop.f32.mrb[0].mxu0
  %v559 = vadd.f32 0.0, %v558
  %v560 = vpop.f32.mrb[0].mxu0
  %v561 = vpop.f32.mrb[0].mxu0
  %v562 = vadd.f32 0.0, %v561
  %v563 = vpop.f32.mrb[0].mxu0
  %564 = vmatprep.mubr.bf16.mxu0 0
  %565 = vmatmul.mubr.bf16.gmra.mrb[0].mxu0 %v358
  %v566 = vpop.f32.mrb[0].mxu0
  %v567 = vadd.f32 0.0, %v566
  %v568 = vpop.f32.mrb[0].mxu0
  %v569 = vpop.f32.mrb[0].mxu0
  %v570 = vadd.f32 0.0, %v569
  %v571 = vpop.f32.mrb[0].mxu0
  %572 = vmatprep.mubr.bf16.mxu0 0
  %573 = vmatmul.mubr.bf16.gmra.mrb[0].mxu0 %v361
  %v574 = vpop.f32.mrb[0].mxu0
  %v575 = vadd.f32 0.0, %v574
  %v576 = vpop.f32.mrb[0].mxu0
  %v577 = vpop.f32.mrb[0].mxu0
  %v578 = vadd.f32 0.0, %v577
  %v579 = vpop.f32.mrb[0].mxu0
  %580 = vmatprep.mubr.bf16.mxu0 0
  %581 = vmatmul.mubr.bf16.gmra.mrb[0].mxu0 %v364
  %v582 = vpop.f32.mrb[0].mxu0
  %v583 = vadd.f32 0.0, %v582
  %v584 = vpop.f32.mrb[0].mxu0
  %v585 = vpop.f32.mrb[0].mxu0
  %v586 = vadd.f32 0.0, %v585
  %v587 = vpop.f32.mrb[0].mxu0
  %588 = vmatprep.mubr.bf16.mxu0 0
  %589 = vmatmul.mubr.bf16.gmra.mrb[0].mxu0 %v367
  %v590 = vpop.f32.mrb[0].mxu0
  %v591 = vadd.f32 0.0, %v590
  %v592 = vpop.f32.mrb[0].mxu0
  %v593 = vpop.f32.mrb[0].mxu0
  %v594 = vadd.f32 0.0, %v593
  %v595 = vpop.f32.mrb[0].mxu0
  %596 = vmatprep.mubr.bf16.mxu0 0
  %597 = vmatmul.mubr.bf16.gmra.mrb[0].mxu0 %v370
  %v598 = vpop.f32.mrb[0].mxu0
  %v599 = vadd.f32 0.0, %v598
  %v600 = vpop.f32.mrb[0].mxu0
  %v601 = vpop.f32.mrb[0].mxu0
  %v602 = vadd.f32 0.0, %v601
  %v603 = vpop.f32.mrb[0].mxu0
  %604 = vmatprep.mubr.bf16.mxu0 0
  %605 = vmatmul.mubr.bf16.gmra.mrb[0].mxu0 %v373
  %v606 = vpop.f32.mrb[0].mxu0
  %v607 = vadd.f32 0.0, %v606
  %v608 = vpop.f32.mrb[0].mxu0
  %v609 = vpop.f32.mrb[0].mxu0
  %v610 = vadd.f32 0.0, %v609
  %v611 = vpop.f32.mrb[0].mxu0
  %612 = vmatprep.mubr.bf16.mxu0 0
  %613 = vmatmul.mubr.bf16.gmra.mrb[0].mxu0 %v376
  %v614 = vpop.f32.mrb[0].mxu0
  %v615 = vadd.f32 0.0, %v614
  %v616 = vpop.f32.mrb[0].mxu0
  %v617 = vpop.f32.mrb[0].mxu0
  %v618 = vadd.f32 0.0, %v617
  %v619 = vpop.f32.mrb[0].mxu0
  %620 = vmatprep.mubr.bf16.mxu0 0
  %621 = vmatmul.mubr.bf16.gmra.mrb[0].mxu0 %v379
  %v622 = vpop.f32.mrb[0].mxu0
  %v623 = vadd.f32 0.0, %v622
  %v624 = vpop.f32.mrb[0].mxu0
  %v625 = vpop.f32.mrb[0].mxu0
  %v626 = vadd.f32 0.0, %v625
  %v627 = vpop.f32.mrb[0].mxu0
  %628 = vmatprep.mubr.bf16.mxu0 0
  %629 = vmatmul.mubr.bf16.gmra.mrb[0].mxu0 %v382
  %v630 = vpop.f32.mrb[0].mxu0
  %v631 = vadd.f32 0.0, %v630
  %v632 = vpop.f32.mrb[0].mxu0
  %v633 = vpop.f32.mrb[0].mxu0
  %v634 = vadd.f32 0.0, %v633
  %v635 = vpop.f32.mrb[0].mxu0
  %636 = vmatprep.mubr.bf16.mxu0 0
  %637 = vmatmul.mubr.bf16.gmra.mrb[0].mxu0 %v385
  %v638 = vpop.f32.mrb[0].mxu0
  %v639 = vadd.f32 0.0, %v638
  %v640 = vpop.f32.mrb[0].mxu0
  %v641 = vpop.f32.mrb[0].mxu0
  %v642 = vadd.f32 0.0, %v641
  %v643 = vpop.f32.mrb[0].mxu0
  %644 = vmatprep.mubr.bf16.mxu0 0
  %645 = vmatmul.mubr.bf16.gmra.mrb[0].mxu0 %v388
  %v646 = vpop.f32.mrb[0].mxu0
  %v647 = vadd.f32 0.0, %v646
  %v648 = vpop.f32.mrb[0].mxu0
  %v649 = vpop.f32.mrb[0].mxu0
  %v650 = vadd.f32 0.0, %v649
  %v651 = vpop.f32.mrb[0].mxu0
  %652 = vmatprep.mubr.bf16.mxu0 0
  %653 = vmatmul.mubr.bf16.gmra.mrb[0].mxu0 %v391
  %v654 = vpop.f32.mrb[0].mxu0
  %v655 = vadd.f32 0.0, %v654
  %v656 = vpop.f32.mrb[0].mxu0
  %v657 = vpop.f32.mrb[0].mxu0
  %v658 = vadd.f32 0.0, %v657
  %v659 = vpop.f32.mrb[0].mxu0
  %660 = vmatprep.mubr.bf16.mxu0 0
  %661 = vmatmul.mubr.bf16.gmra.mrb[0].mxu0 %v394
  %v662 = vpop.f32.mrb[0].mxu0
  %v663 = vadd.f32 0.0, %v662
  %v664 = vpop.f32.mrb[0].mxu0
  %v665 = vpop.f32.mrb[0].mxu0
  %v666 = vadd.f32 0.0, %v665
  %v667 = vpop.f32.mrb[0].mxu0
  %668 = vmatprep.mubr.bf16.mxu0 0
  %669 = vmatmul.mubr.bf16.gmra.mrb[0].mxu0 %v397
  %v670 = vpop.f32.mrb[0].mxu0
  %v671 = vadd.f32 0.0, %v670
  %v672 = vpop.f32.mrb[0].mxu0
  %v673 = vpop.f32.mrb[0].mxu0
  %v674 = vadd.f32 0.0, %v673
  %v675 = vpop.f32.mrb[0].mxu0
  %676 = vmatprep.mubr.bf16.mxu0 0
  %677 = vmatmul.mubr.bf16.gmra.mrb[0].mxu0 %v400
  %v678 = vpop.f32.mrb[0].mxu0
  %v679 = vadd.f32 0.0, %v678
  %v680 = vpop.f32.mrb[0].mxu0
  %v681 = vpop.f32.mrb[0].mxu0
  %v682 = vadd.f32 0.0, %v681
  %v683 = vpop.f32.mrb[0].mxu0
  %684 = vmatprep.mubr.bf16.mxu0 0
  %685 = vmatmul.mubr.bf16.gmra.mrb[0].mxu0 %v403
  %v686 = vpop.f32.mrb[0].mxu0
  %v687 = vadd.f32 0.0, %v686
  %v688 = vpop.f32.mrb[0].mxu0
  %v689 = vpop.f32.mrb[0].mxu0
  %v690 = vadd.f32 0.0, %v689
  %v691 = vpop.f32.mrb[0].mxu0
  %692 = vmatprep.mubr.bf16.mxu0 0
  %693 = vmatmul.mubr.bf16.gmra.mrb[0].mxu0 %v406
  %v694 = vpop.f32.mrb[0].mxu0
  %v695 = vadd.f32 0.0, %v694
  %v696 = vpop.f32.mrb[0].mxu0
  %v697 = vpop.f32.mrb[0].mxu0
  %v698 = vadd.f32 0.0, %v697
  %v699 = vpop.f32.mrb[0].mxu0
  %700 = vdwg.mxu0
  %v765 = vunpack.c.l.b16 %v21
  %v766 = vunpack.c.l.b16 %v22
  %v767 = vunpack.c.l.b16 %v23
  %v768 = vunpack.c.l.b16 %v24
  %v769 = vunpack.c.l.b16 %v25
  %v770 = vunpack.c.l.b16 %v26
  %v771 = vunpack.c.l.b16 %v27
  %v772 = vunpack.c.l.b16 %v28
  %v773 = vunpack.c.l.b16 %v29
  %v774 = vunpack.c.l.b16 %v30
  %v775 = vunpack.c.l.b16 %v31
  %v776 = vunpack.c.l.b16 %v32
  %v777 = vunpack.c.l.b16 %v33
  %v778 = vunpack.c.l.b16 %v34
  %v779 = vunpack.c.l.b16 %v35
  %v780 = vunpack.c.l.b16 %v36
  %v781 = vunpack.c.l.b16 %v37
  %v782 = vunpack.c.l.b16 %v38
  %v783 = vunpack.c.l.b16 %v39
  %v784 = vunpack.c.l.b16 %v40
  %v785 = vunpack.c.l.b16 %v41
  %v786 = vunpack.c.l.b16 %v42
  %v787 = vunpack.c.l.b16 %v43
  %v788 = vunpack.c.l.b16 %v44
  %v789 = vunpack.c.l.b16 %v45
  %v790 = vunpack.c.l.b16 %v46
  %v791 = vunpack.c.l.b16 %v47
  %v792 = vunpack.c.l.b16 %v48
  %v793 = vunpack.c.l.b16 %v49
  %v794 = vunpack.c.l.b16 %v50
  %v795 = vunpack.c.l.b16 %v51
  %v796 = vunpack.c.l.b16 %v52
  %v797 = vunpack.c.l.b16 %v53
  %v798 = vunpack.c.l.b16 %v54
  %v799 = vunpack.c.l.b16 %v55
  %v800 = vunpack.c.l.b16 %v56
  %v801 = vunpack.c.l.b16 %v57
  %v802 = vunpack.c.l.b16 %v58
  %v803 = vunpack.c.l.b16 %v59
  %v804 = vunpack.c.l.b16 %v60
  %v805 = vunpack.c.l.b16 %v61
  %v806 = vunpack.c.l.b16 %v62
  %v807 = vunpack.c.l.b16 %v63
  %v808 = vunpack.c.l.b16 %v64
  %v809 = vunpack.c.l.b16 %v65
  %v810 = vunpack.c.l.b16 %v66
  %v811 = vunpack.c.l.b16 %v67
  %v812 = vunpack.c.l.b16 %v68
  %v813 = vunpack.c.l.b16 %v69
  %v814 = vunpack.c.l.b16 %v70
  %v815 = vunpack.c.l.b16 %v71
  %v816 = vunpack.c.l.b16 %v72
  %v817 = vunpack.c.l.b16 %v73
  %v818 = vunpack.c.l.b16 %v74
  %v819 = vunpack.c.l.b16 %v75
  %v820 = vunpack.c.l.b16 %v76
  %v821 = vunpack.c.l.b16 %v77
  %v822 = vunpack.c.l.b16 %v78
  %v823 = vunpack.c.l.b16 %v79
  %v824 = vunpack.c.l.b16 %v80
  %v825 = vunpack.c.l.b16 %v81
  %v826 = vunpack.c.l.b16 %v82
  %v827 = vunpack.c.l.b16 %v83
  %v828 = vunpack.c.l.b16 %v84
  %v829 = vpack.c.b16 %v766, %v765
  %v830 = vpack.c.b16 %v768, %v767
  %v831 = vpack.c.b16 %v770, %v769
  %v832 = vpack.c.b16 %v772, %v771
  %v833 = vpack.c.b16 %v774, %v773
  %v834 = vpack.c.b16 %v776, %v775
  %v835 = vpack.c.b16 %v778, %v777
  %v836 = vpack.c.b16 %v780, %v779
  %v837 = vpack.c.b16 %v782, %v781
  %v838 = vpack.c.b16 %v784, %v783
  %v839 = vpack.c.b16 %v786, %v785
  %v840 = vpack.c.b16 %v788, %v787
  %v841 = vpack.c.b16 %v790, %v789
  %v842 = vpack.c.b16 %v792, %v791
  %v843 = vpack.c.b16 %v794, %v793
  %v844 = vpack.c.b16 %v796, %v795
  %v845 = vpack.c.b16 %v798, %v797
  %v846 = vpack.c.b16 %v800, %v799
  %v847 = vpack.c.b16 %v802, %v801
  %v848 = vpack.c.b16 %v804, %v803
  %v849 = vpack.c.b16 %v806, %v805
  %v850 = vpack.c.b16 %v808, %v807
  %v851 = vpack.c.b16 %v810, %v809
  %v852 = vpack.c.b16 %v812, %v811
  %v853 = vpack.c.b16 %v814, %v813
  %v854 = vpack.c.b16 %v816, %v815
  %v855 = vpack.c.b16 %v818, %v817
  %v856 = vpack.c.b16 %v820, %v819
  %v857 = vpack.c.b16 %v822, %v821
  %v858 = vpack.c.b16 %v824, %v823
  %v859 = vpack.c.b16 %v826, %v825
  %v860 = vpack.c.b16 %v828, %v827
  %v862 = vsel %vm311, %v829, 0
  %v865 = vsel %vm311, %v830, 0
  %v868 = vsel %vm311, %v831, 0
  %v871 = vsel %vm311, %v832, 0
  %v874 = vsel %vm311, %v833, 0
  %v877 = vsel %vm311, %v834, 0
  %v880 = vsel %vm311, %v835, 0
  %v883 = vsel %vm311, %v836, 0
  %v886 = vsel %vm311, %v837, 0
  %v889 = vsel %vm311, %v838, 0
  %v892 = vsel %vm311, %v839, 0
  %v895 = vsel %vm311, %v840, 0
  %v898 = vsel %vm311, %v841, 0
  %v901 = vsel %vm311, %v842, 0
  %v904 = vsel %vm311, %v843, 0
  %v907 = vsel %vm311, %v844, 0
  %v910 = vsel %vm311, %v845, 0
  %v913 = vsel %vm311, %v846, 0
  %v916 = vsel %vm311, %v847, 0
  %v919 = vsel %vm311, %v848, 0
  %v922 = vsel %vm311, %v849, 0
  %v925 = vsel %vm311, %v850, 0
  %v928 = vsel %vm311, %v851, 0
  %v931 = vsel %vm311, %v852, 0
  %v934 = vsel %vm311, %v853, 0
  %v937 = vsel %vm311, %v854, 0
  %v940 = vsel %vm311, %v855, 0
  %v943 = vsel %vm311, %v856, 0
  %v946 = vsel %vm311, %v857, 0
  %v949 = vsel %vm311, %v858, 0
  %v952 = vsel %vm311, %v859, 0
  %v955 = vsel %vm311, %v860, 0
  %v958 = vsel %vm408, %v85, 0
  %960 = vmatprep.subr.bf16.mxu0 0
  %961 = vmatpush1.bf16.msra.mxu0 %v958
  %962 = vmatprep.subr.bf16.mxu0 0
  %963 = vmatpush1.bf16.msra.mxu0 0
  %964 = vmatprep.subr.bf16.mxu0 0
  %965 = vmatpush1.bf16.msra.mxu0 0
  %966 = vmatprep.subr.bf16.mxu0 0
  %967 = vmatpush1.bf16.msra.mxu0 0
  %968 = vmatprep.subr.bf16.mxu0 0
  %969 = vmatpush1.bf16.msra.mxu0 0
  %970 = vmatprep.subr.bf16.mxu0 0
  %971 = vmatpush1.bf16.msra.mxu0 0
  %972 = vmatprep.subr.bf16.mxu0 0
  %973 = vmatpush1.bf16.msra.mxu0 0
  %974 = vmatprep.subr.bf16.mxu0 0
  %975 = vmatpush1.bf16.msra.mxu0 0
  %976 = vmatprep.subr.bf16.mxu0 0
  %977 = vmatpush1.bf16.msra.mxu0 0
  %978 = vmatprep.subr.bf16.mxu0 0
  %979 = vmatpush1.bf16.msra.mxu0 0
  %980 = vmatprep.subr.bf16.mxu0 0
  %981 = vmatpush1.bf16.msra.mxu0 0
  %982 = vmatprep.subr.bf16.mxu0 0
  %983 = vmatpush1.bf16.msra.mxu0 0
  %984 = vmatprep.subr.bf16.mxu0 0
  %985 = vmatpush1.bf16.msra.mxu0 0
  %986 = vmatprep.subr.bf16.mxu0 0
  %987 = vmatpush1.bf16.msra.mxu0 0
  %988 = vmatprep.subr.bf16.mxu0 0
  %989 = vmatpush1.bf16.msra.mxu0 0
  %990 = vmatprep.subr.bf16.mxu0 0
  %991 = vmatpush1.bf16.msra.mxu0 0
  %992 = vmatprep.mubr.bf16.mxu0 0
  %993 = vmatmul.mubr.bf16.gmra.mrb[0].mxu0 %v862
  %v994 = vpop.f32.mrb[0].mxu0
  %v995 = vadd.f32 %v447, %v994
  %v996 = vpop.f32.mrb[0].mxu0
  %v997 = vpop.f32.mrb[0].mxu0
  %v998 = vadd.f32 %v450, %v997
  %v999 = vpop.f32.mrb[0].mxu0
  %1000 = vmatprep.mubr.bf16.mxu0 0
  %1001 = vmatmul.mubr.bf16.gmra.mrb[0].mxu0 %v865
  %v1002 = vpop.f32.mrb[0].mxu0
  %v1003 = vadd.f32 %v455, %v1002
  %v1004 = vpop.f32.mrb[0].mxu0
  %v1005 = vpop.f32.mrb[0].mxu0
  %v1006 = vadd.f32 %v458, %v1005
  %v1007 = vpop.f32.mrb[0].mxu0
  %1008 = vmatprep.mubr.bf16.mxu0 0
  %1009 = vmatmul.mubr.bf16.gmra.mrb[0].mxu0 %v868
  %v1010 = vpop.f32.mrb[0].mxu0
  %v1011 = vadd.f32 %v463, %v1010
  %v1012 = vpop.f32.mrb[0].mxu0
  %v1013 = vpop.f32.mrb[0].mxu0
  %v1014 = vadd.f32 %v466, %v1013
  %v1015 = vpop.f32.mrb[0].mxu0
  %1016 = vmatprep.mubr.bf16.mxu0 0
  %1017 = vmatmul.mubr.bf16.gmra.mrb[0].mxu0 %v871
  %v1018 = vpop.f32.mrb[0].mxu0
  %v1019 = vadd.f32 %v471, %v1018
  %v1020 = vpop.f32.mrb[0].mxu0
  %v1021 = vpop.f32.mrb[0].mxu0
  %v1022 = vadd.f32 %v474, %v1021
  %v1023 = vpop.f32.mrb[0].mxu0
  %1024 = vmatprep.mubr.bf16.mxu0 0
  %1025 = vmatmul.mubr.bf16.gmra.mrb[0].mxu0 %v874
  %v1026 = vpop.f32.mrb[0].mxu0
  %v1027 = vadd.f32 %v479, %v1026
  %v1028 = vpop.f32.mrb[0].mxu0
  %v1029 = vpop.f32.mrb[0].mxu0
  %v1030 = vadd.f32 %v482, %v1029
  %v1031 = vpop.f32.mrb[0].mxu0
  %1032 = vmatprep.mubr.bf16.mxu0 0
  %1033 = vmatmul.mubr.bf16.gmra.mrb[0].mxu0 %v877
  %v1034 = vpop.f32.mrb[0].mxu0
  %v1035 = vadd.f32 %v487, %v1034
  %v1036 = vpop.f32.mrb[0].mxu0
  %v1037 = vpop.f32.mrb[0].mxu0
  %v1038 = vadd.f32 %v490, %v1037
  %v1039 = vpop.f32.mrb[0].mxu0
  %1040 = vmatprep.mubr.bf16.mxu0 0
  %1041 = vmatmul.mubr.bf16.gmra.mrb[0].mxu0 %v880
  %v1042 = vpop.f32.mrb[0].mxu0
  %v1043 = vadd.f32 %v495, %v1042
  %v1044 = vpop.f32.mrb[0].mxu0
  %v1045 = vpop.f32.mrb[0].mxu0
  %v1046 = vadd.f32 %v498, %v1045
  %v1047 = vpop.f32.mrb[0].mxu0
  %1048 = vmatprep.mubr.bf16.mxu0 0
  %1049 = vmatmul.mubr.bf16.gmra.mrb[0].mxu0 %v883
  %v1050 = vpop.f32.mrb[0].mxu0
  %v1051 = vadd.f32 %v503, %v1050
  %v1052 = vpop.f32.mrb[0].mxu0
  %v1053 = vpop.f32.mrb[0].mxu0
  %v1054 = vadd.f32 %v506, %v1053
  %v1055 = vpop.f32.mrb[0].mxu0
  %1056 = vmatprep.mubr.bf16.mxu0 0
  %1057 = vmatmul.mubr.bf16.gmra.mrb[0].mxu0 %v886
  %v1058 = vpop.f32.mrb[0].mxu0
  %v1059 = vadd.f32 %v511, %v1058
  %v1060 = vpop.f32.mrb[0].mxu0
  %v1061 = vpop.f32.mrb[0].mxu0
  %v1062 = vadd.f32 %v514, %v1061
  %v1063 = vpop.f32.mrb[0].mxu0
  %1064 = vmatprep.mubr.bf16.mxu0 0
  %1065 = vmatmul.mubr.bf16.gmra.mrb[0].mxu0 %v889
  %v1066 = vpop.f32.mrb[0].mxu0
  %v1067 = vadd.f32 %v519, %v1066
  %v1068 = vpop.f32.mrb[0].mxu0
  %v1069 = vpop.f32.mrb[0].mxu0
  %v1070 = vadd.f32 %v522, %v1069
  %v1071 = vpop.f32.mrb[0].mxu0
  %1072 = vmatprep.mubr.bf16.mxu0 0
  %1073 = vmatmul.mubr.bf16.gmra.mrb[0].mxu0 %v892
  %v1074 = vpop.f32.mrb[0].mxu0
  %v1075 = vadd.f32 %v527, %v1074
  %v1076 = vpop.f32.mrb[0].mxu0
  %v1077 = vpop.f32.mrb[0].mxu0
  %v1078 = vadd.f32 %v530, %v1077
  %v1079 = vpop.f32.mrb[0].mxu0
  %1080 = vmatprep.mubr.bf16.mxu0 0
  %1081 = vmatmul.mubr.bf16.gmra.mrb[0].mxu0 %v895
  %v1082 = vpop.f32.mrb[0].mxu0
  %v1083 = vadd.f32 %v535, %v1082
  %v1084 = vpop.f32.mrb[0].mxu0
  %v1085 = vpop.f32.mrb[0].mxu0
  %v1086 = vadd.f32 %v538, %v1085
  %v1087 = vpop.f32.mrb[0].mxu0
  %1088 = vmatprep.mubr.bf16.mxu0 0
  %1089 = vmatmul.mubr.bf16.gmra.mrb[0].mxu0 %v898
  %v1090 = vpop.f32.mrb[0].mxu0
  %v1091 = vadd.f32 %v543, %v1090
  %v1092 = vpop.f32.mrb[0].mxu0
  %v1093 = vpop.f32.mrb[0].mxu0
  %v1094 = vadd.f32 %v546, %v1093
  %v1095 = vpop.f32.mrb[0].mxu0
  %1096 = vmatprep.mubr.bf16.mxu0 0
  %1097 = vmatmul.mubr.bf16.gmra.mrb[0].mxu0 %v901
  %v1098 = vpop.f32.mrb[0].mxu0
  %v1099 = vadd.f32 %v551, %v1098
  %v1100 = vpop.f32.mrb[0].mxu0
  %v1101 = vpop.f32.mrb[0].mxu0
  %v1102 = vadd.f32 %v554, %v1101
  %v1103 = vpop.f32.mrb[0].mxu0
  %1104 = vmatprep.mubr.bf16.mxu0 0
  %1105 = vmatmul.mubr.bf16.gmra.mrb[0].mxu0 %v904
  %v1106 = vpop.f32.mrb[0].mxu0
  %v1107 = vadd.f32 %v559, %v1106
  %v1108 = vpop.f32.mrb[0].mxu0
  %v1109 = vpop.f32.mrb[0].mxu0
  %v1110 = vadd.f32 %v562, %v1109
  %v1111 = vpop.f32.mrb[0].mxu0
  %1112 = vmatprep.mubr.bf16.mxu0 0
  %1113 = vmatmul.mubr.bf16.gmra.mrb[0].mxu0 %v907
  %v1114 = vpop.f32.mrb[0].mxu0
  %v1115 = vadd.f32 %v567, %v1114
  %v1116 = vpop.f32.mrb[0].mxu0
  %v1117 = vpop.f32.mrb[0].mxu0
  %v1118 = vadd.f32 %v570, %v1117
  %v1119 = vpop.f32.mrb[0].mxu0
  %1120 = vmatprep.mubr.bf16.mxu0 0
  %1121 = vmatmul.mubr.bf16.gmra.mrb[0].mxu0 %v910
  %v1122 = vpop.f32.mrb[0].mxu0
  %v1123 = vadd.f32 %v575, %v1122
  %v1124 = vpop.f32.mrb[0].mxu0
  %v1125 = vpop.f32.mrb[0].mxu0
  %v1126 = vadd.f32 %v578, %v1125
  %v1127 = vpop.f32.mrb[0].mxu0
  %1128 = vmatprep.mubr.bf16.mxu0 0
  %1129 = vmatmul.mubr.bf16.gmra.mrb[0].mxu0 %v913
  %v1130 = vpop.f32.mrb[0].mxu0
  %v1131 = vadd.f32 %v583, %v1130
  %v1132 = vpop.f32.mrb[0].mxu0
  %v1133 = vpop.f32.mrb[0].mxu0
  %v1134 = vadd.f32 %v586, %v1133
  %v1135 = vpop.f32.mrb[0].mxu0
  %1136 = vmatprep.mubr.bf16.mxu0 0
  %1137 = vmatmul.mubr.bf16.gmra.mrb[0].mxu0 %v916
  %v1138 = vpop.f32.mrb[0].mxu0
  %v1139 = vadd.f32 %v591, %v1138
  %v1140 = vpop.f32.mrb[0].mxu0
  %v1141 = vpop.f32.mrb[0].mxu0
  %v1142 = vadd.f32 %v594, %v1141
  %v1143 = vpop.f32.mrb[0].mxu0
  %1144 = vmatprep.mubr.bf16.mxu0 0
  %1145 = vmatmul.mubr.bf16.gmra.mrb[0].mxu0 %v919
  %v1146 = vpop.f32.mrb[0].mxu0
  %v1147 = vadd.f32 %v599, %v1146
  %v1148 = vpop.f32.mrb[0].mxu0
  %v1149 = vpop.f32.mrb[0].mxu0
  %v1150 = vadd.f32 %v602, %v1149
  %v1151 = vpop.f32.mrb[0].mxu0
  %1152 = vmatprep.mubr.bf16.mxu0 0
  %1153 = vmatmul.mubr.bf16.gmra.mrb[0].mxu0 %v922
  %v1154 = vpop.f32.mrb[0].mxu0
  %v1155 = vadd.f32 %v607, %v1154
  %v1156 = vpop.f32.mrb[0].mxu0
  %v1157 = vpop.f32.mrb[0].mxu0
  %v1158 = vadd.f32 %v610, %v1157
  %v1159 = vpop.f32.mrb[0].mxu0
  %1160 = vmatprep.mubr.bf16.mxu0 0
  %1161 = vmatmul.mubr.bf16.gmra.mrb[0].mxu0 %v925
  %v1162 = vpop.f32.mrb[0].mxu0
  %v1163 = vadd.f32 %v615, %v1162
  %v1164 = vpop.f32.mrb[0].mxu0
  %v1165 = vpop.f32.mrb[0].mxu0
  %v1166 = vadd.f32 %v618, %v1165
  %v1167 = vpop.f32.mrb[0].mxu0
  %1168 = vmatprep.mubr.bf16.mxu0 0
  %1169 = vmatmul.mubr.bf16.gmra.mrb[0].mxu0 %v928
  %v1170 = vpop.f32.mrb[0].mxu0
  %v1171 = vadd.f32 %v623, %v1170
  %v1172 = vpop.f32.mrb[0].mxu0
  %v1173 = vpop.f32.mrb[0].mxu0
  %v1174 = vadd.f32 %v626, %v1173
  %v1175 = vpop.f32.mrb[0].mxu0
  %1176 = vmatprep.mubr.bf16.mxu0 0
  %1177 = vmatmul.mubr.bf16.gmra.mrb[0].mxu0 %v931
  %v1178 = vpop.f32.mrb[0].mxu0
  %v1179 = vadd.f32 %v631, %v1178
  %v1180 = vpop.f32.mrb[0].mxu0
  %v1181 = vpop.f32.mrb[0].mxu0
  %v1182 = vadd.f32 %v634, %v1181
  %v1183 = vpop.f32.mrb[0].mxu0
  %1184 = vmatprep.mubr.bf16.mxu0 0
  %1185 = vmatmul.mubr.bf16.gmra.mrb[0].mxu0 %v934
  %v1186 = vpop.f32.mrb[0].mxu0
  %v1187 = vadd.f32 %v639, %v1186
  %v1188 = vpop.f32.mrb[0].mxu0
  %v1189 = vpop.f32.mrb[0].mxu0
  %v1190 = vadd.f32 %v642, %v1189
  %v1191 = vpop.f32.mrb[0].mxu0
  %1192 = vmatprep.mubr.bf16.mxu0 0
  %1193 = vmatmul.mubr.bf16.gmra.mrb[0].mxu0 %v937
  %v1194 = vpop.f32.mrb[0].mxu0
  %v1195 = vadd.f32 %v647, %v1194
  %v1196 = vpop.f32.mrb[0].mxu0
  %v1197 = vpop.f32.mrb[0].mxu0
  %v1198 = vadd.f32 %v650, %v1197
  %v1199 = vpop.f32.mrb[0].mxu0
  %1200 = vmatprep.mubr.bf16.mxu0 0
  %1201 = vmatmul.mubr.bf16.gmra.mrb[0].mxu0 %v940
  %v1202 = vpop.f32.mrb[0].mxu0
  %v1203 = vadd.f32 %v655, %v1202
  %v1204 = vpop.f32.mrb[0].mxu0
  %v1205 = vpop.f32.mrb[0].mxu0
  %v1206 = vadd.f32 %v658, %v1205
  %v1207 = vpop.f32.mrb[0].mxu0
  %1208 = vmatprep.mubr.bf16.mxu0 0
  %1209 = vmatmul.mubr.bf16.gmra.mrb[0].mxu0 %v943
  %v1210 = vpop.f32.mrb[0].mxu0
  %v1211 = vadd.f32 %v663, %v1210
  %v1212 = vpop.f32.mrb[0].mxu0
  %v1213 = vpop.f32.mrb[0].mxu0
  %v1214 = vadd.f32 %v666, %v1213
  %v1215 = vpop.f32.mrb[0].mxu0
  %1216 = vmatprep.mubr.bf16.mxu0 0
  %1217 = vmatmul.mubr.bf16.gmra.mrb[0].mxu0 %v946
  %v1218 = vpop.f32.mrb[0].mxu0
  %v1219 = vadd.f32 %v671, %v1218
  %v1220 = vpop.f32.mrb[0].mxu0
  %v1221 = vpop.f32.mrb[0].mxu0
  %v1222 = vadd.f32 %v674, %v1221
  %v1223 = vpop.f32.mrb[0].mxu0
  %1224 = vmatprep.mubr.bf16.mxu0 0
  %1225 = vmatmul.mubr.bf16.gmra.mrb[0].mxu0 %v949
  %v1226 = vpop.f32.mrb[0].mxu0
  %v1227 = vadd.f32 %v679, %v1226
  %v1228 = vpop.f32.mrb[0].mxu0
  %v1229 = vpop.f32.mrb[0].mxu0
  %v1230 = vadd.f32 %v682, %v1229
  %v1231 = vpop.f32.mrb[0].mxu0
  %1232 = vmatprep.mubr.bf16.mxu0 0
  %1233 = vmatmul.mubr.bf16.gmra.mrb[0].mxu0 %v952
  %v1234 = vpop.f32.mrb[0].mxu0
  %v1235 = vadd.f32 %v687, %v1234
  %v1236 = vpop.f32.mrb[0].mxu0
  %v1237 = vpop.f32.mrb[0].mxu0
  %v1238 = vadd.f32 %v690, %v1237
  %v1239 = vpop.f32.mrb[0].mxu0
  %1240 = vmatprep.mubr.bf16.mxu0 0
  %1241 = vmatmul.mubr.bf16.gmra.mrb[0].mxu0 %v955
  %v1242 = vpop.f32.mrb[0].mxu0
  %v1243 = vadd.f32 %v695, %v1242
  %v1244 = vpop.f32.mrb[0].mxu0
  %v1245 = vpop.f32.mrb[0].mxu0
  %v1246 = vadd.f32 %v698, %v1245
  %v1247 = vpop.f32.mrb[0].mxu0
  %1248 = vdwg.mxu0
  %v1249 = vpack.c.bf16 %v998, %v995
  %v1250 = vpack.c.bf16 %v1006, %v1003
  %v1251 = vpack.c.bf16 %v1014, %v1011
  %v1252 = vpack.c.bf16 %v1022, %v1019
  %v1253 = vpack.c.bf16 %v1030, %v1027
  %v1254 = vpack.c.bf16 %v1038, %v1035
  %v1255 = vpack.c.bf16 %v1046, %v1043
  %v1256 = vpack.c.bf16 %v1054, %v1051
  %v1257 = vpack.c.bf16 %v1062, %v1059
  %v1258 = vpack.c.bf16 %v1070, %v1067
  %v1259 = vpack.c.bf16 %v1078, %v1075
  %v1260 = vpack.c.bf16 %v1086, %v1083
  %v1261 = vpack.c.bf16 %v1094, %v1091
  %v1262 = vpack.c.bf16 %v1102, %v1099
  %v1263 = vpack.c.bf16 %v1110, %v1107
  %v1264 = vpack.c.bf16 %v1118, %v1115
  %v1265 = vpack.c.bf16 %v1126, %v1123
  %v1266 = vpack.c.bf16 %v1134, %v1131
  %v1267 = vpack.c.bf16 %v1142, %v1139
  %v1268 = vpack.c.bf16 %v1150, %v1147
  %v1269 = vpack.c.bf16 %v1158, %v1155
  %v1270 = vpack.c.bf16 %v1166, %v1163
  %v1271 = vpack.c.bf16 %v1174, %v1171
  %v1272 = vpack.c.bf16 %v1182, %v1179
  %v1273 = vpack.c.bf16 %v1190, %v1187
  %v1274 = vpack.c.bf16 %v1198, %v1195
  %v1275 = vpack.c.bf16 %v1206, %v1203
  %v1276 = vpack.c.bf16 %v1214, %v1211
  %v1277 = vpack.c.bf16 %v1222, %v1219
  %v1278 = vpack.c.bf16 %v1230, %v1227
  %v1279 = vpack.c.bf16 %v1238, %v1235
  %v1280 = vpack.c.bf16 %v1246, %v1243
  %v1313 = vunpack.c.l.b16 %v1249
  %v1314 = vunpack.c.h.b16 %v1249
  %v1315 = vunpack.c.l.b16 %v1250
  %v1316 = vunpack.c.h.b16 %v1250
  %v1317 = vunpack.c.l.b16 %v1251
  %v1318 = vunpack.c.h.b16 %v1251
  %v1319 = vunpack.c.l.b16 %v1252
  %v1320 = vunpack.c.h.b16 %v1252
  %v1321 = vunpack.c.l.b16 %v1253
  %v1322 = vunpack.c.h.b16 %v1253
  %v1323 = vunpack.c.l.b16 %v1254
  %v1324 = vunpack.c.h.b16 %v1254
  %v1325 = vunpack.c.l.b16 %v1255
  %v1326 = vunpack.c.h.b16 %v1255
  %v1327 = vunpack.c.l.b16 %v1256
  %v1328 = vunpack.c.h.b16 %v1256
  %v1329 = vunpack.c.l.b16 %v1257
  %v1330 = vunpack.c.h.b16 %v1257
  %v1331 = vunpack.c.l.b16 %v1258
  %v1332 = vunpack.c.h.b16 %v1258
  %v1333 = vunpack.c.l.b16 %v1259
  %v1334 = vunpack.c.h.b16 %v1259
  %v1335 = vunpack.c.l.b16 %v1260
  %v1336 = vunpack.c.h.b16 %v1260
  %v1337 = vunpack.c.l.b16 %v1261
  %v1338 = vunpack.c.h.b16 %v1261
  %v1339 = vunpack.c.l.b16 %v1262
  %v1340 = vunpack.c.h.b16 %v1262
  %v1341 = vunpack.c.l.b16 %v1263
  %v1342 = vunpack.c.h.b16 %v1263
  %v1343 = vunpack.c.l.b16 %v1264
  %v1344 = vunpack.c.h.b16 %v1264
  %v1345 = vunpack.c.l.b16 %v1265
  %v1346 = vunpack.c.h.b16 %v1265
  %v1347 = vunpack.c.l.b16 %v1266
  %v1348 = vunpack.c.h.b16 %v1266
  %v1349 = vunpack.c.l.b16 %v1267
  %v1350 = vunpack.c.h.b16 %v1267
  %v1351 = vunpack.c.l.b16 %v1268
  %v1352 = vunpack.c.h.b16 %v1268
  %v1353 = vunpack.c.l.b16 %v1269
  %v1354 = vunpack.c.h.b16 %v1269
  %v1355 = vunpack.c.l.b16 %v1270
  %v1356 = vunpack.c.h.b16 %v1270
  %v1357 = vunpack.c.l.b16 %v1271
  %v1358 = vunpack.c.h.b16 %v1271
  %v1359 = vunpack.c.l.b16 %v1272
  %v1360 = vunpack.c.h.b16 %v1272
  %v1361 = vunpack.c.l.b16 %v1273
  %v1362 = vunpack.c.h.b16 %v1273
  %v1363 = vunpack.c.l.b16 %v1274
  %v1364 = vunpack.c.h.b16 %v1274
  %v1365 = vunpack.c.l.b16 %v1275
  %v1366 = vunpack.c.h.b16 %v1275
  %v1367 = vunpack.c.l.b16 %v1276
  %v1368 = vunpack.c.h.b16 %v1276
  %v1369 = vunpack.c.l.b16 %v1277
  %v1370 = vunpack.c.h.b16 %v1277
  %v1371 = vunpack.c.l.b16 %v1278
  %v1372 = vunpack.c.h.b16 %v1278
  %v1373 = vunpack.c.l.b16 %v1279
  %v1374 = vunpack.c.h.b16 %v1279
  %v1375 = vunpack.c.l.b16 %v1280
  %v1376 = vunpack.c.h.b16 %v1280
  %v1377 = vpack.c.b16 %v1313, %v1313
  %v1378 = vpack.c.b16 %v1314, %v1314
  %v1379 = vpack.c.b16 %v1315, %v1315
  %v1380 = vpack.c.b16 %v1316, %v1316
  %v1381 = vpack.c.b16 %v1317, %v1317
  %v1382 = vpack.c.b16 %v1318, %v1318
  %v1383 = vpack.c.b16 %v1319, %v1319
  %v1384 = vpack.c.b16 %v1320, %v1320
  %v1385 = vpack.c.b16 %v1321, %v1321
  %v1386 = vpack.c.b16 %v1322, %v1322
  %v1387 = vpack.c.b16 %v1323, %v1323
  %v1388 = vpack.c.b16 %v1324, %v1324
  %v1389 = vpack.c.b16 %v1325, %v1325
  %v1390 = vpack.c.b16 %v1326, %v1326
  %v1391 = vpack.c.b16 %v1327, %v1327
  %v1392 = vpack.c.b16 %v1328, %v1328
  %v1393 = vpack.c.b16 %v1329, %v1329
  %v1394 = vpack.c.b16 %v1330, %v1330
  %v1395 = vpack.c.b16 %v1331, %v1331
  %v1396 = vpack.c.b16 %v1332, %v1332
  %v1397 = vpack.c.b16 %v1333, %v1333
  %v1398 = vpack.c.b16 %v1334, %v1334
  %v1399 = vpack.c.b16 %v1335, %v1335
  %v1400 = vpack.c.b16 %v1336, %v1336
  %v1401 = vpack.c.b16 %v1337, %v1337
  %v1402 = vpack.c.b16 %v1338, %v1338
  %v1403 = vpack.c.b16 %v1339, %v1339
  %v1404 = vpack.c.b16 %v1340, %v1340
  %v1405 = vpack.c.b16 %v1341, %v1341
  %v1406 = vpack.c.b16 %v1342, %v1342
  %v1407 = vpack.c.b16 %v1343, %v1343
  %v1408 = vpack.c.b16 %v1344, %v1344
  %v1409 = vpack.c.b16 %v1345, %v1345
  %v1410 = vpack.c.b16 %v1346, %v1346
  %v1411 = vpack.c.b16 %v1347, %v1347
  %v1412 = vpack.c.b16 %v1348, %v1348
  %v1413 = vpack.c.b16 %v1349, %v1349
  %v1414 = vpack.c.b16 %v1350, %v1350
  %v1415 = vpack.c.b16 %v1351, %v1351
  %v1416 = vpack.c.b16 %v1352, %v1352
  %v1417 = vpack.c.b16 %v1353, %v1353
  %v1418 = vpack.c.b16 %v1354, %v1354
  %v1419 = vpack.c.b16 %v1355, %v1355
  %v1420 = vpack.c.b16 %v1356, %v1356
  %v1421 = vpack.c.b16 %v1357, %v1357
  %v1422 = vpack.c.b16 %v1358, %v1358
  %v1423 = vpack.c.b16 %v1359, %v1359
  %v1424 = vpack.c.b16 %v1360, %v1360
  %v1425 = vpack.c.b16 %v1361, %v1361
  %v1426 = vpack.c.b16 %v1362, %v1362
  %v1427 = vpack.c.b16 %v1363, %v1363
  %v1428 = vpack.c.b16 %v1364, %v1364
  %v1429 = vpack.c.b16 %v1365, %v1365
  %v1430 = vpack.c.b16 %v1366, %v1366
  %v1431 = vpack.c.b16 %v1367, %v1367
  %v1432 = vpack.c.b16 %v1368, %v1368
  %v1433 = vpack.c.b16 %v1369, %v1369
  %v1434 = vpack.c.b16 %v1370, %v1370
  %v1435 = vpack.c.b16 %v1371, %v1371
  %v1436 = vpack.c.b16 %v1372, %v1372
  %v1437 = vpack.c.b16 %v1373, %v1373
  %v1438 = vpack.c.b16 %v1374, %v1374
  %v1439 = vpack.c.b16 %v1375, %v1375
  %v1440 = vpack.c.b16 %v1376, %v1376
  %vm1505 = vcmask 125952
  %1506 = vst.msk [vmem:[%s4] sm:$0xf] %vm1505, %v1377
  %1507 = vst.msk [vmem:[%s4 + $0x4] sm:$0xf] %vm1505, %v1378
  %1508 = vst.msk [vmem:[%s4 + $0x8] sm:$0xf] %vm1505, %v1379
  %1509 = vst.msk [vmem:[%s4 + $0xc] sm:$0xf] %vm1505, %v1380
  %1510 = vst.msk [vmem:[%s4 + $0x10] sm:$0xf] %vm1505, %v1381
  %1511 = vst.msk [vmem:[%s4 + $0x14] sm:$0xf] %vm1505, %v1382
  %1512 = vst.msk [vmem:[%s4 + $0x18] sm:$0xf] %vm1505, %v1383
  %1513 = vst.msk [vmem:[%s4 + $0x1c] sm:$0xf] %vm1505, %v1384
  %1514 = vst.msk [vmem:[%s4 + $0x20] sm:$0xf] %vm1505, %v1385
  %1515 = vst.msk [vmem:[%s4 + $0x24] sm:$0xf] %vm1505, %v1386
  %1516 = vst.msk [vmem:[%s4 + $0x28] sm:$0xf] %vm1505, %v1387
  %1517 = vst.msk [vmem:[%s4 + $0x2c] sm:$0xf] %vm1505, %v1388
  %1518 = vst.msk [vmem:[%s4 + $0x30] sm:$0xf] %vm1505, %v1389
  %1519 = vst.msk [vmem:[%s4 + $0x34] sm:$0xf] %vm1505, %v1390
  %1520 = vst.msk [vmem:[%s4 + $0x38] sm:$0xf] %vm1505, %v1391
  %1521 = vst.msk [vmem:[%s4 + $0x3c] sm:$0xf] %vm1505, %v1392
  %1522 = vst.msk [vmem:[%s4 + $0x40] sm:$0xf] %vm1505, %v1393
  %1523 = vst.msk [vmem:[%s4 + $0x44] sm:$0xf] %vm1505, %v1394
  %1524 = vst.msk [vmem:[%s4 + $0x48] sm:$0xf] %vm1505, %v1395
  %1525 = vst.msk [vmem:[%s4 + $0x4c] sm:$0xf] %vm1505, %v1396
  %1526 = vst.msk [vmem:[%s4 + $0x50] sm:$0xf] %vm1505, %v1397
  %1527 = vst.msk [vmem:[%s4 + $0x54] sm:$0xf] %vm1505, %v1398
  %1528 = vst.msk [vmem:[%s4 + $0x58] sm:$0xf] %vm1505, %v1399
  %1529 = vst.msk [vmem:[%s4 + $0x5c] sm:$0xf] %vm1505, %v1400
  %1530 = vst.msk [vmem:[%s4 + $0x60] sm:$0xf] %vm1505, %v1401
  %1531 = vst.msk [vmem:[%s4 + $0x64] sm:$0xf] %vm1505, %v1402
  %1532 = vst.msk [vmem:[%s4 + $0x68] sm:$0xf] %vm1505, %v1403
  %1533 = vst.msk [vmem:[%s4 + $0x6c] sm:$0xf] %vm1505, %v1404
  %1534 = vst.msk [vmem:[%s4 + $0x70] sm:$0xf] %vm1505, %v1405
  %1535 = vst.msk [vmem:[%s4 + $0x74] sm:$0xf] %vm1505, %v1406
  %1536 = vst.msk [vmem:[%s4 + $0x78] sm:$0xf] %vm1505, %v1407
  %1537 = vst.msk [vmem:[%s4 + $0x7c] sm:$0xf] %vm1505, %v1408
  %1538 = vst.msk [vmem:[%s4 + $0x80] sm:$0xf] %vm1505, %v1409
  %1539 = vst.msk [vmem:[%s4 + $0x84] sm:$0xf] %vm1505, %v1410
  %1540 = vst.msk [vmem:[%s4 + $0x88] sm:$0xf] %vm1505, %v1411
  %1541 = vst.msk [vmem:[%s4 + $0x8c] sm:$0xf] %vm1505, %v1412
  %1542 = vst.msk [vmem:[%s4 + $0x90] sm:$0xf] %vm1505, %v1413
  %1543 = vst.msk [vmem:[%s4 + $0x94] sm:$0xf] %vm1505, %v1414
  %1544 = vst.msk [vmem:[%s4 + $0x98] sm:$0xf] %vm1505, %v1415
  %1545 = vst.msk [vmem:[%s4 + $0x9c] sm:$0xf] %vm1505, %v1416
  %1546 = vst.msk [vmem:[%s4 + $0xa0] sm:$0xf] %vm1505, %v1417
  %1547 = vst.msk [vmem:[%s4 + $0xa4] sm:$0xf] %vm1505, %v1418
  %1548 = vst.msk [vmem:[%s4 + $0xa8] sm:$0xf] %vm1505, %v1419
  %1549 = vst.msk [vmem:[%s4 + $0xac] sm:$0xf] %vm1505, %v1420
  %1550 = vst.msk [vmem:[%s4 + $0xb0] sm:$0xf] %vm1505, %v1421
  %1551 = vst.msk [vmem:[%s4 + $0xb4] sm:$0xf] %vm1505, %v1422
  %1552 = vst.msk [vmem:[%s4 + $0xb8] sm:$0xf] %vm1505, %v1423
  %1553 = vst.msk [vmem:[%s4 + $0xbc] sm:$0xf] %vm1505, %v1424
  %1554 = vst.msk [vmem:[%s4 + $0xc0] sm:$0xf] %vm1505, %v1425
  %1555 = vst.msk [vmem:[%s4 + $0xc4] sm:$0xf] %vm1505, %v1426
  %1556 = vst.msk [vmem:[%s4 + $0xc8] sm:$0xf] %vm1505, %v1427
  %1557 = vst.msk [vmem:[%s4 + $0xcc] sm:$0xf] %vm1505, %v1428
  %1558 = vst.msk [vmem:[%s4 + $0xd0] sm:$0xf] %vm1505, %v1429
  %1559 = vst.msk [vmem:[%s4 + $0xd4] sm:$0xf] %vm1505, %v1430
  %1560 = vst.msk [vmem:[%s4 + $0xd8] sm:$0xf] %vm1505, %v1431
  %1561 = vst.msk [vmem:[%s4 + $0xdc] sm:$0xf] %vm1505, %v1432
  %1562 = vst.msk [vmem:[%s4 + $0xe0] sm:$0xf] %vm1505, %v1433
  %1563 = vst.msk [vmem:[%s4 + $0xe4] sm:$0xf] %vm1505, %v1434
  %1564 = vst.msk [vmem:[%s4 + $0xe8] sm:$0xf] %vm1505, %v1435
  %1565 = vst.msk [vmem:[%s4 + $0xec] sm:$0xf] %vm1505, %v1436
  %1566 = vst.msk [vmem:[%s4 + $0xf0] sm:$0xf] %vm1505, %v1437
  %1567 = vst.msk [vmem:[%s4 + $0xf4] sm:$0xf] %vm1505, %v1438
  %1568 = vst.msk [vmem:[%s4 + $0xf8] sm:$0xf] %vm1505, %v1439
  %1569 = vst.msk [vmem:[%s4 + $0xfc] sm:$0xf] %vm1505, %v1440
  %vm1570 = vcmask 130048
  %v1571 = vsel %vm1570, %v995, 0.0
  %v1572 = vsel %vm1570, %v998, 0.0
  %v1573 = vadd.f32 %v1571, %v1572
  %v1574 = vsel %vm1570, %v1003, 0.0
  %v1575 = vadd.f32 %v1573, %v1574
  %v1576 = vsel %vm1570, %v1006, 0.0
  %v1577 = vadd.f32 %v1575, %v1576
  %v1578 = vsel %vm1570, %v1011, 0.0
  %v1579 = vadd.f32 %v1577, %v1578
  %v1580 = vsel %vm1570, %v1014, 0.0
  %v1581 = vadd.f32 %v1579, %v1580
  %v1582 = vsel %vm1570, %v1019, 0.0
  %v1583 = vadd.f32 %v1581, %v1582
  %v1584 = vsel %vm1570, %v1022, 0.0
  %v1585 = vadd.f32 %v1583, %v1584
  %v1586 = vsel %vm1570, %v1027, 0.0
  %v1587 = vadd.f32 %v1585, %v1586
  %v1588 = vsel %vm1570, %v1030, 0.0
  %v1589 = vadd.f32 %v1587, %v1588
  %v1590 = vsel %vm1570, %v1035, 0.0
  %v1591 = vadd.f32 %v1589, %v1590
  %v1592 = vsel %vm1570, %v1038, 0.0
  %v1593 = vadd.f32 %v1591, %v1592
  %v1594 = vsel %vm1570, %v1043, 0.0
  %v1595 = vadd.f32 %v1593, %v1594
  %v1596 = vsel %vm1570, %v1046, 0.0
  %v1597 = vadd.f32 %v1595, %v1596
  %v1598 = vsel %vm1570, %v1051, 0.0
  %v1599 = vadd.f32 %v1597, %v1598
  %v1600 = vsel %vm1570, %v1054, 0.0
  %v1601 = vadd.f32 %v1599, %v1600
  %v1602 = vsel %vm1570, %v1059, 0.0
  %v1603 = vadd.f32 %v1601, %v1602
  %v1604 = vsel %vm1570, %v1062, 0.0
  %v1605 = vadd.f32 %v1603, %v1604
  %v1606 = vsel %vm1570, %v1067, 0.0
  %v1607 = vadd.f32 %v1605, %v1606
  %v1608 = vsel %vm1570, %v1070, 0.0
  %v1609 = vadd.f32 %v1607, %v1608
  %v1610 = vsel %vm1570, %v1075, 0.0
  %v1611 = vadd.f32 %v1609, %v1610
  %v1612 = vsel %vm1570, %v1078, 0.0
  %v1613 = vadd.f32 %v1611, %v1612
  %v1614 = vsel %vm1570, %v1083, 0.0
  %v1615 = vadd.f32 %v1613, %v1614
  %v1616 = vsel %vm1570, %v1086, 0.0
  %v1617 = vadd.f32 %v1615, %v1616
  %v1618 = vsel %vm1570, %v1091, 0.0
  %v1619 = vadd.f32 %v1617, %v1618
  %v1620 = vsel %vm1570, %v1094, 0.0
  %v1621 = vadd.f32 %v1619, %v1620
  %v1622 = vsel %vm1570, %v1099, 0.0
  %v1623 = vadd.f32 %v1621, %v1622
  %v1624 = vsel %vm1570, %v1102, 0.0
  %v1625 = vadd.f32 %v1623, %v1624
  %v1626 = vsel %vm1570, %v1107, 0.0
  %v1627 = vadd.f32 %v1625, %v1626
  %v1628 = vsel %vm1570, %v1110, 0.0
  %v1629 = vadd.f32 %v1627, %v1628
  %v1630 = vsel %vm1570, %v1115, 0.0
  %v1631 = vadd.f32 %v1629, %v1630
  %v1632 = vsel %vm1570, %v1118, 0.0
  %v1633 = vadd.f32 %v1631, %v1632
  %v1634 = vsel %vm1570, %v1123, 0.0
  %v1635 = vadd.f32 %v1633, %v1634
  %v1636 = vsel %vm1570, %v1126, 0.0
  %v1637 = vadd.f32 %v1635, %v1636
  %v1638 = vsel %vm1570, %v1131, 0.0
  %v1639 = vadd.f32 %v1637, %v1638
  %v1640 = vsel %vm1570, %v1134, 0.0
  %v1641 = vadd.f32 %v1639, %v1640
  %v1642 = vsel %vm1570, %v1139, 0.0
  %v1643 = vadd.f32 %v1641, %v1642
  %v1644 = vsel %vm1570, %v1142, 0.0
  %v1645 = vadd.f32 %v1643, %v1644
  %v1646 = vsel %vm1570, %v1147, 0.0
  %v1647 = vadd.f32 %v1645, %v1646
  %v1648 = vsel %vm1570, %v1150, 0.0
  %v1649 = vadd.f32 %v1647, %v1648
  %v1650 = vsel %vm1570, %v1155, 0.0
  %v1651 = vadd.f32 %v1649, %v1650
  %v1652 = vsel %vm1570, %v1158, 0.0
  %v1653 = vadd.f32 %v1651, %v1652
  %v1654 = vsel %vm1570, %v1163, 0.0
  %v1655 = vadd.f32 %v1653, %v1654
  %v1656 = vsel %vm1570, %v1166, 0.0
  %v1657 = vadd.f32 %v1655, %v1656
  %v1658 = vsel %vm1570, %v1171, 0.0
  %v1659 = vadd.f32 %v1657, %v1658
  %v1660 = vsel %vm1570, %v1174, 0.0
  %v1661 = vadd.f32 %v1659, %v1660
  %v1662 = vsel %vm1570, %v1179, 0.0
  %v1663 = vadd.f32 %v1661, %v1662
  %v1664 = vsel %vm1570, %v1182, 0.0
  %v1665 = vadd.f32 %v1663, %v1664
  %v1666 = vsel %vm1570, %v1187, 0.0
  %v1667 = vadd.f32 %v1665, %v1666
  %v1668 = vsel %vm1570, %v1190, 0.0
  %v1669 = vadd.f32 %v1667, %v1668
  %v1670 = vsel %vm1570, %v1195, 0.0
  %v1671 = vadd.f32 %v1669, %v1670
  %v1672 = vsel %vm1570, %v1198, 0.0
  %v1673 = vadd.f32 %v1671, %v1672
  %v1674 = vsel %vm1570, %v1203, 0.0
  %v1675 = vadd.f32 %v1673, %v1674
  %v1676 = vsel %vm1570, %v1206, 0.0
  %v1677 = vadd.f32 %v1675, %v1676
  %v1678 = vsel %vm1570, %v1211, 0.0
  %v1679 = vadd.f32 %v1677, %v1678
  %v1680 = vsel %vm1570, %v1214, 0.0
  %v1681 = vadd.f32 %v1679, %v1680
  %v1682 = vsel %vm1570, %v1219, 0.0
  %v1683 = vadd.f32 %v1681, %v1682
  %v1684 = vsel %vm1570, %v1222, 0.0
  %v1685 = vadd.f32 %v1683, %v1684
  %v1686 = vsel %vm1570, %v1227, 0.0
  %v1687 = vadd.f32 %v1685, %v1686
  %v1688 = vsel %vm1570, %v1230, 0.0
  %v1689 = vadd.f32 %v1687, %v1688
  %v1690 = vsel %vm1570, %v1235, 0.0
  %v1691 = vadd.f32 %v1689, %v1690
  %v1692 = vsel %vm1570, %v1238, 0.0
  %v1693 = vadd.f32 %v1691, %v1692
  %v1694 = vsel %vm1570, %v1243, 0.0
  %v1695 = vadd.f32 %v1693, %v1694
  %v1696 = vsel %vm1570, %v1246, 0.0
  %v1697 = vadd.f32 %v1695, %v1696
  %v1698 = vrot.slane %v1697, 4
  %v1699 = vadd.f32 %v1697, %v1698
  %v1700 = vrot.slane %v1699, 2
  %v1701 = vadd.f32 %v1699, %v1700
  %v1702 = vrot.slane %v1701, 1
  %v1703 = vadd.f32 %v1701, %v1702
  %v1704 = vmul.f32 %v995, %v995
  %v1705 = vmul.f32 %v998, %v998
  %v1706 = vmul.f32 %v1003, %v1003
  %v1707 = vmul.f32 %v1006, %v1006
  %v1708 = vmul.f32 %v1011, %v1011
  %v1709 = vmul.f32 %v1014, %v1014
  %v1710 = vmul.f32 %v1019, %v1019
  %v1711 = vmul.f32 %v1022, %v1022
  %v1712 = vmul.f32 %v1027, %v1027
  %v1713 = vmul.f32 %v1030, %v1030
  %v1714 = vmul.f32 %v1035, %v1035
  %v1715 = vmul.f32 %v1038, %v1038
  %v1716 = vmul.f32 %v1043, %v1043
  %v1717 = vmul.f32 %v1046, %v1046
  %v1718 = vmul.f32 %v1051, %v1051
  %v1719 = vmul.f32 %v1054, %v1054
  %v1720 = vmul.f32 %v1059, %v1059
  %v1721 = vmul.f32 %v1062, %v1062
  %v1722 = vmul.f32 %v1067, %v1067
  %v1723 = vmul.f32 %v1070, %v1070
  %v1724 = vmul.f32 %v1075, %v1075
  %v1725 = vmul.f32 %v1078, %v1078
  %v1726 = vmul.f32 %v1083, %v1083
  %v1727 = vmul.f32 %v1086, %v1086
  %v1728 = vmul.f32 %v1091, %v1091
  %v1729 = vmul.f32 %v1094, %v1094
  %v1730 = vmul.f32 %v1099, %v1099
  %v1731 = vmul.f32 %v1102, %v1102
  %v1732 = vmul.f32 %v1107, %v1107
  %v1733 = vmul.f32 %v1110, %v1110
  %v1734 = vmul.f32 %v1115, %v1115
  %v1735 = vmul.f32 %v1118, %v1118
  %v1736 = vmul.f32 %v1123, %v1123
  %v1737 = vmul.f32 %v1126, %v1126
  %v1738 = vmul.f32 %v1131, %v1131
  %v1739 = vmul.f32 %v1134, %v1134
  %v1740 = vmul.f32 %v1139, %v1139
  %v1741 = vmul.f32 %v1142, %v1142
  %v1742 = vmul.f32 %v1147, %v1147
  %v1743 = vmul.f32 %v1150, %v1150
  %v1744 = vmul.f32 %v1155, %v1155
  %v1745 = vmul.f32 %v1158, %v1158
  %v1746 = vmul.f32 %v1163, %v1163
  %v1747 = vmul.f32 %v1166, %v1166
  %v1748 = vmul.f32 %v1171, %v1171
  %v1749 = vmul.f32 %v1174, %v1174
  %v1750 = vmul.f32 %v1179, %v1179
  %v1751 = vmul.f32 %v1182, %v1182
  %v1752 = vmul.f32 %v1187, %v1187
  %v1753 = vmul.f32 %v1190, %v1190
  %v1754 = vmul.f32 %v1195, %v1195
  %v1755 = vmul.f32 %v1198, %v1198
  %v1756 = vmul.f32 %v1203, %v1203
  %v1757 = vmul.f32 %v1206, %v1206
  %v1758 = vmul.f32 %v1211, %v1211
  %v1759 = vmul.f32 %v1214, %v1214
  %v1760 = vmul.f32 %v1219, %v1219
  %v1761 = vmul.f32 %v1222, %v1222
  %v1762 = vmul.f32 %v1227, %v1227
  %v1763 = vmul.f32 %v1230, %v1230
  %v1764 = vmul.f32 %v1235, %v1235
  %v1765 = vmul.f32 %v1238, %v1238
  %v1766 = vmul.f32 %v1243, %v1243
  %v1767 = vmul.f32 %v1246, %v1246
  %v1768 = vsel %vm1570, %v1704, 0.0
  %v1769 = vsel %vm1570, %v1705, 0.0
  %v1770 = vadd.f32 %v1768, %v1769
  %v1771 = vsel %vm1570, %v1706, 0.0
  %v1772 = vadd.f32 %v1770, %v1771
  %v1773 = vsel %vm1570, %v1707, 0.0
  %v1774 = vadd.f32 %v1772, %v1773
  %v1775 = vsel %vm1570, %v1708, 0.0
  %v1776 = vadd.f32 %v1774, %v1775
  %v1777 = vsel %vm1570, %v1709, 0.0
  %v1778 = vadd.f32 %v1776, %v1777
  %v1779 = vsel %vm1570, %v1710, 0.0
  %v1780 = vadd.f32 %v1778, %v1779
  %v1781 = vsel %vm1570, %v1711, 0.0
  %v1782 = vadd.f32 %v1780, %v1781
  %v1783 = vsel %vm1570, %v1712, 0.0
  %v1784 = vadd.f32 %v1782, %v1783
  %v1785 = vsel %vm1570, %v1713, 0.0
  %v1786 = vadd.f32 %v1784, %v1785
  %v1787 = vsel %vm1570, %v1714, 0.0
  %v1788 = vadd.f32 %v1786, %v1787
  %v1789 = vsel %vm1570, %v1715, 0.0
  %v1790 = vadd.f32 %v1788, %v1789
  %v1791 = vsel %vm1570, %v1716, 0.0
  %v1792 = vadd.f32 %v1790, %v1791
  %v1793 = vsel %vm1570, %v1717, 0.0
  %v1794 = vadd.f32 %v1792, %v1793
  %v1795 = vsel %vm1570, %v1718, 0.0
  %v1796 = vadd.f32 %v1794, %v1795
  %v1797 = vsel %vm1570, %v1719, 0.0
  %v1798 = vadd.f32 %v1796, %v1797
  %v1799 = vsel %vm1570, %v1720, 0.0
  %v1800 = vadd.f32 %v1798, %v1799
  %v1801 = vsel %vm1570, %v1721, 0.0
  %v1802 = vadd.f32 %v1800, %v1801
  %v1803 = vsel %vm1570, %v1722, 0.0
  %v1804 = vadd.f32 %v1802, %v1803
  %v1805 = vsel %vm1570, %v1723, 0.0
  %v1806 = vadd.f32 %v1804, %v1805
  %v1807 = vsel %vm1570, %v1724, 0.0
  %v1808 = vadd.f32 %v1806, %v1807
  %v1809 = vsel %vm1570, %v1725, 0.0
  %v1810 = vadd.f32 %v1808, %v1809
  %v1811 = vsel %vm1570, %v1726, 0.0
  %v1812 = vadd.f32 %v1810, %v1811
  %v1813 = vsel %vm1570, %v1727, 0.0
  %v1814 = vadd.f32 %v1812, %v1813
  %v1815 = vsel %vm1570, %v1728, 0.0
  %v1816 = vadd.f32 %v1814, %v1815
  %v1817 = vsel %vm1570, %v1729, 0.0
  %v1818 = vadd.f32 %v1816, %v1817
  %v1819 = vsel %vm1570, %v1730, 0.0
  %v1820 = vadd.f32 %v1818, %v1819
  %v1821 = vsel %vm1570, %v1731, 0.0
  %v1822 = vadd.f32 %v1820, %v1821
  %v1823 = vsel %vm1570, %v1732, 0.0
  %v1824 = vadd.f32 %v1822, %v1823
  %v1825 = vsel %vm1570, %v1733, 0.0
  %v1826 = vadd.f32 %v1824, %v1825
  %v1827 = vsel %vm1570, %v1734, 0.0
  %v1828 = vadd.f32 %v1826, %v1827
  %v1829 = vsel %vm1570, %v1735, 0.0
  %v1830 = vadd.f32 %v1828, %v1829
  %v1831 = vsel %vm1570, %v1736, 0.0
  %v1832 = vadd.f32 %v1830, %v1831
  %v1833 = vsel %vm1570, %v1737, 0.0
  %v1834 = vadd.f32 %v1832, %v1833
  %v1835 = vsel %vm1570, %v1738, 0.0
  %v1836 = vadd.f32 %v1834, %v1835
  %v1837 = vsel %vm1570, %v1739, 0.0
  %v1838 = vadd.f32 %v1836, %v1837
  %v1839 = vsel %vm1570, %v1740, 0.0
  %v1840 = vadd.f32 %v1838, %v1839
  %v1841 = vsel %vm1570, %v1741, 0.0
  %v1842 = vadd.f32 %v1840, %v1841
  %v1843 = vsel %vm1570, %v1742, 0.0
  %v1844 = vadd.f32 %v1842, %v1843
  %v1845 = vsel %vm1570, %v1743, 0.0
  %v1846 = vadd.f32 %v1844, %v1845
  %v1847 = vsel %vm1570, %v1744, 0.0
  %v1848 = vadd.f32 %v1846, %v1847
  %v1849 = vsel %vm1570, %v1745, 0.0
  %v1850 = vadd.f32 %v1848, %v1849
  %v1851 = vsel %vm1570, %v1746, 0.0
  %v1852 = vadd.f32 %v1850, %v1851
  %v1853 = vsel %vm1570, %v1747, 0.0
  %v1854 = vadd.f32 %v1852, %v1853
  %v1855 = vsel %vm1570, %v1748, 0.0
  %v1856 = vadd.f32 %v1854, %v1855
  %v1857 = vsel %vm1570, %v1749, 0.0
  %v1858 = vadd.f32 %v1856, %v1857
  %v1859 = vsel %vm1570, %v1750, 0.0
  %v1860 = vadd.f32 %v1858, %v1859
  %v1861 = vsel %vm1570, %v1751, 0.0
  %v1862 = vadd.f32 %v1860, %v1861
  %v1863 = vsel %vm1570, %v1752, 0.0
  %v1864 = vadd.f32 %v1862, %v1863
  %v1865 = vsel %vm1570, %v1753, 0.0
  %v1866 = vadd.f32 %v1864, %v1865
  %v1867 = vsel %vm1570, %v1754, 0.0
  %v1868 = vadd.f32 %v1866, %v1867
  %v1869 = vsel %vm1570, %v1755, 0.0
  %v1870 = vadd.f32 %v1868, %v1869
  %v1871 = vsel %vm1570, %v1756, 0.0
  %v1872 = vadd.f32 %v1870, %v1871
  %v1873 = vsel %vm1570, %v1757, 0.0
  %v1874 = vadd.f32 %v1872, %v1873
  %v1875 = vsel %vm1570, %v1758, 0.0
  %v1876 = vadd.f32 %v1874, %v1875
  %v1877 = vsel %vm1570, %v1759, 0.0
  %v1878 = vadd.f32 %v1876, %v1877
  %v1879 = vsel %vm1570, %v1760, 0.0
  %v1880 = vadd.f32 %v1878, %v1879
  %v1881 = vsel %vm1570, %v1761, 0.0
  %v1882 = vadd.f32 %v1880, %v1881
  %v1883 = vsel %vm1570, %v1762, 0.0
  %v1884 = vadd.f32 %v1882, %v1883
  %v1885 = vsel %vm1570, %v1763, 0.0
  %v1886 = vadd.f32 %v1884, %v1885
  %v1887 = vsel %vm1570, %v1764, 0.0
  %v1888 = vadd.f32 %v1886, %v1887
  %v1889 = vsel %vm1570, %v1765, 0.0
  %v1890 = vadd.f32 %v1888, %v1889
  %v1891 = vsel %vm1570, %v1766, 0.0
  %v1892 = vadd.f32 %v1890, %v1891
  %v1893 = vsel %vm1570, %v1767, 0.0
  %v1894 = vadd.f32 %v1892, %v1893
  %v1895 = vrot.slane %v1894, 4
  %v1896 = vadd.f32 %v1894, %v1895
  %v1897 = vrot.slane %v1896, 2
  %v1898 = vadd.f32 %v1896, %v1897
  %v1899 = vrot.slane %v1898, 1
  %v1900 = vadd.f32 %v1898, %v1899
  %1901 = vst.msk [vmem:[%s5] sm:$0xff] %vm1570, %v1703
  %1902 = vst.msk [vmem:[%s6] sm:$0xff] %vm1570, %v1900
  // Predicated region
  $region18: #{skip_upsample_forward.4} parent=0 // pred_check
    _
  $region19: #{skip_upsample_forward.4} parent=0 // pred_check_branch
    %1904 = sbr.rel (0) target = $region21
  $region20: #{skip_upsample_forward.4} parent=0 // pred_region
    _
  $region21: #{skip_upsample_forward.4} parent=0 // pred_fallthru
    _
  // Predicated region
  $region22: #{skip_upsample_forward.4} parent=0 // pred_check
    _
  $region23: #{skip_upsample_forward.4} parent=0 // pred_check_branch
    %1906 = sbr.rel (0) target = $region25
  $region24: #{skip_upsample_forward.4} parent=0 // pred_region
    _
  $region25: #{skip_upsample_forward.4} parent=0 // pred_fallthru
    _
  // Predicated region
  $region26: #{skip_upsample_forward.4} parent=0 // pred_check
    _
  $region27: #{skip_upsample_forward.4} parent=0 // pred_check_branch
    %1908 = sbr.rel (0) target = $region29
  $region28: #{skip_upsample_forward.4} parent=0 // pred_region
    _
  $region29: #{skip_upsample_forward.4} parent=0 // pred_fallthru
    _
  // Predicated region
  $region30: #{skip_upsample_forward.4} parent=0 // pred_check
    _
  $region31: #{skip_upsample_forward.4} parent=0 // pred_check_branch
    %1910 = sbr.rel (0) target = $region33
  $region32: #{skip_upsample_forward.4} parent=0 // pred_region
    _
  $region33: #{skip_upsample_forward.4} parent=0 // pred_fallthru
    _
  // Predicated region
  $region34: #{skip_upsample_forward.4} parent=0 // pred_check
    _
  $region35: #{skip_upsample_forward.4} parent=0 // pred_check_branch
    %1912 = sbr.rel (0) target = $region37
  $region36: #{skip_upsample_forward.4} parent=0 // pred_region
    _
  $region37: #{skip_upsample_forward.4} parent=0 // pred_fallthru
    _
  // Predicated region
  $region38: #{skip_upsample_forward.4} parent=0 // pred_check
    _
  $region39: #{skip_upsample_forward.4} parent=0 // pred_check_branch
    %1914 = sbr.rel (0) target = $region41
  $region40: #{skip_upsample_forward.4} parent=0 // pred_region
    _
  $region41: #{skip_upsample_forward.4} parent=0 // pred_fallthru
    _

// kernel: skip_upsample_forward.5
$region0: #{skip_upsample_forward.5}
  #allocation0 [shape = 'u32[]', space=smem, size = 0x4, offset = 0x4, fixed_abs, tag = 'smem constant byte address 0x4 - core index']
  #allocation1 [shape = 'u32[144,128]{1,0:T(1,128)}', space=vmem, size = 0x12000, scoped, tag = 'internal scratch']
  %s0 = inlined_call_operand.vmem [shape: bf16[32,16,16], index: 0, kind: input, shape index: {}]
  %s1 = inlined_call_operand.vmem [shape: f32[1,1,16], index: 1, kind: input, shape index: {}]
  %s2 = inlined_call_operand.vmem [shape: f32[1,1,16], index: 2, kind: input, shape index: {}]
  %s3 = inlined_call_operand.vmem [shape: bf16[32,18,8], index: 3, kind: output, shape index: {0}]
  %s4 = inlined_call_operand.vmem [shape: bf16[32,16,8], index: 4, kind: output, shape index: {1}]
  %5 = xla_tuple %s3, %s4
  %s6 = sld [smem:[#allocation0]]
  $region30: #{skip_upsample_forward.5} parent=0
    _
  %s8 = ssub.s32 1, %s6
  %s9 = scalar_select 0, %s8, %s6
  // Predicated region
  $region2: #{skip_upsample_forward.5} parent=0 // pred_check
    _
  $region3: #{skip_upsample_forward.5} parent=0 // pred_check_branch
    %11 = sbr.rel (0) target = $region5
  $region4: #{skip_upsample_forward.5} parent=0 // pred_region
    _
  $region5: #{skip_upsample_forward.5} parent=0 // pred_fallthru
    _
  // Predicated region
  $region6: #{skip_upsample_forward.5} parent=0 // pred_check
    _
  $region7: #{skip_upsample_forward.5} parent=0 // pred_check_branch
    %13 = sbr.rel (0) target = $region9
  $region8: #{skip_upsample_forward.5} parent=0 // pred_region
    _
  $region9: #{skip_upsample_forward.5} parent=0 // pred_fallthru
    _
  // Predicated region
  $region10: #{skip_upsample_forward.5} parent=0 // pred_check
    _
  $region11: #{skip_upsample_forward.5} parent=0 // pred_check_branch
    %15 = sbr.rel (0) target = $region13
  $region12: #{skip_upsample_forward.5} parent=0 // pred_region
    _
  $region13: #{skip_upsample_forward.5} parent=0 // pred_fallthru
    _
  %v17 = vld [vmem:[%s0] sm:$0xf]
  %v18 = vld [vmem:[%s0 + $0x4] sm:$0xf]
  %v19 = vld [vmem:[%s0 + $0x8] sm:$0xf]
  %v20 = vld [vmem:[%s0 + $0xc] sm:$0xf]
  %v21 = vld [vmem:[%s0 + $0x10] sm:$0xf]
  %v22 = vld [vmem:[%s0 + $0x14] sm:$0xf]
  %v23 = vld [vmem:[%s0 + $0x18] sm:$0xf]
  %v24 = vld [vmem:[%s0 + $0x1c] sm:$0xf]
  %v25 = vld [vmem:[%s0 + $0x20] sm:$0xf]
  %v26 = vld [vmem:[%s0 + $0x24] sm:$0xf]
  %v27 = vld [vmem:[%s0 + $0x28] sm:$0xf]
  %v28 = vld [vmem:[%s0 + $0x2c] sm:$0xf]
  %v29 = vld [vmem:[%s0 + $0x30] sm:$0xf]
  %v30 = vld [vmem:[%s0 + $0x34] sm:$0xf]
  %v31 = vld [vmem:[%s0 + $0x38] sm:$0xf]
  %v32 = vld [vmem:[%s0 + $0x3c] sm:$0xf]
  %v33 = vld [vmem:[%s0 + $0x40] sm:$0xf]
  %v34 = vld [vmem:[%s0 + $0x44] sm:$0xf]
  %v35 = vld [vmem:[%s0 + $0x48] sm:$0xf]
  %v36 = vld [vmem:[%s0 + $0x4c] sm:$0xf]
  %v37 = vld [vmem:[%s0 + $0x50] sm:$0xf]
  %v38 = vld [vmem:[%s0 + $0x54] sm:$0xf]
  %v39 = vld [vmem:[%s0 + $0x58] sm:$0xf]
  %v40 = vld [vmem:[%s0 + $0x5c] sm:$0xf]
  %v41 = vld [vmem:[%s0 + $0x60] sm:$0xf]
  %v42 = vld [vmem:[%s0 + $0x64] sm:$0xf]
  %v43 = vld [vmem:[%s0 + $0x68] sm:$0xf]
  %v44 = vld [vmem:[%s0 + $0x6c] sm:$0xf]
  %v45 = vld [vmem:[%s0 + $0x70] sm:$0xf]
  %v46 = vld [vmem:[%s0 + $0x74] sm:$0xf]
  %v47 = vld [vmem:[%s0 + $0x78] sm:$0xf]
  %v48 = vld [vmem:[%s0 + $0x7c] sm:$0xf]
  %v49 = vld [vmem:[%s0 + $0x80] sm:$0xf]
  %v50 = vld [vmem:[%s0 + $0x84] sm:$0xf]
  %v51 = vld [vmem:[%s0 + $0x88] sm:$0xf]
  %v52 = vld [vmem:[%s0 + $0x8c] sm:$0xf]
  %v53 = vld [vmem:[%s0 + $0x90] sm:$0xf]
  %v54 = vld [vmem:[%s0 + $0x94] sm:$0xf]
  %v55 = vld [vmem:[%s0 + $0x98] sm:$0xf]
  %v56 = vld [vmem:[%s0 + $0x9c] sm:$0xf]
  %v57 = vld [vmem:[%s0 + $0xa0] sm:$0xf]
  %v58 = vld [vmem:[%s0 + $0xa4] sm:$0xf]
  %v59 = vld [vmem:[%s0 + $0xa8] sm:$0xf]
  %v60 = vld [vmem:[%s0 + $0xac] sm:$0xf]
  %v61 = vld [vmem:[%s0 + $0xb0] sm:$0xf]
  %v62 = vld [vmem:[%s0 + $0xb4] sm:$0xf]
  %v63 = vld [vmem:[%s0 + $0xb8] sm:$0xf]
  %v64 = vld [vmem:[%s0 + $0xbc] sm:$0xf]
  %v65 = vld [vmem:[%s0 + $0xc0] sm:$0xf]
  %v66 = vld [vmem:[%s0 + $0xc4] sm:$0xf]
  %v67 = vld [vmem:[%s0 + $0xc8] sm:$0xf]
  %v68 = vld [vmem:[%s0 + $0xcc] sm:$0xf]
  %v69 = vld [vmem:[%s0 + $0xd0] sm:$0xf]
  %v70 = vld [vmem:[%s0 + $0xd4] sm:$0xf]
  %v71 = vld [vmem:[%s0 + $0xd8] sm:$0xf]
  %v72 = vld [vmem:[%s0 + $0xdc] sm:$0xf]
  %v73 = vld [vmem:[%s0 + $0xe0] sm:$0xf]
  %v74 = vld [vmem:[%s0 + $0xe4] sm:$0xf]
  %v75 = vld [vmem:[%s0 + $0xe8] sm:$0xf]
  %v76 = vld [vmem:[%s0 + $0xec] sm:$0xf]
  %v77 = vld [vmem:[%s0 + $0xf0] sm:$0xf]
  %v78 = vld [vmem:[%s0 + $0xf4] sm:$0xf]
  %v79 = vld [vmem:[%s0 + $0xf8] sm:$0xf]
  %v80 = vld [vmem:[%s0 + $0xfc] sm:$0xf]
  %v81 = vunpack.c.l.bf16 %v17
  %v82 = vunpack.c.l.bf16 %v18
  %v83 = vunpack.c.l.bf16 %v19
  %v84 = vunpack.c.l.bf16 %v20
  %v85 = vunpack.c.l.bf16 %v21
  %v86 = vunpack.c.l.bf16 %v22
  %v87 = vunpack.c.l.bf16 %v23
  %v88 = vunpack.c.l.bf16 %v24
  %v89 = vunpack.c.l.bf16 %v25
  %v90 = vunpack.c.l.bf16 %v26
  %v91 = vunpack.c.l.bf16 %v27
  %v92 = vunpack.c.l.bf16 %v28
  %v93 = vunpack.c.l.bf16 %v29
  %v94 = vunpack.c.l.bf16 %v30
  %v95 = vunpack.c.l.bf16 %v31
  %v96 = vunpack.c.l.bf16 %v32
  %v97 = vunpack.c.l.bf16 %v33
  %v98 = vunpack.c.l.bf16 %v34
  %v99 = vunpack.c.l.bf16 %v35
  %v100 = vunpack.c.l.bf16 %v36
  %v101 = vunpack.c.l.bf16 %v37
  %v102 = vunpack.c.l.bf16 %v38
  %v103 = vunpack.c.l.bf16 %v39
  %v104 = vunpack.c.l.bf16 %v40
  %v105 = vunpack.c.l.bf16 %v41
  %v106 = vunpack.c.l.bf16 %v42
  %v107 = vunpack.c.l.bf16 %v43
  %v108 = vunpack.c.l.bf16 %v44
  %v109 = vunpack.c.l.bf16 %v45
  %v110 = vunpack.c.l.bf16 %v46
  %v111 = vunpack.c.l.bf16 %v47
  %v112 = vunpack.c.l.bf16 %v48
  %v113 = vunpack.c.l.bf16 %v49
  %v114 = vunpack.c.l.bf16 %v50
  %v115 = vunpack.c.l.bf16 %v51
  %v116 = vunpack.c.l.bf16 %v52
  %v117 = vunpack.c.l.bf16 %v53
  %v118 = vunpack.c.l.bf16 %v54
  %v119 = vunpack.c.l.bf16 %v55
  %v120 = vunpack.c.l.bf16 %v56
  %v121 = vunpack.c.l.bf16 %v57
  %v122 = vunpack.c.l.bf16 %v58
  %v123 = vunpack.c.l.bf16 %v59
  %v124 = vunpack.c.l.bf16 %v60
  %v125 = vunpack.c.l.bf16 %v61
  %v126 = vunpack.c.l.bf16 %v62
  %v127 = vunpack.c.l.bf16 %v63
  %v128 = vunpack.c.l.bf16 %v64
  %v129 = vunpack.c.l.bf16 %v65
  %v130 = vunpack.c.l.bf16 %v66
  %v131 = vunpack.c.l.bf16 %v67
  %v132 = vunpack.c.l.bf16 %v68
  %v133 = vunpack.c.l.bf16 %v69
  %v134 = vunpack.c.l.bf16 %v70
  %v135 = vunpack.c.l.bf16 %v71
  %v136 = vunpack.c.l.bf16 %v72
  %v137 = vunpack.c.l.bf16 %v73
  %v138 = vunpack.c.l.bf16 %v74
  %v139 = vunpack.c.l.bf16 %v75
  %v140 = vunpack.c.l.bf16 %v76
  %v141 = vunpack.c.l.bf16 %v77
  %v142 = vunpack.c.l.bf16 %v78
  %v143 = vunpack.c.l.bf16 %v79
  %v144 = vunpack.c.l.bf16 %v80
  %v145 = vld [vmem:[%s1] sm:$0x1]
  %v147 = vlaneseq
  %v148 = vshrl.u32 %v147, 7
  %v149 = vsub.s32 0, %v148
  %v150 = vrot.slane %v145, %v149
  %v152 = vmul.f32 %v81, %v150
  %v153 = vmul.f32 %v82, %v150
  %v154 = vmul.f32 %v83, %v150
  %v155 = vmul.f32 %v84, %v150
  %v156 = vmul.f32 %v85, %v150
  %v157 = vmul.f32 %v86, %v150
  %v158 = vmul.f32 %v87, %v150
  %v159 = vmul.f32 %v88, %v150
  %v160 = vmul.f32 %v89, %v150
  %v161 = vmul.f32 %v90, %v150
  %v162 = vmul.f32 %v91, %v150
  %v163 = vmul.f32 %v92, %v150
  %v164 = vmul.f32 %v93, %v150
  %v165 = vmul.f32 %v94, %v150
  %v166 = vmul.f32 %v95, %v150
  %v167 = vmul.f32 %v96, %v150
  %v168 = vmul.f32 %v97, %v150
  %v169 = vmul.f32 %v98, %v150
  %v170 = vmul.f32 %v99, %v150
  %v171 = vmul.f32 %v100, %v150
  %v172 = vmul.f32 %v101, %v150
  %v173 = vmul.f32 %v102, %v150
  %v174 = vmul.f32 %v103, %v150
  %v175 = vmul.f32 %v104, %v150
  %v176 = vmul.f32 %v105, %v150
  %v177 = vmul.f32 %v106, %v150
  %v178 = vmul.f32 %v107, %v150
  %v179 = vmul.f32 %v108, %v150
  %v180 = vmul.f32 %v109, %v150
  %v181 = vmul.f32 %v110, %v150
  %v182 = vmul.f32 %v111, %v150
  %v183 = vmul.f32 %v112, %v150
  %v184 = vmul.f32 %v113, %v150
  %v185 = vmul.f32 %v114, %v150
  %v186 = vmul.f32 %v115, %v150
  %v187 = vmul.f32 %v116, %v150
  %v188 = vmul.f32 %v117, %v150
  %v189 = vmul.f32 %v118, %v150
  %v190 = vmul.f32 %v119, %v150
  %v191 = vmul.f32 %v120, %v150
  %v192 = vmul.f32 %v121, %v150
  %v193 = vmul.f32 %v122, %v150
  %v194 = vmul.f32 %v123, %v150
  %v195 = vmul.f32 %v124, %v150
  %v196 = vmul.f32 %v125, %v150
  %v197 = vmul.f32 %v126, %v150
  %v198 = vmul.f32 %v127, %v150
  %v199 = vmul.f32 %v128, %v150
  %v200 = vmul.f32 %v129, %v150
  %v201 = vmul.f32 %v130, %v150
  %v202 = vmul.f32 %v131, %v150
  %v203 = vmul.f32 %v132, %v150
  %v204 = vmul.f32 %v133, %v150
  %v205 = vmul.f32 %v134, %v150
  %v206 = vmul.f32 %v135, %v150
  %v207 = vmul.f32 %v136, %v150
  %v208 = vmul.f32 %v137, %v150
  %v209 = vmul.f32 %v138, %v150
  %v210 = vmul.f32 %v139, %v150
  %v211 = vmul.f32 %v140, %v150
  %v212 = vmul.f32 %v141, %v150
  %v213 = vmul.f32 %v142, %v150
  %v214 = vmul.f32 %v143, %v150
  %v215 = vmul.f32 %v144, %v150
  %v216 = vld [vmem:[%s2] sm:$0x1]
  %v218 = vlaneseq
  %v219 = vshrl.u32 %v218, 7
  %v220 = vsub.s32 0, %v219
  %v221 = vrot.slane %v216, %v220
  %v223 = vadd.f32 %v152, %v221
  %v224 = vadd.f32 %v153, %v221
  %v225 = vadd.f32 %v154, %v221
  %v226 = vadd.f32 %v155, %v221
  %v227 = vadd.f32 %v156, %v221
  %v228 = vadd.f32 %v157, %v221
  %v229 = vadd.f32 %v158, %v221
  %v230 = vadd.f32 %v159, %v221
  %v231 = vadd.f32 %v160, %v221
  %v232 = vadd.f32 %v161, %v221
  %v233 = vadd.f32 %v162, %v221
  %v234 = vadd.f32 %v163, %v221
  %v235 = vadd.f32 %v164, %v221
  %v236 = vadd.f32 %v165, %v221
  %v237 = vadd.f32 %v166, %v221
  %v238 = vadd.f32 %v167, %v221
  %v239 = vadd.f32 %v168, %v221
  %v240 = vadd.f32 %v169, %v221
  %v241 = vadd.f32 %v170, %v221
  %v242 = vadd.f32 %v171, %v221
  %v243 = vadd.f32 %v172, %v221
  %v244 = vadd.f32 %v173, %v221
  %v245 = vadd.f32 %v174, %v221
  %v246 = vadd.f32 %v175, %v221
  %v247 = vadd.f32 %v176, %v221
  %v248 = vadd.f32 %v177, %v221
  %v249 = vadd.f32 %v178, %v221
  %v250 = vadd.f32 %v179, %v221
  %v251 = vadd.f32 %v180, %v221
  %v252 = vadd.f32 %v181, %v221
  %v253 = vadd.f32 %v182, %v221
  %v254 = vadd.f32 %v183, %v221
  %v255 = vadd.f32 %v184, %v221
  %v256 = vadd.f32 %v185, %v221
  %v257 = vadd.f32 %v186, %v221
  %v258 = vadd.f32 %v187, %v221
  %v259 = vadd.f32 %v188, %v221
  %v260 = vadd.f32 %v189, %v221
  %v261 = vadd.f32 %v190, %v221
  %v262 = vadd.f32 %v191, %v221
  %v263 = vadd.f32 %v192, %v221
  %v264 = vadd.f32 %v193, %v221
  %v265 = vadd.f32 %v194, %v221
  %v266 = vadd.f32 %v195, %v221
  %v267 = vadd.f32 %v196, %v221
  %v268 = vadd.f32 %v197, %v221
  %v269 = vadd.f32 %v198, %v221
  %v270 = vadd.f32 %v199, %v221
  %v271 = vadd.f32 %v200, %v221
  %v272 = vadd.f32 %v201, %v221
  %v273 = vadd.f32 %v202, %v221
  %v274 = vadd.f32 %v203, %v221
  %v275 = vadd.f32 %v204, %v221
  %v276 = vadd.f32 %v205, %v221
  %v277 = vadd.f32 %v206, %v221
  %v278 = vadd.f32 %v207, %v221
  %v279 = vadd.f32 %v208, %v221
  %v280 = vadd.f32 %v209, %v221
  %v281 = vadd.f32 %v210, %v221
  %v282 = vadd.f32 %v211, %v221
  %v283 = vadd.f32 %v212, %v221
  %v284 = vadd.f32 %v213, %v221
  %v285 = vadd.f32 %v214, %v221
  %v286 = vadd.f32 %v215, %v221
  %v287 = vmax.f32 %v223, 0.0
  %v288 = vmax.f32 %v224, 0.0
  %v289 = vmax.f32 %v225, 0.0
  %v290 = vmax.f32 %v226, 0.0
  %v291 = vmax.f32 %v227, 0.0
  %v292 = vmax.f32 %v228, 0.0
  %v293 = vmax.f32 %v229, 0.0
  %v294 = vmax.f32 %v230, 0.0
  %v295 = vmax.f32 %v231, 0.0
  %v296 = vmax.f32 %v232, 0.0
  %v297 = vmax.f32 %v233, 0.0
  %v298 = vmax.f32 %v234, 0.0
  %v299 = vmax.f32 %v235, 0.0
  %v300 = vmax.f32 %v236, 0.0
  %v301 = vmax.f32 %v237, 0.0
  %v302 = vmax.f32 %v238, 0.0
  %v303 = vmax.f32 %v239, 0.0
  %v304 = vmax.f32 %v240, 0.0
  %v305 = vmax.f32 %v241, 0.0
  %v306 = vmax.f32 %v242, 0.0
  %v307 = vmax.f32 %v243, 0.0
  %v308 = vmax.f32 %v244, 0.0
  %v309 = vmax.f32 %v245, 0.0
  %v310 = vmax.f32 %v246, 0.0
  %v311 = vmax.f32 %v247, 0.0
  %v312 = vmax.f32 %v248, 0.0
  %v313 = vmax.f32 %v249, 0.0
  %v314 = vmax.f32 %v250, 0.0
  %v315 = vmax.f32 %v251, 0.0
  %v316 = vmax.f32 %v252, 0.0
  %v317 = vmax.f32 %v253, 0.0
  %v318 = vmax.f32 %v254, 0.0
  %v319 = vmax.f32 %v255, 0.0
  %v320 = vmax.f32 %v256, 0.0
  %v321 = vmax.f32 %v257, 0.0
  %v322 = vmax.f32 %v258, 0.0
  %v323 = vmax.f32 %v259, 0.0
  %v324 = vmax.f32 %v260, 0.0
  %v325 = vmax.f32 %v261, 0.0
  %v326 = vmax.f32 %v262, 0.0
  %v327 = vmax.f32 %v263, 0.0
  %v328 = vmax.f32 %v264, 0.0
  %v329 = vmax.f32 %v265, 0.0
  %v330 = vmax.f32 %v266, 0.0
  %v331 = vmax.f32 %v267, 0.0
  %v332 = vmax.f32 %v268, 0.0
  %v333 = vmax.f32 %v269, 0.0
  %v334 = vmax.f32 %v270, 0.0
  %v335 = vmax.f32 %v271, 0.0
  %v336 = vmax.f32 %v272, 0.0
  %v337 = vmax.f32 %v273, 0.0
  %v338 = vmax.f32 %v274, 0.0
  %v339 = vmax.f32 %v275, 0.0
  %v340 = vmax.f32 %v276, 0.0
  %v341 = vmax.f32 %v277, 0.0
  %v342 = vmax.f32 %v278, 0.0
  %v343 = vmax.f32 %v279, 0.0
  %v344 = vmax.f32 %v280, 0.0
  %v345 = vmax.f32 %v281, 0.0
  %v346 = vmax.f32 %v282, 0.0
  %v347 = vmax.f32 %v283, 0.0
  %v348 = vmax.f32 %v284, 0.0
  %v349 = vmax.f32 %v285, 0.0
  %v350 = vmax.f32 %v286, 0.0
  %vm351 = vcmask 57344
  %vm352 = vsmask.f32 256
  %vm353 = vmand %vm351, %vm352
  %v354 = vld [vmem:[%s3] sm:$0x1]
  %v355 = vsel %vm353, 0, %v354
  %356 = vst [vmem:[%s3] sm:$0x1] %v355
  %v357 = vld [vmem:[%s3 + $0xc] sm:$0x1]
  %v358 = vsel %vm353, 0, %v357
  %359 = vst [vmem:[%s3 + $0xc] sm:$0x1] %v358
  %v360 = vld [vmem:[%s3 + $0x18] sm:$0x1]
  %v361 = vsel %vm353, 0, %v360
  %362 = vst [vmem:[%s3 + $0x18] sm:$0x1] %v361
  %v363 = vld [vmem:[%s3 + $0x24] sm:$0x1]
  %v364 = vsel %vm353, 0, %v363
  %365 = vst [vmem:[%s3 + $0x24] sm:$0x1] %v364
  %v366 = vld [vmem:[%s3 + $0x30] sm:$0x1]
  %v367 = vsel %vm353, 0, %v366
  %368 = vst [vmem:[%s3 + $0x30] sm:$0x1] %v367
  %v369 = vld [vmem:[%s3 + $0x3c] sm:$0x1]
  %v370 = vsel %vm353, 0, %v369
  %371 = vst [vmem:[%s3 + $0x3c] sm:$0x1] %v370
  %v372 = vld [vmem:[%s3 + $0x48] sm:$0x1]
  %v373 = vsel %vm353, 0, %v372
  %374 = vst [vmem:[%s3 + $0x48] sm:$0x1] %v373
  %v375 = vld [vmem:[%s3 + $0x54] sm:$0x1]
  %v376 = vsel %vm353, 0, %v375
  %377 = vst [vmem:[%s3 + $0x54] sm:$0x1] %v376
  %v378 = vld [vmem:[%s3 + $0x60] sm:$0x1]
  %v379 = vsel %vm353, 0, %v378
  %380 = vst [vmem:[%s3 + $0x60] sm:$0x1] %v379
  %v381 = vld [vmem:[%s3 + $0x6c] sm:$0x1]
  %v382 = vsel %vm353, 0, %v381
  %383 = vst [vmem:[%s3 + $0x6c] sm:$0x1] %v382
  %v384 = vld [vmem:[%s3 + $0x78] sm:$0x1]
  %v385 = vsel %vm353, 0, %v384
  %386 = vst [vmem:[%s3 + $0x78] sm:$0x1] %v385
  %v387 = vld [vmem:[%s3 + $0x84] sm:$0x1]
  %v388 = vsel %vm353, 0, %v387
  %389 = vst [vmem:[%s3 + $0x84] sm:$0x1] %v388
  %v390 = vld [vmem:[%s3 + $0x90] sm:$0x1]
  %v391 = vsel %vm353, 0, %v390
  %392 = vst [vmem:[%s3 + $0x90] sm:$0x1] %v391
  %v393 = vld [vmem:[%s3 + $0x9c] sm:$0x1]
  %v394 = vsel %vm353, 0, %v393
  %395 = vst [vmem:[%s3 + $0x9c] sm:$0x1] %v394
  %v396 = vld [vmem:[%s3 + $0xa8] sm:$0x1]
  %v397 = vsel %vm353, 0, %v396
  %398 = vst [vmem:[%s3 + $0xa8] sm:$0x1] %v397
  %v399 = vld [vmem:[%s3 + $0xb4] sm:$0x1]
  %v400 = vsel %vm353, 0, %v399
  %401 = vst [vmem:[%s3 + $0xb4] sm:$0x1] %v400
  %v402 = vld [vmem:[%s3 + $0xc0] sm:$0x1]
  %v403 = vsel %vm353, 0, %v402
  %404 = vst [vmem:[%s3 + $0xc0] sm:$0x1] %v403
  %v405 = vld [vmem:[%s3 + $0xcc] sm:$0x1]
  %v406 = vsel %vm353, 0, %v405
  %407 = vst [vmem:[%s3 + $0xcc] sm:$0x1] %v406
  %v408 = vld [vmem:[%s3 + $0xd8] sm:$0x1]
  %v409 = vsel %vm353, 0, %v408
  %410 = vst [vmem:[%s3 + $0xd8] sm:$0x1] %v409
  %v411 = vld [vmem:[%s3 + $0xe4] sm:$0x1]
  %v412 = vsel %vm353, 0, %v411
  %413 = vst [vmem:[%s3 + $0xe4] sm:$0x1] %v412
  %v414 = vld [vmem:[%s3 + $0xf0] sm:$0x1]
  %v415 = vsel %vm353, 0, %v414
  %416 = vst [vmem:[%s3 + $0xf0] sm:$0x1] %v415
  %v417 = vld [vmem:[%s3 + $0xfc] sm:$0x1]
  %v418 = vsel %vm353, 0, %v417
  %419 = vst [vmem:[%s3 + $0xfc] sm:$0x1] %v418
  %v420 = vld [vmem:[%s3 + $0x108] sm:$0x1]
  %v421 = vsel %vm353, 0, %v420
  %422 = vst [vmem:[%s3 + $0x108] sm:$0x1] %v421
  %v423 = vld [vmem:[%s3 + $0x114] sm:$0x1]
  %v424 = vsel %vm353, 0, %v423
  %425 = vst [vmem:[%s3 + $0x114] sm:$0x1] %v424
  %v426 = vld [vmem:[%s3 + $0x120] sm:$0x1]
  %v427 = vsel %vm353, 0, %v426
  %428 = vst [vmem:[%s3 + $0x120] sm:$0x1] %v427
  %v429 = vld [vmem:[%s3 + $0x12c] sm:$0x1]
  %v430 = vsel %vm353, 0, %v429
  %431 = vst [vmem:[%s3 + $0x12c] sm:$0x1] %v430
  %v432 = vld [vmem:[%s3 + $0x138] sm:$0x1]
  %v433 = vsel %vm353, 0, %v432
  %434 = vst [vmem:[%s3 + $0x138] sm:$0x1] %v433
  %v435 = vld [vmem:[%s3 + $0x144] sm:$0x1]
  %v436 = vsel %vm353, 0, %v435
  %437 = vst [vmem:[%s3 + $0x144] sm:$0x1] %v436
  %v438 = vld [vmem:[%s3 + $0x150] sm:$0x1]
  %v439 = vsel %vm353, 0, %v438
  %440 = vst [vmem:[%s3 + $0x150] sm:$0x1] %v439
  %v441 = vld [vmem:[%s3 + $0x15c] sm:$0x1]
  %v442 = vsel %vm353, 0, %v441
  %443 = vst [vmem:[%s3 + $0x15c] sm:$0x1] %v442
  %v444 = vld [vmem:[%s3 + $0x168] sm:$0x1]
  %v445 = vsel %vm353, 0, %v444
  %446 = vst [vmem:[%s3 + $0x168] sm:$0x1] %v445
  %v447 = vld [vmem:[%s3 + $0x174] sm:$0x1]
  %v448 = vsel %vm353, 0, %v447
  %449 = vst [vmem:[%s3 + $0x174] sm:$0x1] %v448
  %v450 = vpack.c.bf16 %v288, %v287
  %v451 = vpack.c.bf16 %v290, %v289
  %v452 = vpack.c.bf16 %v292, %v291
  %v453 = vpack.c.bf16 %v294, %v293
  %v454 = vpack.c.bf16 %v296, %v295
  %v455 = vpack.c.bf16 %v298, %v297
  %v456 = vpack.c.bf16 %v300, %v299
  %v457 = vpack.c.bf16 %v302, %v301
  %v458 = vpack.c.bf16 %v304, %v303
  %v459 = vpack.c.bf16 %v306, %v305
  %v460 = vpack.c.bf16 %v308, %v307
  %v461 = vpack.c.bf16 %v310, %v309
  %v462 = vpack.c.bf16 %v312, %v311
  %v463 = vpack.c.bf16 %v314, %v313
  %v464 = vpack.c.bf16 %v316, %v315
  %v465 = vpack.c.bf16 %v318, %v317
  %v466 = vpack.c.bf16 %v320, %v319
  %v467 = vpack.c.bf16 %v322, %v321
  %v468 = vpack.c.bf16 %v324, %v323
  %v469 = vpack.c.bf16 %v326, %v325
  %v470 = vpack.c.bf16 %v328, %v327
  %v471 = vpack.c.bf16 %v330, %v329
  %v472 = vpack.c.bf16 %v332, %v331
  %v473 = vpack.c.bf16 %v334, %v333
  %v474 = vpack.c.bf16 %v336, %v335
  %v475 = vpack.c.bf16 %v338, %v337
  %v476 = vpack.c.bf16 %v340, %v339
  %v477 = vpack.c.bf16 %v342, %v341
  %v478 = vpack.c.bf16 %v344, %v343
  %v479 = vpack.c.bf16 %v346, %v345
  %v480 = vpack.c.bf16 %v348, %v347
  %v481 = vpack.c.bf16 %v350, %v349
  %v514 = vunpack.c.l.b16 %v450
  %v515 = vunpack.c.h.b16 %v450
  %v516 = vunpack.c.l.b16 %v451
  %v517 = vunpack.c.h.b16 %v451
  %v518 = vunpack.c.l.b16 %v452
  %v519 = vunpack.c.h.b16 %v452
  %v520 = vunpack.c.l.b16 %v453
  %v521 = vunpack.c.h.b16 %v453
  %v522 = vunpack.c.l.b16 %v454
  %v523 = vunpack.c.h.b16 %v454
  %v524 = vunpack.c.l.b16 %v455
  %v525 = vunpack.c.h.b16 %v455
  %v526 = vunpack.c.l.b16 %v456
  %v527 = vunpack.c.h.b16 %v456
  %v528 = vunpack.c.l.b16 %v457
  %v529 = vunpack.c.h.b16 %v457
  %v530 = vunpack.c.l.b16 %v458
  %v531 = vunpack.c.h.b16 %v458
  %v532 = vunpack.c.l.b16 %v459
  %v533 = vunpack.c.h.b16 %v459
  %v534 = vunpack.c.l.b16 %v460
  %v535 = vunpack.c.h.b16 %v460
  %v536 = vunpack.c.l.b16 %v461
  %v537 = vunpack.c.h.b16 %v461
  %v538 = vunpack.c.l.b16 %v462
  %v539 = vunpack.c.h.b16 %v462
  %v540 = vunpack.c.l.b16 %v463
  %v541 = vunpack.c.h.b16 %v463
  %v542 = vunpack.c.l.b16 %v464
  %v543 = vunpack.c.h.b16 %v464
  %v544 = vunpack.c.l.b16 %v465
  %v545 = vunpack.c.h.b16 %v465
  %v546 = vunpack.c.l.b16 %v466
  %v547 = vunpack.c.h.b16 %v466
  %v548 = vunpack.c.l.b16 %v467
  %v549 = vunpack.c.h.b16 %v467
  %v550 = vunpack.c.l.b16 %v468
  %v551 = vunpack.c.h.b16 %v468
  %v552 = vunpack.c.l.b16 %v469
  %v553 = vunpack.c.h.b16 %v469
  %v554 = vunpack.c.l.b16 %v470
  %v555 = vunpack.c.h.b16 %v470
  %v556 = vunpack.c.l.b16 %v471
  %v557 = vunpack.c.h.b16 %v471
  %v558 = vunpack.c.l.b16 %v472
  %v559 = vunpack.c.h.b16 %v472
  %v560 = vunpack.c.l.b16 %v473
  %v561 = vunpack.c.h.b16 %v473
  %v562 = vunpack.c.l.b16 %v474
  %v563 = vunpack.c.h.b16 %v474
  %v564 = vunpack.c.l.b16 %v475
  %v565 = vunpack.c.h.b16 %v475
  %v566 = vunpack.c.l.b16 %v476
  %v567 = vunpack.c.h.b16 %v476
  %v568 = vunpack.c.l.b16 %v477
  %v569 = vunpack.c.h.b16 %v477
  %v570 = vunpack.c.l.b16 %v478
  %v571 = vunpack.c.h.b16 %v478
  %v572 = vunpack.c.l.b16 %v479
  %v573 = vunpack.c.h.b16 %v479
  %v574 = vunpack.c.l.b16 %v480
  %v575 = vunpack.c.h.b16 %v480
  %v576 = vunpack.c.l.b16 %v481
  %v577 = vunpack.c.h.b16 %v481
  %v578 = vpack.c.b16 %v514, %v514
  %v579 = vpack.c.b16 %v515, %v515
  %v580 = vpack.c.b16 %v516, %v516
  %v581 = vpack.c.b16 %v517, %v517
  %v582 = vpack.c.b16 %v518, %v518
  %v583 = vpack.c.b16 %v519, %v519
  %v584 = vpack.c.b16 %v520, %v520
  %v585 = vpack.c.b16 %v521, %v521
  %v586 = vpack.c.b16 %v522, %v522
  %v587 = vpack.c.b16 %v523, %v523
  %v588 = vpack.c.b16 %v524, %v524
  %v589 = vpack.c.b16 %v525, %v525
  %v590 = vpack.c.b16 %v526, %v526
  %v591 = vpack.c.b16 %v527, %v527
  %v592 = vpack.c.b16 %v528, %v528
  %v593 = vpack.c.b16 %v529, %v529
  %v594 = vpack.c.b16 %v530, %v530
  %v595 = vpack.c.b16 %v531, %v531
  %v596 = vpack.c.b16 %v532, %v532
  %v597 = vpack.c.b16 %v533, %v533
  %v598 = vpack.c.b16 %v534, %v534
  %v599 = vpack.c.b16 %v535, %v535
  %v600 = vpack.c.b16 %v536, %v536
  %v601 = vpack.c.b16 %v537, %v537
  %v602 = vpack.c.b16 %v538, %v538
  %v603 = vpack.c.b16 %v539, %v539
  %v604 = vpack.c.b16 %v540, %v540
  %v605 = vpack.c.b16 %v541, %v541
  %v606 = vpack.c.b16 %v542, %v542
  %v607 = vpack.c.b16 %v543, %v543
  %v608 = vpack.c.b16 %v544, %v544
  %v609 = vpack.c.b16 %v545, %v545
  %v610 = vpack.c.b16 %v546, %v546
  %v611 = vpack.c.b16 %v547, %v547
  %v612 = vpack.c.b16 %v548, %v548
  %v613 = vpack.c.b16 %v549, %v549
  %v614 = vpack.c.b16 %v550, %v550
  %v615 = vpack.c.b16 %v551, %v551
  %v616 = vpack.c.b16 %v552, %v552
  %v617 = vpack.c.b16 %v553, %v553
  %v618 = vpack.c.b16 %v554, %v554
  %v619 = vpack.c.b16 %v555, %v555
  %v620 = vpack.c.b16 %v556, %v556
  %v621 = vpack.c.b16 %v557, %v557
  %v622 = vpack.c.b16 %v558, %v558
  %v623 = vpack.c.b16 %v559, %v559
  %v624 = vpack.c.b16 %v560, %v560
  %v625 = vpack.c.b16 %v561, %v561
  %v626 = vpack.c.b16 %v562, %v562
  %v627 = vpack.c.b16 %v563, %v563
  %v628 = vpack.c.b16 %v564, %v564
  %v629 = vpack.c.b16 %v565, %v565
  %v630 = vpack.c.b16 %v566, %v566
  %v631 = vpack.c.b16 %v567, %v567
  %v632 = vpack.c.b16 %v568, %v568
  %v633 = vpack.c.b16 %v569, %v569
  %v634 = vpack.c.b16 %v570, %v570
  %v635 = vpack.c.b16 %v571, %v571
  %v636 = vpack.c.b16 %v572, %v572
  %v637 = vpack.c.b16 %v573, %v573
  %v638 = vpack.c.b16 %v574, %v574
  %v639 = vpack.c.b16 %v575, %v575
  %v640 = vpack.c.b16 %v576, %v576
  %v641 = vpack.c.b16 %v577, %v577
  %vm642 = vsmask.f32 4368
  %vm643 = vmor %vm352, %vm642
  %v645 = vshrl.u32 %v578, 16
  %v647 = vrot.slane %v645, 7
  %v648 = vshll.u32 %v578, 16
  %v650 = vor.u32 %v647, %v648
  %v651 = vrot.slane %v647, 4
  %v653 = vshrl.u32 %v579, 16
  %v655 = vrot.slane %v653, 7
  %v656 = vshll.u32 %v579, 16
  %v658 = vor.u32 %v655, %v656
  %v659 = vsel %vm643, %v651, %v658
  %v660 = vrot.slane %v655, 4
  %v662 = vshrl.u32 %v580, 16
  %v664 = vrot.slane %v662, 7
  %v665 = vshll.u32 %v580, 16
  %v667 = vor.u32 %v664, %v665
  %v668 = vrot.slane %v664, 4
  %v670 = vshrl.u32 %v581, 16
  %v672 = vrot.slane %v670, 7
  %v673 = vshll.u32 %v581, 16
  %v675 = vor.u32 %v672, %v673
  %v676 = vsel %vm643, %v668, %v675
  %v677 = vrot.slane %v672, 4
  %v679 = vshrl.u32 %v582, 16
  %v681 = vrot.slane %v679, 7
  %v682 = vshll.u32 %v582, 16
  %v684 = vor.u32 %v681, %v682
  %v685 = vrot.slane %v681, 4
  %v687 = vshrl.u32 %v583, 16
  %v689 = vrot.slane %v687, 7
  %v690 = vshll.u32 %v583, 16
  %v692 = vor.u32 %v689, %v690
  %v693 = vsel %vm643, %v685, %v692
  %v694 = vrot.slane %v689, 4
  %v696 = vshrl.u32 %v584, 16
  %v698 = vrot.slane %v696, 7
  %v699 = vshll.u32 %v584, 16
  %v701 = vor.u32 %v698, %v699
  %v702 = vrot.slane %v698, 4
  %v704 = vshrl.u32 %v585, 16
  %v706 = vrot.slane %v704, 7
  %v707 = vshll.u32 %v585, 16
  %v709 = vor.u32 %v706, %v707
  %v710 = vsel %vm643, %v702, %v709
  %v711 = vrot.slane %v706, 4
  %v713 = vshrl.u32 %v586, 16
  %v715 = vrot.slane %v713, 7
  %v716 = vshll.u32 %v586, 16
  %v718 = vor.u32 %v715, %v716
  %v719 = vrot.slane %v715, 4
  %v721 = vshrl.u32 %v587, 16
  %v723 = vrot.slane %v721, 7
  %v724 = vshll.u32 %v587, 16
  %v726 = vor.u32 %v723, %v724
  %v727 = vsel %vm643, %v719, %v726
  %v728 = vrot.slane %v723, 4
  %v730 = vshrl.u32 %v588, 16
  %v732 = vrot.slane %v730, 7
  %v733 = vshll.u32 %v588, 16
  %v735 = vor.u32 %v732, %v733
  %v736 = vrot.slane %v732, 4
  %v738 = vshrl.u32 %v589, 16
  %v740 = vrot.slane %v738, 7
  %v741 = vshll.u32 %v589, 16
  %v743 = vor.u32 %v740, %v741
  %v744 = vsel %vm643, %v736, %v743
  %v745 = vrot.slane %v740, 4
  %v747 = vshrl.u32 %v590, 16
  %v749 = vrot.slane %v747, 7
  %v750 = vshll.u32 %v590, 16
  %v752 = vor.u32 %v749, %v750
  %v753 = vrot.slane %v749, 4
  %v755 = vshrl.u32 %v591, 16
  %v757 = vrot.slane %v755, 7
  %v758 = vshll.u32 %v591, 16
  %v760 = vor.u32 %v757, %v758
  %v761 = vsel %vm643, %v753, %v760
  %v762 = vrot.slane %v757, 4
  %v764 = vshrl.u32 %v592, 16
  %v766 = vrot.slane %v764, 7
  %v767 = vshll.u32 %v592, 16
  %v769 = vor.u32 %v766, %v767
  %v770 = vrot.slane %v766, 4
  %v772 = vshrl.u32 %v593, 16
  %v774 = vrot.slane %v772, 7
  %v775 = vshll.u32 %v593, 16
  %v777 = vor.u32 %v774, %v775
  %v778 = vsel %vm643, %v770, %v777
  %v779 = vrot.slane %v774, 4
  %v781 = vshrl.u32 %v594, 16
  %v783 = vrot.slane %v781, 7
  %v784 = vshll.u32 %v594, 16
  %v786 = vor.u32 %v783, %v784
  %v787 = vrot.slane %v783, 4
  %v789 = vshrl.u32 %v595, 16
  %v791 = vrot.slane %v789, 7
  %v792 = vshll.u32 %v595, 16
  %v794 = vor.u32 %v791, %v792
  %v795 = vsel %vm643, %v787, %v794
  %v796 = vrot.slane %v791, 4
  %v798 = vshrl.u32 %v596, 16
  %v800 = vrot.slane %v798, 7
  %v801 = vshll.u32 %v596, 16
  %v803 = vor.u32 %v800, %v801
  %v804 = vrot.slane %v800, 4
  %v806 = vshrl.u32 %v597, 16
  %v808 = vrot.slane %v806, 7
  %v809 = vshll.u32 %v597, 16
  %v811 = vor.u32 %v808, %v809
  %v812 = vsel %vm643, %v804, %v811
  %v813 = vrot.slane %v808, 4
  %v815 = vshrl.u32 %v598, 16
  %v817 = vrot.slane %v815, 7
  %v818 = vshll.u32 %v598, 16
  %v820 = vor.u32 %v817, %v818
  %v821 = vrot.slane %v817, 4
  %v823 = vshrl.u32 %v599, 16
  %v825 = vrot.slane %v823, 7
  %v826 = vshll.u32 %v599, 16
  %v828 = vor.u32 %v825, %v826
  %v829 = vsel %vm643, %v821, %v828
  %v830 = vrot.slane %v825, 4
  %v832 = vshrl.u32 %v600, 16
  %v834 = vrot.slane %v832, 7
  %v835 = vshll.u32 %v600, 16
  %v837 = vor.u32 %v834, %v835
  %v838 = vrot.slane %v834, 4
  %v840 = vshrl.u32 %v601, 16
  %v842 = vrot.slane %v840, 7
  %v843 = vshll.u32 %v601, 16
  %v845 = vor.u32 %v842, %v843
  %v846 = vsel %vm643, %v838, %v845
  %v847 = vrot.slane %v842, 4
  %v849 = vshrl.u32 %v602, 16
  %v851 = vrot.slane %v849, 7
  %v852 = vshll.u32 %v602, 16
  %v854 = vor.u32 %v851, %v852
  %v855 = vrot.slane %v851, 4
  %v857 = vshrl.u32 %v603, 16
  %v859 = vrot.slane %v857, 7
  %v860 = vshll.u32 %v603, 16
  %v862 = vor.u32 %v859, %v860
  %v863 = vsel %vm643, %v855, %v862
  %v864 = vrot.slane %v859, 4
  %v866 = vshrl.u32 %v604, 16
  %v868 = vrot.slane %v866, 7
  %v869 = vshll.u32 %v604, 16
  %v871 = vor.u32 %v868, %v869
  %v872 = vrot.slane %v868, 4
  %v874 = vshrl.u32 %v605, 16
  %v876 = vrot.slane %v874, 7
  %v877 = vshll.u32 %v605, 16
  %v879 = vor.u32 %v876, %v877
  %v880 = vsel %vm643, %v872, %v879
  %v881 = vrot.slane %v876, 4
  %v883 = vshrl.u32 %v606, 16
  %v885 = vrot.slane %v883, 7
  %v886 = vshll.u32 %v606, 16
  %v888 = vor.u32 %v885, %v886
  %v889 = vrot.slane %v885, 4
  %v891 = vshrl.u32 %v607, 16
  %v893 = vrot.slane %v891, 7
  %v894 = vshll.u32 %v607, 16
  %v896 = vor.u32 %v893, %v894
  %v897 = vsel %vm643, %v889, %v896
  %v898 = vrot.slane %v893, 4
  %v900 = vshrl.u32 %v608, 16
  %v902 = vrot.slane %v900, 7
  %v903 = vshll.u32 %v608, 16
  %v905 = vor.u32 %v902, %v903
  %v906 = vrot.slane %v902, 4
  %v908 = vshrl.u32 %v609, 16
  %v910 = vrot.slane %v908, 7
  %v911 = vshll.u32 %v609, 16
  %v913 = vor.u32 %v910, %v911
  %v914 = vsel %vm643, %v906, %v913
  %v915 = vrot.slane %v910, 4
  %v917 = vshrl.u32 %v610, 16
  %v919 = vrot.slane %v917, 7
  %v920 = vshll.u32 %v610, 16
  %v922 = vor.u32 %v919, %v920
  %v923 = vrot.slane %v919, 4
  %v925 = vshrl.u32 %v611, 16
  %v927 = vrot.slane %v925, 7
  %v928 = vshll.u32 %v611, 16
  %v930 = vor.u32 %v927, %v928
  %v931 = vsel %vm643, %v923, %v930
  %v932 = vrot.slane %v927, 4
  %v934 = vshrl.u32 %v612, 16
  %v936 = vrot.slane %v934, 7
  %v937 = vshll.u32 %v612, 16
  %v939 = vor.u32 %v936, %v937
  %v940 = vrot.slane %v936, 4
  %v942 = vshrl.u32 %v613, 16
  %v944 = vrot.slane %v942, 7
  %v945 = vshll.u32 %v613, 16
  %v947 = vor.u32 %v944, %v945
  %v948 = vsel %vm643, %v940, %v947
  %v949 = vrot.slane %v944, 4
  %v951 = vshrl.u32 %v614, 16
  %v953 = vrot.slane %v951, 7
  %v954 = vshll.u32 %v614, 16
  %v956 = vor.u32 %v953, %v954
  %v957 = vrot.slane %v953, 4
  %v959 = vshrl.u32 %v615, 16
  %v961 = vrot.slane %v959, 7
  %v962 = vshll.u32 %v615, 16
  %v964 = vor.u32 %v961, %v962
  %v965 = vsel %vm643, %v957, %v964
  %v966 = vrot.slane %v961, 4
  %v968 = vshrl.u32 %v616, 16
  %v970 = vrot.slane %v968, 7
  %v971 = vshll.u32 %v616, 16
  %v973 = vor.u32 %v970, %v971
  %v974 = vrot.slane %v970, 4
  %v976 = vshrl.u32 %v617, 16
  %v978 = vrot.slane %v976, 7
  %v979 = vshll.u32 %v617, 16
  %v981 = vor.u32 %v978, %v979
  %v982 = vsel %vm643, %v974, %v981
  %v983 = vrot.slane %v978, 4
  %v985 = vshrl.u32 %v618, 16
  %v987 = vrot.slane %v985, 7
  %v988 = vshll.u32 %v618, 16
  %v990 = vor.u32 %v987, %v988
  %v991 = vrot.slane %v987, 4
  %v993 = vshrl.u32 %v619, 16
  %v995 = vrot.slane %v993, 7
  %v996 = vshll.u32 %v619, 16
  %v998 = vor.u32 %v995, %v996
  %v999 = vsel %vm643, %v991, %v998
  %v1000 = vrot.slane %v995, 4
  %v1002 = vshrl.u32 %v620, 16
  %v1004 = vrot.slane %v1002, 7
  %v1005 = vshll.u32 %v620, 16
  %v1007 = vor.u32 %v1004, %v1005
  %v1008 = vrot.slane %v1004, 4
  %v1010 = vshrl.u32 %v621, 16
  %v1012 = vrot.slane %v1010, 7
  %v1013 = vshll.u32 %v621, 16
  %v1015 = vor.u32 %v1012, %v1013
  %v1016 = vsel %vm643, %v1008, %v1015
  %v1017 = vrot.slane %v1012, 4
  %v1019 = vshrl.u32 %v622, 16
  %v1021 = vrot.slane %v1019, 7
  %v1022 = vshll.u32 %v622, 16
  %v1024 = vor.u32 %v1021, %v1022
  %v1025 = vrot.slane %v1021, 4
  %v1027 = vshrl.u32 %v623, 16
  %v1029 = vrot.slane %v1027, 7
  %v1030 = vshll.u32 %v623, 16
  %v1032 = vor.u32 %v1029, %v1030
  %v1033 = vsel %vm643, %v1025, %v1032
  %v1034 = vrot.slane %v1029, 4
  %v1036 = vshrl.u32 %v624, 16
  %v1038 = vrot.slane %v1036, 7
  %v1039 = vshll.u32 %v624, 16
  %v1041 = vor.u32 %v1038, %v1039
  %v1042 = vrot.slane %v1038, 4
  %v1044 = vshrl.u32 %v625, 16
  %v1046 = vrot.slane %v1044, 7
  %v1047 = vshll.u32 %v625, 16
  %v1049 = vor.u32 %v1046, %v1047
  %v1050 = vsel %vm643, %v1042, %v1049
  %v1051 = vrot.slane %v1046, 4
  %v1053 = vshrl.u32 %v626, 16
  %v1055 = vrot.slane %v1053, 7
  %v1056 = vshll.u32 %v626, 16
  %v1058 = vor.u32 %v1055, %v1056
  %v1059 = vrot.slane %v1055, 4
  %v1061 = vshrl.u32 %v627, 16
  %v1063 = vrot.slane %v1061, 7
  %v1064 = vshll.u32 %v627, 16
  %v1066 = vor.u32 %v1063, %v1064
  %v1067 = vsel %vm643, %v1059, %v1066
  %v1068 = vrot.slane %v1063, 4
  %v1070 = vshrl.u32 %v628, 16
  %v1072 = vrot.slane %v1070, 7
  %v1073 = vshll.u32 %v628, 16
  %v1075 = vor.u32 %v1072, %v1073
  %v1076 = vrot.slane %v1072, 4
  %v1078 = vshrl.u32 %v629, 16
  %v1080 = vrot.slane %v1078, 7
  %v1081 = vshll.u32 %v629, 16
  %v1083 = vor.u32 %v1080, %v1081
  %v1084 = vsel %vm643, %v1076, %v1083
  %v1085 = vrot.slane %v1080, 4
  %v1087 = vshrl.u32 %v630, 16
  %v1089 = vrot.slane %v1087, 7
  %v1090 = vshll.u32 %v630, 16
  %v1092 = vor.u32 %v1089, %v1090
  %v1093 = vrot.slane %v1089, 4
  %v1095 = vshrl.u32 %v631, 16
  %v1097 = vrot.slane %v1095, 7
  %v1098 = vshll.u32 %v631, 16
  %v1100 = vor.u32 %v1097, %v1098
  %v1101 = vsel %vm643, %v1093, %v1100
  %v1102 = vrot.slane %v1097, 4
  %v1104 = vshrl.u32 %v632, 16
  %v1106 = vrot.slane %v1104, 7
  %v1107 = vshll.u32 %v632, 16
  %v1109 = vor.u32 %v1106, %v1107
  %v1110 = vrot.slane %v1106, 4
  %v1112 = vshrl.u32 %v633, 16
  %v1114 = vrot.slane %v1112, 7
  %v1115 = vshll.u32 %v633, 16
  %v1117 = vor.u32 %v1114, %v1115
  %v1118 = vsel %vm643, %v1110, %v1117
  %v1119 = vrot.slane %v1114, 4
  %v1121 = vshrl.u32 %v634, 16
  %v1123 = vrot.slane %v1121, 7
  %v1124 = vshll.u32 %v634, 16
  %v1126 = vor.u32 %v1123, %v1124
  %v1127 = vrot.slane %v1123, 4
  %v1129 = vshrl.u32 %v635, 16
  %v1131 = vrot.slane %v1129, 7
  %v1132 = vshll.u32 %v635, 16
  %v1134 = vor.u32 %v1131, %v1132
  %v1135 = vsel %vm643, %v1127, %v1134
  %v1136 = vrot.slane %v1131, 4
  %v1138 = vshrl.u32 %v636, 16
  %v1140 = vrot.slane %v1138, 7
  %v1141 = vshll.u32 %v636, 16
  %v1143 = vor.u32 %v1140, %v1141
  %v1144 = vrot.slane %v1140, 4
  %v1146 = vshrl.u32 %v637, 16
  %v1148 = vrot.slane %v1146, 7
  %v1149 = vshll.u32 %v637, 16
  %v1151 = vor.u32 %v1148, %v1149
  %v1152 = vsel %vm643, %v1144, %v1151
  %v1153 = vrot.slane %v1148, 4
  %v1155 = vshrl.u32 %v638, 16
  %v1157 = vrot.slane %v1155, 7
  %v1158 = vshll.u32 %v638, 16
  %v1160 = vor.u32 %v1157, %v1158
  %v1161 = vrot.slane %v1157, 4
  %v1163 = vshrl.u32 %v639, 16
  %v1165 = vrot.slane %v1163, 7
  %v1166 = vshll.u32 %v639, 16
  %v1168 = vor.u32 %v1165, %v1166
  %v1169 = vsel %vm643, %v1161, %v1168
  %v1170 = vrot.slane %v1165, 4
  %v1172 = vshrl.u32 %v640, 16
  %v1174 = vrot.slane %v1172, 7
  %v1175 = vshll.u32 %v640, 16
  %v1177 = vor.u32 %v1174, %v1175
  %v1178 = vrot.slane %v1174, 4
  %v1180 = vshrl.u32 %v641, 16
  %v1182 = vrot.slane %v1180, 7
  %v1183 = vshll.u32 %v641, 16
  %v1185 = vor.u32 %v1182, %v1183
  %v1186 = vsel %vm643, %v1178, %v1185
  %v1187 = vrot.slane %v1182, 4
  %vm1284 = vcmask 60416
  %vm1285 = vsmask.f32 7938
  %vm1286 = vmand %vm1284, %vm1285
  %v1287 = vld [vmem:[%s3] sm:$0xf]
  %v1288 = vsel %vm1286, %v650, %v1287
  %1289 = vst [vmem:[%s3] sm:$0xf] %v1288
  %vm1290 = vcmask 60416
  %1291 = vst.msk [vmem:[%s3 + $0x4] sm:$0xf] %vm1290, %v659
  %v1292 = vld [vmem:[%s3 + $0x8] sm:$0x1]
  %v1293 = vsel %vm353, %v660, %v1292
  %1294 = vst [vmem:[%s3 + $0x8] sm:$0x1] %v1293
  %v1295 = vld [vmem:[%s3 + $0xc] sm:$0xf]
  %v1296 = vsel %vm1286, %v667, %v1295
  %1297 = vst [vmem:[%s3 + $0xc] sm:$0xf] %v1296
  %1298 = vst.msk [vmem:[%s3 + $0x10] sm:$0xf] %vm1290, %v676
  %v1299 = vld [vmem:[%s3 + $0x14] sm:$0x1]
  %v1300 = vsel %vm353, %v677, %v1299
  %1301 = vst [vmem:[%s3 + $0x14] sm:$0x1] %v1300
  %v1302 = vld [vmem:[%s3 + $0x18] sm:$0xf]
  %v1303 = vsel %vm1286, %v684, %v1302
  %1304 = vst [vmem:[%s3 + $0x18] sm:$0xf] %v1303
  %1305 = vst.msk [vmem:[%s3 + $0x1c] sm:$0xf] %vm1290, %v693
  %v1306 = vld [vmem:[%s3 + $0x20] sm:$0x1]
  %v1307 = vsel %vm353, %v694, %v1306
  %1308 = vst [vmem:[%s3 + $0x20] sm:$0x1] %v1307
  %v1309 = vld [vmem:[%s3 + $0x24] sm:$0xf]
  %v1310 = vsel %vm1286, %v701, %v1309
  %1311 = vst [vmem:[%s3 + $0x24] sm:$0xf] %v1310
  %1312 = vst.msk [vmem:[%s3 + $0x28] sm:$0xf] %vm1290, %v710
  %v1313 = vld [vmem:[%s3 + $0x2c] sm:$0x1]
  %v1314 = vsel %vm353, %v711, %v1313
  %1315 = vst [vmem:[%s3 + $0x2c] sm:$0x1] %v1314
  %v1316 = vld [vmem:[%s3 + $0x30] sm:$0xf]
  %v1317 = vsel %vm1286, %v718, %v1316
  %1318 = vst [vmem:[%s3 + $0x30] sm:$0xf] %v1317
  %1319 = vst.msk [vmem:[%s3 + $0x34] sm:$0xf] %vm1290, %v727
  %v1320 = vld [vmem:[%s3 + $0x38] sm:$0x1]
  %v1321 = vsel %vm353, %v728, %v1320
  %1322 = vst [vmem:[%s3 + $0x38] sm:$0x1] %v1321
  %v1323 = vld [vmem:[%s3 + $0x3c] sm:$0xf]
  %v1324 = vsel %vm1286, %v735, %v1323
  %1325 = vst [vmem:[%s3 + $0x3c] sm:$0xf] %v1324
  %1326 = vst.msk [vmem:[%s3 + $0x40] sm:$0xf] %vm1290, %v744
  %v1327 = vld [vmem:[%s3 + $0x44] sm:$0x1]
  %v1328 = vsel %vm353, %v745, %v1327
  %1329 = vst [vmem:[%s3 + $0x44] sm:$0x1] %v1328
  %v1330 = vld [vmem:[%s3 + $0x48] sm:$0xf]
  %v1331 = vsel %vm1286, %v752, %v1330
  %1332 = vst [vmem:[%s3 + $0x48] sm:$0xf] %v1331
  %1333 = vst.msk [vmem:[%s3 + $0x4c] sm:$0xf] %vm1290, %v761
  %v1334 = vld [vmem:[%s3 + $0x50] sm:$0x1]
  %v1335 = vsel %vm353, %v762, %v1334
  %1336 = vst [vmem:[%s3 + $0x50] sm:$0x1] %v1335
  %v1337 = vld [vmem:[%s3 + $0x54] sm:$0xf]
  %v1338 = vsel %vm1286, %v769, %v1337
  %1339 = vst [vmem:[%s3 + $0x54] sm:$0xf] %v1338
  %1340 = vst.msk [vmem:[%s3 + $0x58] sm:$0xf] %vm1290, %v778
  %v1341 = vld [vmem:[%s3 + $0x5c] sm:$0x1]
  %v1342 = vsel %vm353, %v779, %v1341
  %1343 = vst [vmem:[%s3 + $0x5c] sm:$0x1] %v1342
  %v1344 = vld [vmem:[%s3 + $0x60] sm:$0xf]
  %v1345 = vsel %vm1286, %v786, %v1344
  %1346 = vst [vmem:[%s3 + $0x60] sm:$0xf] %v1345
  %1347 = vst.msk [vmem:[%s3 + $0x64] sm:$0xf] %vm1290, %v795
  %v1348 = vld [vmem:[%s3 + $0x68] sm:$0x1]
  %v1349 = vsel %vm353, %v796, %v1348
  %1350 = vst [vmem:[%s3 + $0x68] sm:$0x1] %v1349
  %v1351 = vld [vmem:[%s3 + $0x6c] sm:$0xf]
  %v1352 = vsel %vm1286, %v803, %v1351
  %1353 = vst [vmem:[%s3 + $0x6c] sm:$0xf] %v1352
  %1354 = vst.msk [vmem:[%s3 + $0x70] sm:$0xf] %vm1290, %v812
  %v1355 = vld [vmem:[%s3 + $0x74] sm:$0x1]
  %v1356 = vsel %vm353, %v813, %v1355
  %1357 = vst [vmem:[%s3 + $0x74] sm:$0x1] %v1356
  %v1358 = vld [vmem:[%s3 + $0x78] sm:$0xf]
  %v1359 = vsel %vm1286, %v820, %v1358
  %1360 = vst [vmem:[%s3 + $0x78] sm:$0xf] %v1359
  %1361 = vst.msk [vmem:[%s3 + $0x7c] sm:$0xf] %vm1290, %v829
  %v1362 = vld [vmem:[%s3 + $0x80] sm:$0x1]
  %v1363 = vsel %vm353, %v830, %v1362
  %1364 = vst [vmem:[%s3 + $0x80] sm:$0x1] %v1363
  %v1365 = vld [vmem:[%s3 + $0x84] sm:$0xf]
  %v1366 = vsel %vm1286, %v837, %v1365
  %1367 = vst [vmem:[%s3 + $0x84] sm:$0xf] %v1366
  %1368 = vst.msk [vmem:[%s3 + $0x88] sm:$0xf] %vm1290, %v846
  %v1369 = vld [vmem:[%s3 + $0x8c] sm:$0x1]
  %v1370 = vsel %vm353, %v847, %v1369
  %1371 = vst [vmem:[%s3 + $0x8c] sm:$0x1] %v1370
  %v1372 = vld [vmem:[%s3 + $0x90] sm:$0xf]
  %v1373 = vsel %vm1286, %v854, %v1372
  %1374 = vst [vmem:[%s3 + $0x90] sm:$0xf] %v1373
  %1375 = vst.msk [vmem:[%s3 + $0x94] sm:$0xf] %vm1290, %v863
  %v1376 = vld [vmem:[%s3 + $0x98] sm:$0x1]
  %v1377 = vsel %vm353, %v864, %v1376
  %1378 = vst [vmem:[%s3 + $0x98] sm:$0x1] %v1377
  %v1379 = vld [vmem:[%s3 + $0x9c] sm:$0xf]
  %v1380 = vsel %vm1286, %v871, %v1379
  %1381 = vst [vmem:[%s3 + $0x9c] sm:$0xf] %v1380
  %1382 = vst.msk [vmem:[%s3 + $0xa0] sm:$0xf] %vm1290, %v880
  %v1383 = vld [vmem:[%s3 + $0xa4] sm:$0x1]
  %v1384 = vsel %vm353, %v881, %v1383
  %1385 = vst [vmem:[%s3 + $0xa4] sm:$0x1] %v1384
  %v1386 = vld [vmem:[%s3 + $0xa8] sm:$0xf]
  %v1387 = vsel %vm1286, %v888, %v1386
  %1388 = vst [vmem:[%s3 + $0xa8] sm:$0xf] %v1387
  %1389 = vst.msk [vmem:[%s3 + $0xac] sm:$0xf] %vm1290, %v897
  %v1390 = vld [vmem:[%s3 + $0xb0] sm:$0x1]
  %v1391 = vsel %vm353, %v898, %v1390
  %1392 = vst [vmem:[%s3 + $0xb0] sm:$0x1] %v1391
  %v1393 = vld [vmem:[%s3 + $0xb4] sm:$0xf]
  %v1394 = vsel %vm1286, %v905, %v1393
  %1395 = vst [vmem:[%s3 + $0xb4] sm:$0xf] %v1394
  %1396 = vst.msk [vmem:[%s3 + $0xb8] sm:$0xf] %vm1290, %v914
  %v1397 = vld [vmem:[%s3 + $0xbc] sm:$0x1]
  %v1398 = vsel %vm353, %v915, %v1397
  %1399 = vst [vmem:[%s3 + $0xbc] sm:$0x1] %v1398
  %v1400 = vld [vmem:[%s3 + $0xc0] sm:$0xf]
  %v1401 = vsel %vm1286, %v922, %v1400
  %1402 = vst [vmem:[%s3 + $0xc0] sm:$0xf] %v1401
  %1403 = vst.msk [vmem:[%s3 + $0xc4] sm:$0xf] %vm1290, %v931
  %v1404 = vld [vmem:[%s3 + $0xc8] sm:$0x1]
  %v1405 = vsel %vm353, %v932, %v1404
  %1406 = vst [vmem:[%s3 + $0xc8] sm:$0x1] %v1405
  %v1407 = vld [vmem:[%s3 + $0xcc] sm:$0xf]
  %v1408 = vsel %vm1286, %v939, %v1407
  %1409 = vst [vmem:[%s3 + $0xcc] sm:$0xf] %v1408
  %1410 = vst.msk [vmem:[%s3 + $0xd0] sm:$0xf] %vm1290, %v948
  %v1411 = vld [vmem:[%s3 + $0xd4] sm:$0x1]
  %v1412 = vsel %vm353, %v949, %v1411
  %1413 = vst [vmem:[%s3 + $0xd4] sm:$0x1] %v1412
  %v1414 = vld [vmem:[%s3 + $0xd8] sm:$0xf]
  %v1415 = vsel %vm1286, %v956, %v1414
  %1416 = vst [vmem:[%s3 + $0xd8] sm:$0xf] %v1415
  %1417 = vst.msk [vmem:[%s3 + $0xdc] sm:$0xf] %vm1290, %v965
  %v1418 = vld [vmem:[%s3 + $0xe0] sm:$0x1]
  %v1419 = vsel %vm353, %v966, %v1418
  %1420 = vst [vmem:[%s3 + $0xe0] sm:$0x1] %v1419
  %v1421 = vld [vmem:[%s3 + $0xe4] sm:$0xf]
  %v1422 = vsel %vm1286, %v973, %v1421
  %1423 = vst [vmem:[%s3 + $0xe4] sm:$0xf] %v1422
  %1424 = vst.msk [vmem:[%s3 + $0xe8] sm:$0xf] %vm1290, %v982
  %v1425 = vld [vmem:[%s3 + $0xec] sm:$0x1]
  %v1426 = vsel %vm353, %v983, %v1425
  %1427 = vst [vmem:[%s3 + $0xec] sm:$0x1] %v1426
  %v1428 = vld [vmem:[%s3 + $0xf0] sm:$0xf]
  %v1429 = vsel %vm1286, %v990, %v1428
  %1430 = vst [vmem:[%s3 + $0xf0] sm:$0xf] %v1429
  %1431 = vst.msk [vmem:[%s3 + $0xf4] sm:$0xf] %vm1290, %v999
  %v1432 = vld [vmem:[%s3 + $0xf8] sm:$0x1]
  %v1433 = vsel %vm353, %v1000, %v1432
  %1434 = vst [vmem:[%s3 + $0xf8] sm:$0x1] %v1433
  %v1435 = vld [vmem:[%s3 + $0xfc] sm:$0xf]
  %v1436 = vsel %vm1286, %v1007, %v1435
  %1437 = vst [vmem:[%s3 + $0xfc] sm:$0xf] %v1436
  %1438 = vst.msk [vmem:[%s3 + $0x100] sm:$0xf] %vm1290, %v1016
  %v1439 = vld [vmem:[%s3 + $0x104] sm:$0x1]
  %v1440 = vsel %vm353, %v1017, %v1439
  %1441 = vst [vmem:[%s3 + $0x104] sm:$0x1] %v1440
  %v1442 = vld [vmem:[%s3 + $0x108] sm:$0xf]
  %v1443 = vsel %vm1286, %v1024, %v1442
  %1444 = vst [vmem:[%s3 + $0x108] sm:$0xf] %v1443
  %1445 = vst.msk [vmem:[%s3 + $0x10c] sm:$0xf] %vm1290, %v1033
  %v1446 = vld [vmem:[%s3 + $0x110] sm:$0x1]
  %v1447 = vsel %vm353, %v1034, %v1446
  %1448 = vst [vmem:[%s3 + $0x110] sm:$0x1] %v1447
  %v1449 = vld [vmem:[%s3 + $0x114] sm:$0xf]
  %v1450 = vsel %vm1286, %v1041, %v1449
  %1451 = vst [vmem:[%s3 + $0x114] sm:$0xf] %v1450
  %1452 = vst.msk [vmem:[%s3 + $0x118] sm:$0xf] %vm1290, %v1050
  %v1453 = vld [vmem:[%s3 + $0x11c] sm:$0x1]
  %v1454 = vsel %vm353, %v1051, %v1453
  %1455 = vst [vmem:[%s3 + $0x11c] sm:$0x1] %v1454
  %v1456 = vld [vmem:[%s3 + $0x120] sm:$0xf]
  %v1457 = vsel %vm1286, %v1058, %v1456
  %1458 = vst [vmem:[%s3 + $0x120] sm:$0xf] %v1457
  %1459 = vst.msk [vmem:[%s3 + $0x124] sm:$0xf] %vm1290, %v1067
  %v1460 = vld [vmem:[%s3 + $0x128] sm:$0x1]
  %v1461 = vsel %vm353, %v1068, %v1460
  %1462 = vst [vmem:[%s3 + $0x128] sm:$0x1] %v1461
  %v1463 = vld [vmem:[%s3 + $0x12c] sm:$0xf]
  %v1464 = vsel %vm1286, %v1075, %v1463
  %1465 = vst [vmem:[%s3 + $0x12c] sm:$0xf] %v1464
  %1466 = vst.msk [vmem:[%s3 + $0x130] sm:$0xf] %vm1290, %v1084
  %v1467 = vld [vmem:[%s3 + $0x134] sm:$0x1]
  %v1468 = vsel %vm353, %v1085, %v1467
  %1469 = vst [vmem:[%s3 + $0x134] sm:$0x1] %v1468
  %v1470 = vld [vmem:[%s3 + $0x138] sm:$0xf]
  %v1471 = vsel %vm1286, %v1092, %v1470
  %1472 = vst [vmem:[%s3 + $0x138] sm:$0xf] %v1471
  %1473 = vst.msk [vmem:[%s3 + $0x13c] sm:$0xf] %vm1290, %v1101
  %v1474 = vld [vmem:[%s3 + $0x140] sm:$0x1]
  %v1475 = vsel %vm353, %v1102, %v1474
  %1476 = vst [vmem:[%s3 + $0x140] sm:$0x1] %v1475
  %v1477 = vld [vmem:[%s3 + $0x144] sm:$0xf]
  %v1478 = vsel %vm1286, %v1109, %v1477
  %1479 = vst [vmem:[%s3 + $0x144] sm:$0xf] %v1478
  %1480 = vst.msk [vmem:[%s3 + $0x148] sm:$0xf] %vm1290, %v1118
  %v1481 = vld [vmem:[%s3 + $0x14c] sm:$0x1]
  %v1482 = vsel %vm353, %v1119, %v1481
  %1483 = vst [vmem:[%s3 + $0x14c] sm:$0x1] %v1482
  %v1484 = vld [vmem:[%s3 + $0x150] sm:$0xf]
  %v1485 = vsel %vm1286, %v1126, %v1484
  %1486 = vst [vmem:[%s3 + $0x150] sm:$0xf] %v1485
  %1487 = vst.msk [vmem:[%s3 + $0x154] sm:$0xf] %vm1290, %v1135
  %v1488 = vld [vmem:[%s3 + $0x158] sm:$0x1]
  %v1489 = vsel %vm353, %v1136, %v1488
  %1490 = vst [vmem:[%s3 + $0x158] sm:$0x1] %v1489
  %v1491 = vld [vmem:[%s3 + $0x15c] sm:$0xf]
  %v1492 = vsel %vm1286, %v1143, %v1491
  %1493 = vst [vmem:[%s3 + $0x15c] sm:$0xf] %v1492
  %1494 = vst.msk [vmem:[%s3 + $0x160] sm:$0xf] %vm1290, %v1152
  %v1495 = vld [vmem:[%s3 + $0x164] sm:$0x1]
  %v1496 = vsel %vm353, %v1153, %v1495
  %1497 = vst [vmem:[%s3 + $0x164] sm:$0x1] %v1496
  %v1498 = vld [vmem:[%s3 + $0x168] sm:$0xf]
  %v1499 = vsel %vm1286, %v1160, %v1498
  %1500 = vst [vmem:[%s3 + $0x168] sm:$0xf] %v1499
  %1501 = vst.msk [vmem:[%s3 + $0x16c] sm:$0xf] %vm1290, %v1169
  %v1502 = vld [vmem:[%s3 + $0x170] sm:$0x1]
  %v1503 = vsel %vm353, %v1170, %v1502
  %1504 = vst [vmem:[%s3 + $0x170] sm:$0x1] %v1503
  %v1505 = vld [vmem:[%s3 + $0x174] sm:$0xf]
  %v1506 = vsel %vm1286, %v1177, %v1505
  %1507 = vst [vmem:[%s3 + $0x174] sm:$0xf] %v1506
  %1508 = vst.msk [vmem:[%s3 + $0x178] sm:$0xf] %vm1290, %v1186
  %v1509 = vld [vmem:[%s3 + $0x17c] sm:$0x1]
  %v1510 = vsel %vm353, %v1187, %v1509
  %1511 = vst [vmem:[%s3 + $0x17c] sm:$0x1] %v1510
  %vm1512 = vmand %vm351, %vm1285
  %v1513 = vld [vmem:[%s3 + $0x8] sm:$0x1]
  %v1514 = vsel %vm1512, 0, %v1513
  %1515 = vst [vmem:[%s3 + $0x8] sm:$0x1] %v1514
  %v1516 = vld [vmem:[%s3 + $0x14] sm:$0x1]
  %v1517 = vsel %vm1512, 0, %v1516
  %1518 = vst [vmem:[%s3 + $0x14] sm:$0x1] %v1517
  %v1519 = vld [vmem:[%s3 + $0x20] sm:$0x1]
  %v1520 = vsel %vm1512, 0, %v1519
  %1521 = vst [vmem:[%s3 + $0x20] sm:$0x1] %v1520
  %v1522 = vld [vmem:[%s3 + $0x2c] sm:$0x1]
  %v1523 = vsel %vm1512, 0, %v1522
  %1524 = vst [vmem:[%s3 + $0x2c] sm:$0x1] %v1523
  %v1525 = vld [vmem:[%s3 + $0x38] sm:$0x1]
  %v1526 = vsel %vm1512, 0, %v1525
  %1527 = vst [vmem:[%s3 + $0x38] sm:$0x1] %v1526
  %v1528 = vld [vmem:[%s3 + $0x44] sm:$0x1]
  %v1529 = vsel %vm1512, 0, %v1528
  %1530 = vst [vmem:[%s3 + $0x44] sm:$0x1] %v1529
  %v1531 = vld [vmem:[%s3 + $0x50] sm:$0x1]
  %v1532 = vsel %vm1512, 0, %v1531
  %1533 = vst [vmem:[%s3 + $0x50] sm:$0x1] %v1532
  %v1534 = vld [vmem:[%s3 + $0x5c] sm:$0x1]
  %v1535 = vsel %vm1512, 0, %v1534
  %1536 = vst [vmem:[%s3 + $0x5c] sm:$0x1] %v1535
  %v1537 = vld [vmem:[%s3 + $0x68] sm:$0x1]
  %v1538 = vsel %vm1512, 0, %v1537
  %1539 = vst [vmem:[%s3 + $0x68] sm:$0x1] %v1538
  %v1540 = vld [vmem:[%s3 + $0x74] sm:$0x1]
  %v1541 = vsel %vm1512, 0, %v1540
  %1542 = vst [vmem:[%s3 + $0x74] sm:$0x1] %v1541
  %v1543 = vld [vmem:[%s3 + $0x80] sm:$0x1]
  %v1544 = vsel %vm1512, 0, %v1543
  %1545 = vst [vmem:[%s3 + $0x80] sm:$0x1] %v1544
  %v1546 = vld [vmem:[%s3 + $0x8c] sm:$0x1]
  %v1547 = vsel %vm1512, 0, %v1546
  %1548 = vst [vmem:[%s3 + $0x8c] sm:$0x1] %v1547
  %v1549 = vld [vmem:[%s3 + $0x98] sm:$0x1]
  %v1550 = vsel %vm1512, 0, %v1549
  %1551 = vst [vmem:[%s3 + $0x98] sm:$0x1] %v1550
  %v1552 = vld [vmem:[%s3 + $0xa4] sm:$0x1]
  %v1553 = vsel %vm1512, 0, %v1552
  %1554 = vst [vmem:[%s3 + $0xa4] sm:$0x1] %v1553
  %v1555 = vld [vmem:[%s3 + $0xb0] sm:$0x1]
  %v1556 = vsel %vm1512, 0, %v1555
  %1557 = vst [vmem:[%s3 + $0xb0] sm:$0x1] %v1556
  %v1558 = vld [vmem:[%s3 + $0xbc] sm:$0x1]
  %v1559 = vsel %vm1512, 0, %v1558
  %1560 = vst [vmem:[%s3 + $0xbc] sm:$0x1] %v1559
  %v1561 = vld [vmem:[%s3 + $0xc8] sm:$0x1]
  %v1562 = vsel %vm1512, 0, %v1561
  %1563 = vst [vmem:[%s3 + $0xc8] sm:$0x1] %v1562
  %v1564 = vld [vmem:[%s3 + $0xd4] sm:$0x1]
  %v1565 = vsel %vm1512, 0, %v1564
  %1566 = vst [vmem:[%s3 + $0xd4] sm:$0x1] %v1565
  %v1567 = vld [vmem:[%s3 + $0xe0] sm:$0x1]
  %v1568 = vsel %vm1512, 0, %v1567
  %1569 = vst [vmem:[%s3 + $0xe0] sm:$0x1] %v1568
  %v1570 = vld [vmem:[%s3 + $0xec] sm:$0x1]
  %v1571 = vsel %vm1512, 0, %v1570
  %1572 = vst [vmem:[%s3 + $0xec] sm:$0x1] %v1571
  %v1573 = vld [vmem:[%s3 + $0xf8] sm:$0x1]
  %v1574 = vsel %vm1512, 0, %v1573
  %1575 = vst [vmem:[%s3 + $0xf8] sm:$0x1] %v1574
  %v1576 = vld [vmem:[%s3 + $0x104] sm:$0x1]
  %v1577 = vsel %vm1512, 0, %v1576
  %1578 = vst [vmem:[%s3 + $0x104] sm:$0x1] %v1577
  %v1579 = vld [vmem:[%s3 + $0x110] sm:$0x1]
  %v1580 = vsel %vm1512, 0, %v1579
  %1581 = vst [vmem:[%s3 + $0x110] sm:$0x1] %v1580
  %v1582 = vld [vmem:[%s3 + $0x11c] sm:$0x1]
  %v1583 = vsel %vm1512, 0, %v1582
  %1584 = vst [vmem:[%s3 + $0x11c] sm:$0x1] %v1583
  %v1585 = vld [vmem:[%s3 + $0x128] sm:$0x1]
  %v1586 = vsel %vm1512, 0, %v1585
  %1587 = vst [vmem:[%s3 + $0x128] sm:$0x1] %v1586
  %v1588 = vld [vmem:[%s3 + $0x134] sm:$0x1]
  %v1589 = vsel %vm1512, 0, %v1588
  %1590 = vst [vmem:[%s3 + $0x134] sm:$0x1] %v1589
  %v1591 = vld [vmem:[%s3 + $0x140] sm:$0x1]
  %v1592 = vsel %vm1512, 0, %v1591
  %1593 = vst [vmem:[%s3 + $0x140] sm:$0x1] %v1592
  %v1594 = vld [vmem:[%s3 + $0x14c] sm:$0x1]
  %v1595 = vsel %vm1512, 0, %v1594
  %1596 = vst [vmem:[%s3 + $0x14c] sm:$0x1] %v1595
  %v1597 = vld [vmem:[%s3 + $0x158] sm:$0x1]
  %v1598 = vsel %vm1512, 0, %v1597
  %1599 = vst [vmem:[%s3 + $0x158] sm:$0x1] %v1598
  %v1600 = vld [vmem:[%s3 + $0x164] sm:$0x1]
  %v1601 = vsel %vm1512, 0, %v1600
  %1602 = vst [vmem:[%s3 + $0x164] sm:$0x1] %v1601
  %v1603 = vld [vmem:[%s3 + $0x170] sm:$0x1]
  %v1604 = vsel %vm1512, 0, %v1603
  %1605 = vst [vmem:[%s3 + $0x170] sm:$0x1] %v1604
  %v1606 = vld [vmem:[%s3 + $0x17c] sm:$0x1]
  %v1607 = vsel %vm1512, 0, %v1606
  %1608 = vst [vmem:[%s3 + $0x17c] sm:$0x1] %v1607
  %1609 = vrot.lane.b32.xlu0 %v578, 120
  %v1610 = vpop.permute.xlu0 %1609
  %1611 = vrot.lane.b32.xlu0 %v579, 120
  %v1612 = vpop.permute.xlu0 %1611
  %1613 = vrot.lane.b32.xlu0 %v580, 120
  %v1614 = vpop.permute.xlu0 %1613
  %1615 = vrot.lane.b32.xlu0 %v581, 120
  %v1616 = vpop.permute.xlu0 %1615
  %1617 = vrot.lane.b32.xlu0 %v582, 120
  %v1618 = vpop.permute.xlu0 %1617
  %1619 = vrot.lane.b32.xlu0 %v583, 120
  %v1620 = vpop.permute.xlu0 %1619
  %1621 = vrot.lane.b32.xlu0 %v584, 120
  %v1622 = vpop.permute.xlu0 %1621
  %1623 = vrot.lane.b32.xlu0 %v585, 120
  %v1624 = vpop.permute.xlu0 %1623
  %1625 = vrot.lane.b32.xlu0 %v586, 120
  %v1626 = vpop.permute.xlu0 %1625
  %1627 = vrot.lane.b32.xlu0 %v587, 120
  %v1628 = vpop.permute.xlu0 %1627
  %1629 = vrot.lane.b32.xlu0 %v588, 120
  %v1630 = vpop.permute.xlu0 %1629
  %1631 = vrot.lane.b32.xlu0 %v589, 120
  %v1632 = vpop.permute.xlu0 %1631
  %1633 = vrot.lane.b32.xlu0 %v590, 120
  %v1634 = vpop.permute.xlu0 %1633
  %1635 = vrot.lane.b32.xlu0 %v591, 120
  %v1636 = vpop.permute.xlu0 %1635
  %1637 = vrot.lane.b32.xlu0 %v592, 120
  %v1638 = vpop.permute.xlu0 %1637
  %1639 = vrot.lane.b32.xlu0 %v593, 120
  %v1640 = vpop.permute.xlu0 %1639
  %1641 = vrot.lane.b32.xlu0 %v594, 120
  %v1642 = vpop.permute.xlu0 %1641
  %1643 = vrot.lane.b32.xlu0 %v595, 120
  %v1644 = vpop.permute.xlu0 %1643
  %1645 = vrot.lane.b32.xlu0 %v596, 120
  %v1646 = vpop.permute.xlu0 %1645
  %1647 = vrot.lane.b32.xlu0 %v597, 120
  %v1648 = vpop.permute.xlu0 %1647
  %1649 = vrot.lane.b32.xlu0 %v598, 120
  %v1650 = vpop.permute.xlu0 %1649
  %1651 = vrot.lane.b32.xlu0 %v599, 120
  %v1652 = vpop.permute.xlu0 %1651
  %1653 = vrot.lane.b32.xlu0 %v600, 120
  %v1654 = vpop.permute.xlu0 %1653
  %1655 = vrot.lane.b32.xlu0 %v601, 120
  %v1656 = vpop.permute.xlu0 %1655
  %1657 = vrot.lane.b32.xlu0 %v602, 120
  %v1658 = vpop.permute.xlu0 %1657
  %1659 = vrot.lane.b32.xlu0 %v603, 120
  %v1660 = vpop.permute.xlu0 %1659
  %1661 = vrot.lane.b32.xlu0 %v604, 120
  %v1662 = vpop.permute.xlu0 %1661
  %1663 = vrot.lane.b32.xlu0 %v605, 120
  %v1664 = vpop.permute.xlu0 %1663
  %1665 = vrot.lane.b32.xlu0 %v606, 120
  %v1666 = vpop.permute.xlu0 %1665
  %1667 = vrot.lane.b32.xlu0 %v607, 120
  %v1668 = vpop.permute.xlu0 %1667
  %1669 = vrot.lane.b32.xlu0 %v608, 120
  %v1670 = vpop.permute.xlu0 %1669
  %1671 = vrot.lane.b32.xlu0 %v609, 120
  %v1672 = vpop.permute.xlu0 %1671
  %1673 = vrot.lane.b32.xlu0 %v610, 120
  %v1674 = vpop.permute.xlu0 %1673
  %1675 = vrot.lane.b32.xlu0 %v611, 120
  %v1676 = vpop.permute.xlu0 %1675
  %1677 = vrot.lane.b32.xlu0 %v612, 120
  %v1678 = vpop.permute.xlu0 %1677
  %1679 = vrot.lane.b32.xlu0 %v613, 120
  %v1680 = vpop.permute.xlu0 %1679
  %1681 = vrot.lane.b32.xlu0 %v614, 120
  %v1682 = vpop.permute.xlu0 %1681
  %1683 = vrot.lane.b32.xlu0 %v615, 120
  %v1684 = vpop.permute.xlu0 %1683
  %1685 = vrot.lane.b32.xlu0 %v616, 120
  %v1686 = vpop.permute.xlu0 %1685
  %1687 = vrot.lane.b32.xlu0 %v617, 120
  %v1688 = vpop.permute.xlu0 %1687
  %1689 = vrot.lane.b32.xlu0 %v618, 120
  %v1690 = vpop.permute.xlu0 %1689
  %1691 = vrot.lane.b32.xlu0 %v619, 120
  %v1692 = vpop.permute.xlu0 %1691
  %1693 = vrot.lane.b32.xlu0 %v620, 120
  %v1694 = vpop.permute.xlu0 %1693
  %1695 = vrot.lane.b32.xlu0 %v621, 120
  %v1696 = vpop.permute.xlu0 %1695
  %1697 = vrot.lane.b32.xlu0 %v622, 120
  %v1698 = vpop.permute.xlu0 %1697
  %1699 = vrot.lane.b32.xlu0 %v623, 120
  %v1700 = vpop.permute.xlu0 %1699
  %1701 = vrot.lane.b32.xlu0 %v624, 120
  %v1702 = vpop.permute.xlu0 %1701
  %1703 = vrot.lane.b32.xlu0 %v625, 120
  %v1704 = vpop.permute.xlu0 %1703
  %1705 = vrot.lane.b32.xlu0 %v626, 120
  %v1706 = vpop.permute.xlu0 %1705
  %1707 = vrot.lane.b32.xlu0 %v627, 120
  %v1708 = vpop.permute.xlu0 %1707
  %1709 = vrot.lane.b32.xlu0 %v628, 120
  %v1710 = vpop.permute.xlu0 %1709
  %1711 = vrot.lane.b32.xlu0 %v629, 120
  %v1712 = vpop.permute.xlu0 %1711
  %1713 = vrot.lane.b32.xlu0 %v630, 120
  %v1714 = vpop.permute.xlu0 %1713
  %1715 = vrot.lane.b32.xlu0 %v631, 120
  %v1716 = vpop.permute.xlu0 %1715
  %1717 = vrot.lane.b32.xlu0 %v632, 120
  %v1718 = vpop.permute.xlu0 %1717
  %1719 = vrot.lane.b32.xlu0 %v633, 120
  %v1720 = vpop.permute.xlu0 %1719
  %1721 = vrot.lane.b32.xlu0 %v634, 120
  %v1722 = vpop.permute.xlu0 %1721
  %1723 = vrot.lane.b32.xlu0 %v635, 120
  %v1724 = vpop.permute.xlu0 %1723
  %1725 = vrot.lane.b32.xlu0 %v636, 120
  %v1726 = vpop.permute.xlu0 %1725
  %1727 = vrot.lane.b32.xlu0 %v637, 120
  %v1728 = vpop.permute.xlu0 %1727
  %1729 = vrot.lane.b32.xlu0 %v638, 120
  %v1730 = vpop.permute.xlu0 %1729
  %1731 = vrot.lane.b32.xlu0 %v639, 120
  %v1732 = vpop.permute.xlu0 %1731
  %1733 = vrot.lane.b32.xlu0 %v640, 120
  %v1734 = vpop.permute.xlu0 %1733
  %1735 = vrot.lane.b32.xlu0 %v641, 120
  %v1736 = vpop.permute.xlu0 %1735
  %1801 = vst.msk [vmem:[%s4] sm:$0xf] %vm1290, %v1610
  %1802 = vst.msk [vmem:[%s4 + $0x4] sm:$0xf] %vm1290, %v1612
  %1803 = vst.msk [vmem:[%s4 + $0x8] sm:$0xf] %vm1290, %v1614
  %1804 = vst.msk [vmem:[%s4 + $0xc] sm:$0xf] %vm1290, %v1616
  %1805 = vst.msk [vmem:[%s4 + $0x10] sm:$0xf] %vm1290, %v1618
  %1806 = vst.msk [vmem:[%s4 + $0x14] sm:$0xf] %vm1290, %v1620
  %1807 = vst.msk [vmem:[%s4 + $0x18] sm:$0xf] %vm1290, %v1622
  %1808 = vst.msk [vmem:[%s4 + $0x1c] sm:$0xf] %vm1290, %v1624
  %1809 = vst.msk [vmem:[%s4 + $0x20] sm:$0xf] %vm1290, %v1626
  %1810 = vst.msk [vmem:[%s4 + $0x24] sm:$0xf] %vm1290, %v1628
  %1811 = vst.msk [vmem:[%s4 + $0x28] sm:$0xf] %vm1290, %v1630
  %1812 = vst.msk [vmem:[%s4 + $0x2c] sm:$0xf] %vm1290, %v1632
  %1813 = vst.msk [vmem:[%s4 + $0x30] sm:$0xf] %vm1290, %v1634
  %1814 = vst.msk [vmem:[%s4 + $0x34] sm:$0xf] %vm1290, %v1636
  %1815 = vst.msk [vmem:[%s4 + $0x38] sm:$0xf] %vm1290, %v1638
  %1816 = vst.msk [vmem:[%s4 + $0x3c] sm:$0xf] %vm1290, %v1640
  %1817 = vst.msk [vmem:[%s4 + $0x40] sm:$0xf] %vm1290, %v1642
  %1818 = vst.msk [vmem:[%s4 + $0x44] sm:$0xf] %vm1290, %v1644
  %1819 = vst.msk [vmem:[%s4 + $0x48] sm:$0xf] %vm1290, %v1646
  %1820 = vst.msk [vmem:[%s4 + $0x4c] sm:$0xf] %vm1290, %v1648
  %1821 = vst.msk [vmem:[%s4 + $0x50] sm:$0xf] %vm1290, %v1650
  %1822 = vst.msk [vmem:[%s4 + $0x54] sm:$0xf] %vm1290, %v1652
  %1823 = vst.msk [vmem:[%s4 + $0x58] sm:$0xf] %vm1290, %v1654
  %1824 = vst.msk [vmem:[%s4 + $0x5c] sm:$0xf] %vm1290, %v1656
  %1825 = vst.msk [vmem:[%s4 + $0x60] sm:$0xf] %vm1290, %v1658
  %1826 = vst.msk [vmem:[%s4 + $0x64] sm:$0xf] %vm1290, %v1660
  %1827 = vst.msk [vmem:[%s4 + $0x68] sm:$0xf] %vm1290, %v1662
  %1828 = vst.msk [vmem:[%s4 + $0x6c] sm:$0xf] %vm1290, %v1664
  %1829 = vst.msk [vmem:[%s4 + $0x70] sm:$0xf] %vm1290, %v1666
  %1830 = vst.msk [vmem:[%s4 + $0x74] sm:$0xf] %vm1290, %v1668
  %1831 = vst.msk [vmem:[%s4 + $0x78] sm:$0xf] %vm1290, %v1670
  %1832 = vst.msk [vmem:[%s4 + $0x7c] sm:$0xf] %vm1290, %v1672
  %1833 = vst.msk [vmem:[%s4 + $0x80] sm:$0xf] %vm1290, %v1674
  %1834 = vst.msk [vmem:[%s4 + $0x84] sm:$0xf] %vm1290, %v1676
  %1835 = vst.msk [vmem:[%s4 + $0x88] sm:$0xf] %vm1290, %v1678
  %1836 = vst.msk [vmem:[%s4 + $0x8c] sm:$0xf] %vm1290, %v1680
  %1837 = vst.msk [vmem:[%s4 + $0x90] sm:$0xf] %vm1290, %v1682
  %1838 = vst.msk [vmem:[%s4 + $0x94] sm:$0xf] %vm1290, %v1684
  %1839 = vst.msk [vmem:[%s4 + $0x98] sm:$0xf] %vm1290, %v1686
  %1840 = vst.msk [vmem:[%s4 + $0x9c] sm:$0xf] %vm1290, %v1688
  %1841 = vst.msk [vmem:[%s4 + $0xa0] sm:$0xf] %vm1290, %v1690
  %1842 = vst.msk [vmem:[%s4 + $0xa4] sm:$0xf] %vm1290, %v1692
  %1843 = vst.msk [vmem:[%s4 + $0xa8] sm:$0xf] %vm1290, %v1694
  %1844 = vst.msk [vmem:[%s4 + $0xac] sm:$0xf] %vm1290, %v1696
  %1845 = vst.msk [vmem:[%s4 + $0xb0] sm:$0xf] %vm1290, %v1698
  %1846 = vst.msk [vmem:[%s4 + $0xb4] sm:$0xf] %vm1290, %v1700
  %1847 = vst.msk [vmem:[%s4 + $0xb8] sm:$0xf] %vm1290, %v1702
  %1848 = vst.msk [vmem:[%s4 + $0xbc] sm:$0xf] %vm1290, %v1704
  %1849 = vst.msk [vmem:[%s4 + $0xc0] sm:$0xf] %vm1290, %v1706
  %1850 = vst.msk [vmem:[%s4 + $0xc4] sm:$0xf] %vm1290, %v1708
  %1851 = vst.msk [vmem:[%s4 + $0xc8] sm:$0xf] %vm1290, %v1710
  %1852 = vst.msk [vmem:[%s4 + $0xcc] sm:$0xf] %vm1290, %v1712
  %1853 = vst.msk [vmem:[%s4 + $0xd0] sm:$0xf] %vm1290, %v1714
  %1854 = vst.msk [vmem:[%s4 + $0xd4] sm:$0xf] %vm1290, %v1716
  %1855 = vst.msk [vmem:[%s4 + $0xd8] sm:$0xf] %vm1290, %v1718
  %1856 = vst.msk [vmem:[%s4 + $0xdc] sm:$0xf] %vm1290, %v1720
  %1857 = vst.msk [vmem:[%s4 + $0xe0] sm:$0xf] %vm1290, %v1722
  %1858 = vst.msk [vmem:[%s4 + $0xe4] sm:$0xf] %vm1290, %v1724
  %1859 = vst.msk [vmem:[%s4 + $0xe8] sm:$0xf] %vm1290, %v1726
  %1860 = vst.msk [vmem:[%s4 + $0xec] sm:$0xf] %vm1290, %v1728
  %1861 = vst.msk [vmem:[%s4 + $0xf0] sm:$0xf] %vm1290, %v1730
  %1862 = vst.msk [vmem:[%s4 + $0xf4] sm:$0xf] %vm1290, %v1732
  %1863 = vst.msk [vmem:[%s4 + $0xf8] sm:$0xf] %vm1290, %v1734
  %1864 = vst.msk [vmem:[%s4 + $0xfc] sm:$0xf] %vm1290, %v1736
  // Predicated region
  $region14: #{skip_upsample_forward.5} parent=0 // pred_check
    _
  $region15: #{skip_upsample_forward.5} parent=0 // pred_check_branch
    %1866 = sbr.rel (0) target = $region17
  $region16: #{skip_upsample_forward.5} parent=0 // pred_region
    _
  $region17: #{skip_upsample_forward.5} parent=0 // pred_fallthru
    _
  // Predicated region
  $region18: #{skip_upsample_forward.5} parent=0 // pred_check
    _
  $region19: #{skip_upsample_forward.5} parent=0 // pred_check_branch
    %1868 = sbr.rel (0) target = $region21
  $region20: #{skip_upsample_forward.5} parent=0 // pred_region
    _
  $region21: #{skip_upsample_forward.5} parent=0 // pred_fallthru
    _
  // Predicated region
  $region22: #{skip_upsample_forward.5} parent=0 // pred_check
    _
  $region23: #{skip_upsample_forward.5} parent=0 // pred_check_branch
    %1870 = sbr.rel (0) target = $region25
  $region24: #{skip_upsample_forward.5} parent=0 // pred_region
    _
  $region25: #{skip_upsample_forward.5} parent=0 // pred_fallthru
    _
  // Predicated region
  $region26: #{skip_upsample_forward.5} parent=0 // pred_check
    _
  $region27: #{skip_upsample_forward.5} parent=0 // pred_check_branch
    %1872 = sbr.rel (0) target = $region29
  $region28: #{skip_upsample_forward.5} parent=0 // pred_region
    _
  $region29: #{skip_upsample_forward.5} parent=0 // pred_fallthru
    _

// kernel: skip_upsample_forward.7
$region0: #{skip_upsample_forward.7}
  #allocation0 [shape = 'u32[]', space=smem, size = 0x4, offset = 0x4, fixed_abs, tag = 'smem constant byte address 0x4 - core index']
  #allocation1 [shape = 'u32[144,128]{1,0:T(1,128)}', space=vmem, size = 0x12000, scoped, tag = 'internal scratch']
  %s0 = inlined_call_operand.vmem [shape: bf16[32,144], index: 0, kind: input, shape index: {}]
  %s1 = inlined_call_operand.vmem [shape: f32[1,128], index: 1, kind: input, shape index: {}]
  %s2 = inlined_call_operand.vmem [shape: f32[1,128], index: 2, kind: input, shape index: {}]
  %s3 = inlined_call_operand.vmem [shape: bf16[32,128], index: 3, kind: input, shape index: {}]
  %s4 = inlined_call_operand.vmem [shape: f32[32,128], index: 4, kind: output, shape index: {}]
  %s5 = sld [smem:[#allocation0]]
  $region26: #{skip_upsample_forward.7} parent=0
    _
  %s7 = ssub.s32 1, %s5
  %s8 = scalar_select 0, %s7, %s5
  // Predicated region
  $region2: #{skip_upsample_forward.7} parent=0 // pred_check
    _
  $region3: #{skip_upsample_forward.7} parent=0 // pred_check_branch
    %10 = sbr.rel (0) target = $region5
  $region4: #{skip_upsample_forward.7} parent=0 // pred_region
    _
  $region5: #{skip_upsample_forward.7} parent=0 // pred_fallthru
    _
  // Predicated region
  $region6: #{skip_upsample_forward.7} parent=0 // pred_check
    _
  $region7: #{skip_upsample_forward.7} parent=0 // pred_check_branch
    %12 = sbr.rel (0) target = $region9
  $region8: #{skip_upsample_forward.7} parent=0 // pred_region
    _
  $region9: #{skip_upsample_forward.7} parent=0 // pred_fallthru
    _
  // Predicated region
  $region10: #{skip_upsample_forward.7} parent=0 // pred_check
    _
  $region11: #{skip_upsample_forward.7} parent=0 // pred_check_branch
    %14 = sbr.rel (0) target = $region13
  $region12: #{skip_upsample_forward.7} parent=0 // pred_region
    _
  $region13: #{skip_upsample_forward.7} parent=0 // pred_fallthru
    _
  // Predicated region
  $region14: #{skip_upsample_forward.7} parent=0 // pred_check
    _
  $region15: #{skip_upsample_forward.7} parent=0 // pred_check_branch
    %16 = sbr.rel (0) target = $region17
  $region16: #{skip_upsample_forward.7} parent=0 // pred_region
    _
  $region17: #{skip_upsample_forward.7} parent=0 // pred_fallthru
    _
  %v17 = vld [vmem:[%s0] sm:$0xf]
  %v18 = vld [vmem:[%s0 + $0x8] sm:$0xf]
  %v19 = vld [vmem:[%s0 + $0x10] sm:$0xf]
  %v20 = vld [vmem:[%s0 + $0x18] sm:$0xf]
  %v21 = vunpack.c.l.bf16 %v17
  %v22 = vunpack.c.l.bf16 %v18
  %v23 = vunpack.c.l.bf16 %v19
  %v24 = vunpack.c.l.bf16 %v20
  %v25 = vld [vmem:[%s1] sm:$0x1]
  %v27 = vlaneseq
  %v28 = vshrl.u32 %v27, 7
  %v29 = vsub.s32 0, %v28
  %v30 = vrot.slane %v25, %v29
  %v32 = vmul.f32 %v21, %v30
  %v33 = vmul.f32 %v22, %v30
  %v34 = vmul.f32 %v23, %v30
  %v35 = vmul.f32 %v24, %v30
  %v36 = vld [vmem:[%s2] sm:$0x1]
  %v38 = vlaneseq
  %v39 = vshrl.u32 %v38, 7
  %v40 = vsub.s32 0, %v39
  %v41 = vrot.slane %v36, %v40
  %v43 = vadd.f32 %v32, %v41
  %v44 = vadd.f32 %v33, %v41
  %v45 = vadd.f32 %v34, %v41
  %v46 = vadd.f32 %v35, %v41
  %v47 = vmax.f32 %v43, 0.0
  %v48 = vmax.f32 %v44, 0.0
  %v49 = vmax.f32 %v45, 0.0
  %v50 = vmax.f32 %v46, 0.0
  %v51 = vld [vmem:[%s3] sm:$0xf]
  %v52 = vld [vmem:[%s3 + $0x4] sm:$0xf]
  %v53 = vld [vmem:[%s3 + $0x8] sm:$0xf]
  %v54 = vld [vmem:[%s3 + $0xc] sm:$0xf]
  %v55 = vunpack.c.l.bf16 %v51
  %v56 = vunpack.c.l.bf16 %v52
  %v57 = vunpack.c.l.bf16 %v53
  %v58 = vunpack.c.l.bf16 %v54
  %v59 = vadd.f32 %v47, %v55
  %v60 = vadd.f32 %v48, %v56
  %v61 = vadd.f32 %v49, %v57
  %v62 = vadd.f32 %v50, %v58
  %63 = vst [vmem:[%s4] sm:$0xff] %v59
  %64 = vst [vmem:[%s4 + $0x8] sm:$0xff] %v60
  %65 = vst [vmem:[%s4 + $0x10] sm:$0xff] %v61
  %66 = vst [vmem:[%s4 + $0x18] sm:$0xff] %v62
  // Predicated region
  $region18: #{skip_upsample_forward.7} parent=0 // pred_check
    _
  $region19: #{skip_upsample_forward.7} parent=0 // pred_check_branch
    %68 = sbr.rel (0) target = $region21
  $region20: #{skip_upsample_forward.7} parent=0 // pred_region
    _
  $region21: #{skip_upsample_forward.7} parent=0 // pred_fallthru
    _
  // Predicated region
  $region22: #{skip_upsample_forward.7} parent=0 // pred_check
    _
  $region23: #{skip_upsample_forward.7} parent=0 // pred_check_branch
    %70 = sbr.rel (0) target = $region25
  $region24: #{skip_upsample_forward.7} parent=0 // pred_region
    _
  $region25: #{skip_upsample_forward.7} parent=0 // pred_fallthru
    _

// kernel: skip_upsample_forward.6
$region0: #{skip_upsample_forward.6}
  #allocation0 [shape = 'u32[]', space=smem, size = 0x4, offset = 0x4, fixed_abs, tag = 'smem constant byte address 0x4 - core index']
  #allocation1 [shape = 'u32[144,128]{1,0:T(1,128)}', space=vmem, size = 0x12000, scoped, tag = 'internal scratch']
  #allocation2 [shape = 'bf16[332,8]{1,0:T(8,128)(2,1)}', space=vmem, size = 0x15000, scoped, tag = 'scratch operand']
  #allocation3 [shape = 'f32[288,8]{1,0:T(8,128)}', space=vmem, size = 0x24000, scoped, tag = 'scratch operand']
  %s0 = inlined_call_operand.vmem [shape: bf16[2,288,8], index: 0, kind: input, shape index: {}]
  %s1 = inlined_call_operand.vmem [shape: bf16[72,8], index: 1, kind: input, shape index: {}]
  %s2 = inlined_call_operand.vmem [shape: bf16[2,288,8], index: 2, kind: output, shape index: {0}]
  %s3 = inlined_call_operand.vmem [shape: f32[2,8,8], index: 3, kind: output, shape index: {1}]
  %s4 = inlined_call_operand.vmem [shape: f32[2,8,8], index: 4, kind: output, shape index: {2}]
  %5 = xla_tuple %s2, %s3, %s4
  %s6 = sld [smem:[#allocation0]]
  $region57: #{skip_upsample_forward.6} parent=0
    _
  %s8 = ssub.s32 1, %s6
  %s9 = scalar_select 0, %s8, %s6
  loop: start=0, step=1, limit=4
  $region2: #{skip_upsample_forward.6} parent=0 // loop_pre_header
    _
  $region3: #{skip_upsample_forward.6} parent=0 // loop_header
    %s11 = sphi 0, %s15
    %p12 = scmp.ge.s32.totalorder %s11, 4
    %s21 = sphi 0, %s23
    %s24 = sphi 0, %s21
    %s25 = sphi 0, %s24
    %s41 = sphi 0, %s25
    %s45 = sphi 0, %s45
    %s47 = sphi 0, %s45
    %s48 = sphi 0, %s47
    %s62 = sphi 0, %s48
    %s68 = sphi 0, %s70
    %s71 = sphi 0, %s68
    %s72 = sphi 0, %s71
    %s88 = sphi 0, %s72
    %s94 = sphi 0, %s96
    %s97 = sphi 0, %s94
    %s98 = sphi 0, %s97
    %s114 = sphi 0, %s98
    %s120 = sphi 0, %s122
    %s123 = sphi 0, %s120
    %s124 = sphi 0, %s123
    %s140 = sphi 0, %s124
  $region4: #{skip_upsample_forward.6} parent=0 // loop_header_branch
    %14 = sbr.rel (%p12) target = $region8
  $region5: #{skip_upsample_forward.6} parent=0 // loop_body
    %s16 = ssub.s32 %s11, 1
    %s17 = ssub.s32 %s11, 2
    %s18 = sadd.s32 %s11, 1
    %s19 = ssub.s32 %s11, %s18
    %p20 = scmp.eq.s32.totalorder %s19, 0
    %s22 = sadd.s32 %s21, 1
    %s23 = scalar_select %p20, %s21, %s22
    %p26 = pneg %p20
    %p27 = scmp.eq.s32.totalorder %s11, 1
    %p28 = por %p26, %p27
    %p29 = scmp.ne.s32.totalorder %s21, %s24
    %p30 = scmp.eq.s32.totalorder %s11, 0
    %p31 = por %p29, %p30
    %p32 = scmp.ne.s32.totalorder %s21, %s24
    %p33 = scmp.eq.s32.totalorder %s16, 1
    %p34 = por %p32, %p33
    %p35 = scmp.ne.s32.totalorder %s24, %s25
    %p36 = scmp.eq.s32.totalorder %s16, 0
    %p37 = por %p35, %p36
    %p38 = scmp.ne.s32.totalorder %s24, %s25
    %p39 = scmp.eq.s32.totalorder %s17, 1
    %p40 = por %p38, %p39
    %p42 = scmp.ne.s32.totalorder %s25, %s41
    %p43 = scmp.eq.s32.totalorder %s17, 0
    %p44 = por %p42, %p43
    %s46 = sadd.s32 %s45, 1
    %p49 = scmp.eq.s32.totalorder %s11, 1
    %p50 = scmp.ne.s32.totalorder %s45, %s47
    %p51 = scmp.eq.s32.totalorder %s11, 0
    %p52 = por %p50, %p51
    %p53 = scmp.ne.s32.totalorder %s45, %s47
    %p54 = scmp.eq.s32.totalorder %s16, 1
    %p55 = por %p53, %p54
    %p56 = scmp.ne.s32.totalorder %s47, %s48
    %p57 = scmp.eq.s32.totalorder %s16, 0
    %p58 = por %p56, %p57
    %p59 = scmp.ne.s32.totalorder %s47, %s48
    %p60 = scmp.eq.s32.totalorder %s17, 1
    %p61 = por %p59, %p60
    %p63 = scmp.ne.s32.totalorder %s48, %s62
    %p64 = scmp.eq.s32.totalorder %s17, 0
    %p65 = por %p63, %p64
    %s66 = ssub.s32 %s11, %s18
    %p67 = scmp.eq.s32.totalorder %s66, 0
    %s69 = sadd.s32 %s68, 1
    %s70 = scalar_select %p67, %s68, %s69
    %p73 = pneg %p67
    %p74 = scmp.eq.s32.totalorder %s11, 1
    %p75 = por %p73, %p74
    %p76 = scmp.ne.s32.totalorder %s68, %s71
    %p77 = scmp.eq.s32.totalorder %s11, 0
    %p78 = por %p76, %p77
    %p79 = scmp.ne.s32.totalorder %s68, %s71
    %p80 = scmp.eq.s32.totalorder %s16, 1
    %p81 = por %p79, %p80
    %p82 = scmp.ne.s32.totalorder %s71, %s72
    %p83 = scmp.eq.s32.totalorder %s16, 0
    %p84 = por %p82, %p83
    %p85 = scmp.ne.s32.totalorder %s71, %s72
    %p86 = scmp.eq.s32.totalorder %s17, 1
    %p87 = por %p85, %p86
    %p89 = scmp.ne.s32.totalorder %s72, %s88
    %p90 = scmp.eq.s32.totalorder %s17, 0
    %p91 = por %p89, %p90
    %s92 = ssub.s32 %s11, %s18
    %p93 = scmp.eq.s32.totalorder %s92, 0
    %s95 = sadd.s32 %s94, 1
    %s96 = scalar_select %p93, %s94, %s95
    %p99 = pneg %p93
    %p100 = scmp.eq.s32.totalorder %s11, 1
    %p101 = por %p99, %p100
    %p102 = scmp.ne.s32.totalorder %s94, %s97
    %p103 = scmp.eq.s32.totalorder %s11, 0
    %p104 = por %p102, %p103
    %p105 = scmp.ne.s32.totalorder %s94, %s97
    %p106 = scmp.eq.s32.totalorder %s16, 1
    %p107 = por %p105, %p106
    %p108 = scmp.ne.s32.totalorder %s97, %s98
    %p109 = scmp.eq.s32.totalorder %s16, 0
    %p110 = por %p108, %p109
    %p111 = scmp.ne.s32.totalorder %s97, %s98
    %p112 = scmp.eq.s32.totalorder %s17, 1
    %p113 = por %p111, %p112
    %p115 = scmp.ne.s32.totalorder %s98, %s114
    %p116 = scmp.eq.s32.totalorder %s17, 0
    %p117 = por %p115, %p116
    %s118 = ssub.s32 %s11, %s18
    %p119 = scmp.eq.s32.totalorder %s118, 0
    %s121 = sadd.s32 %s120, 1
    %s122 = scalar_select %p119, %s120, %s121
    %p125 = pneg %p119
    %p126 = scmp.eq.s32.totalorder %s11, 1
    %p127 = por %p125, %p126
    %p128 = scmp.ne.s32.totalorder %s120, %s123
    %p129 = scmp.eq.s32.totalorder %s11, 0
    %p130 = por %p128, %p129
    %p131 = scmp.ne.s32.totalorder %s120, %s123
    %p132 = scmp.eq.s32.totalorder %s16, 1
    %p133 = por %p131, %p132
    %p134 = scmp.ne.s32.totalorder %s123, %s124
    %p135 = scmp.eq.s32.totalorder %s16, 0
    %p136 = por %p134, %p135
    %p137 = scmp.ne.s32.totalorder %s123, %s124
    %p138 = scmp.eq.s32.totalorder %s17, 1
    %p139 = por %p137, %p138
    %p141 = scmp.ne.s32.totalorder %s124, %s140
    %p142 = scmp.eq.s32.totalorder %s17, 0
    %p143 = por %p141, %p142
    %p144 = scmp.le.s32.totalorder 1, %s11
    %p145 = scmp.lt.s32.totalorder %s11, 3
    %p146 = pnand %p144, %p145
    %p147 = pneg %p146
    // Predicated region
    $region9: #{skip_upsample_forward.6} parent=5 // pred_check
      _
    $region10: #{skip_upsample_forward.6} parent=5 // pred_check_branch
      %149 = sbr.rel (%p146) target = $region12
    $region11: #{skip_upsample_forward.6} parent=5 // pred_region
      %s150 = ssub.s32 %s11, 1
      // Predicated region
      $region13: #{skip_upsample_forward.6} parent=11 // pred_check
        %p151 = pneg %p58
      $region14: #{skip_upsample_forward.6} parent=11 // pred_check_branch
        %153 = sbr.rel (%p151) target = $region16
      $region15: #{skip_upsample_forward.6} parent=11 // pred_region
        _
      $region16: #{skip_upsample_forward.6} parent=11 // pred_fallthru
        _
    $region12: #{skip_upsample_forward.6} parent=5 // pred_fallthru
      _
    %p154 = scmp.lt.s32.totalorder %s11, 2
    // Predicated region
    $region17: #{skip_upsample_forward.6} parent=5 // pred_check
      %p155 = pneg %p154
    $region18: #{skip_upsample_forward.6} parent=5 // pred_check_branch
      %157 = sbr.rel (%p155) target = $region20
    $region19: #{skip_upsample_forward.6} parent=5 // pred_region
      // Predicated region
      $region21: #{skip_upsample_forward.6} parent=19 // pred_check
        %p158 = pneg %p31
      $region22: #{skip_upsample_forward.6} parent=19 // pred_check_branch
        %160 = sbr.rel (%p158) target = $region24
      $region23: #{skip_upsample_forward.6} parent=19 // pred_region
        %p161 = scmp.lt.s32.totalorder %s11, 1
        %s162 = scalar_select %p161, %s11, 1
        %s163 = smul.addr %s162, 36
        %s164 = smul.addr %s163, 4
        %s165 = scalar_lea.vmem %s0, %s164
      $region24: #{skip_upsample_forward.6} parent=19 // pred_fallthru
        _
    $region20: #{skip_upsample_forward.6} parent=5 // pred_fallthru
      _
    %p166 = scmp.le.s32.totalorder 1, %s11
    %p167 = scmp.lt.s32.totalorder %s11, 3
    %p168 = pnand %p166, %p167
    %p169 = pneg %p168
    // Predicated region
    $region25: #{skip_upsample_forward.6} parent=5 // pred_check
      _
    $region26: #{skip_upsample_forward.6} parent=5 // pred_check_branch
      %171 = sbr.rel (%p168) target = $region28
    $region27: #{skip_upsample_forward.6} parent=5 // pred_region
      %s172 = ssub.s32 %s11, 1
      %p173 = scmp.lt.s32.totalorder %s16, 1
      %s174 = scalar_select %p173, %s16, 1
      %s175 = smul.addr %s174, 36
      %s176 = smul.addr %s175, 4
      %s177 = scalar_lea.vmem %s0, %s176
      %p178 = pneg %p37
      %p179 = pneg %p34
      %p180 = pneg %p58
      %p181 = pneg %p55
      %p182 = pneg %p84
      %p183 = pneg %p81
      %p184 = scmp.lt.s32.totalorder %s16, 1
      %s185 = scalar_select %p184, %s16, 1
      %s186 = smul.addr %s185, 36
      %s187 = smul.addr %s186, 4
      %s188 = scalar_lea.vmem %s2, %s187
      %p189 = pneg %p110
      %p190 = pneg %p107
      %p191 = scmp.lt.s32.totalorder %s16, 1
      %s192 = scalar_select %p191, %s16, 1
      %s193 = smul.addr %s192, 8
      %s194 = scalar_lea.vmem %s3, %s193
      %p195 = pneg %p136
      %p196 = pneg %p133
      %p197 = scmp.lt.s32.totalorder %s16, 1
      %s198 = scalar_select %p197, %s16, 1
      %s199 = smul.addr %s198, 8
      %s200 = scalar_lea.vmem %s4, %s199
      %p201 = scmp.lt.s32.totalorder %s16, 1
      %s202 = scalar_select %p201, %s16, 1
      %s203 = smul.addr %s202, 36
      %s204 = smul.addr %s203, 4
      %s205 = scalar_lea.vmem %s0, %s204
      %p206 = scmp.lt.s32.totalorder %s16, 1
      %s207 = scalar_select %p206, %s16, 1
      %s208 = smul.addr %s207, 36
      %s209 = smul.addr %s208, 4
      %s210 = scalar_lea.vmem %s2, %s209
      %p211 = scmp.lt.s32.totalorder %s16, 1
      %s212 = scalar_select %p211, %s16, 1
      %s213 = smul.addr %s212, 8
      %s214 = scalar_lea.vmem %s3, %s213
      %p215 = scmp.lt.s32.totalorder %s16, 1
      %s216 = scalar_select %p215, %s16, 1
      %s217 = smul.addr %s216, 8
      %s218 = scalar_lea.vmem %s4, %s217
      %vm220 = vcmask 60416
      %221 = vst.msk [vmem:[#allocation2] sm:$0xf] %vm220, 0
      %222 = vst.msk [vmem:[#allocation2 + $0x4] sm:$0xf] %vm220, 0
      %vm223 = vcmask 57344
      %224 = vst.msk [vmem:[#allocation2 + $0x8] sm:$0x1] %vm223, 0
      %vm225 = vcmask 60417
      %226 = vst.msk [vmem:[#allocation2 + $0x98] sm:$0xe] %vm225, 0
      %227 = vst.msk [vmem:[#allocation2 + $0x9c] sm:$0xf] %vm220, 0
      %228 = vst.msk [vmem:[#allocation2 + $0xa0] sm:$0xf] %vm220, 0
      %vm229 = vcmask 58368
      %230 = vst.msk [vmem:[#allocation2 + $0xa4] sm:$0x3] %vm229, 0
      %v231 = vld [vmem:[%s205] sm:$0xf]
      %v232 = vld [vmem:[%s205 + $0x4] sm:$0xf]
      %v233 = vld [vmem:[%s205 + $0x8] sm:$0xf]
      %v234 = vld [vmem:[%s205 + $0xc] sm:$0xf]
      %v235 = vld [vmem:[%s205 + $0x10] sm:$0xf]
      %v236 = vld [vmem:[%s205 + $0x14] sm:$0xf]
      %v237 = vld [vmem:[%s205 + $0x18] sm:$0xf]
      %v238 = vld [vmem:[%s205 + $0x1c] sm:$0xf]
      %v239 = vld [vmem:[%s205 + $0x20] sm:$0xf]
      %v240 = vld [vmem:[%s205 + $0x24] sm:$0xf]
      %v241 = vld [vmem:[%s205 + $0x28] sm:$0xf]
      %v242 = vld [vmem:[%s205 + $0x2c] sm:$0xf]
      %v243 = vld [vmem:[%s205 + $0x30] sm:$0xf]
      %v244 = vld [vmem:[%s205 + $0x34] sm:$0xf]
      %v245 = vld [vmem:[%s205 + $0x38] sm:$0xf]
      %v246 = vld [vmem:[%s205 + $0x3c] sm:$0xf]
      %v247 = vld [vmem:[%s205 + $0x40] sm:$0xf]
      %v248 = vld [vmem:[%s205 + $0x44] sm:$0xf]
      %v249 = vld [vmem:[%s205 + $0x48] sm:$0xf]
      %v250 = vld [vmem:[%s205 + $0x4c] sm:$0xf]
      %v251 = vld [vmem:[%s205 + $0x50] sm:$0xf]
      %v252 = vld [vmem:[%s205 + $0x54] sm:$0xf]
      %v253 = vld [vmem:[%s205 + $0x58] sm:$0xf]
      %v254 = vld [vmem:[%s205 + $0x5c] sm:$0xf]
      %v255 = vld [vmem:[%s205 + $0x60] sm:$0xf]
      %v256 = vld [vmem:[%s205 + $0x64] sm:$0xf]
      %v257 = vld [vmem:[%s205 + $0x68] sm:$0xf]
      %v258 = vld [vmem:[%s205 + $0x6c] sm:$0xf]
      %v259 = vld [vmem:[%s205 + $0x70] sm:$0xf]
      %v260 = vld [vmem:[%s205 + $0x74] sm:$0xf]
      %v261 = vld [vmem:[%s205 + $0x78] sm:$0xf]
      %v262 = vld [vmem:[%s205 + $0x7c] sm:$0xf]
      %v263 = vld [vmem:[%s205 + $0x80] sm:$0xf]
      %v264 = vld [vmem:[%s205 + $0x84] sm:$0xf]
      %v265 = vld [vmem:[%s205 + $0x88] sm:$0xf]
      %v266 = vld [vmem:[%s205 + $0x8c] sm:$0xf]
      %vm303 = vcmask 1040384
      %vm304 = vcmask 1044484
      %vm305 = vmor %vm303, %vm304
      %v306 = vrot.slane %v231, 7
      %v307 = vrot.slane %v306, 4
      %v308 = vrot.slane %v232, 7
      %v309 = vsel %vm305, %v307, %v308
      %v310 = vrot.slane %v308, 4
      %v311 = vrot.slane %v233, 7
      %v312 = vsel %vm305, %v310, %v311
      %v313 = vrot.slane %v311, 4
      %v314 = vrot.slane %v234, 7
      %v315 = vsel %vm305, %v313, %v314
      %v316 = vrot.slane %v314, 4
      %v317 = vrot.slane %v235, 7
      %v318 = vsel %vm305, %v316, %v317
      %v319 = vrot.slane %v317, 4
      %v320 = vrot.slane %v236, 7
      %v321 = vsel %vm305, %v319, %v320
      %v322 = vrot.slane %v320, 4
      %v323 = vrot.slane %v237, 7
      %v324 = vsel %vm305, %v322, %v323
      %v325 = vrot.slane %v323, 4
      %v326 = vrot.slane %v238, 7
      %v327 = vsel %vm305, %v325, %v326
      %v328 = vrot.slane %v326, 4
      %v329 = vrot.slane %v239, 7
      %v330 = vsel %vm305, %v328, %v329
      %v331 = vrot.slane %v329, 4
      %v332 = vrot.slane %v240, 7
      %v333 = vsel %vm305, %v331, %v332
      %v334 = vrot.slane %v332, 4
      %v335 = vrot.slane %v241, 7
      %v336 = vsel %vm305, %v334, %v335
      %v337 = vrot.slane %v335, 4
      %v338 = vrot.slane %v242, 7
      %v339 = vsel %vm305, %v337, %v338
      %v340 = vrot.slane %v338, 4
      %v341 = vrot.slane %v243, 7
      %v342 = vsel %vm305, %v340, %v341
      %v343 = vrot.slane %v341, 4
      %v344 = vrot.slane %v244, 7
      %v345 = vsel %vm305, %v343, %v344
      %v346 = vrot.slane %v344, 4
      %v347 = vrot.slane %v245, 7
      %v348 = vsel %vm305, %v346, %v347
      %v349 = vrot.slane %v347, 4
      %v350 = vrot.slane %v246, 7
      %v351 = vsel %vm305, %v349, %v350
      %v352 = vrot.slane %v350, 4
      %v353 = vrot.slane %v247, 7
      %v354 = vsel %vm305, %v352, %v353
      %v355 = vrot.slane %v353, 4
      %v356 = vrot.slane %v248, 7
      %v357 = vsel %vm305, %v355, %v356
      %v358 = vrot.slane %v356, 4
      %v359 = vrot.slane %v249, 7
      %v360 = vsel %vm305, %v358, %v359
      %v361 = vrot.slane %v359, 4
      %v362 = vrot.slane %v250, 7
      %v363 = vsel %vm305, %v361, %v362
      %v364 = vrot.slane %v362, 4
      %v365 = vrot.slane %v251, 7
      %v366 = vsel %vm305, %v364, %v365
      %v367 = vrot.slane %v365, 4
      %v368 = vrot.slane %v252, 7
      %v369 = vsel %vm305, %v367, %v368
      %v370 = vrot.slane %v368, 4
      %v371 = vrot.slane %v253, 7
      %v372 = vsel %vm305, %v370, %v371
      %v373 = vrot.slane %v371, 4
      %v374 = vrot.slane %v254, 7
      %v375 = vsel %vm305, %v373, %v374
      %v376 = vrot.slane %v374, 4
      %v377 = vrot.slane %v255, 7
      %v378 = vsel %vm305, %v376, %v377
      %v379 = vrot.slane %v377, 4
      %v380 = vrot.slane %v256, 7
      %v381 = vsel %vm305, %v379, %v380
      %v382 = vrot.slane %v380, 4
      %v383 = vrot.slane %v257, 7
      %v384 = vsel %vm305, %v382, %v383
      %v385 = vrot.slane %v383, 4
      %v386 = vrot.slane %v258, 7
      %v387 = vsel %vm305, %v385, %v386
      %v388 = vrot.slane %v386, 4
      %v389 = vrot.slane %v259, 7
      %v390 = vsel %vm305, %v388, %v389
      %v391 = vrot.slane %v389, 4
      %v392 = vrot.slane %v260, 7
      %v393 = vsel %vm305, %v391, %v392
      %v394 = vrot.slane %v392, 4
      %v395 = vrot.slane %v261, 7
      %v396 = vsel %vm305, %v394, %v395
      %v397 = vrot.slane %v395, 4
      %v398 = vrot.slane %v262, 7
      %v399 = vsel %vm305, %v397, %v398
      %v400 = vrot.slane %v398, 4
      %v401 = vrot.slane %v263, 7
      %v402 = vsel %vm305, %v400, %v401
      %v403 = vrot.slane %v401, 4
      %v404 = vrot.slane %v264, 7
      %v405 = vsel %vm305, %v403, %v404
      %v406 = vrot.slane %v404, 4
      %v407 = vrot.slane %v265, 7
      %v408 = vsel %vm305, %v406, %v407
      %v409 = vrot.slane %v407, 4
      %v410 = vrot.slane %v266, 7
      %v411 = vsel %vm305, %v409, %v410
      %v412 = vrot.slane %v410, 4
      %450 = vst.msk [vmem:[#allocation2 + $0x8] sm:$0xe] %vm225, %v306
      %451 = vst.msk [vmem:[#allocation2 + $0xc] sm:$0xf] %vm220, %v309
      %452 = vst.msk [vmem:[#allocation2 + $0x10] sm:$0xf] %vm220, %v312
      %453 = vst.msk [vmem:[#allocation2 + $0x14] sm:$0xf] %vm220, %v315
      %454 = vst.msk [vmem:[#allocation2 + $0x18] sm:$0xf] %vm220, %v318
      %455 = vst.msk [vmem:[#allocation2 + $0x1c] sm:$0xf] %vm220, %v321
      %456 = vst.msk [vmem:[#allocation2 + $0x20] sm:$0xf] %vm220, %v324
      %457 = vst.msk [vmem:[#allocation2 + $0x24] sm:$0xf] %vm220, %v327
      %458 = vst.msk [vmem:[#allocation2 + $0x28] sm:$0xf] %vm220, %v330
      %459 = vst.msk [vmem:[#allocation2 + $0x2c] sm:$0xf] %vm220, %v333
      %460 = vst.msk [vmem:[#allocation2 + $0x30] sm:$0xf] %vm220, %v336
      %461 = vst.msk [vmem:[#allocation2 + $0x34] sm:$0xf] %vm220, %v339
      %462 = vst.msk [vmem:[#allocation2 + $0x38] sm:$0xf] %vm220, %v342
      %463 = vst.msk [vmem:[#allocation2 + $0x3c] sm:$0xf] %vm220, %v345
      %464 = vst.msk [vmem:[#allocation2 + $0x40] sm:$0xf] %vm220, %v348
      %465 = vst.msk [vmem:[#allocation2 + $0x44] sm:$0xf] %vm220, %v351
      %466 = vst.msk [vmem:[#allocation2 + $0x48] sm:$0xf] %vm220, %v354
      %467 = vst.msk [vmem:[#allocation2 + $0x4c] sm:$0xf] %vm220, %v357
      %468 = vst.msk [vmem:[#allocation2 + $0x50] sm:$0xf] %vm220, %v360
      %469 = vst.msk [vmem:[#allocation2 + $0x54] sm:$0xf] %vm220, %v363
      %470 = vst.msk [vmem:[#allocation2 + $0x58] sm:$0xf] %vm220, %v366
      %471 = vst.msk [vmem:[#allocation2 + $0x5c] sm:$0xf] %vm220, %v369
      %472 = vst.msk [vmem:[#allocation2 + $0x60] sm:$0xf] %vm220, %v372
      %473 = vst.msk [vmem:[#allocation2 + $0x64] sm:$0xf] %vm220, %v375
      %474 = vst.msk [vmem:[#allocation2 + $0x68] sm:$0xf] %vm220, %v378
      %475 = vst.msk [vmem:[#allocation2 + $0x6c] sm:$0xf] %vm220, %v381
      %476 = vst.msk [vmem:[#allocation2 + $0x70] sm:$0xf] %vm220, %v384
      %477 = vst.msk [vmem:[#allocation2 + $0x74] sm:$0xf] %vm220, %v387
      %478 = vst.msk [vmem:[#allocation2 + $0x78] sm:$0xf] %vm220, %v390
      %479 = vst.msk [vmem:[#allocation2 + $0x7c] sm:$0xf] %vm220, %v393
      %480 = vst.msk [vmem:[#allocation2 + $0x80] sm:$0xf] %vm220, %v396
      %481 = vst.msk [vmem:[#allocation2 + $0x84] sm:$0xf] %vm220, %v399
      %482 = vst.msk [vmem:[#allocation2 + $0x88] sm:$0xf] %vm220, %v402
      %483 = vst.msk [vmem:[#allocation2 + $0x8c] sm:$0xf] %vm220, %v405
      %484 = vst.msk [vmem:[#allocation2 + $0x90] sm:$0xf] %vm220, %v408
      %485 = vst.msk [vmem:[#allocation2 + $0x94] sm:$0xf] %vm220, %v411
      %486 = vst.msk [vmem:[#allocation2 + $0x98] sm:$0x1] %vm223, %v412
      %vm487 = vcmask 64512
      %488 = vst.msk [vmem:[#allocation3] sm:$0xff] %vm487, 0.0
      %489 = vst.msk [vmem:[#allocation3 + $0x8] sm:$0xff] %vm487, 0.0
      %490 = vst.msk [vmem:[#allocation3 + $0x10] sm:$0xff] %vm487, 0.0
      %491 = vst.msk [vmem:[#allocation3 + $0x18] sm:$0xff] %vm487, 0.0
      %492 = vst.msk [vmem:[#allocation3 + $0x20] sm:$0xff] %vm487, 0.0
      %493 = vst.msk [vmem:[#allocation3 + $0x28] sm:$0xff] %vm487, 0.0
      %494 = vst.msk [vmem:[#allocation3 + $0x30] sm:$0xff] %vm487, 0.0
      %495 = vst.msk [vmem:[#allocation3 + $0x38] sm:$0xff] %vm487, 0.0
      %496 = vst.msk [vmem:[#allocation3 + $0x40] sm:$0xff] %vm487, 0.0
      %497 = vst.msk [vmem:[#allocation3 + $0x48] sm:$0xff] %vm487, 0.0
      %498 = vst.msk [vmem:[#allocation3 + $0x50] sm:$0xff] %vm487, 0.0
      %499 = vst.msk [vmem:[#allocation3 + $0x58] sm:$0xff] %vm487, 0.0
      %500 = vst.msk [vmem:[#allocation3 + $0x60] sm:$0xff] %vm487, 0.0
      %501 = vst.msk [vmem:[#allocation3 + $0x68] sm:$0xff] %vm487, 0.0
      %502 = vst.msk [vmem:[#allocation3 + $0x70] sm:$0xff] %vm487, 0.0
      %503 = vst.msk [vmem:[#allocation3 + $0x78] sm:$0xff] %vm487, 0.0
      %504 = vst.msk [vmem:[#allocation3 + $0x80] sm:$0xff] %vm487, 0.0
      %505 = vst.msk [vmem:[#allocation3 + $0x88] sm:$0xff] %vm487, 0.0
      %506 = vst.msk [vmem:[#allocation3 + $0x90] sm:$0xff] %vm487, 0.0
      %507 = vst.msk [vmem:[#allocation3 + $0x98] sm:$0xff] %vm487, 0.0
      %508 = vst.msk [vmem:[#allocation3 + $0xa0] sm:$0xff] %vm487, 0.0
      %509 = vst.msk [vmem:[#allocation3 + $0xa8] sm:$0xff] %vm487, 0.0
      %510 = vst.msk [vmem:[#allocation3 + $0xb0] sm:$0xff] %vm487, 0.0
      %511 = vst.msk [vmem:[#allocation3 + $0xb8] sm:$0xff] %vm487, 0.0
      %512 = vst.msk [vmem:[#allocation3 + $0xc0] sm:$0xff] %vm487, 0.0
      %513 = vst.msk [vmem:[#allocation3 + $0xc8] sm:$0xff] %vm487, 0.0
      %514 = vst.msk [vmem:[#allocation3 + $0xd0] sm:$0xff] %vm487, 0.0
      %515 = vst.msk [vmem:[#allocation3 + $0xd8] sm:$0xff] %vm487, 0.0
      %516 = vst.msk [vmem:[#allocation3 + $0xe0] sm:$0xff] %vm487, 0.0
      %517 = vst.msk [vmem:[#allocation3 + $0xe8] sm:$0xff] %vm487, 0.0
      %518 = vst.msk [vmem:[#allocation3 + $0xf0] sm:$0xff] %vm487, 0.0
      %519 = vst.msk [vmem:[#allocation3 + $0xf8] sm:$0xff] %vm487, 0.0
      %520 = vst.msk [vmem:[#allocation3 + $0x100] sm:$0xff] %vm487, 0.0
      %521 = vst.msk [vmem:[#allocation3 + $0x108] sm:$0xff] %vm487, 0.0
      %522 = vst.msk [vmem:[#allocation3 + $0x110] sm:$0xff] %vm487, 0.0
      %523 = vst.msk [vmem:[#allocation3 + $0x118] sm:$0xff] %vm487, 0.0
      %v524 = vld [vmem:[#allocation3] sm:$0xff]
      %v525 = vld [vmem:[#allocation3 + $0x8] sm:$0xff]
      %v526 = vld [vmem:[#allocation3 + $0x10] sm:$0xff]
      %v527 = vld [vmem:[#allocation3 + $0x18] sm:$0xff]
      %v528 = vld [vmem:[#allocation3 + $0x20] sm:$0xff]
      %v529 = vld [vmem:[#allocation3 + $0x28] sm:$0xff]
      %v530 = vld [vmem:[#allocation3 + $0x30] sm:$0xff]
      %v531 = vld [vmem:[#allocation3 + $0x38] sm:$0xff]
      %v532 = vld [vmem:[#allocation3 + $0x40] sm:$0xff]
      %v533 = vld [vmem:[#allocation3 + $0x48] sm:$0xff]
      %v534 = vld [vmem:[#allocation3 + $0x50] sm:$0xff]
      %v535 = vld [vmem:[#allocation3 + $0x58] sm:$0xff]
      %v536 = vld [vmem:[#allocation3 + $0x60] sm:$0xff]
      %v537 = vld [vmem:[#allocation3 + $0x68] sm:$0xff]
      %v538 = vld [vmem:[#allocation3 + $0x70] sm:$0xff]
      %v539 = vld [vmem:[#allocation3 + $0x78] sm:$0xff]
      %v540 = vld [vmem:[#allocation3 + $0x80] sm:$0xff]
      %v541 = vld [vmem:[#allocation3 + $0x88] sm:$0xff]
      %v542 = vld [vmem:[#allocation3 + $0x90] sm:$0xff]
      %v543 = vld [vmem:[#allocation3 + $0x98] sm:$0xff]
      %v544 = vld [vmem:[#allocation3 + $0xa0] sm:$0xff]
      %v545 = vld [vmem:[#allocation3 + $0xa8] sm:$0xff]
      %v546 = vld [vmem:[#allocation3 + $0xb0] sm:$0xff]
      %v547 = vld [vmem:[#allocation3 + $0xb8] sm:$0xff]
      %v548 = vld [vmem:[#allocation3 + $0xc0] sm:$0xff]
      %v549 = vld [vmem:[#allocation3 + $0xc8] sm:$0xff]
      %v550 = vld [vmem:[#allocation3 + $0xd0] sm:$0xff]
      %v551 = vld [vmem:[#allocation3 + $0xd8] sm:$0xff]
      %v552 = vld [vmem:[#allocation3 + $0xe0] sm:$0xff]
      %v553 = vld [vmem:[#allocation3 + $0xe8] sm:$0xff]
      %v554 = vld [vmem:[#allocation3 + $0xf0] sm:$0xff]
      %v555 = vld [vmem:[#allocation3 + $0xf8] sm:$0xff]
      %v556 = vld [vmem:[#allocation3 + $0x100] sm:$0xff]
      %v557 = vld [vmem:[#allocation3 + $0x108] sm:$0xff]
      %v558 = vld [vmem:[#allocation3 + $0x110] sm:$0xff]
      %v559 = vld [vmem:[#allocation3 + $0x118] sm:$0xff]
      %v560 = vld [vmem:[#allocation2] sm:$0xf]
      %v561 = vld [vmem:[#allocation2 + $0x4] sm:$0xf]
      %v562 = vld [vmem:[#allocation2 + $0x8] sm:$0xf]
      %v563 = vld [vmem:[#allocation2 + $0xc] sm:$0xf]
      %v564 = vld [vmem:[#allocation2 + $0x10] sm:$0xf]
      %v565 = vld [vmem:[#allocation2 + $0x14] sm:$0xf]
      %v566 = vld [vmem:[#allocation2 + $0x18] sm:$0xf]
      %v567 = vld [vmem:[#allocation2 + $0x1c] sm:$0xf]
      %v568 = vld [vmem:[#allocation2 + $0x20] sm:$0xf]
      %v569 = vld [vmem:[#allocation2 + $0x24] sm:$0xf]
      %v570 = vld [vmem:[#allocation2 + $0x28] sm:$0xf]
      %v571 = vld [vmem:[#allocation2 + $0x2c] sm:$0xf]
      %v572 = vld [vmem:[#allocation2 + $0x30] sm:$0xf]
      %v573 = vld [vmem:[#allocation2 + $0x34] sm:$0xf]
      %v574 = vld [vmem:[#allocation2 + $0x38] sm:$0xf]
      %v575 = vld [vmem:[#allocation2 + $0x3c] sm:$0xf]
      %v576 = vld [vmem:[#allocation2 + $0x40] sm:$0xf]
      %v577 = vld [vmem:[#allocation2 + $0x44] sm:$0xf]
      %v578 = vld [vmem:[#allocation2 + $0x48] sm:$0xf]
      %v579 = vld [vmem:[#allocation2 + $0x4c] sm:$0xf]
      %v580 = vld [vmem:[#allocation2 + $0x50] sm:$0xf]
      %v581 = vld [vmem:[#allocation2 + $0x54] sm:$0xf]
      %v582 = vld [vmem:[#allocation2 + $0x58] sm:$0xf]
      %v583 = vld [vmem:[#allocation2 + $0x5c] sm:$0xf]
      %v584 = vld [vmem:[#allocation2 + $0x60] sm:$0xf]
      %v585 = vld [vmem:[#allocation2 + $0x64] sm:$0xf]
      %v586 = vld [vmem:[#allocation2 + $0x68] sm:$0xf]
      %v587 = vld [vmem:[#allocation2 + $0x6c] sm:$0xf]
      %v588 = vld [vmem:[#allocation2 + $0x70] sm:$0xf]
      %v589 = vld [vmem:[#allocation2 + $0x74] sm:$0xf]
      %v590 = vld [vmem:[#allocation2 + $0x78] sm:$0xf]
      %v591 = vld [vmem:[#allocation2 + $0x7c] sm:$0xf]
      %v592 = vld [vmem:[#allocation2 + $0x80] sm:$0xf]
      %v593 = vld [vmem:[#allocation2 + $0x84] sm:$0xf]
      %v594 = vld [vmem:[#allocation2 + $0x88] sm:$0xf]
      %v595 = vld [vmem:[#allocation2 + $0x8c] sm:$0xf]
      %v596 = vld [vmem:[%s1] sm:$0xf]
      %v633 = vunpack.c.l.b16 %v560
      %v634 = vunpack.c.l.b16 %v561
      %v635 = vunpack.c.l.b16 %v562
      %v636 = vunpack.c.l.b16 %v563
      %v637 = vunpack.c.l.b16 %v564
      %v638 = vunpack.c.l.b16 %v565
      %v639 = vunpack.c.l.b16 %v566
      %v640 = vunpack.c.l.b16 %v567
      %v641 = vunpack.c.l.b16 %v568
      %v642 = vunpack.c.l.b16 %v569
      %v643 = vunpack.c.l.b16 %v570
      %v644 = vunpack.c.l.b16 %v571
      %v645 = vunpack.c.l.b16 %v572
      %v646 = vunpack.c.l.b16 %v573
      %v647 = vunpack.c.l.b16 %v574
      %v648 = vunpack.c.l.b16 %v575
      %v649 = vunpack.c.l.b16 %v576
      %v650 = vunpack.c.l.b16 %v577
      %v651 = vunpack.c.l.b16 %v578
      %v652 = vunpack.c.l.b16 %v579
      %v653 = vunpack.c.l.b16 %v580
      %v654 = vunpack.c.l.b16 %v581
      %v655 = vunpack.c.l.b16 %v582
      %v656 = vunpack.c.l.b16 %v583
      %v657 = vunpack.c.l.b16 %v584
      %v658 = vunpack.c.l.b16 %v585
      %v659 = vunpack.c.l.b16 %v586
      %v660 = vunpack.c.l.b16 %v587
      %v661 = vunpack.c.l.b16 %v588
      %v662 = vunpack.c.l.b16 %v589
      %v663 = vunpack.c.l.b16 %v590
      %v664 = vunpack.c.l.b16 %v591
      %v665 = vunpack.c.l.b16 %v592
      %v666 = vunpack.c.l.b16 %v593
      %v667 = vunpack.c.l.b16 %v594
      %v668 = vunpack.c.l.b16 %v595
      %v669 = vpack.c.b16 %v634, %v633
      %v670 = vpack.c.b16 %v636, %v635
      %v671 = vpack.c.b16 %v638, %v637
      %v672 = vpack.c.b16 %v640, %v639
      %v673 = vpack.c.b16 %v642, %v641
      %v674 = vpack.c.b16 %v644, %v643
      %v675 = vpack.c.b16 %v646, %v645
      %v676 = vpack.c.b16 %v648, %v647
      %v677 = vpack.c.b16 %v650, %v649
      %v678 = vpack.c.b16 %v652, %v651
      %v679 = vpack.c.b16 %v654, %v653
      %v680 = vpack.c.b16 %v656, %v655
      %v681 = vpack.c.b16 %v658, %v657
      %v682 = vpack.c.b16 %v660, %v659
      %v683 = vpack.c.b16 %v662, %v661
      %v684 = vpack.c.b16 %v664, %v663
      %v685 = vpack.c.b16 %v666, %v665
      %v686 = vpack.c.b16 %v668, %v667
      %v688 = vsel %vm487, %v669, 0
      %v691 = vsel %vm487, %v670, 0
      %v694 = vsel %vm487, %v671, 0
      %v697 = vsel %vm487, %v672, 0
      %v700 = vsel %vm487, %v673, 0
      %v703 = vsel %vm487, %v674, 0
      %v706 = vsel %vm487, %v675, 0
      %v709 = vsel %vm487, %v676, 0
      %v712 = vsel %vm487, %v677, 0
      %v715 = vsel %vm487, %v678, 0
      %v718 = vsel %vm487, %v679, 0
      %v721 = vsel %vm487, %v680, 0
      %v724 = vsel %vm487, %v681, 0
      %v727 = vsel %vm487, %v682, 0
      %v730 = vsel %vm487, %v683, 0
      %v733 = vsel %vm487, %v684, 0
      %v736 = vsel %vm487, %v685, 0
      %v739 = vsel %vm487, %v686, 0
      %vm741 = vcmask 1043456
      %v743 = vsel %vm741, %v596, 0
      %745 = vmatprep.subr.bf16.mxu0 0
      %746 = vmatpush1.bf16.msra.mxu0 %v743
      %747 = vmatprep.subr.bf16.mxu0 0
      %748 = vmatpush1.bf16.msra.mxu0 0
      %749 = vmatprep.subr.bf16.mxu0 0
      %750 = vmatpush1.bf16.msra.mxu0 0
      %751 = vmatprep.subr.bf16.mxu0 0
      %752 = vmatpush1.bf16.msra.mxu0 0
      %753 = vmatprep.subr.bf16.mxu0 0
      %754 = vmatpush1.bf16.msra.mxu0 0
      %755 = vmatprep.subr.bf16.mxu0 0
      %756 = vmatpush1.bf16.msra.mxu0 0
      %757 = vmatprep.subr.bf16.mxu0 0
      %758 = vmatpush1.bf16.msra.mxu0 0
      %759 = vmatprep.subr.bf16.mxu0 0
      %760 = vmatpush1.bf16.msra.mxu0 0
      %761 = vmatprep.subr.bf16.mxu0 0
      %762 = vmatpush1.bf16.msra.mxu0 0
      %763 = vmatprep.subr.bf16.mxu0 0
      %764 = vmatpush1.bf16.msra.mxu0 0
      %765 = vmatprep.subr.bf16.mxu0 0
      %766 = vmatpush1.bf16.msra.mxu0 0
      %767 = vmatprep.subr.bf16.mxu0 0
      %768 = vmatpush1.bf16.msra.mxu0 0
      %769 = vmatprep.subr.bf16.mxu0 0
      %770 = vmatpush1.bf16.msra.mxu0 0
      %771 = vmatprep.subr.bf16.mxu0 0
      %772 = vmatpush1.bf16.msra.mxu0 0
      %773 = vmatprep.subr.bf16.mxu0 0
      %774 = vmatpush1.bf16.msra.mxu0 0
      %775 = vmatprep.subr.bf16.mxu0 0
      %776 = vmatpush1.bf16.msra.mxu0 0
      %777 = vmatprep.mubr.bf16.mxu0 0
      %778 = vmatmul.mubr.bf16.gmra.mrb[0].mxu0 %v688
      %v779 = vpop.f32.mrb[0].mxu0
      %v780 = vadd.f32 0.0, %v779
      %v781 = vpop.f32.mrb[0].mxu0
      %v782 = vpop.f32.mrb[0].mxu0
      %v783 = vadd.f32 0.0, %v782
      %v784 = vpop.f32.mrb[0].mxu0
      %785 = vmatprep.mubr.bf16.mxu0 0
      %786 = vmatmul.mubr.bf16.gmra.mrb[0].mxu0 %v691
      %v787 = vpop.f32.mrb[0].mxu0
      %v788 = vadd.f32 0.0, %v787
      %v789 = vpop.f32.mrb[0].mxu0
      %v790 = vpop.f32.mrb[0].mxu0
      %v791 = vadd.f32 0.0, %v790
      %v792 = vpop.f32.mrb[0].mxu0
      %793 = vmatprep.mubr.bf16.mxu0 0
      %794 = vmatmul.mubr.bf16.gmra.mrb[0].mxu0 %v694
      %v795 = vpop.f32.mrb[0].mxu0
      %v796 = vadd.f32 0.0, %v795
      %v797 = vpop.f32.mrb[0].mxu0
      %v798 = vpop.f32.mrb[0].mxu0
      %v799 = vadd.f32 0.0, %v798
      %v800 = vpop.f32.mrb[0].mxu0
      %801 = vmatprep.mubr.bf16.mxu0 0
      %802 = vmatmul.mubr.bf16.gmra.mrb[0].mxu0 %v697
      %v803 = vpop.f32.mrb[0].mxu0
      %v804 = vadd.f32 0.0, %v803
      %v805 = vpop.f32.mrb[0].mxu0
      %v806 = vpop.f32.mrb[0].mxu0
      %v807 = vadd.f32 0.0, %v806
      %v808 = vpop.f32.mrb[0].mxu0
      %809 = vmatprep.mubr.bf16.mxu0 0
      %810 = vmatmul.mubr.bf16.gmra.mrb[0].mxu0 %v700
      %v811 = vpop.f32.mrb[0].mxu0
      %v812 = vadd.f32 0.0, %v811
      %v813 = vpop.f32.mrb[0].mxu0
      %v814 = vpop.f32.mrb[0].mxu0
      %v815 = vadd.f32 0.0, %v814
      %v816 = vpop.f32.mrb[0].mxu0
      %817 = vmatprep.mubr.bf16.mxu0 0
      %818 = vmatmul.mubr.bf16.gmra.mrb[0].mxu0 %v703
      %v819 = vpop.f32.mrb[0].mxu0
      %v820 = vadd.f32 0.0, %v819
      %v821 = vpop.f32.mrb[0].mxu0
      %v822 = vpop.f32.mrb[0].mxu0
      %v823 = vadd.f32 0.0, %v822
      %v824 = vpop.f32.mrb[0].mxu0
      %825 = vmatprep.mubr.bf16.mxu0 0
      %826 = vmatmul.mubr.bf16.gmra.mrb[0].mxu0 %v706
      %v827 = vpop.f32.mrb[0].mxu0
      %v828 = vadd.f32 0.0, %v827
      %v829 = vpop.f32.mrb[0].mxu0
      %v830 = vpop.f32.mrb[0].mxu0
      %v831 = vadd.f32 0.0, %v830
      %v832 = vpop.f32.mrb[0].mxu0
      %833 = vmatprep.mubr.bf16.mxu0 0
      %834 = vmatmul.mubr.bf16.gmra.mrb[0].mxu0 %v709
      %v835 = vpop.f32.mrb[0].mxu0
      %v836 = vadd.f32 0.0, %v835
      %v837 = vpop.f32.mrb[0].mxu0
      %v838 = vpop.f32.mrb[0].mxu0
      %v839 = vadd.f32 0.0, %v838
      %v840 = vpop.f32.mrb[0].mxu0
      %841 = vmatprep.mubr.bf16.mxu0 0
      %842 = vmatmul.mubr.bf16.gmra.mrb[0].mxu0 %v712
      %v843 = vpop.f32.mrb[0].mxu0
      %v844 = vadd.f32 0.0, %v843
      %v845 = vpop.f32.mrb[0].mxu0
      %v846 = vpop.f32.mrb[0].mxu0
      %v847 = vadd.f32 0.0, %v846
      %v848 = vpop.f32.mrb[0].mxu0
      %849 = vmatprep.mubr.bf16.mxu0 0
      %850 = vmatmul.mubr.bf16.gmra.mrb[0].mxu0 %v715
      %v851 = vpop.f32.mrb[0].mxu0
      %v852 = vadd.f32 0.0, %v851
      %v853 = vpop.f32.mrb[0].mxu0
      %v854 = vpop.f32.mrb[0].mxu0
      %v855 = vadd.f32 0.0, %v854
      %v856 = vpop.f32.mrb[0].mxu0
      %857 = vmatprep.mubr.bf16.mxu0 0
      %858 = vmatmul.mubr.bf16.gmra.mrb[0].mxu0 %v718
      %v859 = vpop.f32.mrb[0].mxu0
      %v860 = vadd.f32 0.0, %v859
      %v861 = vpop.f32.mrb[0].mxu0
      %v862 = vpop.f32.mrb[0].mxu0
      %v863 = vadd.f32 0.0, %v862
      %v864 = vpop.f32.mrb[0].mxu0
      %865 = vmatprep.mubr.bf16.mxu0 0
      %866 = vmatmul.mubr.bf16.gmra.mrb[0].mxu0 %v721
      %v867 = vpop.f32.mrb[0].mxu0
      %v868 = vadd.f32 0.0, %v867
      %v869 = vpop.f32.mrb[0].mxu0
      %v870 = vpop.f32.mrb[0].mxu0
      %v871 = vadd.f32 0.0, %v870
      %v872 = vpop.f32.mrb[0].mxu0
      %873 = vmatprep.mubr.bf16.mxu0 0
      %874 = vmatmul.mubr.bf16.gmra.mrb[0].mxu0 %v724
      %v875 = vpop.f32.mrb[0].mxu0
      %v876 = vadd.f32 0.0, %v875
      %v877 = vpop.f32.mrb[0].mxu0
      %v878 = vpop.f32.mrb[0].mxu0
      %v879 = vadd.f32 0.0, %v878
      %v880 = vpop.f32.mrb[0].mxu0
      %881 = vmatprep.mubr.bf16.mxu0 0
      %882 = vmatmul.mubr.bf16.gmra.mrb[0].mxu0 %v727
      %v883 = vpop.f32.mrb[0].mxu0
      %v884 = vadd.f32 0.0, %v883
      %v885 = vpop.f32.mrb[0].mxu0
      %v886 = vpop.f32.mrb[0].mxu0
      %v887 = vadd.f32 0.0, %v886
      %v888 = vpop.f32.mrb[0].mxu0
      %889 = vmatprep.mubr.bf16.mxu0 0
      %890 = vmatmul.mubr.bf16.gmra.mrb[0].mxu0 %v730
      %v891 = vpop.f32.mrb[0].mxu0
      %v892 = vadd.f32 0.0, %v891
      %v893 = vpop.f32.mrb[0].mxu0
      %v894 = vpop.f32.mrb[0].mxu0
      %v895 = vadd.f32 0.0, %v894
      %v896 = vpop.f32.mrb[0].mxu0
      %897 = vmatprep.mubr.bf16.mxu0 0
      %898 = vmatmul.mubr.bf16.gmra.mrb[0].mxu0 %v733
      %v899 = vpop.f32.mrb[0].mxu0
      %v900 = vadd.f32 0.0, %v899
      %v901 = vpop.f32.mrb[0].mxu0
      %v902 = vpop.f32.mrb[0].mxu0
      %v903 = vadd.f32 0.0, %v902
      %v904 = vpop.f32.mrb[0].mxu0
      %905 = vmatprep.mubr.bf16.mxu0 0
      %906 = vmatmul.mubr.bf16.gmra.mrb[0].mxu0 %v736
      %v907 = vpop.f32.mrb[0].mxu0
      %v908 = vadd.f32 0.0, %v907
      %v909 = vpop.f32.mrb[0].mxu0
      %v910 = vpop.f32.mrb[0].mxu0
      %v911 = vadd.f32 0.0, %v910
      %v912 = vpop.f32.mrb[0].mxu0
      %913 = vmatprep.mubr.bf16.mxu0 0
      %914 = vmatmul.mubr.bf16.gmra.mrb[0].mxu0 %v739
      %v915 = vpop.f32.mrb[0].mxu0
      %v916 = vadd.f32 0.0, %v915
      %v917 = vpop.f32.mrb[0].mxu0
      %v918 = vpop.f32.mrb[0].mxu0
      %v919 = vadd.f32 0.0, %v918
      %v920 = vpop.f32.mrb[0].mxu0
      %921 = vdwg.mxu0
      %v922 = vadd.f32 %v524, %v780
      %v923 = vadd.f32 %v525, %v783
      %v924 = vadd.f32 %v526, %v788
      %v925 = vadd.f32 %v527, %v791
      %v926 = vadd.f32 %v528, %v796
      %v927 = vadd.f32 %v529, %v799
      %v928 = vadd.f32 %v530, %v804
      %v929 = vadd.f32 %v531, %v807
      %v930 = vadd.f32 %v532, %v812
      %v931 = vadd.f32 %v533, %v815
      %v932 = vadd.f32 %v534, %v820
      %v933 = vadd.f32 %v535, %v823
      %v934 = vadd.f32 %v536, %v828
      %v935 = vadd.f32 %v537, %v831
      %v936 = vadd.f32 %v538, %v836
      %v937 = vadd.f32 %v539, %v839
      %v938 = vadd.f32 %v540, %v844
      %v939 = vadd.f32 %v541, %v847
      %v940 = vadd.f32 %v542, %v852
      %v941 = vadd.f32 %v543, %v855
      %v942 = vadd.f32 %v544, %v860
      %v943 = vadd.f32 %v545, %v863
      %v944 = vadd.f32 %v546, %v868
      %v945 = vadd.f32 %v547, %v871
      %v946 = vadd.f32 %v548, %v876
      %v947 = vadd.f32 %v549, %v879
      %v948 = vadd.f32 %v550, %v884
      %v949 = vadd.f32 %v551, %v887
      %v950 = vadd.f32 %v552, %v892
      %v951 = vadd.f32 %v553, %v895
      %v952 = vadd.f32 %v554, %v900
      %v953 = vadd.f32 %v555, %v903
      %v954 = vadd.f32 %v556, %v908
      %v955 = vadd.f32 %v557, %v911
      %v956 = vadd.f32 %v558, %v916
      %v957 = vadd.f32 %v559, %v919
      %958 = vst.msk [vmem:[#allocation3] sm:$0xff] %vm487, %v922
      %959 = vst.msk [vmem:[#allocation3 + $0x8] sm:$0xff] %vm487, %v923
      %960 = vst.msk [vmem:[#allocation3 + $0x10] sm:$0xff] %vm487, %v924
      %961 = vst.msk [vmem:[#allocation3 + $0x18] sm:$0xff] %vm487, %v925
      %962 = vst.msk [vmem:[#allocation3 + $0x20] sm:$0xff] %vm487, %v926
      %963 = vst.msk [vmem:[#allocation3 + $0x28] sm:$0xff] %vm487, %v927
      %964 = vst.msk [vmem:[#allocation3 + $0x30] sm:$0xff] %vm487, %v928
      %965 = vst.msk [vmem:[#allocation3 + $0x38] sm:$0xff] %vm487, %v929
      %966 = vst.msk [vmem:[#allocation3 + $0x40] sm:$0xff] %vm487, %v930
      %967 = vst.msk [vmem:[#allocation3 + $0x48] sm:$0xff] %vm487, %v931
      %968 = vst.msk [vmem:[#allocation3 + $0x50] sm:$0xff] %vm487, %v932
      %969 = vst.msk [vmem:[#allocation3 + $0x58] sm:$0xff] %vm487, %v933
      %970 = vst.msk [vmem:[#allocation3 + $0x60] sm:$0xff] %vm487, %v934
      %971 = vst.msk [vmem:[#allocation3 + $0x68] sm:$0xff] %vm487, %v935
      %972 = vst.msk [vmem:[#allocation3 + $0x70] sm:$0xff] %vm487, %v936
      %973 = vst.msk [vmem:[#allocation3 + $0x78] sm:$0xff] %vm487, %v937
      %974 = vst.msk [vmem:[#allocation3 + $0x80] sm:$0xff] %vm487, %v938
      %975 = vst.msk [vmem:[#allocation3 + $0x88] sm:$0xff] %vm487, %v939
      %976 = vst.msk [vmem:[#allocation3 + $0x90] sm:$0xff] %vm487, %v940
      %977 = vst.msk [vmem:[#allocation3 + $0x98] sm:$0xff] %vm487, %v941
      %978 = vst.msk [vmem:[#allocation3 + $0xa0] sm:$0xff] %vm487, %v942
      %979 = vst.msk [vmem:[#allocation3 + $0xa8] sm:$0xff] %vm487, %v943
      %980 = vst.msk [vmem:[#allocation3 + $0xb0] sm:$0xff] %vm487, %v944
      %981 = vst.msk [vmem:[#allocation3 + $0xb8] sm:$0xff] %vm487, %v945
      %982 = vst.msk [vmem:[#allocation3 + $0xc0] sm:$0xff] %vm487, %v946
      %983 = vst.msk [vmem:[#allocation3 + $0xc8] sm:$0xff] %vm487, %v947
      %984 = vst.msk [vmem:[#allocation3 + $0xd0] sm:$0xff] %vm487, %v948
      %985 = vst.msk [vmem:[#allocation3 + $0xd8] sm:$0xff] %vm487, %v949
      %986 = vst.msk [vmem:[#allocation3 + $0xe0] sm:$0xff] %vm487, %v950
      %987 = vst.msk [vmem:[#allocation3 + $0xe8] sm:$0xff] %vm487, %v951
      %988 = vst.msk [vmem:[#allocation3 + $0xf0] sm:$0xff] %vm487, %v952
      %989 = vst.msk [vmem:[#allocation3 + $0xf8] sm:$0xff] %vm487, %v953
      %990 = vst.msk [vmem:[#allocation3 + $0x100] sm:$0xff] %vm487, %v954
      %991 = vst.msk [vmem:[#allocation3 + $0x108] sm:$0xff] %vm487, %v955
      %992 = vst.msk [vmem:[#allocation3 + $0x110] sm:$0xff] %vm487, %v956
      %993 = vst.msk [vmem:[#allocation3 + $0x118] sm:$0xff] %vm487, %v957
      %v994 = vld [vmem:[#allocation3] sm:$0xff]
      %v995 = vld [vmem:[#allocation3 + $0x8] sm:$0xff]
      %v996 = vld [vmem:[#allocation3 + $0x10] sm:$0xff]
      %v997 = vld [vmem:[#allocation3 + $0x18] sm:$0xff]
      %v998 = vld [vmem:[#allocation3 + $0x20] sm:$0xff]
      %v999 = vld [vmem:[#allocation3 + $0x28] sm:$0xff]
      %v1000 = vld [vmem:[#allocation3 + $0x30] sm:$0xff]
      %v1001 = vld [vmem:[#allocation3 + $0x38] sm:$0xff]
      %v1002 = vld [vmem:[#allocation3 + $0x40] sm:$0xff]
      %v1003 = vld [vmem:[#allocation3 + $0x48] sm:$0xff]
      %v1004 = vld [vmem:[#allocation3 + $0x50] sm:$0xff]
      %v1005 = vld [vmem:[#allocation3 + $0x58] sm:$0xff]
      %v1006 = vld [vmem:[#allocation3 + $0x60] sm:$0xff]
      %v1007 = vld [vmem:[#allocation3 + $0x68] sm:$0xff]
      %v1008 = vld [vmem:[#allocation3 + $0x70] sm:$0xff]
      %v1009 = vld [vmem:[#allocation3 + $0x78] sm:$0xff]
      %v1010 = vld [vmem:[#allocation3 + $0x80] sm:$0xff]
      %v1011 = vld [vmem:[#allocation3 + $0x88] sm:$0xff]
      %v1012 = vld [vmem:[#allocation3 + $0x90] sm:$0xff]
      %v1013 = vld [vmem:[#allocation3 + $0x98] sm:$0xff]
      %v1014 = vld [vmem:[#allocation3 + $0xa0] sm:$0xff]
      %v1015 = vld [vmem:[#allocation3 + $0xa8] sm:$0xff]
      %v1016 = vld [vmem:[#allocation3 + $0xb0] sm:$0xff]
      %v1017 = vld [vmem:[#allocation3 + $0xb8] sm:$0xff]
      %v1018 = vld [vmem:[#allocation3 + $0xc0] sm:$0xff]
      %v1019 = vld [vmem:[#allocation3 + $0xc8] sm:$0xff]
      %v1020 = vld [vmem:[#allocation3 + $0xd0] sm:$0xff]
      %v1021 = vld [vmem:[#allocation3 + $0xd8] sm:$0xff]
      %v1022 = vld [vmem:[#allocation3 + $0xe0] sm:$0xff]
      %v1023 = vld [vmem:[#allocation3 + $0xe8] sm:$0xff]
      %v1024 = vld [vmem:[#allocation3 + $0xf0] sm:$0xff]
      %v1025 = vld [vmem:[#allocation3 + $0xf8] sm:$0xff]
      %v1026 = vld [vmem:[#allocation3 + $0x100] sm:$0xff]
      %v1027 = vld [vmem:[#allocation3 + $0x108] sm:$0xff]
      %v1028 = vld [vmem:[#allocation3 + $0x110] sm:$0xff]
      %v1029 = vld [vmem:[#allocation3 + $0x118] sm:$0xff]
      %v1030 = vld [vmem:[#allocation2] sm:$0xf]
      %v1031 = vld [vmem:[#allocation2 + $0x4] sm:$0xf]
      %v1032 = vld [vmem:[#allocation2 + $0x8] sm:$0xf]
      %v1033 = vld [vmem:[#allocation2 + $0xc] sm:$0xf]
      %v1034 = vld [vmem:[#allocation2 + $0x10] sm:$0xf]
      %v1035 = vld [vmem:[#allocation2 + $0x14] sm:$0xf]
      %v1036 = vld [vmem:[#allocation2 + $0x18] sm:$0xf]
      %v1037 = vld [vmem:[#allocation2 + $0x1c] sm:$0xf]
      %v1038 = vld [vmem:[#allocation2 + $0x20] sm:$0xf]
      %v1039 = vld [vmem:[#allocation2 + $0x24] sm:$0xf]
      %v1040 = vld [vmem:[#allocation2 + $0x28] sm:$0xf]
      %v1041 = vld [vmem:[#allocation2 + $0x2c] sm:$0xf]
      %v1042 = vld [vmem:[#allocation2 + $0x30] sm:$0xf]
      %v1043 = vld [vmem:[#allocation2 + $0x34] sm:$0xf]
      %v1044 = vld [vmem:[#allocation2 + $0x38] sm:$0xf]
      %v1045 = vld [vmem:[#allocation2 + $0x3c] sm:$0xf]
      %v1046 = vld [vmem:[#allocation2 + $0x40] sm:$0xf]
      %v1047 = vld [vmem:[#allocation2 + $0x44] sm:$0xf]
      %v1048 = vld [vmem:[#allocation2 + $0x48] sm:$0xf]
      %v1049 = vld [vmem:[#allocation2 + $0x4c] sm:$0xf]
      %v1050 = vld [vmem:[#allocation2 + $0x50] sm:$0xf]
      %v1051 = vld [vmem:[#allocation2 + $0x54] sm:$0xf]
      %v1052 = vld [vmem:[#allocation2 + $0x58] sm:$0xf]
      %v1053 = vld [vmem:[#allocation2 + $0x5c] sm:$0xf]
      %v1054 = vld [vmem:[#allocation2 + $0x60] sm:$0xf]
      %v1055 = vld [vmem:[#allocation2 + $0x64] sm:$0xf]
      %v1056 = vld [vmem:[#allocation2 + $0x68] sm:$0xf]
      %v1057 = vld [vmem:[#allocation2 + $0x6c] sm:$0xf]
      %v1058 = vld [vmem:[#allocation2 + $0x70] sm:$0xf]
      %v1059 = vld [vmem:[#allocation2 + $0x74] sm:$0xf]
      %v1060 = vld [vmem:[#allocation2 + $0x78] sm:$0xf]
      %v1061 = vld [vmem:[#allocation2 + $0x7c] sm:$0xf]
      %v1062 = vld [vmem:[#allocation2 + $0x80] sm:$0xf]
      %v1063 = vld [vmem:[#allocation2 + $0x84] sm:$0xf]
      %v1064 = vld [vmem:[#allocation2 + $0x88] sm:$0xf]
      %v1065 = vld [vmem:[#allocation2 + $0x8c] sm:$0xf]
      %v1066 = vld [vmem:[#allocation2 + $0x90] sm:$0x1]
      %v1067 = vld [vmem:[%s1 + $0x4] sm:$0xf]
      %v1105 = vunpack.c.l.b16 %v1030
      %v1106 = vunpack.c.l.b16 %v1031
      %v1107 = vunpack.c.l.b16 %v1032
      %v1108 = vunpack.c.l.b16 %v1033
      %v1109 = vunpack.c.l.b16 %v1034
      %v1110 = vunpack.c.l.b16 %v1035
      %v1111 = vunpack.c.l.b16 %v1036
      %v1112 = vunpack.c.l.b16 %v1037
      %v1113 = vunpack.c.l.b16 %v1038
      %v1114 = vunpack.c.l.b16 %v1039
      %v1115 = vunpack.c.l.b16 %v1040
      %v1116 = vunpack.c.l.b16 %v1041
      %v1117 = vunpack.c.l.b16 %v1042
      %v1118 = vunpack.c.l.b16 %v1043
      %v1119 = vunpack.c.l.b16 %v1044
      %v1120 = vunpack.c.l.b16 %v1045
      %v1121 = vunpack.c.l.b16 %v1046
      %v1122 = vunpack.c.l.b16 %v1047
      %v1123 = vunpack.c.l.b16 %v1048
      %v1124 = vunpack.c.l.b16 %v1049
      %v1125 = vunpack.c.l.b16 %v1050
      %v1126 = vunpack.c.l.b16 %v1051
      %v1127 = vunpack.c.l.b16 %v1052
      %v1128 = vunpack.c.l.b16 %v1053
      %v1129 = vunpack.c.l.b16 %v1054
      %v1130 = vunpack.c.l.b16 %v1055
      %v1131 = vunpack.c.l.b16 %v1056
      %v1132 = vunpack.c.l.b16 %v1057
      %v1133 = vunpack.c.l.b16 %v1058
      %v1134 = vunpack.c.l.b16 %v1059
      %v1135 = vunpack.c.l.b16 %v1060
      %v1136 = vunpack.c.l.b16 %v1061
      %v1137 = vunpack.c.l.b16 %v1062
      %v1138 = vunpack.c.l.b16 %v1063
      %v1139 = vunpack.c.l.b16 %v1064
      %v1140 = vunpack.c.l.b16 %v1065
      %v1141 = vunpack.c.l.b16 %v1066
      %v1142 = vpack.c.b16 %v1106, %v1105
      %v1143 = vpack.c.b16 %v1108, %v1107
      %v1144 = vpack.c.b16 %v1110, %v1109
      %v1145 = vpack.c.b16 %v1112, %v1111
      %v1146 = vpack.c.b16 %v1114, %v1113
      %v1147 = vpack.c.b16 %v1116, %v1115
      %v1148 = vpack.c.b16 %v1118, %v1117
      %v1149 = vpack.c.b16 %v1120, %v1119
      %v1150 = vpack.c.b16 %v1122, %v1121
      %v1151 = vpack.c.b16 %v1124, %v1123
      %v1152 = vpack.c.b16 %v1126, %v1125
      %v1153 = vpack.c.b16 %v1128, %v1127
      %v1154 = vpack.c.b16 %v1130, %v1129
      %v1155 = vpack.c.b16 %v1132, %v1131
      %v1156 = vpack.c.b16 %v1134, %v1133
      %v1157 = vpack.c.b16 %v1136, %v1135
      %v1158 = vpack.c.b16 %v1138, %v1137
      %v1159 = vpack.c.b16 %v1140, %v1139
      %v1160 = vpack.c.b16 %v1141, %v1141
      %vm1161 = vsmask.f32 7424
      %v1163 = vshrl.u32 %v1142, 16
      %v1165 = vshll.u32 %v1142, 16
      %v1167 = vrot.slane %v1165, 1
      %v1168 = vor.u32 %v1163, %v1167
      %v1170 = vshll.u32 %v1143, 16
      %v1172 = vrot.slane %v1170, 1
      %v1173 = vsel %vm1161, %v1168, %v1172
      %v1174 = vshrl.u32 %v1143, 16
      %v1176 = vor.u32 %v1174, %v1172
      %v1178 = vshll.u32 %v1144, 16
      %v1180 = vrot.slane %v1178, 1
      %v1181 = vsel %vm1161, %v1176, %v1180
      %v1182 = vshrl.u32 %v1144, 16
      %v1184 = vor.u32 %v1182, %v1180
      %v1186 = vshll.u32 %v1145, 16
      %v1188 = vrot.slane %v1186, 1
      %v1189 = vsel %vm1161, %v1184, %v1188
      %v1190 = vshrl.u32 %v1145, 16
      %v1192 = vor.u32 %v1190, %v1188
      %v1194 = vshll.u32 %v1146, 16
      %v1196 = vrot.slane %v1194, 1
      %v1197 = vsel %vm1161, %v1192, %v1196
      %v1198 = vshrl.u32 %v1146, 16
      %v1200 = vor.u32 %v1198, %v1196
      %v1202 = vshll.u32 %v1147, 16
      %v1204 = vrot.slane %v1202, 1
      %v1205 = vsel %vm1161, %v1200, %v1204
      %v1206 = vshrl.u32 %v1147, 16
      %v1208 = vor.u32 %v1206, %v1204
      %v1210 = vshll.u32 %v1148, 16
      %v1212 = vrot.slane %v1210, 1
      %v1213 = vsel %vm1161, %v1208, %v1212
      %v1214 = vshrl.u32 %v1148, 16
      %v1216 = vor.u32 %v1214, %v1212
      %v1218 = vshll.u32 %v1149, 16
      %v1220 = vrot.slane %v1218, 1
      %v1221 = vsel %vm1161, %v1216, %v1220
      %v1222 = vshrl.u32 %v1149, 16
      %v1224 = vor.u32 %v1222, %v1220
      %v1226 = vshll.u32 %v1150, 16
      %v1228 = vrot.slane %v1226, 1
      %v1229 = vsel %vm1161, %v1224, %v1228
      %v1230 = vshrl.u32 %v1150, 16
      %v1232 = vor.u32 %v1230, %v1228
      %v1234 = vshll.u32 %v1151, 16
      %v1236 = vrot.slane %v1234, 1
      %v1237 = vsel %vm1161, %v1232, %v1236
      %v1238 = vshrl.u32 %v1151, 16
      %v1240 = vor.u32 %v1238, %v1236
      %v1242 = vshll.u32 %v1152, 16
      %v1244 = vrot.slane %v1242, 1
      %v1245 = vsel %vm1161, %v1240, %v1244
      %v1246 = vshrl.u32 %v1152, 16
      %v1248 = vor.u32 %v1246, %v1244
      %v1250 = vshll.u32 %v1153, 16
      %v1252 = vrot.slane %v1250, 1
      %v1253 = vsel %vm1161, %v1248, %v1252
      %v1254 = vshrl.u32 %v1153, 16
      %v1256 = vor.u32 %v1254, %v1252
      %v1258 = vshll.u32 %v1154, 16
      %v1260 = vrot.slane %v1258, 1
      %v1261 = vsel %vm1161, %v1256, %v1260
      %v1262 = vshrl.u32 %v1154, 16
      %v1264 = vor.u32 %v1262, %v1260
      %v1266 = vshll.u32 %v1155, 16
      %v1268 = vrot.slane %v1266, 1
      %v1269 = vsel %vm1161, %v1264, %v1268
      %v1270 = vshrl.u32 %v1155, 16
      %v1272 = vor.u32 %v1270, %v1268
      %v1274 = vshll.u32 %v1156, 16
      %v1276 = vrot.slane %v1274, 1
      %v1277 = vsel %vm1161, %v1272, %v1276
      %v1278 = vshrl.u32 %v1156, 16
      %v1280 = vor.u32 %v1278, %v1276
      %v1282 = vshll.u32 %v1157, 16
      %v1284 = vrot.slane %v1282, 1
      %v1285 = vsel %vm1161, %v1280, %v1284
      %v1286 = vshrl.u32 %v1157, 16
      %v1288 = vor.u32 %v1286, %v1284
      %v1290 = vshll.u32 %v1158, 16
      %v1292 = vrot.slane %v1290, 1
      %v1293 = vsel %vm1161, %v1288, %v1292
      %v1294 = vshrl.u32 %v1158, 16
      %v1296 = vor.u32 %v1294, %v1292
      %v1298 = vshll.u32 %v1159, 16
      %v1300 = vrot.slane %v1298, 1
      %v1301 = vsel %vm1161, %v1296, %v1300
      %v1302 = vshrl.u32 %v1159, 16
      %v1304 = vor.u32 %v1302, %v1300
      %v1306 = vshll.u32 %v1160, 16
      %v1308 = vrot.slane %v1306, 1
      %v1309 = vsel %vm1161, %v1304, %v1308
      %v1311 = vsel %vm487, %v1173, 0
      %v1314 = vsel %vm487, %v1181, 0
      %v1317 = vsel %vm487, %v1189, 0
      %v1320 = vsel %vm487, %v1197, 0
      %v1323 = vsel %vm487, %v1205, 0
      %v1326 = vsel %vm487, %v1213, 0
      %v1329 = vsel %vm487, %v1221, 0
      %v1332 = vsel %vm487, %v1229, 0
      %v1335 = vsel %vm487, %v1237, 0
      %v1338 = vsel %vm487, %v1245, 0
      %v1341 = vsel %vm487, %v1253, 0
      %v1344 = vsel %vm487, %v1261, 0
      %v1347 = vsel %vm487, %v1269, 0
      %v1350 = vsel %vm487, %v1277, 0
      %v1353 = vsel %vm487, %v1285, 0
      %v1356 = vsel %vm487, %v1293, 0
      %v1359 = vsel %vm487, %v1301, 0
      %v1362 = vsel %vm487, %v1309, 0
      %v1365 = vsel %vm741, %v1067, 0
      %1367 = vmatprep.subr.bf16.mxu0 0
      %1368 = vmatpush1.bf16.msra.mxu0 %v1365
      %1369 = vmatprep.subr.bf16.mxu0 0
      %1370 = vmatpush1.bf16.msra.mxu0 0
      %1371 = vmatprep.subr.bf16.mxu0 0
      %1372 = vmatpush1.bf16.msra.mxu0 0
      %1373 = vmatprep.subr.bf16.mxu0 0
      %1374 = vmatpush1.bf16.msra.mxu0 0
      %1375 = vmatprep.subr.bf16.mxu0 0
      %1376 = vmatpush1.bf16.msra.mxu0 0
      %1377 = vmatprep.subr.bf16.mxu0 0
      %1378 = vmatpush1.bf16.msra.mxu0 0
      %1379 = vmatprep.subr.bf16.mxu0 0
      %1380 = vmatpush1.bf16.msra.mxu0 0
      %1381 = vmatprep.subr.bf16.mxu0 0
      %1382 = vmatpush1.bf16.msra.mxu0 0
      %1383 = vmatprep.subr.bf16.mxu0 0
      %1384 = vmatpush1.bf16.msra.mxu0 0
      %1385 = vmatprep.subr.bf16.mxu0 0
      %1386 = vmatpush1.bf16.msra.mxu0 0
      %1387 = vmatprep.subr.bf16.mxu0 0
      %1388 = vmatpush1.bf16.msra.mxu0 0
      %1389 = vmatprep.subr.bf16.mxu0 0
      %1390 = vmatpush1.bf16.msra.mxu0 0
      %1391 = vmatprep.subr.bf16.mxu0 0
      %1392 = vmatpush1.bf16.msra.mxu0 0
      %1393 = vmatprep.subr.bf16.mxu0 0
      %1394 = vmatpush1.bf16.msra.mxu0 0
      %1395 = vmatprep.subr.bf16.mxu0 0
      %1396 = vmatpush1.bf16.msra.mxu0 0
      %1397 = vmatprep.subr.bf16.mxu0 0
      %1398 = vmatpush1.bf16.msra.mxu0 0
      %1399 = vmatprep.mubr.bf16.mxu0 0
      %1400 = vmatmul.mubr.bf16.gmra.mrb[0].mxu0 %v1311
      %v1401 = vpop.f32.mrb[0].mxu0
      %v1402 = vadd.f32 0.0, %v1401
      %v1403 = vpop.f32.mrb[0].mxu0
      %v1404 = vpop.f32.mrb[0].mxu0
      %v1405 = vadd.f32 0.0, %v1404
      %v1406 = vpop.f32.mrb[0].mxu0
      %1407 = vmatprep.mubr.bf16.mxu0 0
      %1408 = vmatmul.mubr.bf16.gmra.mrb[0].mxu0 %v1314
      %v1409 = vpop.f32.mrb[0].mxu0
      %v1410 = vadd.f32 0.0, %v1409
      %v1411 = vpop.f32.mrb[0].mxu0
      %v1412 = vpop.f32.mrb[0].mxu0
      %v1413 = vadd.f32 0.0, %v1412
      %v1414 = vpop.f32.mrb[0].mxu0
      %1415 = vmatprep.mubr.bf16.mxu0 0
      %1416 = vmatmul.mubr.bf16.gmra.mrb[0].mxu0 %v1317
      %v1417 = vpop.f32.mrb[0].mxu0
      %v1418 = vadd.f32 0.0, %v1417
      %v1419 = vpop.f32.mrb[0].mxu0
      %v1420 = vpop.f32.mrb[0].mxu0
      %v1421 = vadd.f32 0.0, %v1420
      %v1422 = vpop.f32.mrb[0].mxu0
      %1423 = vmatprep.mubr.bf16.mxu0 0
      %1424 = vmatmul.mubr.bf16.gmra.mrb[0].mxu0 %v1320
      %v1425 = vpop.f32.mrb[0].mxu0
      %v1426 = vadd.f32 0.0, %v1425
      %v1427 = vpop.f32.mrb[0].mxu0
      %v1428 = vpop.f32.mrb[0].mxu0
      %v1429 = vadd.f32 0.0, %v1428
      %v1430 = vpop.f32.mrb[0].mxu0
      %1431 = vmatprep.mubr.bf16.mxu0 0
      %1432 = vmatmul.mubr.bf16.gmra.mrb[0].mxu0 %v1323
      %v1433 = vpop.f32.mrb[0].mxu0
      %v1434 = vadd.f32 0.0, %v1433
      %v1435 = vpop.f32.mrb[0].mxu0
      %v1436 = vpop.f32.mrb[0].mxu0
      %v1437 = vadd.f32 0.0, %v1436
      %v1438 = vpop.f32.mrb[0].mxu0
      %1439 = vmatprep.mubr.bf16.mxu0 0
      %1440 = vmatmul.mubr.bf16.gmra.mrb[0].mxu0 %v1326
      %v1441 = vpop.f32.mrb[0].mxu0
      %v1442 = vadd.f32 0.0, %v1441
      %v1443 = vpop.f32.mrb[0].mxu0
      %v1444 = vpop.f32.mrb[0].mxu0
      %v1445 = vadd.f32 0.0, %v1444
      %v1446 = vpop.f32.mrb[0].mxu0
      %1447 = vmatprep.mubr.bf16.mxu0 0
      %1448 = vmatmul.mubr.bf16.gmra.mrb[0].mxu0 %v1329
      %v1449 = vpop.f32.mrb[0].mxu0
      %v1450 = vadd.f32 0.0, %v1449
      %v1451 = vpop.f32.mrb[0].mxu0
      %v1452 = vpop.f32.mrb[0].mxu0
      %v1453 = vadd.f32 0.0, %v1452
      %v1454 = vpop.f32.mrb[0].mxu0
      %1455 = vmatprep.mubr.bf16.mxu0 0
      %1456 = vmatmul.mubr.bf16.gmra.mrb[0].mxu0 %v1332
      %v1457 = vpop.f32.mrb[0].mxu0
      %v1458 = vadd.f32 0.0, %v1457
      %v1459 = vpop.f32.mrb[0].mxu0
      %v1460 = vpop.f32.mrb[0].mxu0
      %v1461 = vadd.f32 0.0, %v1460
      %v1462 = vpop.f32.mrb[0].mxu0
      %1463 = vmatprep.mubr.bf16.mxu0 0
      %1464 = vmatmul.mubr.bf16.gmra.mrb[0].mxu0 %v1335
      %v1465 = vpop.f32.mrb[0].mxu0
      %v1466 = vadd.f32 0.0, %v1465
      %v1467 = vpop.f32.mrb[0].mxu0
      %v1468 = vpop.f32.mrb[0].mxu0
      %v1469 = vadd.f32 0.0, %v1468
      %v1470 = vpop.f32.mrb[0].mxu0
      %1471 = vmatprep.mubr.bf16.mxu0 0
      %1472 = vmatmul.mubr.bf16.gmra.mrb[0].mxu0 %v1338
      %v1473 = vpop.f32.mrb[0].mxu0
      %v1474 = vadd.f32 0.0, %v1473
      %v1475 = vpop.f32.mrb[0].mxu0
      %v1476 = vpop.f32.mrb[0].mxu0
      %v1477 = vadd.f32 0.0, %v1476
      %v1478 = vpop.f32.mrb[0].mxu0
      %1479 = vmatprep.mubr.bf16.mxu0 0
      %1480 = vmatmul.mubr.bf16.gmra.mrb[0].mxu0 %v1341
      %v1481 = vpop.f32.mrb[0].mxu0
      %v1482 = vadd.f32 0.0, %v1481
      %v1483 = vpop.f32.mrb[0].mxu0
      %v1484 = vpop.f32.mrb[0].mxu0
      %v1485 = vadd.f32 0.0, %v1484
      %v1486 = vpop.f32.mrb[0].mxu0
      %1487 = vmatprep.mubr.bf16.mxu0 0
      %1488 = vmatmul.mubr.bf16.gmra.mrb[0].mxu0 %v1344
      %v1489 = vpop.f32.mrb[0].mxu0
      %v1490 = vadd.f32 0.0, %v1489
      %v1491 = vpop.f32.mrb[0].mxu0
      %v1492 = vpop.f32.mrb[0].mxu0
      %v1493 = vadd.f32 0.0, %v1492
      %v1494 = vpop.f32.mrb[0].mxu0
      %1495 = vmatprep.mubr.bf16.mxu0 0
      %1496 = vmatmul.mubr.bf16.gmra.mrb[0].mxu0 %v1347
      %v1497 = vpop.f32.mrb[0].mxu0
      %v1498 = vadd.f32 0.0, %v1497
      %v1499 = vpop.f32.mrb[0].mxu0
      %v1500 = vpop.f32.mrb[0].mxu0
      %v1501 = vadd.f32 0.0, %v1500
      %v1502 = vpop.f32.mrb[0].mxu0
      %1503 = vmatprep.mubr.bf16.mxu0 0
      %1504 = vmatmul.mubr.bf16.gmra.mrb[0].mxu0 %v1350
      %v1505 = vpop.f32.mrb[0].mxu0
      %v1506 = vadd.f32 0.0, %v1505
      %v1507 = vpop.f32.mrb[0].mxu0
      %v1508 = vpop.f32.mrb[0].mxu0
      %v1509 = vadd.f32 0.0, %v1508
      %v1510 = vpop.f32.mrb[0].mxu0
      %1511 = vmatprep.mubr.bf16.mxu0 0
      %1512 = vmatmul.mubr.bf16.gmra.mrb[0].mxu0 %v1353
      %v1513 = vpop.f32.mrb[0].mxu0
      %v1514 = vadd.f32 0.0, %v1513
      %v1515 = vpop.f32.mrb[0].mxu0
      %v1516 = vpop.f32.mrb[0].mxu0
      %v1517 = vadd.f32 0.0, %v1516
      %v1518 = vpop.f32.mrb[0].mxu0
      %1519 = vmatprep.mubr.bf16.mxu0 0
      %1520 = vmatmul.mubr.bf16.gmra.mrb[0].mxu0 %v1356
      %v1521 = vpop.f32.mrb[0].mxu0
      %v1522 = vadd.f32 0.0, %v1521
      %v1523 = vpop.f32.mrb[0].mxu0
      %v1524 = vpop.f32.mrb[0].mxu0
      %v1525 = vadd.f32 0.0, %v1524
      %v1526 = vpop.f32.mrb[0].mxu0
      %1527 = vmatprep.mubr.bf16.mxu0 0
      %1528 = vmatmul.mubr.bf16.gmra.mrb[0].mxu0 %v1359
      %v1529 = vpop.f32.mrb[0].mxu0
      %v1530 = vadd.f32 0.0, %v1529
      %v1531 = vpop.f32.mrb[0].mxu0
      %v1532 = vpop.f32.mrb[0].mxu0
      %v1533 = vadd.f32 0.0, %v1532
      %v1534 = vpop.f32.mrb[0].mxu0
      %1535 = vmatprep.mubr.bf16.mxu0 0
      %1536 = vmatmul.mubr.bf16.gmra.mrb[0].mxu0 %v1362
      %v1537 = vpop.f32.mrb[0].mxu0
      %v1538 = vadd.f32 0.0, %v1537
      %v1539 = vpop.f32.mrb[0].mxu0
      %v1540 = vpop.f32.mrb[0].mxu0
      %v1541 = vadd.f32 0.0, %v1540
      %v1542 = vpop.f32.mrb[0].mxu0
      %1543 = vdwg.mxu0
      %v1544 = vadd.f32 %v994, %v1402
      %v1545 = vadd.f32 %v995, %v1405
      %v1546 = vadd.f32 %v996, %v1410
      %v1547 = vadd.f32 %v997, %v1413
      %v1548 = vadd.f32 %v998, %v1418
      %v1549 = vadd.f32 %v999, %v1421
      %v1550 = vadd.f32 %v1000, %v1426
      %v1551 = vadd.f32 %v1001, %v1429
      %v1552 = vadd.f32 %v1002, %v1434
      %v1553 = vadd.f32 %v1003, %v1437
      %v1554 = vadd.f32 %v1004, %v1442
      %v1555 = vadd.f32 %v1005, %v1445
      %v1556 = vadd.f32 %v1006, %v1450
      %v1557 = vadd.f32 %v1007, %v1453
      %v1558 = vadd.f32 %v1008, %v1458
      %v1559 = vadd.f32 %v1009, %v1461
      %v1560 = vadd.f32 %v1010, %v1466
      %v1561 = vadd.f32 %v1011, %v1469
      %v1562 = vadd.f32 %v1012, %v1474
      %v1563 = vadd.f32 %v1013, %v1477
      %v1564 = vadd.f32 %v1014, %v1482
      %v1565 = vadd.f32 %v1015, %v1485
      %v1566 = vadd.f32 %v1016, %v1490
      %v1567 = vadd.f32 %v1017, %v1493
      %v1568 = vadd.f32 %v1018, %v1498
      %v1569 = vadd.f32 %v1019, %v1501
      %v1570 = vadd.f32 %v1020, %v1506
      %v1571 = vadd.f32 %v1021, %v1509
      %v1572 = vadd.f32 %v1022, %v1514
      %v1573 = vadd.f32 %v1023, %v1517
      %v1574 = vadd.f32 %v1024, %v1522
      %v1575 = vadd.f32 %v1025, %v1525
      %v1576 = vadd.f32 %v1026, %v1530
      %v1577 = vadd.f32 %v1027, %v1533
      %v1578 = vadd.f32 %v1028, %v1538
      %v1579 = vadd.f32 %v1029, %v1541
      %1580 = vst.msk [vmem:[#allocation3] sm:$0xff] %vm487, %v1544
      %1581 = vst.msk [vmem:[#allocation3 + $0x8] sm:$0xff] %vm487, %v1545
      %1582 = vst.msk [vmem:[#allocation3 + $0x10] sm:$0xff] %vm487, %v1546
      %1583 = vst.msk [vmem:[#allocation3 + $0x18] sm:$0xff] %vm487, %v1547
      %1584 = vst.msk [vmem:[#allocation3 + $0x20] sm:$0xff] %vm487, %v1548
      %1585 = vst.msk [vmem:[#allocation3 + $0x28] sm:$0xff] %vm487, %v1549
      %1586 = vst.msk [vmem:[#allocation3 + $0x30] sm:$0xff] %vm487, %v1550
      %1587 = vst.msk [vmem:[#allocation3 + $0x38] sm:$0xff] %vm487, %v1551
      %1588 = vst.msk [vmem:[#allocation3 + $0x40] sm:$0xff] %vm487, %v1552
      %1589 = vst.msk [vmem:[#allocation3 + $0x48] sm:$0xff] %vm487, %v1553
      %1590 = vst.msk [vmem:[#allocation3 + $0x50] sm:$0xff] %vm487, %v1554
      %1591 = vst.msk [vmem:[#allocation3 + $0x58] sm:$0xff] %vm487, %v1555
      %1592 = vst.msk [vmem:[#allocation3 + $0x60] sm:$0xff] %vm487, %v1556
      %1593 = vst.msk [vmem:[#allocation3 + $0x68] sm:$0xff] %vm487, %v1557
      %1594 = vst.msk [vmem:[#allocation3 + $0x70] sm:$0xff] %vm487, %v1558
      %1595 = vst.msk [vmem:[#allocation3 + $0x78] sm:$0xff] %vm487, %v1559
      %1596 = vst.msk [vmem:[#allocation3 + $0x80] sm:$0xff] %vm487, %v1560
      %1597 = vst.msk [vmem:[#allocation3 + $0x88] sm:$0xff] %vm487, %v1561
      %1598 = vst.msk [vmem:[#allocation3 + $0x90] sm:$0xff] %vm487, %v1562
      %1599 = vst.msk [vmem:[#allocation3 + $0x98] sm:$0xff] %vm487, %v1563
      %1600 = vst.msk [vmem:[#allocation3 + $0xa0] sm:$0xff] %vm487, %v1564
      %1601 = vst.msk [vmem:[#allocation3 + $0xa8] sm:$0xff] %vm487, %v1565
      %1602 = vst.msk [vmem:[#allocation3 + $0xb0] sm:$0xff] %vm487, %v1566
      %1603 = vst.msk [vmem:[#allocation3 + $0xb8] sm:$0xff] %vm487, %v1567
      %1604 = vst.msk [vmem:[#allocation3 + $0xc0] sm:$0xff] %vm487, %v1568
      %1605 = vst.msk [vmem:[#allocation3 + $0xc8] sm:$0xff] %vm487, %v1569
      %1606 = vst.msk [vmem:[#allocation3 + $0xd0] sm:$0xff] %vm487, %v1570
      %1607 = vst.msk [vmem:[#allocation3 + $0xd8] sm:$0xff] %vm487, %v1571
      %1608 = vst.msk [vmem:[#allocation3 + $0xe0] sm:$0xff] %vm487, %v1572
      %1609 = vst.msk [vmem:[#allocation3 + $0xe8] sm:$0xff] %vm487, %v1573
      %1610 = vst.msk [vmem:[#allocation3 + $0xf0] sm:$0xff] %vm487, %v1574
      %1611 = vst.msk [vmem:[#allocation3 + $0xf8] sm:$0xff] %vm487, %v1575
      %1612 = vst.msk [vmem:[#allocation3 + $0x100] sm:$0xff] %vm487, %v1576
      %1613 = vst.msk [vmem:[#allocation3 + $0x108] sm:$0xff] %vm487, %v1577
      %1614 = vst.msk [vmem:[#allocation3 + $0x110] sm:$0xff] %vm487, %v1578
      %1615 = vst.msk [vmem:[#allocation3 + $0x118] sm:$0xff] %vm487, %v1579
      %v1616 = vld [vmem:[#allocation3] sm:$0xff]
      %v1617 = vld [vmem:[#allocation3 + $0x8] sm:$0xff]
      %v1618 = vld [vmem:[#allocation3 + $0x10] sm:$0xff]
      %v1619 = vld [vmem:[#allocation3 + $0x18] sm:$0xff]
      %v1620 = vld [vmem:[#allocation3 + $0x20] sm:$0xff]
      %v1621 = vld [vmem:[#allocation3 + $0x28] sm:$0xff]
      %v1622 = vld [vmem:[#allocation3 + $0x30] sm:$0xff]
      %v1623 = vld [vmem:[#allocation3 + $0x38] sm:$0xff]
      %v1624 = vld [vmem:[#allocation3 + $0x40] sm:$0xff]
      %v1625 = vld [vmem:[#allocation3 + $0x48] sm:$0xff]
      %v1626 = vld [vmem:[#allocation3 + $0x50] sm:$0xff]
      %v1627 = vld [vmem:[#allocation3 + $0x58] sm:$0xff]
      %v1628 = vld [vmem:[#allocation3 + $0x60] sm:$0xff]
      %v1629 = vld [vmem:[#allocation3 + $0x68] sm:$0xff]
      %v1630 = vld [vmem:[#allocation3 + $0x70] sm:$0xff]
      %v1631 = vld [vmem:[#allocation3 + $0x78] sm:$0xff]
      %v1632 = vld [vmem:[#allocation3 + $0x80] sm:$0xff]
      %v1633 = vld [vmem:[#allocation3 + $0x88] sm:$0xff]
      %v1634 = vld [vmem:[#allocation3 + $0x90] sm:$0xff]
      %v1635 = vld [vmem:[#allocation3 + $0x98] sm:$0xff]
      %v1636 = vld [vmem:[#allocation3 + $0xa0] sm:$0xff]
      %v1637 = vld [vmem:[#allocation3 + $0xa8] sm:$0xff]
      %v1638 = vld [vmem:[#allocation3 + $0xb0] sm:$0xff]
      %v1639 = vld [vmem:[#allocation3 + $0xb8] sm:$0xff]
      %v1640 = vld [vmem:[#allocation3 + $0xc0] sm:$0xff]
      %v1641 = vld [vmem:[#allocation3 + $0xc8] sm:$0xff]
      %v1642 = vld [vmem:[#allocation3 + $0xd0] sm:$0xff]
      %v1643 = vld [vmem:[#allocation3 + $0xd8] sm:$0xff]
      %v1644 = vld [vmem:[#allocation3 + $0xe0] sm:$0xff]
      %v1645 = vld [vmem:[#allocation3 + $0xe8] sm:$0xff]
      %v1646 = vld [vmem:[#allocation3 + $0xf0] sm:$0xff]
      %v1647 = vld [vmem:[#allocation3 + $0xf8] sm:$0xff]
      %v1648 = vld [vmem:[#allocation3 + $0x100] sm:$0xff]
      %v1649 = vld [vmem:[#allocation3 + $0x108] sm:$0xff]
      %v1650 = vld [vmem:[#allocation3 + $0x110] sm:$0xff]
      %v1651 = vld [vmem:[#allocation3 + $0x118] sm:$0xff]
      %v1652 = vld [vmem:[#allocation2] sm:$0xe]
      %v1653 = vld [vmem:[#allocation2 + $0x4] sm:$0xf]
      %v1654 = vld [vmem:[#allocation2 + $0x8] sm:$0xf]
      %v1655 = vld [vmem:[#allocation2 + $0xc] sm:$0xf]
      %v1656 = vld [vmem:[#allocation2 + $0x10] sm:$0xf]
      %v1657 = vld [vmem:[#allocation2 + $0x14] sm:$0xf]
      %v1658 = vld [vmem:[#allocation2 + $0x18] sm:$0xf]
      %v1659 = vld [vmem:[#allocation2 + $0x1c] sm:$0xf]
      %v1660 = vld [vmem:[#allocation2 + $0x20] sm:$0xf]
      %v1661 = vld [vmem:[#allocation2 + $0x24] sm:$0xf]
      %v1662 = vld [vmem:[#allocation2 + $0x28] sm:$0xf]
      %v1663 = vld [vmem:[#allocation2 + $0x2c] sm:$0xf]
      %v1664 = vld [vmem:[#allocation2 + $0x30] sm:$0xf]
      %v1665 = vld [vmem:[#allocation2 + $0x34] sm:$0xf]
      %v1666 = vld [vmem:[#allocation2 + $0x38] sm:$0xf]
      %v1667 = vld [vmem:[#allocation2 + $0x3c] sm:$0xf]
      %v1668 = vld [vmem:[#allocation2 + $0x40] sm:$0xf]
      %v1669 = vld [vmem:[#allocation2 + $0x44] sm:$0xf]
      %v1670 = vld [vmem:[#allocation2 + $0x48] sm:$0xf]
      %v1671 = vld [vmem:[#allocation2 + $0x4c] sm:$0xf]
      %v1672 = vld [vmem:[#allocation2 + $0x50] sm:$0xf]
      %v1673 = vld [vmem:[#allocation2 + $0x54] sm:$0xf]
      %v1674 = vld [vmem:[#allocation2 + $0x58] sm:$0xf]
      %v1675 = vld [vmem:[#allocation2 + $0x5c] sm:$0xf]
      %v1676 = vld [vmem:[#allocation2 + $0x60] sm:$0xf]
      %v1677 = vld [vmem:[#allocation2 + $0x64] sm:$0xf]
      %v1678 = vld [vmem:[#allocation2 + $0x68] sm:$0xf]
      %v1679 = vld [vmem:[#allocation2 + $0x6c] sm:$0xf]
      %v1680 = vld [vmem:[#allocation2 + $0x70] sm:$0xf]
      %v1681 = vld [vmem:[#allocation2 + $0x74] sm:$0xf]
      %v1682 = vld [vmem:[#allocation2 + $0x78] sm:$0xf]
      %v1683 = vld [vmem:[#allocation2 + $0x7c] sm:$0xf]
      %v1684 = vld [vmem:[#allocation2 + $0x80] sm:$0xf]
      %v1685 = vld [vmem:[#allocation2 + $0x84] sm:$0xf]
      %v1686 = vld [vmem:[#allocation2 + $0x88] sm:$0xf]
      %v1687 = vld [vmem:[#allocation2 + $0x8c] sm:$0xf]
      %v1688 = vld [vmem:[#allocation2 + $0x90] sm:$0x1]
      %v1689 = vld [vmem:[%s1 + $0x8] sm:$0xf]
      %v1727 = vunpack.c.l.b16 %v1652
      %v1728 = vunpack.c.l.b16 %v1653
      %v1729 = vunpack.c.l.b16 %v1654
      %v1730 = vunpack.c.l.b16 %v1655
      %v1731 = vunpack.c.l.b16 %v1656
      %v1732 = vunpack.c.l.b16 %v1657
      %v1733 = vunpack.c.l.b16 %v1658
      %v1734 = vunpack.c.l.b16 %v1659
      %v1735 = vunpack.c.l.b16 %v1660
      %v1736 = vunpack.c.l.b16 %v1661
      %v1737 = vunpack.c.l.b16 %v1662
      %v1738 = vunpack.c.l.b16 %v1663
      %v1739 = vunpack.c.l.b16 %v1664
      %v1740 = vunpack.c.l.b16 %v1665
      %v1741 = vunpack.c.l.b16 %v1666
      %v1742 = vunpack.c.l.b16 %v1667
      %v1743 = vunpack.c.l.b16 %v1668
      %v1744 = vunpack.c.l.b16 %v1669
      %v1745 = vunpack.c.l.b16 %v1670
      %v1746 = vunpack.c.l.b16 %v1671
      %v1747 = vunpack.c.l.b16 %v1672
      %v1748 = vunpack.c.l.b16 %v1673
      %v1749 = vunpack.c.l.b16 %v1674
      %v1750 = vunpack.c.l.b16 %v1675
      %v1751 = vunpack.c.l.b16 %v1676
      %v1752 = vunpack.c.l.b16 %v1677
      %v1753 = vunpack.c.l.b16 %v1678
      %v1754 = vunpack.c.l.b16 %v1679
      %v1755 = vunpack.c.l.b16 %v1680
      %v1756 = vunpack.c.l.b16 %v1681
      %v1757 = vunpack.c.l.b16 %v1682
      %v1758 = vunpack.c.l.b16 %v1683
      %v1759 = vunpack.c.l.b16 %v1684
      %v1760 = vunpack.c.l.b16 %v1685
      %v1761 = vunpack.c.l.b16 %v1686
      %v1762 = vunpack.c.l.b16 %v1687
      %v1763 = vunpack.c.l.b16 %v1688
      %v1764 = vpack.c.b16 %v1728, %v1727
      %v1765 = vpack.c.b16 %v1730, %v1729
      %v1766 = vpack.c.b16 %v1732, %v1731
      %v1767 = vpack.c.b16 %v1734, %v1733
      %v1768 = vpack.c.b16 %v1736, %v1735
      %v1769 = vpack.c.b16 %v1738, %v1737
      %v1770 = vpack.c.b16 %v1740, %v1739
      %v1771 = vpack.c.b16 %v1742, %v1741
      %v1772 = vpack.c.b16 %v1744, %v1743
      %v1773 = vpack.c.b16 %v1746, %v1745
      %v1774 = vpack.c.b16 %v1748, %v1747
      %v1775 = vpack.c.b16 %v1750, %v1749
      %v1776 = vpack.c.b16 %v1752, %v1751
      %v1777 = vpack.c.b16 %v1754, %v1753
      %v1778 = vpack.c.b16 %v1756, %v1755
      %v1779 = vpack.c.b16 %v1758, %v1757
      %v1780 = vpack.c.b16 %v1760, %v1759
      %v1781 = vpack.c.b16 %v1762, %v1761
      %v1782 = vpack.c.b16 %v1763, %v1763
      %vm1783 = vcmask 1046528
      %v1784 = vrot.slane %v1764, 1
      %v1785 = vrot.slane %v1765, 1
      %v1786 = vsel %vm1783, %v1784, %v1785
      %v1787 = vrot.slane %v1766, 1
      %v1788 = vsel %vm1783, %v1785, %v1787
      %v1789 = vrot.slane %v1767, 1
      %v1790 = vsel %vm1783, %v1787, %v1789
      %v1791 = vrot.slane %v1768, 1
      %v1792 = vsel %vm1783, %v1789, %v1791
      %v1793 = vrot.slane %v1769, 1
      %v1794 = vsel %vm1783, %v1791, %v1793
      %v1795 = vrot.slane %v1770, 1
      %v1796 = vsel %vm1783, %v1793, %v1795
      %v1797 = vrot.slane %v1771, 1
      %v1798 = vsel %vm1783, %v1795, %v1797
      %v1799 = vrot.slane %v1772, 1
      %v1800 = vsel %vm1783, %v1797, %v1799
      %v1801 = vrot.slane %v1773, 1
      %v1802 = vsel %vm1783, %v1799, %v1801
      %v1803 = vrot.slane %v1774, 1
      %v1804 = vsel %vm1783, %v1801, %v1803
      %v1805 = vrot.slane %v1775, 1
      %v1806 = vsel %vm1783, %v1803, %v1805
      %v1807 = vrot.slane %v1776, 1
      %v1808 = vsel %vm1783, %v1805, %v1807
      %v1809 = vrot.slane %v1777, 1
      %v1810 = vsel %vm1783, %v1807, %v1809
      %v1811 = vrot.slane %v1778, 1
      %v1812 = vsel %vm1783, %v1809, %v1811
      %v1813 = vrot.slane %v1779, 1
      %v1814 = vsel %vm1783, %v1811, %v1813
      %v1815 = vrot.slane %v1780, 1
      %v1816 = vsel %vm1783, %v1813, %v1815
      %v1817 = vrot.slane %v1781, 1
      %v1818 = vsel %vm1783, %v1815, %v1817
      %v1819 = vrot.slane %v1782, 1
      %v1820 = vsel %vm1783, %v1817, %v1819
      %v1822 = vsel %vm487, %v1786, 0
      %v1825 = vsel %vm487, %v1788, 0
      %v1828 = vsel %vm487, %v1790, 0
      %v1831 = vsel %vm487, %v1792, 0
      %v1834 = vsel %vm487, %v1794, 0
      %v1837 = vsel %vm487, %v1796, 0
      %v1840 = vsel %vm487, %v1798, 0
      %v1843 = vsel %vm487, %v1800, 0
      %v1846 = vsel %vm487, %v1802, 0
      %v1849 = vsel %vm487, %v1804, 0
      %v1852 = vsel %vm487, %v1806, 0
      %v1855 = vsel %vm487, %v1808, 0
      %v1858 = vsel %vm487, %v1810, 0
      %v1861 = vsel %vm487, %v1812, 0
      %v1864 = vsel %vm487, %v1814, 0
      %v1867 = vsel %vm487, %v1816, 0
      %v1870 = vsel %vm487, %v1818, 0
      %v1873 = vsel %vm487, %v1820, 0
      %v1876 = vsel %vm741, %v1689, 0
      %1878 = vmatprep.subr.bf16.mxu0 0
      %1879 = vmatpush1.bf16.msra.mxu0 %v1876
      %1880 = vmatprep.subr.bf16.mxu0 0
      %1881 = vmatpush1.bf16.msra.mxu0 0
      %1882 = vmatprep.subr.bf16.mxu0 0
      %1883 = vmatpush1.bf16.msra.mxu0 0
      %1884 = vmatprep.subr.bf16.mxu0 0
      %1885 = vmatpush1.bf16.msra.mxu0 0
      %1886 = vmatprep.subr.bf16.mxu0 0
      %1887 = vmatpush1.bf16.msra.mxu0 0
      %1888 = vmatprep.subr.bf16.mxu0 0
      %1889 = vmatpush1.bf16.msra.mxu0 0
      %1890 = vmatprep.subr.bf16.mxu0 0
      %1891 = vmatpush1.bf16.msra.mxu0 0
      %1892 = vmatprep.subr.bf16.mxu0 0
      %1893 = vmatpush1.bf16.msra.mxu0 0
      %1894 = vmatprep.subr.bf16.mxu0 0
      %1895 = vmatpush1.bf16.msra.mxu0 0
      %1896 = vmatprep.subr.bf16.mxu0 0
      %1897 = vmatpush1.bf16.msra.mxu0 0
      %1898 = vmatprep.subr.bf16.mxu0 0
      %1899 = vmatpush1.bf16.msra.mxu0 0
      %1900 = vmatprep.subr.bf16.mxu0 0
      %1901 = vmatpush1.bf16.msra.mxu0 0
      %1902 = vmatprep.subr.bf16.mxu0 0
      %1903 = vmatpush1.bf16.msra.mxu0 0
      %1904 = vmatprep.subr.bf16.mxu0 0
      %1905 = vmatpush1.bf16.msra.mxu0 0
      %1906 = vmatprep.subr.bf16.mxu0 0
      %1907 = vmatpush1.bf16.msra.mxu0 0
      %1908 = vmatprep.subr.bf16.mxu0 0
      %1909 = vmatpush1.bf16.msra.mxu0 0
      %1910 = vmatprep.mubr.bf16.mxu0 0
      %1911 = vmatmul.mubr.bf16.gmra.mrb[0].mxu0 %v1822
      %v1912 = vpop.f32.mrb[0].mxu0
      %v1913 = vadd.f32 0.0, %v1912
      %v1914 = vpop.f32.mrb[0].mxu0
      %v1915 = vpop.f32.mrb[0].mxu0
      %v1916 = vadd.f32 0.0, %v1915
      %v1917 = vpop.f32.mrb[0].mxu0
      %1918 = vmatprep.mubr.bf16.mxu0 0
      %1919 = vmatmul.mubr.bf16.gmra.mrb[0].mxu0 %v1825
      %v1920 = vpop.f32.mrb[0].mxu0
      %v1921 = vadd.f32 0.0, %v1920
      %v1922 = vpop.f32.mrb[0].mxu0
      %v1923 = vpop.f32.mrb[0].mxu0
      %v1924 = vadd.f32 0.0, %v1923
      %v1925 = vpop.f32.mrb[0].mxu0
      %1926 = vmatprep.mubr.bf16.mxu0 0
      %1927 = vmatmul.mubr.bf16.gmra.mrb[0].mxu0 %v1828
      %v1928 = vpop.f32.mrb[0].mxu0
      %v1929 = vadd.f32 0.0, %v1928
      %v1930 = vpop.f32.mrb[0].mxu0
      %v1931 = vpop.f32.mrb[0].mxu0
      %v1932 = vadd.f32 0.0, %v1931
      %v1933 = vpop.f32.mrb[0].mxu0
      %1934 = vmatprep.mubr.bf16.mxu0 0
      %1935 = vmatmul.mubr.bf16.gmra.mrb[0].mxu0 %v1831
      %v1936 = vpop.f32.mrb[0].mxu0
      %v1937 = vadd.f32 0.0, %v1936
      %v1938 = vpop.f32.mrb[0].mxu0
      %v1939 = vpop.f32.mrb[0].mxu0
      %v1940 = vadd.f32 0.0, %v1939
      %v1941 = vpop.f32.mrb[0].mxu0
      %1942 = vmatprep.mubr.bf16.mxu0 0
      %1943 = vmatmul.mubr.bf16.gmra.mrb[0].mxu0 %v1834
      %v1944 = vpop.f32.mrb[0].mxu0
      %v1945 = vadd.f32 0.0, %v1944
      %v1946 = vpop.f32.mrb[0].mxu0
      %v1947 = vpop.f32.mrb[0].mxu0
      %v1948 = vadd.f32 0.0, %v1947
      %v1949 = vpop.f32.mrb[0].mxu0
      %1950 = vmatprep.mubr.bf16.mxu0 0
      %1951 = vmatmul.mubr.bf16.gmra.mrb[0].mxu0 %v1837
      %v1952 = vpop.f32.mrb[0].mxu0
      %v1953 = vadd.f32 0.0, %v1952
      %v1954 = vpop.f32.mrb[0].mxu0
      %v1955 = vpop.f32.mrb[0].mxu0
      %v1956 = vadd.f32 0.0, %v1955
      %v1957 = vpop.f32.mrb[0].mxu0
      %1958 = vmatprep.mubr.bf16.mxu0 0
      %1959 = vmatmul.mubr.bf16.gmra.mrb[0].mxu0 %v1840
      %v1960 = vpop.f32.mrb[0].mxu0
      %v1961 = vadd.f32 0.0, %v1960
      %v1962 = vpop.f32.mrb[0].mxu0
      %v1963 = vpop.f32.mrb[0].mxu0
      %v1964 = vadd.f32 0.0, %v1963
      %v1965 = vpop.f32.mrb[0].mxu0
      %1966 = vmatprep.mubr.bf16.mxu0 0
      %1967 = vmatmul.mubr.bf16.gmra.mrb[0].mxu0 %v1843
      %v1968 = vpop.f32.mrb[0].mxu0
      %v1969 = vadd.f32 0.0, %v1968
      %v1970 = vpop.f32.mrb[0].mxu0
      %v1971 = vpop.f32.mrb[0].mxu0
      %v1972 = vadd.f32 0.0, %v1971
      %v1973 = vpop.f32.mrb[0].mxu0
      %1974 = vmatprep.mubr.bf16.mxu0 0
      %1975 = vmatmul.mubr.bf16.gmra.mrb[0].mxu0 %v1846
      %v1976 = vpop.f32.mrb[0].mxu0
      %v1977 = vadd.f32 0.0, %v1976
      %v1978 = vpop.f32.mrb[0].mxu0
      %v1979 = vpop.f32.mrb[0].mxu0
      %v1980 = vadd.f32 0.0, %v1979
      %v1981 = vpop.f32.mrb[0].mxu0
      %1982 = vmatprep.mubr.bf16.mxu0 0
      %1983 = vmatmul.mubr.bf16.gmra.mrb[0].mxu0 %v1849
      %v1984 = vpop.f32.mrb[0].mxu0
      %v1985 = vadd.f32 0.0, %v1984
      %v1986 = vpop.f32.mrb[0].mxu0
      %v1987 = vpop.f32.mrb[0].mxu0
      %v1988 = vadd.f32 0.0, %v1987
      %v1989 = vpop.f32.mrb[0].mxu0
      %1990 = vmatprep.mubr.bf16.mxu0 0
      %1991 = vmatmul.mubr.bf16.gmra.mrb[0].mxu0 %v1852
      %v1992 = vpop.f32.mrb[0].mxu0
      %v1993 = vadd.f32 0.0, %v1992
      %v1994 = vpop.f32.mrb[0].mxu0
      %v1995 = vpop.f32.mrb[0].mxu0
      %v1996 = vadd.f32 0.0, %v1995
      %v1997 = vpop.f32.mrb[0].mxu0
      %1998 = vmatprep.mubr.bf16.mxu0 0
      %1999 = vmatmul.mubr.bf16.gmra.mrb[0].mxu0 %v1855
      %v2000 = vpop.f32.mrb[0].mxu0
      %v2001 = vadd.f32 0.0, %v2000
      %v2002 = vpop.f32.mrb[0].mxu0
      %v2003 = vpop.f32.mrb[0].mxu0
      %v2004 = vadd.f32 0.0, %v2003
      %v2005 = vpop.f32.mrb[0].mxu0
      %2006 = vmatprep.mubr.bf16.mxu0 0
      %2007 = vmatmul.mubr.bf16.gmra.mrb[0].mxu0 %v1858
      %v2008 = vpop.f32.mrb[0].mxu0
      %v2009 = vadd.f32 0.0, %v2008
      %v2010 = vpop.f32.mrb[0].mxu0
      %v2011 = vpop.f32.mrb[0].mxu0
      %v2012 = vadd.f32 0.0, %v2011
      %v2013 = vpop.f32.mrb[0].mxu0
      %2014 = vmatprep.mubr.bf16.mxu0 0
      %2015 = vmatmul.mubr.bf16.gmra.mrb[0].mxu0 %v1861
      %v2016 = vpop.f32.mrb[0].mxu0
      %v2017 = vadd.f32 0.0, %v2016
      %v2018 = vpop.f32.mrb[0].mxu0
      %v2019 = vpop.f32.mrb[0].mxu0
      %v2020 = vadd.f32 0.0, %v2019
      %v2021 = vpop.f32.mrb[0].mxu0
      %2022 = vmatprep.mubr.bf16.mxu0 0
      %2023 = vmatmul.mubr.bf16.gmra.mrb[0].mxu0 %v1864
      %v2024 = vpop.f32.mrb[0].mxu0
      %v2025 = vadd.f32 0.0, %v2024
      %v2026 = vpop.f32.mrb[0].mxu0
      %v2027 = vpop.f32.mrb[0].mxu0
      %v2028 = vadd.f32 0.0, %v2027
      %v2029 = vpop.f32.mrb[0].mxu0
      %2030 = vmatprep.mubr.bf16.mxu0 0
      %2031 = vmatmul.mubr.bf16.gmra.mrb[0].mxu0 %v1867
      %v2032 = vpop.f32.mrb[0].mxu0
      %v2033 = vadd.f32 0.0, %v2032
      %v2034 = vpop.f32.mrb[0].mxu0
      %v2035 = vpop.f32.mrb[0].mxu0
      %v2036 = vadd.f32 0.0, %v2035
      %v2037 = vpop.f32.mrb[0].mxu0
      %2038 = vmatprep.mubr.bf16.mxu0 0
      %2039 = vmatmul.mubr.bf16.gmra.mrb[0].mxu0 %v1870
      %v2040 = vpop.f32.mrb[0].mxu0
      %v2041 = vadd.f32 0.0, %v2040
      %v2042 = vpop.f32.mrb[0].mxu0
      %v2043 = vpop.f32.mrb[0].mxu0
      %v2044 = vadd.f32 0.0, %v2043
      %v2045 = vpop.f32.mrb[0].mxu0
      %2046 = vmatprep.mubr.bf16.mxu0 0
      %2047 = vmatmul.mubr.bf16.gmra.mrb[0].mxu0 %v1873
      %v2048 = vpop.f32.mrb[0].mxu0
      %v2049 = vadd.f32 0.0, %v2048
      %v2050 = vpop.f32.mrb[0].mxu0
      %v2051 = vpop.f32.mrb[0].mxu0
      %v2052 = vadd.f32 0.0, %v2051
      %v2053 = vpop.f32.mrb[0].mxu0
      %2054 = vdwg.mxu0
      %v2055 = vadd.f32 %v1616, %v1913
      %v2056 = vadd.f32 %v1617, %v1916
      %v2057 = vadd.f32 %v1618, %v1921
      %v2058 = vadd.f32 %v1619, %v1924
      %v2059 = vadd.f32 %v1620, %v1929
      %v2060 = vadd.f32 %v1621, %v1932
      %v2061 = vadd.f32 %v1622, %v1937
      %v2062 = vadd.f32 %v1623, %v1940
      %v2063 = vadd.f32 %v1624, %v1945
      %v2064 = vadd.f32 %v1625, %v1948
      %v2065 = vadd.f32 %v1626, %v1953
      %v2066 = vadd.f32 %v1627, %v1956
      %v2067 = vadd.f32 %v1628, %v1961
      %v2068 = vadd.f32 %v1629, %v1964
      %v2069 = vadd.f32 %v1630, %v1969
      %v2070 = vadd.f32 %v1631, %v1972
      %v2071 = vadd.f32 %v1632, %v1977
      %v2072 = vadd.f32 %v1633, %v1980
      %v2073 = vadd.f32 %v1634, %v1985
      %v2074 = vadd.f32 %v1635, %v1988
      %v2075 = vadd.f32 %v1636, %v1993
      %v2076 = vadd.f32 %v1637, %v1996
      %v2077 = vadd.f32 %v1638, %v2001
      %v2078 = vadd.f32 %v1639, %v2004
      %v2079 = vadd.f32 %v1640, %v2009
      %v2080 = vadd.f32 %v1641, %v2012
      %v2081 = vadd.f32 %v1642, %v2017
      %v2082 = vadd.f32 %v1643, %v2020
      %v2083 = vadd.f32 %v1644, %v2025
      %v2084 = vadd.f32 %v1645, %v2028
      %v2085 = vadd.f32 %v1646, %v2033
      %v2086 = vadd.f32 %v1647, %v2036
      %v2087 = vadd.f32 %v1648, %v2041
      %v2088 = vadd.f32 %v1649, %v2044
      %v2089 = vadd.f32 %v1650, %v2049
      %v2090 = vadd.f32 %v1651, %v2052
      %2091 = vst.msk [vmem:[#allocation3] sm:$0xff] %vm487, %v2055
      %2092 = vst.msk [vmem:[#allocation3 + $0x8] sm:$0xff] %vm487, %v2056
      %2093 = vst.msk [vmem:[#allocation3 + $0x10] sm:$0xff] %vm487, %v2057
      %2094 = vst.msk [vmem:[#allocation3 + $0x18] sm:$0xff] %vm487, %v2058
      %2095 = vst.msk [vmem:[#allocation3 + $0x20] sm:$0xff] %vm487, %v2059
      %2096 = vst.msk [vmem:[#allocation3 + $0x28] sm:$0xff] %vm487, %v2060
      %2097 = vst.msk [vmem:[#allocation3 + $0x30] sm:$0xff] %vm487, %v2061
      %2098 = vst.msk [vmem:[#allocation3 + $0x38] sm:$0xff] %vm487, %v2062
      %2099 = vst.msk [vmem:[#allocation3 + $0x40] sm:$0xff] %vm487, %v2063
      %2100 = vst.msk [vmem:[#allocation3 + $0x48] sm:$0xff] %vm487, %v2064
      %2101 = vst.msk [vmem:[#allocation3 + $0x50] sm:$0xff] %vm487, %v2065
      %2102 = vst.msk [vmem:[#allocation3 + $0x58] sm:$0xff] %vm487, %v2066
      %2103 = vst.msk [vmem:[#allocation3 + $0x60] sm:$0xff] %vm487, %v2067
      %2104 = vst.msk [vmem:[#allocation3 + $0x68] sm:$0xff] %vm487, %v2068
      %2105 = vst.msk [vmem:[#allocation3 + $0x70] sm:$0xff] %vm487, %v2069
      %2106 = vst.msk [vmem:[#allocation3 + $0x78] sm:$0xff] %vm487, %v2070
      %2107 = vst.msk [vmem:[#allocation3 + $0x80] sm:$0xff] %vm487, %v2071
      %2108 = vst.msk [vmem:[#allocation3 + $0x88] sm:$0xff] %vm487, %v2072
      %2109 = vst.msk [vmem:[#allocation3 + $0x90] sm:$0xff] %vm487, %v2073
      %2110 = vst.msk [vmem:[#allocation3 + $0x98] sm:$0xff] %vm487, %v2074
      %2111 = vst.msk [vmem:[#allocation3 + $0xa0] sm:$0xff] %vm487, %v2075
      %2112 = vst.msk [vmem:[#allocation3 + $0xa8] sm:$0xff] %vm487, %v2076
      %2113 = vst.msk [vmem:[#allocation3 + $0xb0] sm:$0xff] %vm487, %v2077
      %2114 = vst.msk [vmem:[#allocation3 + $0xb8] sm:$0xff] %vm487, %v2078
      %2115 = vst.msk [vmem:[#allocation3 + $0xc0] sm:$0xff] %vm487, %v2079
      %2116 = vst.msk [vmem:[#allocation3 + $0xc8] sm:$0xff] %vm487, %v2080
      %2117 = vst.msk [vmem:[#allocation3 + $0xd0] sm:$0xff] %vm487, %v2081
      %2118 = vst.msk [vmem:[#allocation3 + $0xd8] sm:$0xff] %vm487, %v2082
      %2119 = vst.msk [vmem:[#allocation3 + $0xe0] sm:$0xff] %vm487, %v2083
      %2120 = vst.msk [vmem:[#allocation3 + $0xe8] sm:$0xff] %vm487, %v2084
      %2121 = vst.msk [vmem:[#allocation3 + $0xf0] sm:$0xff] %vm487, %v2085
      %2122 = vst.msk [vmem:[#allocation3 + $0xf8] sm:$0xff] %vm487, %v2086
      %2123 = vst.msk [vmem:[#allocation3 + $0x100] sm:$0xff] %vm487, %v2087
      %2124 = vst.msk [vmem:[#allocation3 + $0x108] sm:$0xff] %vm487, %v2088
      %2125 = vst.msk [vmem:[#allocation3 + $0x110] sm:$0xff] %vm487, %v2089
      %2126 = vst.msk [vmem:[#allocation3 + $0x118] sm:$0xff] %vm487, %v2090
      %v2127 = vld [vmem:[#allocation3] sm:$0xff]
      %v2128 = vld [vmem:[#allocation3 + $0x8] sm:$0xff]
      %v2129 = vld [vmem:[#allocation3 + $0x10] sm:$0xff]
      %v2130 = vld [vmem:[#allocation3 + $0x18] sm:$0xff]
      %v2131 = vld [vmem:[#allocation3 + $0x20] sm:$0xff]
      %v2132 = vld [vmem:[#allocation3 + $0x28] sm:$0xff]
      %v2133 = vld [vmem:[#allocation3 + $0x30] sm:$0xff]
      %v2134 = vld [vmem:[#allocation3 + $0x38] sm:$0xff]
      %v2135 = vld [vmem:[#allocation3 + $0x40] sm:$0xff]
      %v2136 = vld [vmem:[#allocation3 + $0x48] sm:$0xff]
      %v2137 = vld [vmem:[#allocation3 + $0x50] sm:$0xff]
      %v2138 = vld [vmem:[#allocation3 + $0x58] sm:$0xff]
      %v2139 = vld [vmem:[#allocation3 + $0x60] sm:$0xff]
      %v2140 = vld [vmem:[#allocation3 + $0x68] sm:$0xff]
      %v2141 = vld [vmem:[#allocation3 + $0x70] sm:$0xff]
      %v2142 = vld [vmem:[#allocation3 + $0x78] sm:$0xff]
      %v2143 = vld [vmem:[#allocation3 + $0x80] sm:$0xff]
      %v2144 = vld [vmem:[#allocation3 + $0x88] sm:$0xff]
      %v2145 = vld [vmem:[#allocation3 + $0x90] sm:$0xff]
      %v2146 = vld [vmem:[#allocation3 + $0x98] sm:$0xff]
      %v2147 = vld [vmem:[#allocation3 + $0xa0] sm:$0xff]
      %v2148 = vld [vmem:[#allocation3 + $0xa8] sm:$0xff]
      %v2149 = vld [vmem:[#allocation3 + $0xb0] sm:$0xff]
      %v2150 = vld [vmem:[#allocation3 + $0xb8] sm:$0xff]
      %v2151 = vld [vmem:[#allocation3 + $0xc0] sm:$0xff]
      %v2152 = vld [vmem:[#allocation3 + $0xc8] sm:$0xff]
      %v2153 = vld [vmem:[#allocation3 + $0xd0] sm:$0xff]
      %v2154 = vld [vmem:[#allocation3 + $0xd8] sm:$0xff]
      %v2155 = vld [vmem:[#allocation3 + $0xe0] sm:$0xff]
      %v2156 = vld [vmem:[#allocation3 + $0xe8] sm:$0xff]
      %v2157 = vld [vmem:[#allocation3 + $0xf0] sm:$0xff]
      %v2158 = vld [vmem:[#allocation3 + $0xf8] sm:$0xff]
      %v2159 = vld [vmem:[#allocation3 + $0x100] sm:$0xff]
      %v2160 = vld [vmem:[#allocation3 + $0x108] sm:$0xff]
      %v2161 = vld [vmem:[#allocation3 + $0x110] sm:$0xff]
      %v2162 = vld [vmem:[#allocation3 + $0x118] sm:$0xff]
      %v2163 = vld [vmem:[#allocation2 + $0x8] sm:$0xe]
      %v2164 = vld [vmem:[#allocation2 + $0xc] sm:$0xf]
      %v2165 = vld [vmem:[#allocation2 + $0x10] sm:$0xf]
      %v2166 = vld [vmem:[#allocation2 + $0x14] sm:$0xf]
      %v2167 = vld [vmem:[#allocation2 + $0x18] sm:$0xf]
      %v2168 = vld [vmem:[#allocation2 + $0x1c] sm:$0xf]
      %v2169 = vld [vmem:[#allocation2 + $0x20] sm:$0xf]
      %v2170 = vld [vmem:[#allocation2 + $0x24] sm:$0xf]
      %v2171 = vld [vmem:[#allocation2 + $0x28] sm:$0xf]
      %v2172 = vld [vmem:[#allocation2 + $0x2c] sm:$0xf]
      %v2173 = vld [vmem:[#allocation2 + $0x30] sm:$0xf]
      %v2174 = vld [vmem:[#allocation2 + $0x34] sm:$0xf]
      %v2175 = vld [vmem:[#allocation2 + $0x38] sm:$0xf]
      %v2176 = vld [vmem:[#allocation2 + $0x3c] sm:$0xf]
      %v2177 = vld [vmem:[#allocation2 + $0x40] sm:$0xf]
      %v2178 = vld [vmem:[#allocation2 + $0x44] sm:$0xf]
      %v2179 = vld [vmem:[#allocation2 + $0x48] sm:$0xf]
      %v2180 = vld [vmem:[#allocation2 + $0x4c] sm:$0xf]
      %v2181 = vld [vmem:[#allocation2 + $0x50] sm:$0xf]
      %v2182 = vld [vmem:[#allocation2 + $0x54] sm:$0xf]
      %v2183 = vld [vmem:[#allocation2 + $0x58] sm:$0xf]
      %v2184 = vld [vmem:[#allocation2 + $0x5c] sm:$0xf]
      %v2185 = vld [vmem:[#allocation2 + $0x60] sm:$0xf]
      %v2186 = vld [vmem:[#allocation2 + $0x64] sm:$0xf]
      %v2187 = vld [vmem:[#allocation2 + $0x68] sm:$0xf]
      %v2188 = vld [vmem:[#allocation2 + $0x6c] sm:$0xf]
      %v2189 = vld [vmem:[#allocation2 + $0x70] sm:$0xf]
      %v2190 = vld [vmem:[#allocation2 + $0x74] sm:$0xf]
      %v2191 = vld [vmem:[#allocation2 + $0x78] sm:$0xf]
      %v2192 = vld [vmem:[#allocation2 + $0x7c] sm:$0xf]
      %v2193 = vld [vmem:[#allocation2 + $0x80] sm:$0xf]
      %v2194 = vld [vmem:[#allocation2 + $0x84] sm:$0xf]
      %v2195 = vld [vmem:[#allocation2 + $0x88] sm:$0xf]
      %v2196 = vld [vmem:[#allocation2 + $0x8c] sm:$0xf]
      %v2197 = vld [vmem:[#allocation2 + $0x90] sm:$0xf]
      %v2198 = vld [vmem:[#allocation2 + $0x94] sm:$0xf]
      %v2199 = vld [vmem:[#allocation2 + $0x98] sm:$0x1]
      %v2200 = vld [vmem:[%s1 + $0xc] sm:$0xf]
      %v2238 = vunpack.c.l.b16 %v2163
      %v2239 = vunpack.c.l.b16 %v2164
      %v2240 = vunpack.c.l.b16 %v2165
      %v2241 = vunpack.c.l.b16 %v2166
      %v2242 = vunpack.c.l.b16 %v2167
      %v2243 = vunpack.c.l.b16 %v2168
      %v2244 = vunpack.c.l.b16 %v2169
      %v2245 = vunpack.c.l.b16 %v2170
      %v2246 = vunpack.c.l.b16 %v2171
      %v2247 = vunpack.c.l.b16 %v2172
      %v2248 = vunpack.c.l.b16 %v2173
      %v2249 = vunpack.c.l.b16 %v2174
      %v2250 = vunpack.c.l.b16 %v2175
      %v2251 = vunpack.c.l.b16 %v2176
      %v2252 = vunpack.c.l.b16 %v2177
      %v2253 = vunpack.c.l.b16 %v2178
      %v2254 = vunpack.c.l.b16 %v2179
      %v2255 = vunpack.c.l.b16 %v2180
      %v2256 = vunpack.c.l.b16 %v2181
      %v2257 = vunpack.c.l.b16 %v2182
      %v2258 = vunpack.c.l.b16 %v2183
      %v2259 = vunpack.c.l.b16 %v2184
      %v2260 = vunpack.c.l.b16 %v2185
      %v2261 = vunpack.c.l.b16 %v2186
      %v2262 = vunpack.c.l.b16 %v2187
      %v2263 = vunpack.c.l.b16 %v2188
      %v2264 = vunpack.c.l.b16 %v2189
      %v2265 = vunpack.c.l.b16 %v2190
      %v2266 = vunpack.c.l.b16 %v2191
      %v2267 = vunpack.c.l.b16 %v2192
      %v2268 = vunpack.c.l.b16 %v2193
      %v2269 = vunpack.c.l.b16 %v2194
      %v2270 = vunpack.c.l.b16 %v2195
      %v2271 = vunpack.c.l.b16 %v2196
      %v2272 = vunpack.c.l.b16 %v2197
      %v2273 = vunpack.c.l.b16 %v2198
      %v2274 = vunpack.c.l.b16 %v2199
      %v2275 = vpack.c.b16 %v2239, %v2238
      %v2276 = vpack.c.b16 %v2241, %v2240
      %v2277 = vpack.c.b16 %v2243, %v2242
      %v2278 = vpack.c.b16 %v2245, %v2244
      %v2279 = vpack.c.b16 %v2247, %v2246
      %v2280 = vpack.c.b16 %v2249, %v2248
      %v2281 = vpack.c.b16 %v2251, %v2250
      %v2282 = vpack.c.b16 %v2253, %v2252
      %v2283 = vpack.c.b16 %v2255, %v2254
      %v2284 = vpack.c.b16 %v2257, %v2256
      %v2285 = vpack.c.b16 %v2259, %v2258
      %v2286 = vpack.c.b16 %v2261, %v2260
      %v2287 = vpack.c.b16 %v2263, %v2262
      %v2288 = vpack.c.b16 %v2265, %v2264
      %v2289 = vpack.c.b16 %v2267, %v2266
      %v2290 = vpack.c.b16 %v2269, %v2268
      %v2291 = vpack.c.b16 %v2271, %v2270
      %v2292 = vpack.c.b16 %v2273, %v2272
      %v2293 = vpack.c.b16 %v2274, %v2274
      %v2294 = vrot.slane %v2275, 1
      %v2295 = vrot.slane %v2276, 1
      %v2296 = vsel %vm1783, %v2294, %v2295
      %v2297 = vrot.slane %v2277, 1
      %v2298 = vsel %vm1783, %v2295, %v2297
      %v2299 = vrot.slane %v2278, 1
      %v2300 = vsel %vm1783, %v2297, %v2299
      %v2301 = vrot.slane %v2279, 1
      %v2302 = vsel %vm1783, %v2299, %v2301
      %v2303 = vrot.slane %v2280, 1
      %v2304 = vsel %vm1783, %v2301, %v2303
      %v2305 = vrot.slane %v2281, 1
      %v2306 = vsel %vm1783, %v2303, %v2305
      %v2307 = vrot.slane %v2282, 1
      %v2308 = vsel %vm1783, %v2305, %v2307
      %v2309 = vrot.slane %v2283, 1
      %v2310 = vsel %vm1783, %v2307, %v2309
      %v2311 = vrot.slane %v2284, 1
      %v2312 = vsel %vm1783, %v2309, %v2311
      %v2313 = vrot.slane %v2285, 1
      %v2314 = vsel %vm1783, %v2311, %v2313
      %v2315 = vrot.slane %v2286, 1
      %v2316 = vsel %vm1783, %v2313, %v2315
      %v2317 = vrot.slane %v2287, 1
      %v2318 = vsel %vm1783, %v2315, %v2317
      %v2319 = vrot.slane %v2288, 1
      %v2320 = vsel %vm1783, %v2317, %v2319
      %v2321 = vrot.slane %v2289, 1
      %v2322 = vsel %vm1783, %v2319, %v2321
      %v2323 = vrot.slane %v2290, 1
      %v2324 = vsel %vm1783, %v2321, %v2323
      %v2325 = vrot.slane %v2291, 1
      %v2326 = vsel %vm1783, %v2323, %v2325
      %v2327 = vrot.slane %v2292, 1
      %v2328 = vsel %vm1783, %v2325, %v2327
      %v2329 = vrot.slane %v2293, 1
      %v2330 = vsel %vm1783, %v2327, %v2329
      %v2332 = vsel %vm487, %v2296, 0
      %v2335 = vsel %vm487, %v2298, 0
      %v2338 = vsel %vm487, %v2300, 0
      %v2341 = vsel %vm487, %v2302, 0
      %v2344 = vsel %vm487, %v2304, 0
      %v2347 = vsel %vm487, %v2306, 0
      %v2350 = vsel %vm487, %v2308, 0
      %v2353 = vsel %vm487, %v2310, 0
      %v2356 = vsel %vm487, %v2312, 0
      %v2359 = vsel %vm487, %v2314, 0
      %v2362 = vsel %vm487, %v2316, 0
      %v2365 = vsel %vm487, %v2318, 0
      %v2368 = vsel %vm487, %v2320, 0
      %v2371 = vsel %vm487, %v2322, 0
      %v2374 = vsel %vm487, %v2324, 0
      %v2377 = vsel %vm487, %v2326, 0
      %v2380 = vsel %vm487, %v2328, 0
      %v2383 = vsel %vm487, %v2330, 0
      %v2386 = vsel %vm741, %v2200, 0
      %2388 = vmatprep.subr.bf16.mxu0 0
      %2389 = vmatpush1.bf16.msra.mxu0 %v2386
      %2390 = vmatprep.subr.bf16.mxu0 0
      %2391 = vmatpush1.bf16.msra.mxu0 0
      %2392 = vmatprep.subr.bf16.mxu0 0
      %2393 = vmatpush1.bf16.msra.mxu0 0
      %2394 = vmatprep.subr.bf16.mxu0 0
      %2395 = vmatpush1.bf16.msra.mxu0 0
      %2396 = vmatprep.subr.bf16.mxu0 0
      %2397 = vmatpush1.bf16.msra.mxu0 0
      %2398 = vmatprep.subr.bf16.mxu0 0
      %2399 = vmatpush1.bf16.msra.mxu0 0
      %2400 = vmatprep.subr.bf16.mxu0 0
      %2401 = vmatpush1.bf16.msra.mxu0 0
      %2402 = vmatprep.subr.bf16.mxu0 0
      %2403 = vmatpush1.bf16.msra.mxu0 0
      %2404 = vmatprep.subr.bf16.mxu0 0
      %2405 = vmatpush1.bf16.msra.mxu0 0
      %2406 = vmatprep.subr.bf16.mxu0 0
      %2407 = vmatpush1.bf16.msra.mxu0 0
      %2408 = vmatprep.subr.bf16.mxu0 0
      %2409 = vmatpush1.bf16.msra.mxu0 0
      %2410 = vmatprep.subr.bf16.mxu0 0
      %2411 = vmatpush1.bf16.msra.mxu0 0
      %2412 = vmatprep.subr.bf16.mxu0 0
      %2413 = vmatpush1.bf16.msra.mxu0 0
      %2414 = vmatprep.subr.bf16.mxu0 0
      %2415 = vmatpush1.bf16.msra.mxu0 0
      %2416 = vmatprep.subr.bf16.mxu0 0
      %2417 = vmatpush1.bf16.msra.mxu0 0
      %2418 = vmatprep.subr.bf16.mxu0 0
      %2419 = vmatpush1.bf16.msra.mxu0 0
      %2420 = vmatprep.mubr.bf16.mxu0 0
      %2421 = vmatmul.mubr.bf16.gmra.mrb[0].mxu0 %v2332
      %v2422 = vpop.f32.mrb[0].mxu0
      %v2423 = vadd.f32 0.0, %v2422
      %v2424 = vpop.f32.mrb[0].mxu0
      %v2425 = vpop.f32.mrb[0].mxu0
      %v2426 = vadd.f32 0.0, %v2425
      %v2427 = vpop.f32.mrb[0].mxu0
      %2428 = vmatprep.mubr.bf16.mxu0 0
      %2429 = vmatmul.mubr.bf16.gmra.mrb[0].mxu0 %v2335
      %v2430 = vpop.f32.mrb[0].mxu0
      %v2431 = vadd.f32 0.0, %v2430
      %v2432 = vpop.f32.mrb[0].mxu0
      %v2433 = vpop.f32.mrb[0].mxu0
      %v2434 = vadd.f32 0.0, %v2433
      %v2435 = vpop.f32.mrb[0].mxu0
      %2436 = vmatprep.mubr.bf16.mxu0 0
      %2437 = vmatmul.mubr.bf16.gmra.mrb[0].mxu0 %v2338
      %v2438 = vpop.f32.mrb[0].mxu0
      %v2439 = vadd.f32 0.0, %v2438
      %v2440 = vpop.f32.mrb[0].mxu0
      %v2441 = vpop.f32.mrb[0].mxu0
      %v2442 = vadd.f32 0.0, %v2441
      %v2443 = vpop.f32.mrb[0].mxu0
      %2444 = vmatprep.mubr.bf16.mxu0 0
      %2445 = vmatmul.mubr.bf16.gmra.mrb[0].mxu0 %v2341
      %v2446 = vpop.f32.mrb[0].mxu0
      %v2447 = vadd.f32 0.0, %v2446
      %v2448 = vpop.f32.mrb[0].mxu0
      %v2449 = vpop.f32.mrb[0].mxu0
      %v2450 = vadd.f32 0.0, %v2449
      %v2451 = vpop.f32.mrb[0].mxu0
      %2452 = vmatprep.mubr.bf16.mxu0 0
      %2453 = vmatmul.mubr.bf16.gmra.mrb[0].mxu0 %v2344
      %v2454 = vpop.f32.mrb[0].mxu0
      %v2455 = vadd.f32 0.0, %v2454
      %v2456 = vpop.f32.mrb[0].mxu0
      %v2457 = vpop.f32.mrb[0].mxu0
      %v2458 = vadd.f32 0.0, %v2457
      %v2459 = vpop.f32.mrb[0].mxu0
      %2460 = vmatprep.mubr.bf16.mxu0 0
      %2461 = vmatmul.mubr.bf16.gmra.mrb[0].mxu0 %v2347
      %v2462 = vpop.f32.mrb[0].mxu0
      %v2463 = vadd.f32 0.0, %v2462
      %v2464 = vpop.f32.mrb[0].mxu0
      %v2465 = vpop.f32.mrb[0].mxu0
      %v2466 = vadd.f32 0.0, %v2465
      %v2467 = vpop.f32.mrb[0].mxu0
      %2468 = vmatprep.mubr.bf16.mxu0 0
      %2469 = vmatmul.mubr.bf16.gmra.mrb[0].mxu0 %v2350
      %v2470 = vpop.f32.mrb[0].mxu0
      %v2471 = vadd.f32 0.0, %v2470
      %v2472 = vpop.f32.mrb[0].mxu0
      %v2473 = vpop.f32.mrb[0].mxu0
      %v2474 = vadd.f32 0.0, %v2473
      %v2475 = vpop.f32.mrb[0].mxu0
      %2476 = vmatprep.mubr.bf16.mxu0 0
      %2477 = vmatmul.mubr.bf16.gmra.mrb[0].mxu0 %v2353
      %v2478 = vpop.f32.mrb[0].mxu0
      %v2479 = vadd.f32 0.0, %v2478
      %v2480 = vpop.f32.mrb[0].mxu0
      %v2481 = vpop.f32.mrb[0].mxu0
      %v2482 = vadd.f32 0.0, %v2481
      %v2483 = vpop.f32.mrb[0].mxu0
      %2484 = vmatprep.mubr.bf16.mxu0 0
      %2485 = vmatmul.mubr.bf16.gmra.mrb[0].mxu0 %v2356
      %v2486 = vpop.f32.mrb[0].mxu0
      %v2487 = vadd.f32 0.0, %v2486
      %v2488 = vpop.f32.mrb[0].mxu0
      %v2489 = vpop.f32.mrb[0].mxu0
      %v2490 = vadd.f32 0.0, %v2489
      %v2491 = vpop.f32.mrb[0].mxu0
      %2492 = vmatprep.mubr.bf16.mxu0 0
      %2493 = vmatmul.mubr.bf16.gmra.mrb[0].mxu0 %v2359
      %v2494 = vpop.f32.mrb[0].mxu0
      %v2495 = vadd.f32 0.0, %v2494
      %v2496 = vpop.f32.mrb[0].mxu0
      %v2497 = vpop.f32.mrb[0].mxu0
      %v2498 = vadd.f32 0.0, %v2497
      %v2499 = vpop.f32.mrb[0].mxu0
      %2500 = vmatprep.mubr.bf16.mxu0 0
      %2501 = vmatmul.mubr.bf16.gmra.mrb[0].mxu0 %v2362
      %v2502 = vpop.f32.mrb[0].mxu0
      %v2503 = vadd.f32 0.0, %v2502
      %v2504 = vpop.f32.mrb[0].mxu0
      %v2505 = vpop.f32.mrb[0].mxu0
      %v2506 = vadd.f32 0.0, %v2505
      %v2507 = vpop.f32.mrb[0].mxu0
      %2508 = vmatprep.mubr.bf16.mxu0 0
      %2509 = vmatmul.mubr.bf16.gmra.mrb[0].mxu0 %v2365
      %v2510 = vpop.f32.mrb[0].mxu0
      %v2511 = vadd.f32 0.0, %v2510
      %v2512 = vpop.f32.mrb[0].mxu0
      %v2513 = vpop.f32.mrb[0].mxu0
      %v2514 = vadd.f32 0.0, %v2513
      %v2515 = vpop.f32.mrb[0].mxu0
      %2516 = vmatprep.mubr.bf16.mxu0 0
      %2517 = vmatmul.mubr.bf16.gmra.mrb[0].mxu0 %v2368
      %v2518 = vpop.f32.mrb[0].mxu0
      %v2519 = vadd.f32 0.0, %v2518
      %v2520 = vpop.f32.mrb[0].mxu0
      %v2521 = vpop.f32.mrb[0].mxu0
      %v2522 = vadd.f32 0.0, %v2521
      %v2523 = vpop.f32.mrb[0].mxu0
      %2524 = vmatprep.mubr.bf16.mxu0 0
      %2525 = vmatmul.mubr.bf16.gmra.mrb[0].mxu0 %v2371
      %v2526 = vpop.f32.mrb[0].mxu0
      %v2527 = vadd.f32 0.0, %v2526
      %v2528 = vpop.f32.mrb[0].mxu0
      %v2529 = vpop.f32.mrb[0].mxu0
      %v2530 = vadd.f32 0.0, %v2529
      %v2531 = vpop.f32.mrb[0].mxu0
      %2532 = vmatprep.mubr.bf16.mxu0 0
      %2533 = vmatmul.mubr.bf16.gmra.mrb[0].mxu0 %v2374
      %v2534 = vpop.f32.mrb[0].mxu0
      %v2535 = vadd.f32 0.0, %v2534
      %v2536 = vpop.f32.mrb[0].mxu0
      %v2537 = vpop.f32.mrb[0].mxu0
      %v2538 = vadd.f32 0.0, %v2537
      %v2539 = vpop.f32.mrb[0].mxu0
      %2540 = vmatprep.mubr.bf16.mxu0 0
      %2541 = vmatmul.mubr.bf16.gmra.mrb[0].mxu0 %v2377
      %v2542 = vpop.f32.mrb[0].mxu0
      %v2543 = vadd.f32 0.0, %v2542
      %v2544 = vpop.f32.mrb[0].mxu0
      %v2545 = vpop.f32.mrb[0].mxu0
      %v2546 = vadd.f32 0.0, %v2545
      %v2547 = vpop.f32.mrb[0].mxu0
      %2548 = vmatprep.mubr.bf16.mxu0 0
      %2549 = vmatmul.mubr.bf16.gmra.mrb[0].mxu0 %v2380
      %v2550 = vpop.f32.mrb[0].mxu0
      %v2551 = vadd.f32 0.0, %v2550
      %v2552 = vpop.f32.mrb[0].mxu0
      %v2553 = vpop.f32.mrb[0].mxu0
      %v2554 = vadd.f32 0.0, %v2553
      %v2555 = vpop.f32.mrb[0].mxu0
      %2556 = vmatprep.mubr.bf16.mxu0 0
      %2557 = vmatmul.mubr.bf16.gmra.mrb[0].mxu0 %v2383
      %v2558 = vpop.f32.mrb[0].mxu0
      %v2559 = vadd.f32 0.0, %v2558
      %v2560 = vpop.f32.mrb[0].mxu0
      %v2561 = vpop.f32.mrb[0].mxu0
      %v2562 = vadd.f32 0.0, %v2561
      %v2563 = vpop.f32.mrb[0].mxu0
      %2564 = vdwg.mxu0
      %v2565 = vadd.f32 %v2127, %v2423
      %v2566 = vadd.f32 %v2128, %v2426
      %v2567 = vadd.f32 %v2129, %v2431
      %v2568 = vadd.f32 %v2130, %v2434
      %v2569 = vadd.f32 %v2131, %v2439
      %v2570 = vadd.f32 %v2132, %v2442
      %v2571 = vadd.f32 %v2133, %v2447
      %v2572 = vadd.f32 %v2134, %v2450
      %v2573 = vadd.f32 %v2135, %v2455
      %v2574 = vadd.f32 %v2136, %v2458
      %v2575 = vadd.f32 %v2137, %v2463
      %v2576 = vadd.f32 %v2138, %v2466
      %v2577 = vadd.f32 %v2139, %v2471
      %v2578 = vadd.f32 %v2140, %v2474
      %v2579 = vadd.f32 %v2141, %v2479
      %v2580 = vadd.f32 %v2142, %v2482
      %v2581 = vadd.f32 %v2143, %v2487
      %v2582 = vadd.f32 %v2144, %v2490
      %v2583 = vadd.f32 %v2145, %v2495
      %v2584 = vadd.f32 %v2146, %v2498
      %v2585 = vadd.f32 %v2147, %v2503
      %v2586 = vadd.f32 %v2148, %v2506
      %v2587 = vadd.f32 %v2149, %v2511
      %v2588 = vadd.f32 %v2150, %v2514
      %v2589 = vadd.f32 %v2151, %v2519
      %v2590 = vadd.f32 %v2152, %v2522
      %v2591 = vadd.f32 %v2153, %v2527
      %v2592 = vadd.f32 %v2154, %v2530
      %v2593 = vadd.f32 %v2155, %v2535
      %v2594 = vadd.f32 %v2156, %v2538
      %v2595 = vadd.f32 %v2157, %v2543
      %v2596 = vadd.f32 %v2158, %v2546
      %v2597 = vadd.f32 %v2159, %v2551
      %v2598 = vadd.f32 %v2160, %v2554
      %v2599 = vadd.f32 %v2161, %v2559
      %v2600 = vadd.f32 %v2162, %v2562
      %2601 = vst.msk [vmem:[#allocation3] sm:$0xff] %vm487, %v2565
      %2602 = vst.msk [vmem:[#allocation3 + $0x8] sm:$0xff] %vm487, %v2566
      %2603 = vst.msk [vmem:[#allocation3 + $0x10] sm:$0xff] %vm487, %v2567
      %2604 = vst.msk [vmem:[#allocation3 + $0x18] sm:$0xff] %vm487, %v2568
      %2605 = vst.msk [vmem:[#allocation3 + $0x20] sm:$0xff] %vm487, %v2569
      %2606 = vst.msk [vmem:[#allocation3 + $0x28] sm:$0xff] %vm487, %v2570
      %2607 = vst.msk [vmem:[#allocation3 + $0x30] sm:$0xff] %vm487, %v2571
      %2608 = vst.msk [vmem:[#allocation3 + $0x38] sm:$0xff] %vm487, %v2572
      %2609 = vst.msk [vmem:[#allocation3 + $0x40] sm:$0xff] %vm487, %v2573
      %2610 = vst.msk [vmem:[#allocation3 + $0x48] sm:$0xff] %vm487, %v2574
      %2611 = vst.msk [vmem:[#allocation3 + $0x50] sm:$0xff] %vm487, %v2575
      %2612 = vst.msk [vmem:[#allocation3 + $0x58] sm:$0xff] %vm487, %v2576
      %2613 = vst.msk [vmem:[#allocation3 + $0x60] sm:$0xff] %vm487, %v2577
      %2614 = vst.msk [vmem:[#allocation3 + $0x68] sm:$0xff] %vm487, %v2578
      %2615 = vst.msk [vmem:[#allocation3 + $0x70] sm:$0xff] %vm487, %v2579
      %2616 = vst.msk [vmem:[#allocation3 + $0x78] sm:$0xff] %vm487, %v2580
      %2617 = vst.msk [vmem:[#allocation3 + $0x80] sm:$0xff] %vm487, %v2581
      %2618 = vst.msk [vmem:[#allocation3 + $0x88] sm:$0xff] %vm487, %v2582
      %2619 = vst.msk [vmem:[#allocation3 + $0x90] sm:$0xff] %vm487, %v2583
      %2620 = vst.msk [vmem:[#allocation3 + $0x98] sm:$0xff] %vm487, %v2584
      %2621 = vst.msk [vmem:[#allocation3 + $0xa0] sm:$0xff] %vm487, %v2585
      %2622 = vst.msk [vmem:[#allocation3 + $0xa8] sm:$0xff] %vm487, %v2586
      %2623 = vst.msk [vmem:[#allocation3 + $0xb0] sm:$0xff] %vm487, %v2587
      %2624 = vst.msk [vmem:[#allocation3 + $0xb8] sm:$0xff] %vm487, %v2588
      %2625 = vst.msk [vmem:[#allocation3 + $0xc0] sm:$0xff] %vm487, %v2589
      %2626 = vst.msk [vmem:[#allocation3 + $0xc8] sm:$0xff] %vm487, %v2590
      %2627 = vst.msk [vmem:[#allocation3 + $0xd0] sm:$0xff] %vm487, %v2591
      %2628 = vst.msk [vmem:[#allocation3 + $0xd8] sm:$0xff] %vm487, %v2592
      %2629 = vst.msk [vmem:[#allocation3 + $0xe0] sm:$0xff] %vm487, %v2593
      %2630 = vst.msk [vmem:[#allocation3 + $0xe8] sm:$0xff] %vm487, %v2594
      %2631 = vst.msk [vmem:[#allocation3 + $0xf0] sm:$0xff] %vm487, %v2595
      %2632 = vst.msk [vmem:[#allocation3 + $0xf8] sm:$0xff] %vm487, %v2596
      %2633 = vst.msk [vmem:[#allocation3 + $0x100] sm:$0xff] %vm487, %v2597
      %2634 = vst.msk [vmem:[#allocation3 + $0x108] sm:$0xff] %vm487, %v2598
      %2635 = vst.msk [vmem:[#allocation3 + $0x110] sm:$0xff] %vm487, %v2599
      %2636 = vst.msk [vmem:[#allocation3 + $0x118] sm:$0xff] %vm487, %v2600
      %v2637 = vld [vmem:[#allocation3] sm:$0xff]
      %v2638 = vld [vmem:[#allocation3 + $0x8] sm:$0xff]
      %v2639 = vld [vmem:[#allocation3 + $0x10] sm:$0xff]
      %v2640 = vld [vmem:[#allocation3 + $0x18] sm:$0xff]
      %v2641 = vld [vmem:[#allocation3 + $0x20] sm:$0xff]
      %v2642 = vld [vmem:[#allocation3 + $0x28] sm:$0xff]
      %v2643 = vld [vmem:[#allocation3 + $0x30] sm:$0xff]
      %v2644 = vld [vmem:[#allocation3 + $0x38] sm:$0xff]
      %v2645 = vld [vmem:[#allocation3 + $0x40] sm:$0xff]
      %v2646 = vld [vmem:[#allocation3 + $0x48] sm:$0xff]
      %v2647 = vld [vmem:[#allocation3 + $0x50] sm:$0xff]
      %v2648 = vld [vmem:[#allocation3 + $0x58] sm:$0xff]
      %v2649 = vld [vmem:[#allocation3 + $0x60] sm:$0xff]
      %v2650 = vld [vmem:[#allocation3 + $0x68] sm:$0xff]
      %v2651 = vld [vmem:[#allocation3 + $0x70] sm:$0xff]
      %v2652 = vld [vmem:[#allocation3 + $0x78] sm:$0xff]
      %v2653 = vld [vmem:[#allocation3 + $0x80] sm:$0xff]
      %v2654 = vld [vmem:[#allocation3 + $0x88] sm:$0xff]
      %v2655 = vld [vmem:[#allocation3 + $0x90] sm:$0xff]
      %v2656 = vld [vmem:[#allocation3 + $0x98] sm:$0xff]
      %v2657 = vld [vmem:[#allocation3 + $0xa0] sm:$0xff]
      %v2658 = vld [vmem:[#allocation3 + $0xa8] sm:$0xff]
      %v2659 = vld [vmem:[#allocation3 + $0xb0] sm:$0xff]
      %v2660 = vld [vmem:[#allocation3 + $0xb8] sm:$0xff]
      %v2661 = vld [vmem:[#allocation3 + $0xc0] sm:$0xff]
      %v2662 = vld [vmem:[#allocation3 + $0xc8] sm:$0xff]
      %v2663 = vld [vmem:[#allocation3 + $0xd0] sm:$0xff]
      %v2664 = vld [vmem:[#allocation3 + $0xd8] sm:$0xff]
      %v2665 = vld [vmem:[#allocation3 + $0xe0] sm:$0xff]
      %v2666 = vld [vmem:[#allocation3 + $0xe8] sm:$0xff]
      %v2667 = vld [vmem:[#allocation3 + $0xf0] sm:$0xff]
      %v2668 = vld [vmem:[#allocation3 + $0xf8] sm:$0xff]
      %v2669 = vld [vmem:[#allocation3 + $0x100] sm:$0xff]
      %v2670 = vld [vmem:[#allocation3 + $0x108] sm:$0xff]
      %v2671 = vld [vmem:[#allocation3 + $0x110] sm:$0xff]
      %v2672 = vld [vmem:[#allocation3 + $0x118] sm:$0xff]
      %v2673 = vld [vmem:[#allocation2 + $0x8] sm:$0xe]
      %v2674 = vld [vmem:[#allocation2 + $0xc] sm:$0xf]
      %v2675 = vld [vmem:[#allocation2 + $0x10] sm:$0xf]
      %v2676 = vld [vmem:[#allocation2 + $0x14] sm:$0xf]
      %v2677 = vld [vmem:[#allocation2 + $0x18] sm:$0xf]
      %v2678 = vld [vmem:[#allocation2 + $0x1c] sm:$0xf]
      %v2679 = vld [vmem:[#allocation2 + $0x20] sm:$0xf]
      %v2680 = vld [vmem:[#allocation2 + $0x24] sm:$0xf]
      %v2681 = vld [vmem:[#allocation2 + $0x28] sm:$0xf]
      %v2682 = vld [vmem:[#allocation2 + $0x2c] sm:$0xf]
      %v2683 = vld [vmem:[#allocation2 + $0x30] sm:$0xf]
      %v2684 = vld [vmem:[#allocation2 + $0x34] sm:$0xf]
      %v2685 = vld [vmem:[#allocation2 + $0x38] sm:$0xf]
      %v2686 = vld [vmem:[#allocation2 + $0x3c] sm:$0xf]
      %v2687 = vld [vmem:[#allocation2 + $0x40] sm:$0xf]
      %v2688 = vld [vmem:[#allocation2 + $0x44] sm:$0xf]
      %v2689 = vld [vmem:[#allocation2 + $0x48] sm:$0xf]
      %v2690 = vld [vmem:[#allocation2 + $0x4c] sm:$0xf]
      %v2691 = vld [vmem:[#allocation2 + $0x50] sm:$0xf]
      %v2692 = vld [vmem:[#allocation2 + $0x54] sm:$0xf]
      %v2693 = vld [vmem:[#allocation2 + $0x58] sm:$0xf]
      %v2694 = vld [vmem:[#allocation2 + $0x5c] sm:$0xf]
      %v2695 = vld [vmem:[#allocation2 + $0x60] sm:$0xf]
      %v2696 = vld [vmem:[#allocation2 + $0x64] sm:$0xf]
      %v2697 = vld [vmem:[#allocation2 + $0x68] sm:$0xf]
      %v2698 = vld [vmem:[#allocation2 + $0x6c] sm:$0xf]
      %v2699 = vld [vmem:[#allocation2 + $0x70] sm:$0xf]
      %v2700 = vld [vmem:[#allocation2 + $0x74] sm:$0xf]
      %v2701 = vld [vmem:[#allocation2 + $0x78] sm:$0xf]
      %v2702 = vld [vmem:[#allocation2 + $0x7c] sm:$0xf]
      %v2703 = vld [vmem:[#allocation2 + $0x80] sm:$0xf]
      %v2704 = vld [vmem:[#allocation2 + $0x84] sm:$0xf]
      %v2705 = vld [vmem:[#allocation2 + $0x88] sm:$0xf]
      %v2706 = vld [vmem:[#allocation2 + $0x8c] sm:$0xf]
      %v2707 = vld [vmem:[#allocation2 + $0x90] sm:$0xf]
      %v2708 = vld [vmem:[#allocation2 + $0x94] sm:$0xf]
      %v2709 = vld [vmem:[#allocation2 + $0x98] sm:$0x3]
      %v2710 = vld [vmem:[%s1 + $0x10] sm:$0xf]
      %v2748 = vunpack.c.l.b16 %v2673
      %v2749 = vunpack.c.l.b16 %v2674
      %v2750 = vunpack.c.l.b16 %v2675
      %v2751 = vunpack.c.l.b16 %v2676
      %v2752 = vunpack.c.l.b16 %v2677
      %v2753 = vunpack.c.l.b16 %v2678
      %v2754 = vunpack.c.l.b16 %v2679
      %v2755 = vunpack.c.l.b16 %v2680
      %v2756 = vunpack.c.l.b16 %v2681
      %v2757 = vunpack.c.l.b16 %v2682
      %v2758 = vunpack.c.l.b16 %v2683
      %v2759 = vunpack.c.l.b16 %v2684
      %v2760 = vunpack.c.l.b16 %v2685
      %v2761 = vunpack.c.l.b16 %v2686
      %v2762 = vunpack.c.l.b16 %v2687
      %v2763 = vunpack.c.l.b16 %v2688
      %v2764 = vunpack.c.l.b16 %v2689
      %v2765 = vunpack.c.l.b16 %v2690
      %v2766 = vunpack.c.l.b16 %v2691
      %v2767 = vunpack.c.l.b16 %v2692
      %v2768 = vunpack.c.l.b16 %v2693
      %v2769 = vunpack.c.l.b16 %v2694
      %v2770 = vunpack.c.l.b16 %v2695
      %v2771 = vunpack.c.l.b16 %v2696
      %v2772 = vunpack.c.l.b16 %v2697
      %v2773 = vunpack.c.l.b16 %v2698
      %v2774 = vunpack.c.l.b16 %v2699
      %v2775 = vunpack.c.l.b16 %v2700
      %v2776 = vunpack.c.l.b16 %v2701
      %v2777 = vunpack.c.l.b16 %v2702
      %v2778 = vunpack.c.l.b16 %v2703
      %v2779 = vunpack.c.l.b16 %v2704
      %v2780 = vunpack.c.l.b16 %v2705
      %v2781 = vunpack.c.l.b16 %v2706
      %v2782 = vunpack.c.l.b16 %v2707
      %v2783 = vunpack.c.l.b16 %v2708
      %v2784 = vunpack.c.l.b16 %v2709
      %v2785 = vpack.c.b16 %v2749, %v2748
      %v2786 = vpack.c.b16 %v2751, %v2750
      %v2787 = vpack.c.b16 %v2753, %v2752
      %v2788 = vpack.c.b16 %v2755, %v2754
      %v2789 = vpack.c.b16 %v2757, %v2756
      %v2790 = vpack.c.b16 %v2759, %v2758
      %v2791 = vpack.c.b16 %v2761, %v2760
      %v2792 = vpack.c.b16 %v2763, %v2762
      %v2793 = vpack.c.b16 %v2765, %v2764
      %v2794 = vpack.c.b16 %v2767, %v2766
      %v2795 = vpack.c.b16 %v2769, %v2768
      %v2796 = vpack.c.b16 %v2771, %v2770
      %v2797 = vpack.c.b16 %v2773, %v2772
      %v2798 = vpack.c.b16 %v2775, %v2774
      %v2799 = vpack.c.b16 %v2777, %v2776
      %v2800 = vpack.c.b16 %v2779, %v2778
      %v2801 = vpack.c.b16 %v2781, %v2780
      %v2802 = vpack.c.b16 %v2783, %v2782
      %v2803 = vpack.c.b16 %v2784, %v2784
      %vm2804 = vsmask.f32 6400
      %v2806 = vshrl.u32 %v2785, 16
      %v2808 = vrot.slane %v2806, 1
      %v2809 = vshll.u32 %v2785, 16
      %v2811 = vrot.slane %v2809, 2
      %v2812 = vor.u32 %v2808, %v2811
      %v2814 = vshrl.u32 %v2786, 16
      %v2816 = vrot.slane %v2814, 1
      %v2817 = vshll.u32 %v2786, 16
      %v2819 = vrot.slane %v2817, 2
      %v2820 = vor.u32 %v2816, %v2819
      %v2821 = vsel %vm2804, %v2812, %v2820
      %v2823 = vshrl.u32 %v2787, 16
      %v2825 = vrot.slane %v2823, 1
      %v2826 = vshll.u32 %v2787, 16
      %v2828 = vrot.slane %v2826, 2
      %v2829 = vor.u32 %v2825, %v2828
      %v2830 = vsel %vm2804, %v2820, %v2829
      %v2832 = vshrl.u32 %v2788, 16
      %v2834 = vrot.slane %v2832, 1
      %v2835 = vshll.u32 %v2788, 16
      %v2837 = vrot.slane %v2835, 2
      %v2838 = vor.u32 %v2834, %v2837
      %v2839 = vsel %vm2804, %v2829, %v2838
      %v2841 = vshrl.u32 %v2789, 16
      %v2843 = vrot.slane %v2841, 1
      %v2844 = vshll.u32 %v2789, 16
      %v2846 = vrot.slane %v2844, 2
      %v2847 = vor.u32 %v2843, %v2846
      %v2848 = vsel %vm2804, %v2838, %v2847
      %v2850 = vshrl.u32 %v2790, 16
      %v2852 = vrot.slane %v2850, 1
      %v2853 = vshll.u32 %v2790, 16
      %v2855 = vrot.slane %v2853, 2
      %v2856 = vor.u32 %v2852, %v2855
      %v2857 = vsel %vm2804, %v2847, %v2856
      %v2859 = vshrl.u32 %v2791, 16
      %v2861 = vrot.slane %v2859, 1
      %v2862 = vshll.u32 %v2791, 16
      %v2864 = vrot.slane %v2862, 2
      %v2865 = vor.u32 %v2861, %v2864
      %v2866 = vsel %vm2804, %v2856, %v2865
      %v2868 = vshrl.u32 %v2792, 16
      %v2870 = vrot.slane %v2868, 1
      %v2871 = vshll.u32 %v2792, 16
      %v2873 = vrot.slane %v2871, 2
      %v2874 = vor.u32 %v2870, %v2873
      %v2875 = vsel %vm2804, %v2865, %v2874
      %v2877 = vshrl.u32 %v2793, 16
      %v2879 = vrot.slane %v2877, 1
      %v2880 = vshll.u32 %v2793, 16
      %v2882 = vrot.slane %v2880, 2
      %v2883 = vor.u32 %v2879, %v2882
      %v2884 = vsel %vm2804, %v2874, %v2883
      %v2886 = vshrl.u32 %v2794, 16
      %v2888 = vrot.slane %v2886, 1
      %v2889 = vshll.u32 %v2794, 16
      %v2891 = vrot.slane %v2889, 2
      %v2892 = vor.u32 %v2888, %v2891
      %v2893 = vsel %vm2804, %v2883, %v2892
      %v2895 = vshrl.u32 %v2795, 16
      %v2897 = vrot.slane %v2895, 1
      %v2898 = vshll.u32 %v2795, 16
      %v2900 = vrot.slane %v2898, 2
      %v2901 = vor.u32 %v2897, %v2900
      %v2902 = vsel %vm2804, %v2892, %v2901
      %v2904 = vshrl.u32 %v2796, 16
      %v2906 = vrot.slane %v2904, 1
      %v2907 = vshll.u32 %v2796, 16
      %v2909 = vrot.slane %v2907, 2
      %v2910 = vor.u32 %v2906, %v2909
      %v2911 = vsel %vm2804, %v2901, %v2910
      %v2913 = vshrl.u32 %v2797, 16
      %v2915 = vrot.slane %v2913, 1
      %v2916 = vshll.u32 %v2797, 16
      %v2918 = vrot.slane %v2916, 2
      %v2919 = vor.u32 %v2915, %v2918
      %v2920 = vsel %vm2804, %v2910, %v2919
      %v2922 = vshrl.u32 %v2798, 16
      %v2924 = vrot.slane %v2922, 1
      %v2925 = vshll.u32 %v2798, 16
      %v2927 = vrot.slane %v2925, 2
      %v2928 = vor.u32 %v2924, %v2927
      %v2929 = vsel %vm2804, %v2919, %v2928
      %v2931 = vshrl.u32 %v2799, 16
      %v2933 = vrot.slane %v2931, 1
      %v2934 = vshll.u32 %v2799, 16
      %v2936 = vrot.slane %v2934, 2
      %v2937 = vor.u32 %v2933, %v2936
      %v2938 = vsel %vm2804, %v2928, %v2937
      %v2940 = vshrl.u32 %v2800, 16
      %v2942 = vrot.slane %v2940, 1
      %v2943 = vshll.u32 %v2800, 16
      %v2945 = vrot.slane %v2943, 2
      %v2946 = vor.u32 %v2942, %v2945
      %v2947 = vsel %vm2804, %v2937, %v2946
      %v2949 = vshrl.u32 %v2801, 16
      %v2951 = vrot.slane %v2949, 1
      %v2952 = vshll.u32 %v2801, 16
      %v2954 = vrot.slane %v2952, 2
      %v2955 = vor.u32 %v2951, %v2954
      %v2956 = vsel %vm2804, %v2946, %v2955
      %v2958 = vshrl.u32 %v2802, 16
      %v2960 = vrot.slane %v2958, 1
      %v2961 = vshll.u32 %v2802, 16
      %v2963 = vrot.slane %v2961, 2
      %v2964 = vor.u32 %v2960, %v2963
      %v2965 = vsel %vm2804, %v2955, %v2964
      %v2967 = vshrl.u32 %v2803, 16
      %v2969 = vrot.slane %v2967, 1
      %v2970 = vshll.u32 %v2803, 16
      %v2972 = vrot.slane %v2970, 2
      %v2973 = vor.u32 %v2969, %v2972
      %v2974 = vsel %vm2804, %v2964, %v2973
      %v2976 = vsel %vm487, %v2821, 0
      %v2979 = vsel %vm487, %v2830, 0
      %v2982 = vsel %vm487, %v2839, 0
      %v2985 = vsel %vm487, %v2848, 0
      %v2988 = vsel %vm487, %v2857, 0
      %v2991 = vsel %vm487, %v2866, 0
      %v2994 = vsel %vm487, %v2875, 0
      %v2997 = vsel %vm487, %v2884, 0
      %v3000 = vsel %vm487, %v2893, 0
      %v3003 = vsel %vm487, %v2902, 0
      %v3006 = vsel %vm487, %v2911, 0
      %v3009 = vsel %vm487, %v2920, 0
      %v3012 = vsel %vm487, %v2929, 0
      %v3015 = vsel %vm487, %v2938, 0
      %v3018 = vsel %vm487, %v2947, 0
      %v3021 = vsel %vm487, %v2956, 0
      %v3024 = vsel %vm487, %v2965, 0
      %v3027 = vsel %vm487, %v2974, 0
      %v3030 = vsel %vm741, %v2710, 0
      %3032 = vmatprep.subr.bf16.mxu0 0
      %3033 = vmatpush1.bf16.msra.mxu0 %v3030
      %3034 = vmatprep.subr.bf16.mxu0 0
      %3035 = vmatpush1.bf16.msra.mxu0 0
      %3036 = vmatprep.subr.bf16.mxu0 0
      %3037 = vmatpush1.bf16.msra.mxu0 0
      %3038 = vmatprep.subr.bf16.mxu0 0
      %3039 = vmatpush1.bf16.msra.mxu0 0
      %3040 = vmatprep.subr.bf16.mxu0 0
      %3041 = vmatpush1.bf16.msra.mxu0 0
      %3042 = vmatprep.subr.bf16.mxu0 0
      %3043 = vmatpush1.bf16.msra.mxu0 0
      %3044 = vmatprep.subr.bf16.mxu0 0
      %3045 = vmatpush1.bf16.msra.mxu0 0
      %3046 = vmatprep.subr.bf16.mxu0 0
      %3047 = vmatpush1.bf16.msra.mxu0 0
      %3048 = vmatprep.subr.bf16.mxu0 0
      %3049 = vmatpush1.bf16.msra.mxu0 0
      %3050 = vmatprep.subr.bf16.mxu0 0
      %3051 = vmatpush1.bf16.msra.mxu0 0
      %3052 = vmatprep.subr.bf16.mxu0 0
      %3053 = vmatpush1.bf16.msra.mxu0 0
      %3054 = vmatprep.subr.bf16.mxu0 0
      %3055 = vmatpush1.bf16.msra.mxu0 0
      %3056 = vmatprep.subr.bf16.mxu0 0
      %3057 = vmatpush1.bf16.msra.mxu0 0
      %3058 = vmatprep.subr.bf16.mxu0 0
      %3059 = vmatpush1.bf16.msra.mxu0 0
      %3060 = vmatprep.subr.bf16.mxu0 0
      %3061 = vmatpush1.bf16.msra.mxu0 0
      %3062 = vmatprep.subr.bf16.mxu0 0
      %3063 = vmatpush1.bf16.msra.mxu0 0
      %3064 = vmatprep.mubr.bf16.mxu0 0
      %3065 = vmatmul.mubr.bf16.gmra.mrb[0].mxu0 %v2976
      %v3066 = vpop.f32.mrb[0].mxu0
      %v3067 = vadd.f32 0.0, %v3066
      %v3068 = vpop.f32.mrb[0].mxu0
      %v3069 = vpop.f32.mrb[0].mxu0
      %v3070 = vadd.f32 0.0, %v3069
      %v3071 = vpop.f32.mrb[0].mxu0
      %3072 = vmatprep.mubr.bf16.mxu0 0
      %3073 = vmatmul.mubr.bf16.gmra.mrb[0].mxu0 %v2979
      %v3074 = vpop.f32.mrb[0].mxu0
      %v3075 = vadd.f32 0.0, %v3074
      %v3076 = vpop.f32.mrb[0].mxu0
      %v3077 = vpop.f32.mrb[0].mxu0
      %v3078 = vadd.f32 0.0, %v3077
      %v3079 = vpop.f32.mrb[0].mxu0
      %3080 = vmatprep.mubr.bf16.mxu0 0
      %3081 = vmatmul.mubr.bf16.gmra.mrb[0].mxu0 %v2982
      %v3082 = vpop.f32.mrb[0].mxu0
      %v3083 = vadd.f32 0.0, %v3082
      %v3084 = vpop.f32.mrb[0].mxu0
      %v3085 = vpop.f32.mrb[0].mxu0
      %v3086 = vadd.f32 0.0, %v3085
      %v3087 = vpop.f32.mrb[0].mxu0
      %3088 = vmatprep.mubr.bf16.mxu0 0
      %3089 = vmatmul.mubr.bf16.gmra.mrb[0].mxu0 %v2985
      %v3090 = vpop.f32.mrb[0].mxu0
      %v3091 = vadd.f32 0.0, %v3090
      %v3092 = vpop.f32.mrb[0].mxu0
      %v3093 = vpop.f32.mrb[0].mxu0
      %v3094 = vadd.f32 0.0, %v3093
      %v3095 = vpop.f32.mrb[0].mxu0
      %3096 = vmatprep.mubr.bf16.mxu0 0
      %3097 = vmatmul.mubr.bf16.gmra.mrb[0].mxu0 %v2988
      %v3098 = vpop.f32.mrb[0].mxu0
      %v3099 = vadd.f32 0.0, %v3098
      %v3100 = vpop.f32.mrb[0].mxu0
      %v3101 = vpop.f32.mrb[0].mxu0
      %v3102 = vadd.f32 0.0, %v3101
      %v3103 = vpop.f32.mrb[0].mxu0
      %3104 = vmatprep.mubr.bf16.mxu0 0
      %3105 = vmatmul.mubr.bf16.gmra.mrb[0].mxu0 %v2991
      %v3106 = vpop.f32.mrb[0].mxu0
      %v3107 = vadd.f32 0.0, %v3106
      %v3108 = vpop.f32.mrb[0].mxu0
      %v3109 = vpop.f32.mrb[0].mxu0
      %v3110 = vadd.f32 0.0, %v3109
      %v3111 = vpop.f32.mrb[0].mxu0
      %3112 = vmatprep.mubr.bf16.mxu0 0
      %3113 = vmatmul.mubr.bf16.gmra.mrb[0].mxu0 %v2994
      %v3114 = vpop.f32.mrb[0].mxu0
      %v3115 = vadd.f32 0.0, %v3114
      %v3116 = vpop.f32.mrb[0].mxu0
      %v3117 = vpop.f32.mrb[0].mxu0
      %v3118 = vadd.f32 0.0, %v3117
      %v3119 = vpop.f32.mrb[0].mxu0
      %3120 = vmatprep.mubr.bf16.mxu0 0
      %3121 = vmatmul.mubr.bf16.gmra.mrb[0].mxu0 %v2997
      %v3122 = vpop.f32.mrb[0].mxu0
      %v3123 = vadd.f32 0.0, %v3122
      %v3124 = vpop.f32.mrb[0].mxu0
      %v3125 = vpop.f32.mrb[0].mxu0
      %v3126 = vadd.f32 0.0, %v3125
      %v3127 = vpop.f32.mrb[0].mxu0
      %3128 = vmatprep.mubr.bf16.mxu0 0
      %3129 = vmatmul.mubr.bf16.gmra.mrb[0].mxu0 %v3000
      %v3130 = vpop.f32.mrb[0].mxu0
      %v3131 = vadd.f32 0.0, %v3130
      %v3132 = vpop.f32.mrb[0].mxu0
      %v3133 = vpop.f32.mrb[0].mxu0
      %v3134 = vadd.f32 0.0, %v3133
      %v3135 = vpop.f32.mrb[0].mxu0
      %3136 = vmatprep.mubr.bf16.mxu0 0
      %3137 = vmatmul.mubr.bf16.gmra.mrb[0].mxu0 %v3003
      %v3138 = vpop.f32.mrb[0].mxu0
      %v3139 = vadd.f32 0.0, %v3138
      %v3140 = vpop.f32.mrb[0].mxu0
      %v3141 = vpop.f32.mrb[0].mxu0
      %v3142 = vadd.f32 0.0, %v3141
      %v3143 = vpop.f32.mrb[0].mxu0
      %3144 = vmatprep.mubr.bf16.mxu0 0
      %3145 = vmatmul.mubr.bf16.gmra.mrb[0].mxu0 %v3006
      %v3146 = vpop.f32.mrb[0].mxu0
      %v3147 = vadd.f32 0.0, %v3146
      %v3148 = vpop.f32.mrb[0].mxu0
      %v3149 = vpop.f32.mrb[0].mxu0
      %v3150 = vadd.f32 0.0, %v3149
      %v3151 = vpop.f32.mrb[0].mxu0
      %3152 = vmatprep.mubr.bf16.mxu0 0
      %3153 = vmatmul.mubr.bf16.gmra.mrb[0].mxu0 %v3009
      %v3154 = vpop.f32.mrb[0].mxu0
      %v3155 = vadd.f32 0.0, %v3154
      %v3156 = vpop.f32.mrb[0].mxu0
      %v3157 = vpop.f32.mrb[0].mxu0
      %v3158 = vadd.f32 0.0, %v3157
      %v3159 = vpop.f32.mrb[0].mxu0
      %3160 = vmatprep.mubr.bf16.mxu0 0
      %3161 = vmatmul.mubr.bf16.gmra.mrb[0].mxu0 %v3012
      %v3162 = vpop.f32.mrb[0].mxu0
      %v3163 = vadd.f32 0.0, %v3162
      %v3164 = vpop.f32.mrb[0].mxu0
      %v3165 = vpop.f32.mrb[0].mxu0
      %v3166 = vadd.f32 0.0, %v3165
      %v3167 = vpop.f32.mrb[0].mxu0
      %3168 = vmatprep.mubr.bf16.mxu0 0
      %3169 = vmatmul.mubr.bf16.gmra.mrb[0].mxu0 %v3015
      %v3170 = vpop.f32.mrb[0].mxu0
      %v3171 = vadd.f32 0.0, %v3170
      %v3172 = vpop.f32.mrb[0].mxu0
      %v3173 = vpop.f32.mrb[0].mxu0
      %v3174 = vadd.f32 0.0, %v3173
      %v3175 = vpop.f32.mrb[0].mxu0
      %3176 = vmatprep.mubr.bf16.mxu0 0
      %3177 = vmatmul.mubr.bf16.gmra.mrb[0].mxu0 %v3018
      %v3178 = vpop.f32.mrb[0].mxu0
      %v3179 = vadd.f32 0.0, %v3178
      %v3180 = vpop.f32.mrb[0].mxu0
      %v3181 = vpop.f32.mrb[0].mxu0
      %v3182 = vadd.f32 0.0, %v3181
      %v3183 = vpop.f32.mrb[0].mxu0
      %3184 = vmatprep.mubr.bf16.mxu0 0
      %3185 = vmatmul.mubr.bf16.gmra.mrb[0].mxu0 %v3021
      %v3186 = vpop.f32.mrb[0].mxu0
      %v3187 = vadd.f32 0.0, %v3186
      %v3188 = vpop.f32.mrb[0].mxu0
      %v3189 = vpop.f32.mrb[0].mxu0
      %v3190 = vadd.f32 0.0, %v3189
      %v3191 = vpop.f32.mrb[0].mxu0
      %3192 = vmatprep.mubr.bf16.mxu0 0
      %3193 = vmatmul.mubr.bf16.gmra.mrb[0].mxu0 %v3024
      %v3194 = vpop.f32.mrb[0].mxu0
      %v3195 = vadd.f32 0.0, %v3194
      %v3196 = vpop.f32.mrb[0].mxu0
      %v3197 = vpop.f32.mrb[0].mxu0
      %v3198 = vadd.f32 0.0, %v3197
      %v3199 = vpop.f32.mrb[0].mxu0
      %3200 = vmatprep.mubr.bf16.mxu0 0
      %3201 = vmatmul.mubr.bf16.gmra.mrb[0].mxu0 %v3027
      %v3202 = vpop.f32.mrb[0].mxu0
      %v3203 = vadd.f32 0.0, %v3202
      %v3204 = vpop.f32.mrb[0].mxu0
      %v3205 = vpop.f32.mrb[0].mxu0
      %v3206 = vadd.f32 0.0, %v3205
      %v3207 = vpop.f32.mrb[0].mxu0
      %3208 = vdwg.mxu0
      %v3209 = vadd.f32 %v2637, %v3067
      %v3210 = vadd.f32 %v2638, %v3070
      %v3211 = vadd.f32 %v2639, %v3075
      %v3212 = vadd.f32 %v2640, %v3078
      %v3213 = vadd.f32 %v2641, %v3083
      %v3214 = vadd.f32 %v2642, %v3086
      %v3215 = vadd.f32 %v2643, %v3091
      %v3216 = vadd.f32 %v2644, %v3094
      %v3217 = vadd.f32 %v2645, %v3099
      %v3218 = vadd.f32 %v2646, %v3102
      %v3219 = vadd.f32 %v2647, %v3107
      %v3220 = vadd.f32 %v2648, %v3110
      %v3221 = vadd.f32 %v2649, %v3115
      %v3222 = vadd.f32 %v2650, %v3118
      %v3223 = vadd.f32 %v2651, %v3123
      %v3224 = vadd.f32 %v2652, %v3126
      %v3225 = vadd.f32 %v2653, %v3131
      %v3226 = vadd.f32 %v2654, %v3134
      %v3227 = vadd.f32 %v2655, %v3139
      %v3228 = vadd.f32 %v2656, %v3142
      %v3229 = vadd.f32 %v2657, %v3147
      %v3230 = vadd.f32 %v2658, %v3150
      %v3231 = vadd.f32 %v2659, %v3155
      %v3232 = vadd.f32 %v2660, %v3158
      %v3233 = vadd.f32 %v2661, %v3163
      %v3234 = vadd.f32 %v2662, %v3166
      %v3235 = vadd.f32 %v2663, %v3171
      %v3236 = vadd.f32 %v2664, %v3174
      %v3237 = vadd.f32 %v2665, %v3179
      %v3238 = vadd.f32 %v2666, %v3182
      %v3239 = vadd.f32 %v2667, %v3187
      %v3240 = vadd.f32 %v2668, %v3190
      %v3241 = vadd.f32 %v2669, %v3195
      %v3242 = vadd.f32 %v2670, %v3198
      %v3243 = vadd.f32 %v2671, %v3203
      %v3244 = vadd.f32 %v2672, %v3206
      %3245 = vst.msk [vmem:[#allocation3] sm:$0xff] %vm487, %v3209
      %3246 = vst.msk [vmem:[#allocation3 + $0x8] sm:$0xff] %vm487, %v3210
      %3247 = vst.msk [vmem:[#allocation3 + $0x10] sm:$0xff] %vm487, %v3211
      %3248 = vst.msk [vmem:[#allocation3 + $0x18] sm:$0xff] %vm487, %v3212
      %3249 = vst.msk [vmem:[#allocation3 + $0x20] sm:$0xff] %vm487, %v3213
      %3250 = vst.msk [vmem:[#allocation3 + $0x28] sm:$0xff] %vm487, %v3214
      %3251 = vst.msk [vmem:[#allocation3 + $0x30] sm:$0xff] %vm487, %v3215
      %3252 = vst.msk [vmem:[#allocation3 + $0x38] sm:$0xff] %vm487, %v3216
      %3253 = vst.msk [vmem:[#allocation3 + $0x40] sm:$0xff] %vm487, %v3217
      %3254 = vst.msk [vmem:[#allocation3 + $0x48] sm:$0xff] %vm487, %v3218
      %3255 = vst.msk [vmem:[#allocation3 + $0x50] sm:$0xff] %vm487, %v3219
      %3256 = vst.msk [vmem:[#allocation3 + $0x58] sm:$0xff] %vm487, %v3220
      %3257 = vst.msk [vmem:[#allocation3 + $0x60] sm:$0xff] %vm487, %v3221
      %3258 = vst.msk [vmem:[#allocation3 + $0x68] sm:$0xff] %vm487, %v3222
      %3259 = vst.msk [vmem:[#allocation3 + $0x70] sm:$0xff] %vm487, %v3223
      %3260 = vst.msk [vmem:[#allocation3 + $0x78] sm:$0xff] %vm487, %v3224
      %3261 = vst.msk [vmem:[#allocation3 + $0x80] sm:$0xff] %vm487, %v3225
      %3262 = vst.msk [vmem:[#allocation3 + $0x88] sm:$0xff] %vm487, %v3226
      %3263 = vst.msk [vmem:[#allocation3 + $0x90] sm:$0xff] %vm487, %v3227
      %3264 = vst.msk [vmem:[#allocation3 + $0x98] sm:$0xff] %vm487, %v3228
      %3265 = vst.msk [vmem:[#allocation3 + $0xa0] sm:$0xff] %vm487, %v3229
      %3266 = vst.msk [vmem:[#allocation3 + $0xa8] sm:$0xff] %vm487, %v3230
      %3267 = vst.msk [vmem:[#allocation3 + $0xb0] sm:$0xff] %vm487, %v3231
      %3268 = vst.msk [vmem:[#allocation3 + $0xb8] sm:$0xff] %vm487, %v3232
      %3269 = vst.msk [vmem:[#allocation3 + $0xc0] sm:$0xff] %vm487, %v3233
      %3270 = vst.msk [vmem:[#allocation3 + $0xc8] sm:$0xff] %vm487, %v3234
      %3271 = vst.msk [vmem:[#allocation3 + $0xd0] sm:$0xff] %vm487, %v3235
      %3272 = vst.msk [vmem:[#allocation3 + $0xd8] sm:$0xff] %vm487, %v3236
      %3273 = vst.msk [vmem:[#allocation3 + $0xe0] sm:$0xff] %vm487, %v3237
      %3274 = vst.msk [vmem:[#allocation3 + $0xe8] sm:$0xff] %vm487, %v3238
      %3275 = vst.msk [vmem:[#allocation3 + $0xf0] sm:$0xff] %vm487, %v3239
      %3276 = vst.msk [vmem:[#allocation3 + $0xf8] sm:$0xff] %vm487, %v3240
      %3277 = vst.msk [vmem:[#allocation3 + $0x100] sm:$0xff] %vm487, %v3241
      %3278 = vst.msk [vmem:[#allocation3 + $0x108] sm:$0xff] %vm487, %v3242
      %3279 = vst.msk [vmem:[#allocation3 + $0x110] sm:$0xff] %vm487, %v3243
      %3280 = vst.msk [vmem:[#allocation3 + $0x118] sm:$0xff] %vm487, %v3244
      %v3281 = vld [vmem:[#allocation3] sm:$0xff]
      %v3282 = vld [vmem:[#allocation3 + $0x8] sm:$0xff]
      %v3283 = vld [vmem:[#allocation3 + $0x10] sm:$0xff]
      %v3284 = vld [vmem:[#allocation3 + $0x18] sm:$0xff]
      %v3285 = vld [vmem:[#allocation3 + $0x20] sm:$0xff]
      %v3286 = vld [vmem:[#allocation3 + $0x28] sm:$0xff]
      %v3287 = vld [vmem:[#allocation3 + $0x30] sm:$0xff]
      %v3288 = vld [vmem:[#allocation3 + $0x38] sm:$0xff]
      %v3289 = vld [vmem:[#allocation3 + $0x40] sm:$0xff]
      %v3290 = vld [vmem:[#allocation3 + $0x48] sm:$0xff]
      %v3291 = vld [vmem:[#allocation3 + $0x50] sm:$0xff]
      %v3292 = vld [vmem:[#allocation3 + $0x58] sm:$0xff]
      %v3293 = vld [vmem:[#allocation3 + $0x60] sm:$0xff]
      %v3294 = vld [vmem:[#allocation3 + $0x68] sm:$0xff]
      %v3295 = vld [vmem:[#allocation3 + $0x70] sm:$0xff]
      %v3296 = vld [vmem:[#allocation3 + $0x78] sm:$0xff]
      %v3297 = vld [vmem:[#allocation3 + $0x80] sm:$0xff]
      %v3298 = vld [vmem:[#allocation3 + $0x88] sm:$0xff]
      %v3299 = vld [vmem:[#allocation3 + $0x90] sm:$0xff]
      %v3300 = vld [vmem:[#allocation3 + $0x98] sm:$0xff]
      %v3301 = vld [vmem:[#allocation3 + $0xa0] sm:$0xff]
      %v3302 = vld [vmem:[#allocation3 + $0xa8] sm:$0xff]
      %v3303 = vld [vmem:[#allocation3 + $0xb0] sm:$0xff]
      %v3304 = vld [vmem:[#allocation3 + $0xb8] sm:$0xff]
      %v3305 = vld [vmem:[#allocation3 + $0xc0] sm:$0xff]
      %v3306 = vld [vmem:[#allocation3 + $0xc8] sm:$0xff]
      %v3307 = vld [vmem:[#allocation3 + $0xd0] sm:$0xff]
      %v3308 = vld [vmem:[#allocation3 + $0xd8] sm:$0xff]
      %v3309 = vld [vmem:[#allocation3 + $0xe0] sm:$0xff]
      %v3310 = vld [vmem:[#allocation3 + $0xe8] sm:$0xff]
      %v3311 = vld [vmem:[#allocation3 + $0xf0] sm:$0xff]
      %v3312 = vld [vmem:[#allocation3 + $0xf8] sm:$0xff]
      %v3313 = vld [vmem:[#allocation3 + $0x100] sm:$0xff]
      %v3314 = vld [vmem:[#allocation3 + $0x108] sm:$0xff]
      %v3315 = vld [vmem:[#allocation3 + $0x110] sm:$0xff]
      %v3316 = vld [vmem:[#allocation3 + $0x118] sm:$0xff]
      %v3317 = vld [vmem:[#allocation2 + $0x8] sm:$0xc]
      %v3318 = vld [vmem:[#allocation2 + $0xc] sm:$0xf]
      %v3319 = vld [vmem:[#allocation2 + $0x10] sm:$0xf]
      %v3320 = vld [vmem:[#allocation2 + $0x14] sm:$0xf]
      %v3321 = vld [vmem:[#allocation2 + $0x18] sm:$0xf]
      %v3322 = vld [vmem:[#allocation2 + $0x1c] sm:$0xf]
      %v3323 = vld [vmem:[#allocation2 + $0x20] sm:$0xf]
      %v3324 = vld [vmem:[#allocation2 + $0x24] sm:$0xf]
      %v3325 = vld [vmem:[#allocation2 + $0x28] sm:$0xf]
      %v3326 = vld [vmem:[#allocation2 + $0x2c] sm:$0xf]
      %v3327 = vld [vmem:[#allocation2 + $0x30] sm:$0xf]
      %v3328 = vld [vmem:[#allocation2 + $0x34] sm:$0xf]
      %v3329 = vld [vmem:[#allocation2 + $0x38] sm:$0xf]
      %v3330 = vld [vmem:[#allocation2 + $0x3c] sm:$0xf]
      %v3331 = vld [vmem:[#allocation2 + $0x40] sm:$0xf]
      %v3332 = vld [vmem:[#allocation2 + $0x44] sm:$0xf]
      %v3333 = vld [vmem:[#allocation2 + $0x48] sm:$0xf]
      %v3334 = vld [vmem:[#allocation2 + $0x4c] sm:$0xf]
      %v3335 = vld [vmem:[#allocation2 + $0x50] sm:$0xf]
      %v3336 = vld [vmem:[#allocation2 + $0x54] sm:$0xf]
      %v3337 = vld [vmem:[#allocation2 + $0x58] sm:$0xf]
      %v3338 = vld [vmem:[#allocation2 + $0x5c] sm:$0xf]
      %v3339 = vld [vmem:[#allocation2 + $0x60] sm:$0xf]
      %v3340 = vld [vmem:[#allocation2 + $0x64] sm:$0xf]
      %v3341 = vld [vmem:[#allocation2 + $0x68] sm:$0xf]
      %v3342 = vld [vmem:[#allocation2 + $0x6c] sm:$0xf]
      %v3343 = vld [vmem:[#allocation2 + $0x70] sm:$0xf]
      %v3344 = vld [vmem:[#allocation2 + $0x74] sm:$0xf]
      %v3345 = vld [vmem:[#allocation2 + $0x78] sm:$0xf]
      %v3346 = vld [vmem:[#allocation2 + $0x7c] sm:$0xf]
      %v3347 = vld [vmem:[#allocation2 + $0x80] sm:$0xf]
      %v3348 = vld [vmem:[#allocation2 + $0x84] sm:$0xf]
      %v3349 = vld [vmem:[#allocation2 + $0x88] sm:$0xf]
      %v3350 = vld [vmem:[#allocation2 + $0x8c] sm:$0xf]
      %v3351 = vld [vmem:[#allocation2 + $0x90] sm:$0xf]
      %v3352 = vld [vmem:[#allocation2 + $0x94] sm:$0xf]
      %v3353 = vld [vmem:[#allocation2 + $0x98] sm:$0x3]
      %v3354 = vld [vmem:[%s1 + $0x14] sm:$0xf]
      %v3392 = vunpack.c.l.b16 %v3317
      %v3393 = vunpack.c.l.b16 %v3318
      %v3394 = vunpack.c.l.b16 %v3319
      %v3395 = vunpack.c.l.b16 %v3320
      %v3396 = vunpack.c.l.b16 %v3321
      %v3397 = vunpack.c.l.b16 %v3322
      %v3398 = vunpack.c.l.b16 %v3323
      %v3399 = vunpack.c.l.b16 %v3324
      %v3400 = vunpack.c.l.b16 %v3325
      %v3401 = vunpack.c.l.b16 %v3326
      %v3402 = vunpack.c.l.b16 %v3327
      %v3403 = vunpack.c.l.b16 %v3328
      %v3404 = vunpack.c.l.b16 %v3329
      %v3405 = vunpack.c.l.b16 %v3330
      %v3406 = vunpack.c.l.b16 %v3331
      %v3407 = vunpack.c.l.b16 %v3332
      %v3408 = vunpack.c.l.b16 %v3333
      %v3409 = vunpack.c.l.b16 %v3334
      %v3410 = vunpack.c.l.b16 %v3335
      %v3411 = vunpack.c.l.b16 %v3336
      %v3412 = vunpack.c.l.b16 %v3337
      %v3413 = vunpack.c.l.b16 %v3338
      %v3414 = vunpack.c.l.b16 %v3339
      %v3415 = vunpack.c.l.b16 %v3340
      %v3416 = vunpack.c.l.b16 %v3341
      %v3417 = vunpack.c.l.b16 %v3342
      %v3418 = vunpack.c.l.b16 %v3343
      %v3419 = vunpack.c.l.b16 %v3344
      %v3420 = vunpack.c.l.b16 %v3345
      %v3421 = vunpack.c.l.b16 %v3346
      %v3422 = vunpack.c.l.b16 %v3347
      %v3423 = vunpack.c.l.b16 %v3348
      %v3424 = vunpack.c.l.b16 %v3349
      %v3425 = vunpack.c.l.b16 %v3350
      %v3426 = vunpack.c.l.b16 %v3351
      %v3427 = vunpack.c.l.b16 %v3352
      %v3428 = vunpack.c.l.b16 %v3353
      %v3429 = vpack.c.b16 %v3393, %v3392
      %v3430 = vpack.c.b16 %v3395, %v3394
      %v3431 = vpack.c.b16 %v3397, %v3396
      %v3432 = vpack.c.b16 %v3399, %v3398
      %v3433 = vpack.c.b16 %v3401, %v3400
      %v3434 = vpack.c.b16 %v3403, %v3402
      %v3435 = vpack.c.b16 %v3405, %v3404
      %v3436 = vpack.c.b16 %v3407, %v3406
      %v3437 = vpack.c.b16 %v3409, %v3408
      %v3438 = vpack.c.b16 %v3411, %v3410
      %v3439 = vpack.c.b16 %v3413, %v3412
      %v3440 = vpack.c.b16 %v3415, %v3414
      %v3441 = vpack.c.b16 %v3417, %v3416
      %v3442 = vpack.c.b16 %v3419, %v3418
      %v3443 = vpack.c.b16 %v3421, %v3420
      %v3444 = vpack.c.b16 %v3423, %v3422
      %v3445 = vpack.c.b16 %v3425, %v3424
      %v3446 = vpack.c.b16 %v3427, %v3426
      %v3447 = vpack.c.b16 %v3428, %v3428
      %vm3448 = vcmask 1045504
      %v3449 = vrot.slane %v3429, 2
      %v3450 = vrot.slane %v3430, 2
      %v3451 = vsel %vm3448, %v3449, %v3450
      %v3452 = vrot.slane %v3431, 2
      %v3453 = vsel %vm3448, %v3450, %v3452
      %v3454 = vrot.slane %v3432, 2
      %v3455 = vsel %vm3448, %v3452, %v3454
      %v3456 = vrot.slane %v3433, 2
      %v3457 = vsel %vm3448, %v3454, %v3456
      %v3458 = vrot.slane %v3434, 2
      %v3459 = vsel %vm3448, %v3456, %v3458
      %v3460 = vrot.slane %v3435, 2
      %v3461 = vsel %vm3448, %v3458, %v3460
      %v3462 = vrot.slane %v3436, 2
      %v3463 = vsel %vm3448, %v3460, %v3462
      %v3464 = vrot.slane %v3437, 2
      %v3465 = vsel %vm3448, %v3462, %v3464
      %v3466 = vrot.slane %v3438, 2
      %v3467 = vsel %vm3448, %v3464, %v3466
      %v3468 = vrot.slane %v3439, 2
      %v3469 = vsel %vm3448, %v3466, %v3468
      %v3470 = vrot.slane %v3440, 2
      %v3471 = vsel %vm3448, %v3468, %v3470
      %v3472 = vrot.slane %v3441, 2
      %v3473 = vsel %vm3448, %v3470, %v3472
      %v3474 = vrot.slane %v3442, 2
      %v3475 = vsel %vm3448, %v3472, %v3474
      %v3476 = vrot.slane %v3443, 2
      %v3477 = vsel %vm3448, %v3474, %v3476
      %v3478 = vrot.slane %v3444, 2
      %v3479 = vsel %vm3448, %v3476, %v3478
      %v3480 = vrot.slane %v3445, 2
      %v3481 = vsel %vm3448, %v3478, %v3480
      %v3482 = vrot.slane %v3446, 2
      %v3483 = vsel %vm3448, %v3480, %v3482
      %v3484 = vrot.slane %v3447, 2
      %v3485 = vsel %vm3448, %v3482, %v3484
      %v3487 = vsel %vm487, %v3451, 0
      %v3490 = vsel %vm487, %v3453, 0
      %v3493 = vsel %vm487, %v3455, 0
      %v3496 = vsel %vm487, %v3457, 0
      %v3499 = vsel %vm487, %v3459, 0
      %v3502 = vsel %vm487, %v3461, 0
      %v3505 = vsel %vm487, %v3463, 0
      %v3508 = vsel %vm487, %v3465, 0
      %v3511 = vsel %vm487, %v3467, 0
      %v3514 = vsel %vm487, %v3469, 0
      %v3517 = vsel %vm487, %v3471, 0
      %v3520 = vsel %vm487, %v3473, 0
      %v3523 = vsel %vm487, %v3475, 0
      %v3526 = vsel %vm487, %v3477, 0
      %v3529 = vsel %vm487, %v3479, 0
      %v3532 = vsel %vm487, %v3481, 0
      %v3535 = vsel %vm487, %v3483, 0
      %v3538 = vsel %vm487, %v3485, 0
      %v3541 = vsel %vm741, %v3354, 0
      %3543 = vmatprep.subr.bf16.mxu0 0
      %3544 = vmatpush1.bf16.msra.mxu0 %v3541
      %3545 = vmatprep.subr.bf16.mxu0 0
      %3546 = vmatpush1.bf16.msra.mxu0 0
      %3547 = vmatprep.subr.bf16.mxu0 0
      %3548 = vmatpush1.bf16.msra.mxu0 0
      %3549 = vmatprep.subr.bf16.mxu0 0
      %3550 = vmatpush1.bf16.msra.mxu0 0
      %3551 = vmatprep.subr.bf16.mxu0 0
      %3552 = vmatpush1.bf16.msra.mxu0 0
      %3553 = vmatprep.subr.bf16.mxu0 0
      %3554 = vmatpush1.bf16.msra.mxu0 0
      %3555 = vmatprep.subr.bf16.mxu0 0
      %3556 = vmatpush1.bf16.msra.mxu0 0
      %3557 = vmatprep.subr.bf16.mxu0 0
      %3558 = vmatpush1.bf16.msra.mxu0 0
      %3559 = vmatprep.subr.bf16.mxu0 0
      %3560 = vmatpush1.bf16.msra.mxu0 0
      %3561 = vmatprep.subr.bf16.mxu0 0
      %3562 = vmatpush1.bf16.msra.mxu0 0
      %3563 = vmatprep.subr.bf16.mxu0 0
      %3564 = vmatpush1.bf16.msra.mxu0 0
      %3565 = vmatprep.subr.bf16.mxu0 0
      %3566 = vmatpush1.bf16.msra.mxu0 0
      %3567 = vmatprep.subr.bf16.mxu0 0
      %3568 = vmatpush1.bf16.msra.mxu0 0
      %3569 = vmatprep.subr.bf16.mxu0 0
      %3570 = vmatpush1.bf16.msra.mxu0 0
      %3571 = vmatprep.subr.bf16.mxu0 0
      %3572 = vmatpush1.bf16.msra.mxu0 0
      %3573 = vmatprep.subr.bf16.mxu0 0
      %3574 = vmatpush1.bf16.msra.mxu0 0
      %3575 = vmatprep.mubr.bf16.mxu0 0
      %3576 = vmatmul.mubr.bf16.gmra.mrb[0].mxu0 %v3487
      %v3577 = vpop.f32.mrb[0].mxu0
      %v3578 = vadd.f32 0.0, %v3577
      %v3579 = vpop.f32.mrb[0].mxu0
      %v3580 = vpop.f32.mrb[0].mxu0
      %v3581 = vadd.f32 0.0, %v3580
      %v3582 = vpop.f32.mrb[0].mxu0
      %3583 = vmatprep.mubr.bf16.mxu0 0
      %3584 = vmatmul.mubr.bf16.gmra.mrb[0].mxu0 %v3490
      %v3585 = vpop.f32.mrb[0].mxu0
      %v3586 = vadd.f32 0.0, %v3585
      %v3587 = vpop.f32.mrb[0].mxu0
      %v3588 = vpop.f32.mrb[0].mxu0
      %v3589 = vadd.f32 0.0, %v3588
      %v3590 = vpop.f32.mrb[0].mxu0
      %3591 = vmatprep.mubr.bf16.mxu0 0
      %3592 = vmatmul.mubr.bf16.gmra.mrb[0].mxu0 %v3493
      %v3593 = vpop.f32.mrb[0].mxu0
      %v3594 = vadd.f32 0.0, %v3593
      %v3595 = vpop.f32.mrb[0].mxu0
      %v3596 = vpop.f32.mrb[0].mxu0
      %v3597 = vadd.f32 0.0, %v3596
      %v3598 = vpop.f32.mrb[0].mxu0
      %3599 = vmatprep.mubr.bf16.mxu0 0
      %3600 = vmatmul.mubr.bf16.gmra.mrb[0].mxu0 %v3496
      %v3601 = vpop.f32.mrb[0].mxu0
      %v3602 = vadd.f32 0.0, %v3601
      %v3603 = vpop.f32.mrb[0].mxu0
      %v3604 = vpop.f32.mrb[0].mxu0
      %v3605 = vadd.f32 0.0, %v3604
      %v3606 = vpop.f32.mrb[0].mxu0
      %3607 = vmatprep.mubr.bf16.mxu0 0
      %3608 = vmatmul.mubr.bf16.gmra.mrb[0].mxu0 %v3499
      %v3609 = vpop.f32.mrb[0].mxu0
      %v3610 = vadd.f32 0.0, %v3609
      %v3611 = vpop.f32.mrb[0].mxu0
      %v3612 = vpop.f32.mrb[0].mxu0
      %v3613 = vadd.f32 0.0, %v3612
      %v3614 = vpop.f32.mrb[0].mxu0
      %3615 = vmatprep.mubr.bf16.mxu0 0
      %3616 = vmatmul.mubr.bf16.gmra.mrb[0].mxu0 %v3502
      %v3617 = vpop.f32.mrb[0].mxu0
      %v3618 = vadd.f32 0.0, %v3617
      %v3619 = vpop.f32.mrb[0].mxu0
      %v3620 = vpop.f32.mrb[0].mxu0
      %v3621 = vadd.f32 0.0, %v3620
      %v3622 = vpop.f32.mrb[0].mxu0
      %3623 = vmatprep.mubr.bf16.mxu0 0
      %3624 = vmatmul.mubr.bf16.gmra.mrb[0].mxu0 %v3505
      %v3625 = vpop.f32.mrb[0].mxu0
      %v3626 = vadd.f32 0.0, %v3625
      %v3627 = vpop.f32.mrb[0].mxu0
      %v3628 = vpop.f32.mrb[0].mxu0
      %v3629 = vadd.f32 0.0, %v3628
      %v3630 = vpop.f32.mrb[0].mxu0
      %3631 = vmatprep.mubr.bf16.mxu0 0
      %3632 = vmatmul.mubr.bf16.gmra.mrb[0].mxu0 %v3508
      %v3633 = vpop.f32.mrb[0].mxu0
      %v3634 = vadd.f32 0.0, %v3633
      %v3635 = vpop.f32.mrb[0].mxu0
      %v3636 = vpop.f32.mrb[0].mxu0
      %v3637 = vadd.f32 0.0, %v3636
      %v3638 = vpop.f32.mrb[0].mxu0
      %3639 = vmatprep.mubr.bf16.mxu0 0
      %3640 = vmatmul.mubr.bf16.gmra.mrb[0].mxu0 %v3511
      %v3641 = vpop.f32.mrb[0].mxu0
      %v3642 = vadd.f32 0.0, %v3641
      %v3643 = vpop.f32.mrb[0].mxu0
      %v3644 = vpop.f32.mrb[0].mxu0
      %v3645 = vadd.f32 0.0, %v3644
      %v3646 = vpop.f32.mrb[0].mxu0
      %3647 = vmatprep.mubr.bf16.mxu0 0
      %3648 = vmatmul.mubr.bf16.gmra.mrb[0].mxu0 %v3514
      %v3649 = vpop.f32.mrb[0].mxu0
      %v3650 = vadd.f32 0.0, %v3649
      %v3651 = vpop.f32.mrb[0].mxu0
      %v3652 = vpop.f32.mrb[0].mxu0
      %v3653 = vadd.f32 0.0, %v3652
      %v3654 = vpop.f32.mrb[0].mxu0
      %3655 = vmatprep.mubr.bf16.mxu0 0
      %3656 = vmatmul.mubr.bf16.gmra.mrb[0].mxu0 %v3517
      %v3657 = vpop.f32.mrb[0].mxu0
      %v3658 = vadd.f32 0.0, %v3657
      %v3659 = vpop.f32.mrb[0].mxu0
      %v3660 = vpop.f32.mrb[0].mxu0
      %v3661 = vadd.f32 0.0, %v3660
      %v3662 = vpop.f32.mrb[0].mxu0
      %3663 = vmatprep.mubr.bf16.mxu0 0
      %3664 = vmatmul.mubr.bf16.gmra.mrb[0].mxu0 %v3520
      %v3665 = vpop.f32.mrb[0].mxu0
      %v3666 = vadd.f32 0.0, %v3665
      %v3667 = vpop.f32.mrb[0].mxu0
      %v3668 = vpop.f32.mrb[0].mxu0
      %v3669 = vadd.f32 0.0, %v3668
      %v3670 = vpop.f32.mrb[0].mxu0
      %3671 = vmatprep.mubr.bf16.mxu0 0
      %3672 = vmatmul.mubr.bf16.gmra.mrb[0].mxu0 %v3523
      %v3673 = vpop.f32.mrb[0].mxu0
      %v3674 = vadd.f32 0.0, %v3673
      %v3675 = vpop.f32.mrb[0].mxu0
      %v3676 = vpop.f32.mrb[0].mxu0
      %v3677 = vadd.f32 0.0, %v3676
      %v3678 = vpop.f32.mrb[0].mxu0
      %3679 = vmatprep.mubr.bf16.mxu0 0
      %3680 = vmatmul.mubr.bf16.gmra.mrb[0].mxu0 %v3526
      %v3681 = vpop.f32.mrb[0].mxu0
      %v3682 = vadd.f32 0.0, %v3681
      %v3683 = vpop.f32.mrb[0].mxu0
      %v3684 = vpop.f32.mrb[0].mxu0
      %v3685 = vadd.f32 0.0, %v3684
      %v3686 = vpop.f32.mrb[0].mxu0
      %3687 = vmatprep.mubr.bf16.mxu0 0
      %3688 = vmatmul.mubr.bf16.gmra.mrb[0].mxu0 %v3529
      %v3689 = vpop.f32.mrb[0].mxu0
      %v3690 = vadd.f32 0.0, %v3689
      %v3691 = vpop.f32.mrb[0].mxu0
      %v3692 = vpop.f32.mrb[0].mxu0
      %v3693 = vadd.f32 0.0, %v3692
      %v3694 = vpop.f32.mrb[0].mxu0
      %3695 = vmatprep.mubr.bf16.mxu0 0
      %3696 = vmatmul.mubr.bf16.gmra.mrb[0].mxu0 %v3532
      %v3697 = vpop.f32.mrb[0].mxu0
      %v3698 = vadd.f32 0.0, %v3697
      %v3699 = vpop.f32.mrb[0].mxu0
      %v3700 = vpop.f32.mrb[0].mxu0
      %v3701 = vadd.f32 0.0, %v3700
      %v3702 = vpop.f32.mrb[0].mxu0
      %3703 = vmatprep.mubr.bf16.mxu0 0
      %3704 = vmatmul.mubr.bf16.gmra.mrb[0].mxu0 %v3535
      %v3705 = vpop.f32.mrb[0].mxu0
      %v3706 = vadd.f32 0.0, %v3705
      %v3707 = vpop.f32.mrb[0].mxu0
      %v3708 = vpop.f32.mrb[0].mxu0
      %v3709 = vadd.f32 0.0, %v3708
      %v3710 = vpop.f32.mrb[0].mxu0
      %3711 = vmatprep.mubr.bf16.mxu0 0
      %3712 = vmatmul.mubr.bf16.gmra.mrb[0].mxu0 %v3538
      %v3713 = vpop.f32.mrb[0].mxu0
      %v3714 = vadd.f32 0.0, %v3713
      %v3715 = vpop.f32.mrb[0].mxu0
      %v3716 = vpop.f32.mrb[0].mxu0
      %v3717 = vadd.f32 0.0, %v3716
      %v3718 = vpop.f32.mrb[0].mxu0
      %3719 = vdwg.mxu0
      %v3720 = vadd.f32 %v3281, %v3578
      %v3721 = vadd.f32 %v3282, %v3581
      %v3722 = vadd.f32 %v3283, %v3586
      %v3723 = vadd.f32 %v3284, %v3589
      %v3724 = vadd.f32 %v3285, %v3594
      %v3725 = vadd.f32 %v3286, %v3597
      %v3726 = vadd.f32 %v3287, %v3602
      %v3727 = vadd.f32 %v3288, %v3605
      %v3728 = vadd.f32 %v3289, %v3610
      %v3729 = vadd.f32 %v3290, %v3613
      %v3730 = vadd.f32 %v3291, %v3618
      %v3731 = vadd.f32 %v3292, %v3621
      %v3732 = vadd.f32 %v3293, %v3626
      %v3733 = vadd.f32 %v3294, %v3629
      %v3734 = vadd.f32 %v3295, %v3634
      %v3735 = vadd.f32 %v3296, %v3637
      %v3736 = vadd.f32 %v3297, %v3642
      %v3737 = vadd.f32 %v3298, %v3645
      %v3738 = vadd.f32 %v3299, %v3650
      %v3739 = vadd.f32 %v3300, %v3653
      %v3740 = vadd.f32 %v3301, %v3658
      %v3741 = vadd.f32 %v3302, %v3661
      %v3742 = vadd.f32 %v3303, %v3666
      %v3743 = vadd.f32 %v3304, %v3669
      %v3744 = vadd.f32 %v3305, %v3674
      %v3745 = vadd.f32 %v3306, %v3677
      %v3746 = vadd.f32 %v3307, %v3682
      %v3747 = vadd.f32 %v3308, %v3685
      %v3748 = vadd.f32 %v3309, %v3690
      %v3749 = vadd.f32 %v3310, %v3693
      %v3750 = vadd.f32 %v3311, %v3698
      %v3751 = vadd.f32 %v3312, %v3701
      %v3752 = vadd.f32 %v3313, %v3706
      %v3753 = vadd.f32 %v3314, %v3709
      %v3754 = vadd.f32 %v3315, %v3714
      %v3755 = vadd.f32 %v3316, %v3717
      %3756 = vst.msk [vmem:[#allocation3] sm:$0xff] %vm487, %v3720
      %3757 = vst.msk [vmem:[#allocation3 + $0x8] sm:$0xff] %vm487, %v3721
      %3758 = vst.msk [vmem:[#allocation3 + $0x10] sm:$0xff] %vm487, %v3722
      %3759 = vst.msk [vmem:[#allocation3 + $0x18] sm:$0xff] %vm487, %v3723
      %3760 = vst.msk [vmem:[#allocation3 + $0x20] sm:$0xff] %vm487, %v3724
      %3761 = vst.msk [vmem:[#allocation3 + $0x28] sm:$0xff] %vm487, %v3725
      %3762 = vst.msk [vmem:[#allocation3 + $0x30] sm:$0xff] %vm487, %v3726
      %3763 = vst.msk [vmem:[#allocation3 + $0x38] sm:$0xff] %vm487, %v3727
      %3764 = vst.msk [vmem:[#allocation3 + $0x40] sm:$0xff] %vm487, %v3728
      %3765 = vst.msk [vmem:[#allocation3 + $0x48] sm:$0xff] %vm487, %v3729
      %3766 = vst.msk [vmem:[#allocation3 + $0x50] sm:$0xff] %vm487, %v3730
      %3767 = vst.msk [vmem:[#allocation3 + $0x58] sm:$0xff] %vm487, %v3731
      %3768 = vst.msk [vmem:[#allocation3 + $0x60] sm:$0xff] %vm487, %v3732
      %3769 = vst.msk [vmem:[#allocation3 + $0x68] sm:$0xff] %vm487, %v3733
      %3770 = vst.msk [vmem:[#allocation3 + $0x70] sm:$0xff] %vm487, %v3734
      %3771 = vst.msk [vmem:[#allocation3 + $0x78] sm:$0xff] %vm487, %v3735
      %3772 = vst.msk [vmem:[#allocation3 + $0x80] sm:$0xff] %vm487, %v3736
      %3773 = vst.msk [vmem:[#allocation3 + $0x88] sm:$0xff] %vm487, %v3737
      %3774 = vst.msk [vmem:[#allocation3 + $0x90] sm:$0xff] %vm487, %v3738
      %3775 = vst.msk [vmem:[#allocation3 + $0x98] sm:$0xff] %vm487, %v3739
      %3776 = vst.msk [vmem:[#allocation3 + $0xa0] sm:$0xff] %vm487, %v3740
      %3777 = vst.msk [vmem:[#allocation3 + $0xa8] sm:$0xff] %vm487, %v3741
      %3778 = vst.msk [vmem:[#allocation3 + $0xb0] sm:$0xff] %vm487, %v3742
      %3779 = vst.msk [vmem:[#allocation3 + $0xb8] sm:$0xff] %vm487, %v3743
      %3780 = vst.msk [vmem:[#allocation3 + $0xc0] sm:$0xff] %vm487, %v3744
      %3781 = vst.msk [vmem:[#allocation3 + $0xc8] sm:$0xff] %vm487, %v3745
      %3782 = vst.msk [vmem:[#allocation3 + $0xd0] sm:$0xff] %vm487, %v3746
      %3783 = vst.msk [vmem:[#allocation3 + $0xd8] sm:$0xff] %vm487, %v3747
      %3784 = vst.msk [vmem:[#allocation3 + $0xe0] sm:$0xff] %vm487, %v3748
      %3785 = vst.msk [vmem:[#allocation3 + $0xe8] sm:$0xff] %vm487, %v3749
      %3786 = vst.msk [vmem:[#allocation3 + $0xf0] sm:$0xff] %vm487, %v3750
      %3787 = vst.msk [vmem:[#allocation3 + $0xf8] sm:$0xff] %vm487, %v3751
      %3788 = vst.msk [vmem:[#allocation3 + $0x100] sm:$0xff] %vm487, %v3752
      %3789 = vst.msk [vmem:[#allocation3 + $0x108] sm:$0xff] %vm487, %v3753
      %3790 = vst.msk [vmem:[#allocation3 + $0x110] sm:$0xff] %vm487, %v3754
      %3791 = vst.msk [vmem:[#allocation3 + $0x118] sm:$0xff] %vm487, %v3755
      %v3792 = vld [vmem:[#allocation3] sm:$0xff]
      %v3793 = vld [vmem:[#allocation3 + $0x8] sm:$0xff]
      %v3794 = vld [vmem:[#allocation3 + $0x10] sm:$0xff]
      %v3795 = vld [vmem:[#allocation3 + $0x18] sm:$0xff]
      %v3796 = vld [vmem:[#allocation3 + $0x20] sm:$0xff]
      %v3797 = vld [vmem:[#allocation3 + $0x28] sm:$0xff]
      %v3798 = vld [vmem:[#allocation3 + $0x30] sm:$0xff]
      %v3799 = vld [vmem:[#allocation3 + $0x38] sm:$0xff]
      %v3800 = vld [vmem:[#allocation3 + $0x40] sm:$0xff]
      %v3801 = vld [vmem:[#allocation3 + $0x48] sm:$0xff]
      %v3802 = vld [vmem:[#allocation3 + $0x50] sm:$0xff]
      %v3803 = vld [vmem:[#allocation3 + $0x58] sm:$0xff]
      %v3804 = vld [vmem:[#allocation3 + $0x60] sm:$0xff]
      %v3805 = vld [vmem:[#allocation3 + $0x68] sm:$0xff]
      %v3806 = vld [vmem:[#allocation3 + $0x70] sm:$0xff]
      %v3807 = vld [vmem:[#allocation3 + $0x78] sm:$0xff]
      %v3808 = vld [vmem:[#allocation3 + $0x80] sm:$0xff]
      %v3809 = vld [vmem:[#allocation3 + $0x88] sm:$0xff]
      %v3810 = vld [vmem:[#allocation3 + $0x90] sm:$0xff]
      %v3811 = vld [vmem:[#allocation3 + $0x98] sm:$0xff]
      %v3812 = vld [vmem:[#allocation3 + $0xa0] sm:$0xff]
      %v3813 = vld [vmem:[#allocation3 + $0xa8] sm:$0xff]
      %v3814 = vld [vmem:[#allocation3 + $0xb0] sm:$0xff]
      %v3815 = vld [vmem:[#allocation3 + $0xb8] sm:$0xff]
      %v3816 = vld [vmem:[#allocation3 + $0xc0] sm:$0xff]
      %v3817 = vld [vmem:[#allocation3 + $0xc8] sm:$0xff]
      %v3818 = vld [vmem:[#allocation3 + $0xd0] sm:$0xff]
      %v3819 = vld [vmem:[#allocation3 + $0xd8] sm:$0xff]
      %v3820 = vld [vmem:[#allocation3 + $0xe0] sm:$0xff]
      %v3821 = vld [vmem:[#allocation3 + $0xe8] sm:$0xff]
      %v3822 = vld [vmem:[#allocation3 + $0xf0] sm:$0xff]
      %v3823 = vld [vmem:[#allocation3 + $0xf8] sm:$0xff]
      %v3824 = vld [vmem:[#allocation3 + $0x100] sm:$0xff]
      %v3825 = vld [vmem:[#allocation3 + $0x108] sm:$0xff]
      %v3826 = vld [vmem:[#allocation3 + $0x110] sm:$0xff]
      %v3827 = vld [vmem:[#allocation3 + $0x118] sm:$0xff]
      %v3828 = vld [vmem:[#allocation2 + $0x10] sm:$0xc]
      %v3829 = vld [vmem:[#allocation2 + $0x14] sm:$0xf]
      %v3830 = vld [vmem:[#allocation2 + $0x18] sm:$0xf]
      %v3831 = vld [vmem:[#allocation2 + $0x1c] sm:$0xf]
      %v3832 = vld [vmem:[#allocation2 + $0x20] sm:$0xf]
      %v3833 = vld [vmem:[#allocation2 + $0x24] sm:$0xf]
      %v3834 = vld [vmem:[#allocation2 + $0x28] sm:$0xf]
      %v3835 = vld [vmem:[#allocation2 + $0x2c] sm:$0xf]
      %v3836 = vld [vmem:[#allocation2 + $0x30] sm:$0xf]
      %v3837 = vld [vmem:[#allocation2 + $0x34] sm:$0xf]
      %v3838 = vld [vmem:[#allocation2 + $0x38] sm:$0xf]
      %v3839 = vld [vmem:[#allocation2 + $0x3c] sm:$0xf]
      %v3840 = vld [vmem:[#allocation2 + $0x40] sm:$0xf]
      %v3841 = vld [vmem:[#allocation2 + $0x44] sm:$0xf]
      %v3842 = vld [vmem:[#allocation2 + $0x48] sm:$0xf]
      %v3843 = vld [vmem:[#allocation2 + $0x4c] sm:$0xf]
      %v3844 = vld [vmem:[#allocation2 + $0x50] sm:$0xf]
      %v3845 = vld [vmem:[#allocation2 + $0x54] sm:$0xf]
      %v3846 = vld [vmem:[#allocation2 + $0x58] sm:$0xf]
      %v3847 = vld [vmem:[#allocation2 + $0x5c] sm:$0xf]
      %v3848 = vld [vmem:[#allocation2 + $0x60] sm:$0xf]
      %v3849 = vld [vmem:[#allocation2 + $0x64] sm:$0xf]
      %v3850 = vld [vmem:[#allocation2 + $0x68] sm:$0xf]
      %v3851 = vld [vmem:[#allocation2 + $0x6c] sm:$0xf]
      %v3852 = vld [vmem:[#allocation2 + $0x70] sm:$0xf]
      %v3853 = vld [vmem:[#allocation2 + $0x74] sm:$0xf]
      %v3854 = vld [vmem:[#allocation2 + $0x78] sm:$0xf]
      %v3855 = vld [vmem:[#allocation2 + $0x7c] sm:$0xf]
      %v3856 = vld [vmem:[#allocation2 + $0x80] sm:$0xf]
      %v3857 = vld [vmem:[#allocation2 + $0x84] sm:$0xf]
      %v3858 = vld [vmem:[#allocation2 + $0x88] sm:$0xf]
      %v3859 = vld [vmem:[#allocation2 + $0x8c] sm:$0xf]
      %v3860 = vld [vmem:[#allocation2 + $0x90] sm:$0xf]
      %v3861 = vld [vmem:[#allocation2 + $0x94] sm:$0xf]
      %v3862 = vld [vmem:[#allocation2 + $0x98] sm:$0xf]
      %v3863 = vld [vmem:[#allocation2 + $0x9c] sm:$0xf]
      %v3864 = vld [vmem:[#allocation2 + $0xa0] sm:$0x3]
      %v3865 = vld [vmem:[%s1 + $0x18] sm:$0xf]
      %v3903 = vunpack.c.l.b16 %v3828
      %v3904 = vunpack.c.l.b16 %v3829
      %v3905 = vunpack.c.l.b16 %v3830
      %v3906 = vunpack.c.l.b16 %v3831
      %v3907 = vunpack.c.l.b16 %v3832
      %v3908 = vunpack.c.l.b16 %v3833
      %v3909 = vunpack.c.l.b16 %v3834
      %v3910 = vunpack.c.l.b16 %v3835
      %v3911 = vunpack.c.l.b16 %v3836
      %v3912 = vunpack.c.l.b16 %v3837
      %v3913 = vunpack.c.l.b16 %v3838
      %v3914 = vunpack.c.l.b16 %v3839
      %v3915 = vunpack.c.l.b16 %v3840
      %v3916 = vunpack.c.l.b16 %v3841
      %v3917 = vunpack.c.l.b16 %v3842
      %v3918 = vunpack.c.l.b16 %v3843
      %v3919 = vunpack.c.l.b16 %v3844
      %v3920 = vunpack.c.l.b16 %v3845
      %v3921 = vunpack.c.l.b16 %v3846
      %v3922 = vunpack.c.l.b16 %v3847
      %v3923 = vunpack.c.l.b16 %v3848
      %v3924 = vunpack.c.l.b16 %v3849
      %v3925 = vunpack.c.l.b16 %v3850
      %v3926 = vunpack.c.l.b16 %v3851
      %v3927 = vunpack.c.l.b16 %v3852
      %v3928 = vunpack.c.l.b16 %v3853
      %v3929 = vunpack.c.l.b16 %v3854
      %v3930 = vunpack.c.l.b16 %v3855
      %v3931 = vunpack.c.l.b16 %v3856
      %v3932 = vunpack.c.l.b16 %v3857
      %v3933 = vunpack.c.l.b16 %v3858
      %v3934 = vunpack.c.l.b16 %v3859
      %v3935 = vunpack.c.l.b16 %v3860
      %v3936 = vunpack.c.l.b16 %v3861
      %v3937 = vunpack.c.l.b16 %v3862
      %v3938 = vunpack.c.l.b16 %v3863
      %v3939 = vunpack.c.l.b16 %v3864
      %v3940 = vpack.c.b16 %v3904, %v3903
      %v3941 = vpack.c.b16 %v3906, %v3905
      %v3942 = vpack.c.b16 %v3908, %v3907
      %v3943 = vpack.c.b16 %v3910, %v3909
      %v3944 = vpack.c.b16 %v3912, %v3911
      %v3945 = vpack.c.b16 %v3914, %v3913
      %v3946 = vpack.c.b16 %v3916, %v3915
      %v3947 = vpack.c.b16 %v3918, %v3917
      %v3948 = vpack.c.b16 %v3920, %v3919
      %v3949 = vpack.c.b16 %v3922, %v3921
      %v3950 = vpack.c.b16 %v3924, %v3923
      %v3951 = vpack.c.b16 %v3926, %v3925
      %v3952 = vpack.c.b16 %v3928, %v3927
      %v3953 = vpack.c.b16 %v3930, %v3929
      %v3954 = vpack.c.b16 %v3932, %v3931
      %v3955 = vpack.c.b16 %v3934, %v3933
      %v3956 = vpack.c.b16 %v3936, %v3935
      %v3957 = vpack.c.b16 %v3938, %v3937
      %v3958 = vpack.c.b16 %v3939, %v3939
      %v3959 = vrot.slane %v3940, 2
      %v3960 = vrot.slane %v3941, 2
      %v3961 = vsel %vm3448, %v3959, %v3960
      %v3962 = vrot.slane %v3942, 2
      %v3963 = vsel %vm3448, %v3960, %v3962
      %v3964 = vrot.slane %v3943, 2
      %v3965 = vsel %vm3448, %v3962, %v3964
      %v3966 = vrot.slane %v3944, 2
      %v3967 = vsel %vm3448, %v3964, %v3966
      %v3968 = vrot.slane %v3945, 2
      %v3969 = vsel %vm3448, %v3966, %v3968
      %v3970 = vrot.slane %v3946, 2
      %v3971 = vsel %vm3448, %v3968, %v3970
      %v3972 = vrot.slane %v3947, 2
      %v3973 = vsel %vm3448, %v3970, %v3972
      %v3974 = vrot.slane %v3948, 2
      %v3975 = vsel %vm3448, %v3972, %v3974
      %v3976 = vrot.slane %v3949, 2
      %v3977 = vsel %vm3448, %v3974, %v3976
      %v3978 = vrot.slane %v3950, 2
      %v3979 = vsel %vm3448, %v3976, %v3978
      %v3980 = vrot.slane %v3951, 2
      %v3981 = vsel %vm3448, %v3978, %v3980
      %v3982 = vrot.slane %v3952, 2
      %v3983 = vsel %vm3448, %v3980, %v3982
      %v3984 = vrot.slane %v3953, 2
      %v3985 = vsel %vm3448, %v3982, %v3984
      %v3986 = vrot.slane %v3954, 2
      %v3987 = vsel %vm3448, %v3984, %v3986
      %v3988 = vrot.slane %v3955, 2
      %v3989 = vsel %vm3448, %v3986, %v3988
      %v3990 = vrot.slane %v3956, 2
      %v3991 = vsel %vm3448, %v3988, %v3990
      %v3992 = vrot.slane %v3957, 2
      %v3993 = vsel %vm3448, %v3990, %v3992
      %v3994 = vrot.slane %v3958, 2
      %v3995 = vsel %vm3448, %v3992, %v3994
      %v3997 = vsel %vm487, %v3961, 0
      %v4000 = vsel %vm487, %v3963, 0
      %v4003 = vsel %vm487, %v3965, 0
      %v4006 = vsel %vm487, %v3967, 0
      %v4009 = vsel %vm487, %v3969, 0
      %v4012 = vsel %vm487, %v3971, 0
      %v4015 = vsel %vm487, %v3973, 0
      %v4018 = vsel %vm487, %v3975, 0
      %v4021 = vsel %vm487, %v3977, 0
      %v4024 = vsel %vm487, %v3979, 0
      %v4027 = vsel %vm487, %v3981, 0
      %v4030 = vsel %vm487, %v3983, 0
      %v4033 = vsel %vm487, %v3985, 0
      %v4036 = vsel %vm487, %v3987, 0
      %v4039 = vsel %vm487, %v3989, 0
      %v4042 = vsel %vm487, %v3991, 0
      %v4045 = vsel %vm487, %v3993, 0
      %v4048 = vsel %vm487, %v3995, 0
      %v4051 = vsel %vm741, %v3865, 0
      %4053 = vmatprep.subr.bf16.mxu0 0
      %4054 = vmatpush1.bf16.msra.mxu0 %v4051
      %4055 = vmatprep.subr.bf16.mxu0 0
      %4056 = vmatpush1.bf16.msra.mxu0 0
      %4057 = vmatprep.subr.bf16.mxu0 0
      %4058 = vmatpush1.bf16.msra.mxu0 0
      %4059 = vmatprep.subr.bf16.mxu0 0
      %4060 = vmatpush1.bf16.msra.mxu0 0
      %4061 = vmatprep.subr.bf16.mxu0 0
      %4062 = vmatpush1.bf16.msra.mxu0 0
      %4063 = vmatprep.subr.bf16.mxu0 0
      %4064 = vmatpush1.bf16.msra.mxu0 0
      %4065 = vmatprep.subr.bf16.mxu0 0
      %4066 = vmatpush1.bf16.msra.mxu0 0
      %4067 = vmatprep.subr.bf16.mxu0 0
      %4068 = vmatpush1.bf16.msra.mxu0 0
      %4069 = vmatprep.subr.bf16.mxu0 0
      %4070 = vmatpush1.bf16.msra.mxu0 0
      %4071 = vmatprep.subr.bf16.mxu0 0
      %4072 = vmatpush1.bf16.msra.mxu0 0
      %4073 = vmatprep.subr.bf16.mxu0 0
      %4074 = vmatpush1.bf16.msra.mxu0 0
      %4075 = vmatprep.subr.bf16.mxu0 0
      %4076 = vmatpush1.bf16.msra.mxu0 0
      %4077 = vmatprep.subr.bf16.mxu0 0
      %4078 = vmatpush1.bf16.msra.mxu0 0
      %4079 = vmatprep.subr.bf16.mxu0 0
      %4080 = vmatpush1.bf16.msra.mxu0 0
      %4081 = vmatprep.subr.bf16.mxu0 0
      %4082 = vmatpush1.bf16.msra.mxu0 0
      %4083 = vmatprep.subr.bf16.mxu0 0
      %4084 = vmatpush1.bf16.msra.mxu0 0
      %4085 = vmatprep.mubr.bf16.mxu0 0
      %4086 = vmatmul.mubr.bf16.gmra.mrb[0].mxu0 %v3997
      %v4087 = vpop.f32.mrb[0].mxu0
      %v4088 = vadd.f32 0.0, %v4087
      %v4089 = vpop.f32.mrb[0].mxu0
      %v4090 = vpop.f32.mrb[0].mxu0
      %v4091 = vadd.f32 0.0, %v4090
      %v4092 = vpop.f32.mrb[0].mxu0
      %4093 = vmatprep.mubr.bf16.mxu0 0
      %4094 = vmatmul.mubr.bf16.gmra.mrb[0].mxu0 %v4000
      %v4095 = vpop.f32.mrb[0].mxu0
      %v4096 = vadd.f32 0.0, %v4095
      %v4097 = vpop.f32.mrb[0].mxu0
      %v4098 = vpop.f32.mrb[0].mxu0
      %v4099 = vadd.f32 0.0, %v4098
      %v4100 = vpop.f32.mrb[0].mxu0
      %4101 = vmatprep.mubr.bf16.mxu0 0
      %4102 = vmatmul.mubr.bf16.gmra.mrb[0].mxu0 %v4003
      %v4103 = vpop.f32.mrb[0].mxu0
      %v4104 = vadd.f32 0.0, %v4103
      %v4105 = vpop.f32.mrb[0].mxu0
      %v4106 = vpop.f32.mrb[0].mxu0
      %v4107 = vadd.f32 0.0, %v4106
      %v4108 = vpop.f32.mrb[0].mxu0
      %4109 = vmatprep.mubr.bf16.mxu0 0
      %4110 = vmatmul.mubr.bf16.gmra.mrb[0].mxu0 %v4006
      %v4111 = vpop.f32.mrb[0].mxu0
      %v4112 = vadd.f32 0.0, %v4111
      %v4113 = vpop.f32.mrb[0].mxu0
      %v4114 = vpop.f32.mrb[0].mxu0
      %v4115 = vadd.f32 0.0, %v4114
      %v4116 = vpop.f32.mrb[0].mxu0
      %4117 = vmatprep.mubr.bf16.mxu0 0
      %4118 = vmatmul.mubr.bf16.gmra.mrb[0].mxu0 %v4009
      %v4119 = vpop.f32.mrb[0].mxu0
      %v4120 = vadd.f32 0.0, %v4119
      %v4121 = vpop.f32.mrb[0].mxu0
      %v4122 = vpop.f32.mrb[0].mxu0
      %v4123 = vadd.f32 0.0, %v4122
      %v4124 = vpop.f32.mrb[0].mxu0
      %4125 = vmatprep.mubr.bf16.mxu0 0
      %4126 = vmatmul.mubr.bf16.gmra.mrb[0].mxu0 %v4012
      %v4127 = vpop.f32.mrb[0].mxu0
      %v4128 = vadd.f32 0.0, %v4127
      %v4129 = vpop.f32.mrb[0].mxu0
      %v4130 = vpop.f32.mrb[0].mxu0
      %v4131 = vadd.f32 0.0, %v4130
      %v4132 = vpop.f32.mrb[0].mxu0
      %4133 = vmatprep.mubr.bf16.mxu0 0
      %4134 = vmatmul.mubr.bf16.gmra.mrb[0].mxu0 %v4015
      %v4135 = vpop.f32.mrb[0].mxu0
      %v4136 = vadd.f32 0.0, %v4135
      %v4137 = vpop.f32.mrb[0].mxu0
      %v4138 = vpop.f32.mrb[0].mxu0
      %v4139 = vadd.f32 0.0, %v4138
      %v4140 = vpop.f32.mrb[0].mxu0
      %4141 = vmatprep.mubr.bf16.mxu0 0
      %4142 = vmatmul.mubr.bf16.gmra.mrb[0].mxu0 %v4018
      %v4143 = vpop.f32.mrb[0].mxu0
      %v4144 = vadd.f32 0.0, %v4143
      %v4145 = vpop.f32.mrb[0].mxu0
      %v4146 = vpop.f32.mrb[0].mxu0
      %v4147 = vadd.f32 0.0, %v4146
      %v4148 = vpop.f32.mrb[0].mxu0
      %4149 = vmatprep.mubr.bf16.mxu0 0
      %4150 = vmatmul.mubr.bf16.gmra.mrb[0].mxu0 %v4021
      %v4151 = vpop.f32.mrb[0].mxu0
      %v4152 = vadd.f32 0.0, %v4151
      %v4153 = vpop.f32.mrb[0].mxu0
      %v4154 = vpop.f32.mrb[0].mxu0
      %v4155 = vadd.f32 0.0, %v4154
      %v4156 = vpop.f32.mrb[0].mxu0
      %4157 = vmatprep.mubr.bf16.mxu0 0
      %4158 = vmatmul.mubr.bf16.gmra.mrb[0].mxu0 %v4024
      %v4159 = vpop.f32.mrb[0].mxu0
      %v4160 = vadd.f32 0.0, %v4159
      %v4161 = vpop.f32.mrb[0].mxu0
      %v4162 = vpop.f32.mrb[0].mxu0
      %v4163 = vadd.f32 0.0, %v4162
      %v4164 = vpop.f32.mrb[0].mxu0
      %4165 = vmatprep.mubr.bf16.mxu0 0
      %4166 = vmatmul.mubr.bf16.gmra.mrb[0].mxu0 %v4027
      %v4167 = vpop.f32.mrb[0].mxu0
      %v4168 = vadd.f32 0.0, %v4167
      %v4169 = vpop.f32.mrb[0].mxu0
      %v4170 = vpop.f32.mrb[0].mxu0
      %v4171 = vadd.f32 0.0, %v4170
      %v4172 = vpop.f32.mrb[0].mxu0
      %4173 = vmatprep.mubr.bf16.mxu0 0
      %4174 = vmatmul.mubr.bf16.gmra.mrb[0].mxu0 %v4030
      %v4175 = vpop.f32.mrb[0].mxu0
      %v4176 = vadd.f32 0.0, %v4175
      %v4177 = vpop.f32.mrb[0].mxu0
      %v4178 = vpop.f32.mrb[0].mxu0
      %v4179 = vadd.f32 0.0, %v4178
      %v4180 = vpop.f32.mrb[0].mxu0
      %4181 = vmatprep.mubr.bf16.mxu0 0
      %4182 = vmatmul.mubr.bf16.gmra.mrb[0].mxu0 %v4033
      %v4183 = vpop.f32.mrb[0].mxu0
      %v4184 = vadd.f32 0.0, %v4183
      %v4185 = vpop.f32.mrb[0].mxu0
      %v4186 = vpop.f32.mrb[0].mxu0
      %v4187 = vadd.f32 0.0, %v4186
      %v4188 = vpop.f32.mrb[0].mxu0
      %4189 = vmatprep.mubr.bf16.mxu0 0
      %4190 = vmatmul.mubr.bf16.gmra.mrb[0].mxu0 %v4036
      %v4191 = vpop.f32.mrb[0].mxu0
      %v4192 = vadd.f32 0.0, %v4191
      %v4193 = vpop.f32.mrb[0].mxu0
      %v4194 = vpop.f32.mrb[0].mxu0
      %v4195 = vadd.f32 0.0, %v4194
      %v4196 = vpop.f32.mrb[0].mxu0
      %4197 = vmatprep.mubr.bf16.mxu0 0
      %4198 = vmatmul.mubr.bf16.gmra.mrb[0].mxu0 %v4039
      %v4199 = vpop.f32.mrb[0].mxu0
      %v4200 = vadd.f32 0.0, %v4199
      %v4201 = vpop.f32.mrb[0].mxu0
      %v4202 = vpop.f32.mrb[0].mxu0
      %v4203 = vadd.f32 0.0, %v4202
      %v4204 = vpop.f32.mrb[0].mxu0
      %4205 = vmatprep.mubr.bf16.mxu0 0
      %4206 = vmatmul.mubr.bf16.gmra.mrb[0].mxu0 %v4042
      %v4207 = vpop.f32.mrb[0].mxu0
      %v4208 = vadd.f32 0.0, %v4207
      %v4209 = vpop.f32.mrb[0].mxu0
      %v4210 = vpop.f32.mrb[0].mxu0
      %v4211 = vadd.f32 0.0, %v4210
      %v4212 = vpop.f32.mrb[0].mxu0
      %4213 = vmatprep.mubr.bf16.mxu0 0
      %4214 = vmatmul.mubr.bf16.gmra.mrb[0].mxu0 %v4045
      %v4215 = vpop.f32.mrb[0].mxu0
      %v4216 = vadd.f32 0.0, %v4215
      %v4217 = vpop.f32.mrb[0].mxu0
      %v4218 = vpop.f32.mrb[0].mxu0
      %v4219 = vadd.f32 0.0, %v4218
      %v4220 = vpop.f32.mrb[0].mxu0
      %4221 = vmatprep.mubr.bf16.mxu0 0
      %4222 = vmatmul.mubr.bf16.gmra.mrb[0].mxu0 %v4048
      %v4223 = vpop.f32.mrb[0].mxu0
      %v4224 = vadd.f32 0.0, %v4223
      %v4225 = vpop.f32.mrb[0].mxu0
      %v4226 = vpop.f32.mrb[0].mxu0
      %v4227 = vadd.f32 0.0, %v4226
      %v4228 = vpop.f32.mrb[0].mxu0
      %4229 = vdwg.mxu0
      %v4230 = vadd.f32 %v3792, %v4088
      %v4231 = vadd.f32 %v3793, %v4091
      %v4232 = vadd.f32 %v3794, %v4096
      %v4233 = vadd.f32 %v3795, %v4099
      %v4234 = vadd.f32 %v3796, %v4104
      %v4235 = vadd.f32 %v3797, %v4107
      %v4236 = vadd.f32 %v3798, %v4112
      %v4237 = vadd.f32 %v3799, %v4115
      %v4238 = vadd.f32 %v3800, %v4120
      %v4239 = vadd.f32 %v3801, %v4123
      %v4240 = vadd.f32 %v3802, %v4128
      %v4241 = vadd.f32 %v3803, %v4131
      %v4242 = vadd.f32 %v3804, %v4136
      %v4243 = vadd.f32 %v3805, %v4139
      %v4244 = vadd.f32 %v3806, %v4144
      %v4245 = vadd.f32 %v3807, %v4147
      %v4246 = vadd.f32 %v3808, %v4152
      %v4247 = vadd.f32 %v3809, %v4155
      %v4248 = vadd.f32 %v3810, %v4160
      %v4249 = vadd.f32 %v3811, %v4163
      %v4250 = vadd.f32 %v3812, %v4168
      %v4251 = vadd.f32 %v3813, %v4171
      %v4252 = vadd.f32 %v3814, %v4176
      %v4253 = vadd.f32 %v3815, %v4179
      %v4254 = vadd.f32 %v3816, %v4184
      %v4255 = vadd.f32 %v3817, %v4187
      %v4256 = vadd.f32 %v3818, %v4192
      %v4257 = vadd.f32 %v3819, %v4195
      %v4258 = vadd.f32 %v3820, %v4200
      %v4259 = vadd.f32 %v3821, %v4203
      %v4260 = vadd.f32 %v3822, %v4208
      %v4261 = vadd.f32 %v3823, %v4211
      %v4262 = vadd.f32 %v3824, %v4216
      %v4263 = vadd.f32 %v3825, %v4219
      %v4264 = vadd.f32 %v3826, %v4224
      %v4265 = vadd.f32 %v3827, %v4227
      %4266 = vst.msk [vmem:[#allocation3] sm:$0xff] %vm487, %v4230
      %4267 = vst.msk [vmem:[#allocation3 + $0x8] sm:$0xff] %vm487, %v4231
      %4268 = vst.msk [vmem:[#allocation3 + $0x10] sm:$0xff] %vm487, %v4232
      %4269 = vst.msk [vmem:[#allocation3 + $0x18] sm:$0xff] %vm487, %v4233
      %4270 = vst.msk [vmem:[#allocation3 + $0x20] sm:$0xff] %vm487, %v4234
      %4271 = vst.msk [vmem:[#allocation3 + $0x28] sm:$0xff] %vm487, %v4235
      %4272 = vst.msk [vmem:[#allocation3 + $0x30] sm:$0xff] %vm487, %v4236
      %4273 = vst.msk [vmem:[#allocation3 + $0x38] sm:$0xff] %vm487, %v4237
      %4274 = vst.msk [vmem:[#allocation3 + $0x40] sm:$0xff] %vm487, %v4238
      %4275 = vst.msk [vmem:[#allocation3 + $0x48] sm:$0xff] %vm487, %v4239
      %4276 = vst.msk [vmem:[#allocation3 + $0x50] sm:$0xff] %vm487, %v4240
      %4277 = vst.msk [vmem:[#allocation3 + $0x58] sm:$0xff] %vm487, %v4241
      %4278 = vst.msk [vmem:[#allocation3 + $0x60] sm:$0xff] %vm487, %v4242
      %4279 = vst.msk [vmem:[#allocation3 + $0x68] sm:$0xff] %vm487, %v4243
      %4280 = vst.msk [vmem:[#allocation3 + $0x70] sm:$0xff] %vm487, %v4244
      %4281 = vst.msk [vmem:[#allocation3 + $0x78] sm:$0xff] %vm487, %v4245
      %4282 = vst.msk [vmem:[#allocation3 + $0x80] sm:$0xff] %vm487, %v4246
      %4283 = vst.msk [vmem:[#allocation3 + $0x88] sm:$0xff] %vm487, %v4247
      %4284 = vst.msk [vmem:[#allocation3 + $0x90] sm:$0xff] %vm487, %v4248
      %4285 = vst.msk [vmem:[#allocation3 + $0x98] sm:$0xff] %vm487, %v4249
      %4286 = vst.msk [vmem:[#allocation3 + $0xa0] sm:$0xff] %vm487, %v4250
      %4287 = vst.msk [vmem:[#allocation3 + $0xa8] sm:$0xff] %vm487, %v4251
      %4288 = vst.msk [vmem:[#allocation3 + $0xb0] sm:$0xff] %vm487, %v4252
      %4289 = vst.msk [vmem:[#allocation3 + $0xb8] sm:$0xff] %vm487, %v4253
      %4290 = vst.msk [vmem:[#allocation3 + $0xc0] sm:$0xff] %vm487, %v4254
      %4291 = vst.msk [vmem:[#allocation3 + $0xc8] sm:$0xff] %vm487, %v4255
      %4292 = vst.msk [vmem:[#allocation3 + $0xd0] sm:$0xff] %vm487, %v4256
      %4293 = vst.msk [vmem:[#allocation3 + $0xd8] sm:$0xff] %vm487, %v4257
      %4294 = vst.msk [vmem:[#allocation3 + $0xe0] sm:$0xff] %vm487, %v4258
      %4295 = vst.msk [vmem:[#allocation3 + $0xe8] sm:$0xff] %vm487, %v4259
      %4296 = vst.msk [vmem:[#allocation3 + $0xf0] sm:$0xff] %vm487, %v4260
      %4297 = vst.msk [vmem:[#allocation3 + $0xf8] sm:$0xff] %vm487, %v4261
      %4298 = vst.msk [vmem:[#allocation3 + $0x100] sm:$0xff] %vm487, %v4262
      %4299 = vst.msk [vmem:[#allocation3 + $0x108] sm:$0xff] %vm487, %v4263
      %4300 = vst.msk [vmem:[#allocation3 + $0x110] sm:$0xff] %vm487, %v4264
      %4301 = vst.msk [vmem:[#allocation3 + $0x118] sm:$0xff] %vm487, %v4265
      %v4302 = vld [vmem:[#allocation3] sm:$0xff]
      %v4303 = vld [vmem:[#allocation3 + $0x8] sm:$0xff]
      %v4304 = vld [vmem:[#allocation3 + $0x10] sm:$0xff]
      %v4305 = vld [vmem:[#allocation3 + $0x18] sm:$0xff]
      %v4306 = vld [vmem:[#allocation3 + $0x20] sm:$0xff]
      %v4307 = vld [vmem:[#allocation3 + $0x28] sm:$0xff]
      %v4308 = vld [vmem:[#allocation3 + $0x30] sm:$0xff]
      %v4309 = vld [vmem:[#allocation3 + $0x38] sm:$0xff]
      %v4310 = vld [vmem:[#allocation3 + $0x40] sm:$0xff]
      %v4311 = vld [vmem:[#allocation3 + $0x48] sm:$0xff]
      %v4312 = vld [vmem:[#allocation3 + $0x50] sm:$0xff]
      %v4313 = vld [vmem:[#allocation3 + $0x58] sm:$0xff]
      %v4314 = vld [vmem:[#allocation3 + $0x60] sm:$0xff]
      %v4315 = vld [vmem:[#allocation3 + $0x68] sm:$0xff]
      %v4316 = vld [vmem:[#allocation3 + $0x70] sm:$0xff]
      %v4317 = vld [vmem:[#allocation3 + $0x78] sm:$0xff]
      %v4318 = vld [vmem:[#allocation3 + $0x80] sm:$0xff]
      %v4319 = vld [vmem:[#allocation3 + $0x88] sm:$0xff]
      %v4320 = vld [vmem:[#allocation3 + $0x90] sm:$0xff]
      %v4321 = vld [vmem:[#allocation3 + $0x98] sm:$0xff]
      %v4322 = vld [vmem:[#allocation3 + $0xa0] sm:$0xff]
      %v4323 = vld [vmem:[#allocation3 + $0xa8] sm:$0xff]
      %v4324 = vld [vmem:[#allocation3 + $0xb0] sm:$0xff]
      %v4325 = vld [vmem:[#allocation3 + $0xb8] sm:$0xff]
      %v4326 = vld [vmem:[#allocation3 + $0xc0] sm:$0xff]
      %v4327 = vld [vmem:[#allocation3 + $0xc8] sm:$0xff]
      %v4328 = vld [vmem:[#allocation3 + $0xd0] sm:$0xff]
      %v4329 = vld [vmem:[#allocation3 + $0xd8] sm:$0xff]
      %v4330 = vld [vmem:[#allocation3 + $0xe0] sm:$0xff]
      %v4331 = vld [vmem:[#allocation3 + $0xe8] sm:$0xff]
      %v4332 = vld [vmem:[#allocation3 + $0xf0] sm:$0xff]
      %v4333 = vld [vmem:[#allocation3 + $0xf8] sm:$0xff]
      %v4334 = vld [vmem:[#allocation3 + $0x100] sm:$0xff]
      %v4335 = vld [vmem:[#allocation3 + $0x108] sm:$0xff]
      %v4336 = vld [vmem:[#allocation3 + $0x110] sm:$0xff]
      %v4337 = vld [vmem:[#allocation3 + $0x118] sm:$0xff]
      %v4338 = vld [vmem:[#allocation2 + $0x10] sm:$0xc]
      %v4339 = vld [vmem:[#allocation2 + $0x14] sm:$0xf]
      %v4340 = vld [vmem:[#allocation2 + $0x18] sm:$0xf]
      %v4341 = vld [vmem:[#allocation2 + $0x1c] sm:$0xf]
      %v4342 = vld [vmem:[#allocation2 + $0x20] sm:$0xf]
      %v4343 = vld [vmem:[#allocation2 + $0x24] sm:$0xf]
      %v4344 = vld [vmem:[#allocation2 + $0x28] sm:$0xf]
      %v4345 = vld [vmem:[#allocation2 + $0x2c] sm:$0xf]
      %v4346 = vld [vmem:[#allocation2 + $0x30] sm:$0xf]
      %v4347 = vld [vmem:[#allocation2 + $0x34] sm:$0xf]
      %v4348 = vld [vmem:[#allocation2 + $0x38] sm:$0xf]
      %v4349 = vld [vmem:[#allocation2 + $0x3c] sm:$0xf]
      %v4350 = vld [vmem:[#allocation2 + $0x40] sm:$0xf]
      %v4351 = vld [vmem:[#allocation2 + $0x44] sm:$0xf]
      %v4352 = vld [vmem:[#allocation2 + $0x48] sm:$0xf]
      %v4353 = vld [vmem:[#allocation2 + $0x4c] sm:$0xf]
      %v4354 = vld [vmem:[#allocation2 + $0x50] sm:$0xf]
      %v4355 = vld [vmem:[#allocation2 + $0x54] sm:$0xf]
      %v4356 = vld [vmem:[#allocation2 + $0x58] sm:$0xf]
      %v4357 = vld [vmem:[#allocation2 + $0x5c] sm:$0xf]
      %v4358 = vld [vmem:[#allocation2 + $0x60] sm:$0xf]
      %v4359 = vld [vmem:[#allocation2 + $0x64] sm:$0xf]
      %v4360 = vld [vmem:[#allocation2 + $0x68] sm:$0xf]
      %v4361 = vld [vmem:[#allocation2 + $0x6c] sm:$0xf]
      %v4362 = vld [vmem:[#allocation2 + $0x70] sm:$0xf]
      %v4363 = vld [vmem:[#allocation2 + $0x74] sm:$0xf]
      %v4364 = vld [vmem:[#allocation2 + $0x78] sm:$0xf]
      %v4365 = vld [vmem:[#allocation2 + $0x7c] sm:$0xf]
      %v4366 = vld [vmem:[#allocation2 + $0x80] sm:$0xf]
      %v4367 = vld [vmem:[#allocation2 + $0x84] sm:$0xf]
      %v4368 = vld [vmem:[#allocation2 + $0x88] sm:$0xf]
      %v4369 = vld [vmem:[#allocation2 + $0x8c] sm:$0xf]
      %v4370 = vld [vmem:[#allocation2 + $0x90] sm:$0xf]
      %v4371 = vld [vmem:[#allocation2 + $0x94] sm:$0xf]
      %v4372 = vld [vmem:[#allocation2 + $0x98] sm:$0xf]
      %v4373 = vld [vmem:[#allocation2 + $0x9c] sm:$0xf]
      %v4374 = vld [vmem:[#allocation2 + $0xa0] sm:$0x7]
      %v4375 = vld [vmem:[%s1 + $0x1c] sm:$0xf]
      %v4413 = vunpack.c.l.b16 %v4338
      %v4414 = vunpack.c.l.b16 %v4339
      %v4415 = vunpack.c.l.b16 %v4340
      %v4416 = vunpack.c.l.b16 %v4341
      %v4417 = vunpack.c.l.b16 %v4342
      %v4418 = vunpack.c.l.b16 %v4343
      %v4419 = vunpack.c.l.b16 %v4344
      %v4420 = vunpack.c.l.b16 %v4345
      %v4421 = vunpack.c.l.b16 %v4346
      %v4422 = vunpack.c.l.b16 %v4347
      %v4423 = vunpack.c.l.b16 %v4348
      %v4424 = vunpack.c.l.b16 %v4349
      %v4425 = vunpack.c.l.b16 %v4350
      %v4426 = vunpack.c.l.b16 %v4351
      %v4427 = vunpack.c.l.b16 %v4352
      %v4428 = vunpack.c.l.b16 %v4353
      %v4429 = vunpack.c.l.b16 %v4354
      %v4430 = vunpack.c.l.b16 %v4355
      %v4431 = vunpack.c.l.b16 %v4356
      %v4432 = vunpack.c.l.b16 %v4357
      %v4433 = vunpack.c.l.b16 %v4358
      %v4434 = vunpack.c.l.b16 %v4359
      %v4435 = vunpack.c.l.b16 %v4360
      %v4436 = vunpack.c.l.b16 %v4361
      %v4437 = vunpack.c.l.b16 %v4362
      %v4438 = vunpack.c.l.b16 %v4363
      %v4439 = vunpack.c.l.b16 %v4364
      %v4440 = vunpack.c.l.b16 %v4365
      %v4441 = vunpack.c.l.b16 %v4366
      %v4442 = vunpack.c.l.b16 %v4367
      %v4443 = vunpack.c.l.b16 %v4368
      %v4444 = vunpack.c.l.b16 %v4369
      %v4445 = vunpack.c.l.b16 %v4370
      %v4446 = vunpack.c.l.b16 %v4371
      %v4447 = vunpack.c.l.b16 %v4372
      %v4448 = vunpack.c.l.b16 %v4373
      %v4449 = vunpack.c.l.b16 %v4374
      %v4450 = vpack.c.b16 %v4414, %v4413
      %v4451 = vpack.c.b16 %v4416, %v4415
      %v4452 = vpack.c.b16 %v4418, %v4417
      %v4453 = vpack.c.b16 %v4420, %v4419
      %v4454 = vpack.c.b16 %v4422, %v4421
      %v4455 = vpack.c.b16 %v4424, %v4423
      %v4456 = vpack.c.b16 %v4426, %v4425
      %v4457 = vpack.c.b16 %v4428, %v4427
      %v4458 = vpack.c.b16 %v4430, %v4429
      %v4459 = vpack.c.b16 %v4432, %v4431
      %v4460 = vpack.c.b16 %v4434, %v4433
      %v4461 = vpack.c.b16 %v4436, %v4435
      %v4462 = vpack.c.b16 %v4438, %v4437
      %v4463 = vpack.c.b16 %v4440, %v4439
      %v4464 = vpack.c.b16 %v4442, %v4441
      %v4465 = vpack.c.b16 %v4444, %v4443
      %v4466 = vpack.c.b16 %v4446, %v4445
      %v4467 = vpack.c.b16 %v4448, %v4447
      %v4468 = vpack.c.b16 %v4449, %v4449
      %vm4469 = vsmask.f32 5376
      %v4471 = vshrl.u32 %v4450, 16
      %v4473 = vrot.slane %v4471, 2
      %v4474 = vshll.u32 %v4450, 16
      %v4476 = vrot.slane %v4474, 3
      %v4477 = vor.u32 %v4473, %v4476
      %v4479 = vshrl.u32 %v4451, 16
      %v4481 = vrot.slane %v4479, 2
      %v4482 = vshll.u32 %v4451, 16
      %v4484 = vrot.slane %v4482, 3
      %v4485 = vor.u32 %v4481, %v4484
      %v4486 = vsel %vm4469, %v4477, %v4485
      %v4488 = vshrl.u32 %v4452, 16
      %v4490 = vrot.slane %v4488, 2
      %v4491 = vshll.u32 %v4452, 16
      %v4493 = vrot.slane %v4491, 3
      %v4494 = vor.u32 %v4490, %v4493
      %v4495 = vsel %vm4469, %v4485, %v4494
      %v4497 = vshrl.u32 %v4453, 16
      %v4499 = vrot.slane %v4497, 2
      %v4500 = vshll.u32 %v4453, 16
      %v4502 = vrot.slane %v4500, 3
      %v4503 = vor.u32 %v4499, %v4502
      %v4504 = vsel %vm4469, %v4494, %v4503
      %v4506 = vshrl.u32 %v4454, 16
      %v4508 = vrot.slane %v4506, 2
      %v4509 = vshll.u32 %v4454, 16
      %v4511 = vrot.slane %v4509, 3
      %v4512 = vor.u32 %v4508, %v4511
      %v4513 = vsel %vm4469, %v4503, %v4512
      %v4515 = vshrl.u32 %v4455, 16
      %v4517 = vrot.slane %v4515, 2
      %v4518 = vshll.u32 %v4455, 16
      %v4520 = vrot.slane %v4518, 3
      %v4521 = vor.u32 %v4517, %v4520
      %v4522 = vsel %vm4469, %v4512, %v4521
      %v4524 = vshrl.u32 %v4456, 16
      %v4526 = vrot.slane %v4524, 2
      %v4527 = vshll.u32 %v4456, 16
      %v4529 = vrot.slane %v4527, 3
      %v4530 = vor.u32 %v4526, %v4529
      %v4531 = vsel %vm4469, %v4521, %v4530
      %v4533 = vshrl.u32 %v4457, 16
      %v4535 = vrot.slane %v4533, 2
      %v4536 = vshll.u32 %v4457, 16
      %v4538 = vrot.slane %v4536, 3
      %v4539 = vor.u32 %v4535, %v4538
      %v4540 = vsel %vm4469, %v4530, %v4539
      %v4542 = vshrl.u32 %v4458, 16
      %v4544 = vrot.slane %v4542, 2
      %v4545 = vshll.u32 %v4458, 16
      %v4547 = vrot.slane %v4545, 3
      %v4548 = vor.u32 %v4544, %v4547
      %v4549 = vsel %vm4469, %v4539, %v4548
      %v4551 = vshrl.u32 %v4459, 16
      %v4553 = vrot.slane %v4551, 2
      %v4554 = vshll.u32 %v4459, 16
      %v4556 = vrot.slane %v4554, 3
      %v4557 = vor.u32 %v4553, %v4556
      %v4558 = vsel %vm4469, %v4548, %v4557
      %v4560 = vshrl.u32 %v4460, 16
      %v4562 = vrot.slane %v4560, 2
      %v4563 = vshll.u32 %v4460, 16
      %v4565 = vrot.slane %v4563, 3
      %v4566 = vor.u32 %v4562, %v4565
      %v4567 = vsel %vm4469, %v4557, %v4566
      %v4569 = vshrl.u32 %v4461, 16
      %v4571 = vrot.slane %v4569, 2
      %v4572 = vshll.u32 %v4461, 16
      %v4574 = vrot.slane %v4572, 3
      %v4575 = vor.u32 %v4571, %v4574
      %v4576 = vsel %vm4469, %v4566, %v4575
      %v4578 = vshrl.u32 %v4462, 16
      %v4580 = vrot.slane %v4578, 2
      %v4581 = vshll.u32 %v4462, 16
      %v4583 = vrot.slane %v4581, 3
      %v4584 = vor.u32 %v4580, %v4583
      %v4585 = vsel %vm4469, %v4575, %v4584
      %v4587 = vshrl.u32 %v4463, 16
      %v4589 = vrot.slane %v4587, 2
      %v4590 = vshll.u32 %v4463, 16
      %v4592 = vrot.slane %v4590, 3
      %v4593 = vor.u32 %v4589, %v4592
      %v4594 = vsel %vm4469, %v4584, %v4593
      %v4596 = vshrl.u32 %v4464, 16
      %v4598 = vrot.slane %v4596, 2
      %v4599 = vshll.u32 %v4464, 16
      %v4601 = vrot.slane %v4599, 3
      %v4602 = vor.u32 %v4598, %v4601
      %v4603 = vsel %vm4469, %v4593, %v4602
      %v4605 = vshrl.u32 %v4465, 16
      %v4607 = vrot.slane %v4605, 2
      %v4608 = vshll.u32 %v4465, 16
      %v4610 = vrot.slane %v4608, 3
      %v4611 = vor.u32 %v4607, %v4610
      %v4612 = vsel %vm4469, %v4602, %v4611
      %v4614 = vshrl.u32 %v4466, 16
      %v4616 = vrot.slane %v4614, 2
      %v4617 = vshll.u32 %v4466, 16
      %v4619 = vrot.slane %v4617, 3
      %v4620 = vor.u32 %v4616, %v4619
      %v4621 = vsel %vm4469, %v4611, %v4620
      %v4623 = vshrl.u32 %v4467, 16
      %v4625 = vrot.slane %v4623, 2
      %v4626 = vshll.u32 %v4467, 16
      %v4628 = vrot.slane %v4626, 3
      %v4629 = vor.u32 %v4625, %v4628
      %v4630 = vsel %vm4469, %v4620, %v4629
      %v4632 = vshrl.u32 %v4468, 16
      %v4634 = vrot.slane %v4632, 2
      %v4635 = vshll.u32 %v4468, 16
      %v4637 = vrot.slane %v4635, 3
      %v4638 = vor.u32 %v4634, %v4637
      %v4639 = vsel %vm4469, %v4629, %v4638
      %v4641 = vsel %vm487, %v4486, 0
      %v4644 = vsel %vm487, %v4495, 0
      %v4647 = vsel %vm487, %v4504, 0
      %v4650 = vsel %vm487, %v4513, 0
      %v4653 = vsel %vm487, %v4522, 0
      %v4656 = vsel %vm487, %v4531, 0
      %v4659 = vsel %vm487, %v4540, 0
      %v4662 = vsel %vm487, %v4549, 0
      %v4665 = vsel %vm487, %v4558, 0
      %v4668 = vsel %vm487, %v4567, 0
      %v4671 = vsel %vm487, %v4576, 0
      %v4674 = vsel %vm487, %v4585, 0
      %v4677 = vsel %vm487, %v4594, 0
      %v4680 = vsel %vm487, %v4603, 0
      %v4683 = vsel %vm487, %v4612, 0
      %v4686 = vsel %vm487, %v4621, 0
      %v4689 = vsel %vm487, %v4630, 0
      %v4692 = vsel %vm487, %v4639, 0
      %v4695 = vsel %vm741, %v4375, 0
      %4697 = vmatprep.subr.bf16.mxu0 0
      %4698 = vmatpush1.bf16.msra.mxu0 %v4695
      %4699 = vmatprep.subr.bf16.mxu0 0
      %4700 = vmatpush1.bf16.msra.mxu0 0
      %4701 = vmatprep.subr.bf16.mxu0 0
      %4702 = vmatpush1.bf16.msra.mxu0 0
      %4703 = vmatprep.subr.bf16.mxu0 0
      %4704 = vmatpush1.bf16.msra.mxu0 0
      %4705 = vmatprep.subr.bf16.mxu0 0
      %4706 = vmatpush1.bf16.msra.mxu0 0
      %4707 = vmatprep.subr.bf16.mxu0 0
      %4708 = vmatpush1.bf16.msra.mxu0 0
      %4709 = vmatprep.subr.bf16.mxu0 0
      %4710 = vmatpush1.bf16.msra.mxu0 0
      %4711 = vmatprep.subr.bf16.mxu0 0
      %4712 = vmatpush1.bf16.msra.mxu0 0
      %4713 = vmatprep.subr.bf16.mxu0 0
      %4714 = vmatpush1.bf16.msra.mxu0 0
      %4715 = vmatprep.subr.bf16.mxu0 0
      %4716 = vmatpush1.bf16.msra.mxu0 0
      %4717 = vmatprep.subr.bf16.mxu0 0
      %4718 = vmatpush1.bf16.msra.mxu0 0
      %4719 = vmatprep.subr.bf16.mxu0 0
      %4720 = vmatpush1.bf16.msra.mxu0 0
      %4721 = vmatprep.subr.bf16.mxu0 0
      %4722 = vmatpush1.bf16.msra.mxu0 0
      %4723 = vmatprep.subr.bf16.mxu0 0
      %4724 = vmatpush1.bf16.msra.mxu0 0
      %4725 = vmatprep.subr.bf16.mxu0 0
      %4726 = vmatpush1.bf16.msra.mxu0 0
      %4727 = vmatprep.subr.bf16.mxu0 0
      %4728 = vmatpush1.bf16.msra.mxu0 0
      %4729 = vmatprep.mubr.bf16.mxu0 0
      %4730 = vmatmul.mubr.bf16.gmra.mrb[0].mxu0 %v4641
      %v4731 = vpop.f32.mrb[0].mxu0
      %v4732 = vadd.f32 0.0, %v4731
      %v4733 = vpop.f32.mrb[0].mxu0
      %v4734 = vpop.f32.mrb[0].mxu0
      %v4735 = vadd.f32 0.0, %v4734
      %v4736 = vpop.f32.mrb[0].mxu0
      %4737 = vmatprep.mubr.bf16.mxu0 0
      %4738 = vmatmul.mubr.bf16.gmra.mrb[0].mxu0 %v4644
      %v4739 = vpop.f32.mrb[0].mxu0
      %v4740 = vadd.f32 0.0, %v4739
      %v4741 = vpop.f32.mrb[0].mxu0
      %v4742 = vpop.f32.mrb[0].mxu0
      %v4743 = vadd.f32 0.0, %v4742
      %v4744 = vpop.f32.mrb[0].mxu0
      %4745 = vmatprep.mubr.bf16.mxu0 0
      %4746 = vmatmul.mubr.bf16.gmra.mrb[0].mxu0 %v4647
      %v4747 = vpop.f32.mrb[0].mxu0
      %v4748 = vadd.f32 0.0, %v4747
      %v4749 = vpop.f32.mrb[0].mxu0
      %v4750 = vpop.f32.mrb[0].mxu0
      %v4751 = vadd.f32 0.0, %v4750
      %v4752 = vpop.f32.mrb[0].mxu0
      %4753 = vmatprep.mubr.bf16.mxu0 0
      %4754 = vmatmul.mubr.bf16.gmra.mrb[0].mxu0 %v4650
      %v4755 = vpop.f32.mrb[0].mxu0
      %v4756 = vadd.f32 0.0, %v4755
      %v4757 = vpop.f32.mrb[0].mxu0
      %v4758 = vpop.f32.mrb[0].mxu0
      %v4759 = vadd.f32 0.0, %v4758
      %v4760 = vpop.f32.mrb[0].mxu0
      %4761 = vmatprep.mubr.bf16.mxu0 0
      %4762 = vmatmul.mubr.bf16.gmra.mrb[0].mxu0 %v4653
      %v4763 = vpop.f32.mrb[0].mxu0
      %v4764 = vadd.f32 0.0, %v4763
      %v4765 = vpop.f32.mrb[0].mxu0
      %v4766 = vpop.f32.mrb[0].mxu0
      %v4767 = vadd.f32 0.0, %v4766
      %v4768 = vpop.f32.mrb[0].mxu0
      %4769 = vmatprep.mubr.bf16.mxu0 0
      %4770 = vmatmul.mubr.bf16.gmra.mrb[0].mxu0 %v4656
      %v4771 = vpop.f32.mrb[0].mxu0
      %v4772 = vadd.f32 0.0, %v4771
      %v4773 = vpop.f32.mrb[0].mxu0
      %v4774 = vpop.f32.mrb[0].mxu0
      %v4775 = vadd.f32 0.0, %v4774
      %v4776 = vpop.f32.mrb[0].mxu0
      %4777 = vmatprep.mubr.bf16.mxu0 0
      %4778 = vmatmul.mubr.bf16.gmra.mrb[0].mxu0 %v4659
      %v4779 = vpop.f32.mrb[0].mxu0
      %v4780 = vadd.f32 0.0, %v4779
      %v4781 = vpop.f32.mrb[0].mxu0
      %v4782 = vpop.f32.mrb[0].mxu0
      %v4783 = vadd.f32 0.0, %v4782
      %v4784 = vpop.f32.mrb[0].mxu0
      %4785 = vmatprep.mubr.bf16.mxu0 0
      %4786 = vmatmul.mubr.bf16.gmra.mrb[0].mxu0 %v4662
      %v4787 = vpop.f32.mrb[0].mxu0
      %v4788 = vadd.f32 0.0, %v4787
      %v4789 = vpop.f32.mrb[0].mxu0
      %v4790 = vpop.f32.mrb[0].mxu0
      %v4791 = vadd.f32 0.0, %v4790
      %v4792 = vpop.f32.mrb[0].mxu0
      %4793 = vmatprep.mubr.bf16.mxu0 0
      %4794 = vmatmul.mubr.bf16.gmra.mrb[0].mxu0 %v4665
      %v4795 = vpop.f32.mrb[0].mxu0
      %v4796 = vadd.f32 0.0, %v4795
      %v4797 = vpop.f32.mrb[0].mxu0
      %v4798 = vpop.f32.mrb[0].mxu0
      %v4799 = vadd.f32 0.0, %v4798
      %v4800 = vpop.f32.mrb[0].mxu0
      %4801 = vmatprep.mubr.bf16.mxu0 0
      %4802 = vmatmul.mubr.bf16.gmra.mrb[0].mxu0 %v4668
      %v4803 = vpop.f32.mrb[0].mxu0
      %v4804 = vadd.f32 0.0, %v4803
      %v4805 = vpop.f32.mrb[0].mxu0
      %v4806 = vpop.f32.mrb[0].mxu0
      %v4807 = vadd.f32 0.0, %v4806
      %v4808 = vpop.f32.mrb[0].mxu0
      %4809 = vmatprep.mubr.bf16.mxu0 0
      %4810 = vmatmul.mubr.bf16.gmra.mrb[0].mxu0 %v4671
      %v4811 = vpop.f32.mrb[0].mxu0
      %v4812 = vadd.f32 0.0, %v4811
      %v4813 = vpop.f32.mrb[0].mxu0
      %v4814 = vpop.f32.mrb[0].mxu0
      %v4815 = vadd.f32 0.0, %v4814
      %v4816 = vpop.f32.mrb[0].mxu0
      %4817 = vmatprep.mubr.bf16.mxu0 0
      %4818 = vmatmul.mubr.bf16.gmra.mrb[0].mxu0 %v4674
      %v4819 = vpop.f32.mrb[0].mxu0
      %v4820 = vadd.f32 0.0, %v4819
      %v4821 = vpop.f32.mrb[0].mxu0
      %v4822 = vpop.f32.mrb[0].mxu0
      %v4823 = vadd.f32 0.0, %v4822
      %v4824 = vpop.f32.mrb[0].mxu0
      %4825 = vmatprep.mubr.bf16.mxu0 0
      %4826 = vmatmul.mubr.bf16.gmra.mrb[0].mxu0 %v4677
      %v4827 = vpop.f32.mrb[0].mxu0
      %v4828 = vadd.f32 0.0, %v4827
      %v4829 = vpop.f32.mrb[0].mxu0
      %v4830 = vpop.f32.mrb[0].mxu0
      %v4831 = vadd.f32 0.0, %v4830
      %v4832 = vpop.f32.mrb[0].mxu0
      %4833 = vmatprep.mubr.bf16.mxu0 0
      %4834 = vmatmul.mubr.bf16.gmra.mrb[0].mxu0 %v4680
      %v4835 = vpop.f32.mrb[0].mxu0
      %v4836 = vadd.f32 0.0, %v4835
      %v4837 = vpop.f32.mrb[0].mxu0
      %v4838 = vpop.f32.mrb[0].mxu0
      %v4839 = vadd.f32 0.0, %v4838
      %v4840 = vpop.f32.mrb[0].mxu0
      %4841 = vmatprep.mubr.bf16.mxu0 0
      %4842 = vmatmul.mubr.bf16.gmra.mrb[0].mxu0 %v4683
      %v4843 = vpop.f32.mrb[0].mxu0
      %v4844 = vadd.f32 0.0, %v4843
      %v4845 = vpop.f32.mrb[0].mxu0
      %v4846 = vpop.f32.mrb[0].mxu0
      %v4847 = vadd.f32 0.0, %v4846
      %v4848 = vpop.f32.mrb[0].mxu0
      %4849 = vmatprep.mubr.bf16.mxu0 0
      %4850 = vmatmul.mubr.bf16.gmra.mrb[0].mxu0 %v4686
      %v4851 = vpop.f32.mrb[0].mxu0
      %v4852 = vadd.f32 0.0, %v4851
      %v4853 = vpop.f32.mrb[0].mxu0
      %v4854 = vpop.f32.mrb[0].mxu0
      %v4855 = vadd.f32 0.0, %v4854
      %v4856 = vpop.f32.mrb[0].mxu0
      %4857 = vmatprep.mubr.bf16.mxu0 0
      %4858 = vmatmul.mubr.bf16.gmra.mrb[0].mxu0 %v4689
      %v4859 = vpop.f32.mrb[0].mxu0
      %v4860 = vadd.f32 0.0, %v4859
      %v4861 = vpop.f32.mrb[0].mxu0
      %v4862 = vpop.f32.mrb[0].mxu0
      %v4863 = vadd.f32 0.0, %v4862
      %v4864 = vpop.f32.mrb[0].mxu0
      %4865 = vmatprep.mubr.bf16.mxu0 0
      %4866 = vmatmul.mubr.bf16.gmra.mrb[0].mxu0 %v4692
      %v4867 = vpop.f32.mrb[0].mxu0
      %v4868 = vadd.f32 0.0, %v4867
      %v4869 = vpop.f32.mrb[0].mxu0
      %v4870 = vpop.f32.mrb[0].mxu0
      %v4871 = vadd.f32 0.0, %v4870
      %v4872 = vpop.f32.mrb[0].mxu0
      %4873 = vdwg.mxu0
      %v4874 = vadd.f32 %v4302, %v4732
      %v4875 = vadd.f32 %v4303, %v4735
      %v4876 = vadd.f32 %v4304, %v4740
      %v4877 = vadd.f32 %v4305, %v4743
      %v4878 = vadd.f32 %v4306, %v4748
      %v4879 = vadd.f32 %v4307, %v4751
      %v4880 = vadd.f32 %v4308, %v4756
      %v4881 = vadd.f32 %v4309, %v4759
      %v4882 = vadd.f32 %v4310, %v4764
      %v4883 = vadd.f32 %v4311, %v4767
      %v4884 = vadd.f32 %v4312, %v4772
      %v4885 = vadd.f32 %v4313, %v4775
      %v4886 = vadd.f32 %v4314, %v4780
      %v4887 = vadd.f32 %v4315, %v4783
      %v4888 = vadd.f32 %v4316, %v4788
      %v4889 = vadd.f32 %v4317, %v4791
      %v4890 = vadd.f32 %v4318, %v4796
      %v4891 = vadd.f32 %v4319, %v4799
      %v4892 = vadd.f32 %v4320, %v4804
      %v4893 = vadd.f32 %v4321, %v4807
      %v4894 = vadd.f32 %v4322, %v4812
      %v4895 = vadd.f32 %v4323, %v4815
      %v4896 = vadd.f32 %v4324, %v4820
      %v4897 = vadd.f32 %v4325, %v4823
      %v4898 = vadd.f32 %v4326, %v4828
      %v4899 = vadd.f32 %v4327, %v4831
      %v4900 = vadd.f32 %v4328, %v4836
      %v4901 = vadd.f32 %v4329, %v4839
      %v4902 = vadd.f32 %v4330, %v4844
      %v4903 = vadd.f32 %v4331, %v4847
      %v4904 = vadd.f32 %v4332, %v4852
      %v4905 = vadd.f32 %v4333, %v4855
      %v4906 = vadd.f32 %v4334, %v4860
      %v4907 = vadd.f32 %v4335, %v4863
      %v4908 = vadd.f32 %v4336, %v4868
      %v4909 = vadd.f32 %v4337, %v4871
      %4910 = vst.msk [vmem:[#allocation3] sm:$0xff] %vm487, %v4874
      %4911 = vst.msk [vmem:[#allocation3 + $0x8] sm:$0xff] %vm487, %v4875
      %4912 = vst.msk [vmem:[#allocation3 + $0x10] sm:$0xff] %vm487, %v4876
      %4913 = vst.msk [vmem:[#allocation3 + $0x18] sm:$0xff] %vm487, %v4877
      %4914 = vst.msk [vmem:[#allocation3 + $0x20] sm:$0xff] %vm487, %v4878
      %4915 = vst.msk [vmem:[#allocation3 + $0x28] sm:$0xff] %vm487, %v4879
      %4916 = vst.msk [vmem:[#allocation3 + $0x30] sm:$0xff] %vm487, %v4880
      %4917 = vst.msk [vmem:[#allocation3 + $0x38] sm:$0xff] %vm487, %v4881
      %4918 = vst.msk [vmem:[#allocation3 + $0x40] sm:$0xff] %vm487, %v4882
      %4919 = vst.msk [vmem:[#allocation3 + $0x48] sm:$0xff] %vm487, %v4883
      %4920 = vst.msk [vmem:[#allocation3 + $0x50] sm:$0xff] %vm487, %v4884
      %4921 = vst.msk [vmem:[#allocation3 + $0x58] sm:$0xff] %vm487, %v4885
      %4922 = vst.msk [vmem:[#allocation3 + $0x60] sm:$0xff] %vm487, %v4886
      %4923 = vst.msk [vmem:[#allocation3 + $0x68] sm:$0xff] %vm487, %v4887
      %4924 = vst.msk [vmem:[#allocation3 + $0x70] sm:$0xff] %vm487, %v4888
      %4925 = vst.msk [vmem:[#allocation3 + $0x78] sm:$0xff] %vm487, %v4889
      %4926 = vst.msk [vmem:[#allocation3 + $0x80] sm:$0xff] %vm487, %v4890
      %4927 = vst.msk [vmem:[#allocation3 + $0x88] sm:$0xff] %vm487, %v4891
      %4928 = vst.msk [vmem:[#allocation3 + $0x90] sm:$0xff] %vm487, %v4892
      %4929 = vst.msk [vmem:[#allocation3 + $0x98] sm:$0xff] %vm487, %v4893
      %4930 = vst.msk [vmem:[#allocation3 + $0xa0] sm:$0xff] %vm487, %v4894
      %4931 = vst.msk [vmem:[#allocation3 + $0xa8] sm:$0xff] %vm487, %v4895
      %4932 = vst.msk [vmem:[#allocation3 + $0xb0] sm:$0xff] %vm487, %v4896
      %4933 = vst.msk [vmem:[#allocation3 + $0xb8] sm:$0xff] %vm487, %v4897
      %4934 = vst.msk [vmem:[#allocation3 + $0xc0] sm:$0xff] %vm487, %v4898
      %4935 = vst.msk [vmem:[#allocation3 + $0xc8] sm:$0xff] %vm487, %v4899
      %4936 = vst.msk [vmem:[#allocation3 + $0xd0] sm:$0xff] %vm487, %v4900
      %4937 = vst.msk [vmem:[#allocation3 + $0xd8] sm:$0xff] %vm487, %v4901
      %4938 = vst.msk [vmem:[#allocation3 + $0xe0] sm:$0xff] %vm487, %v4902
      %4939 = vst.msk [vmem:[#allocation3 + $0xe8] sm:$0xff] %vm487, %v4903
      %4940 = vst.msk [vmem:[#allocation3 + $0xf0] sm:$0xff] %vm487, %v4904
      %4941 = vst.msk [vmem:[#allocation3 + $0xf8] sm:$0xff] %vm487, %v4905
      %4942 = vst.msk [vmem:[#allocation3 + $0x100] sm:$0xff] %vm487, %v4906
      %4943 = vst.msk [vmem:[#allocation3 + $0x108] sm:$0xff] %vm487, %v4907
      %4944 = vst.msk [vmem:[#allocation3 + $0x110] sm:$0xff] %vm487, %v4908
      %4945 = vst.msk [vmem:[#allocation3 + $0x118] sm:$0xff] %vm487, %v4909
      %v4946 = vld [vmem:[#allocation3] sm:$0xff]
      %v4947 = vld [vmem:[#allocation3 + $0x8] sm:$0xff]
      %v4948 = vld [vmem:[#allocation3 + $0x10] sm:$0xff]
      %v4949 = vld [vmem:[#allocation3 + $0x18] sm:$0xff]
      %v4950 = vld [vmem:[#allocation3 + $0x20] sm:$0xff]
      %v4951 = vld [vmem:[#allocation3 + $0x28] sm:$0xff]
      %v4952 = vld [vmem:[#allocation3 + $0x30] sm:$0xff]
      %v4953 = vld [vmem:[#allocation3 + $0x38] sm:$0xff]
      %v4954 = vld [vmem:[#allocation3 + $0x40] sm:$0xff]
      %v4955 = vld [vmem:[#allocation3 + $0x48] sm:$0xff]
      %v4956 = vld [vmem:[#allocation3 + $0x50] sm:$0xff]
      %v4957 = vld [vmem:[#allocation3 + $0x58] sm:$0xff]
      %v4958 = vld [vmem:[#allocation3 + $0x60] sm:$0xff]
      %v4959 = vld [vmem:[#allocation3 + $0x68] sm:$0xff]
      %v4960 = vld [vmem:[#allocation3 + $0x70] sm:$0xff]
      %v4961 = vld [vmem:[#allocation3 + $0x78] sm:$0xff]
      %v4962 = vld [vmem:[#allocation3 + $0x80] sm:$0xff]
      %v4963 = vld [vmem:[#allocation3 + $0x88] sm:$0xff]
      %v4964 = vld [vmem:[#allocation3 + $0x90] sm:$0xff]
      %v4965 = vld [vmem:[#allocation3 + $0x98] sm:$0xff]
      %v4966 = vld [vmem:[#allocation3 + $0xa0] sm:$0xff]
      %v4967 = vld [vmem:[#allocation3 + $0xa8] sm:$0xff]
      %v4968 = vld [vmem:[#allocation3 + $0xb0] sm:$0xff]
      %v4969 = vld [vmem:[#allocation3 + $0xb8] sm:$0xff]
      %v4970 = vld [vmem:[#allocation3 + $0xc0] sm:$0xff]
      %v4971 = vld [vmem:[#allocation3 + $0xc8] sm:$0xff]
      %v4972 = vld [vmem:[#allocation3 + $0xd0] sm:$0xff]
      %v4973 = vld [vmem:[#allocation3 + $0xd8] sm:$0xff]
      %v4974 = vld [vmem:[#allocation3 + $0xe0] sm:$0xff]
      %v4975 = vld [vmem:[#allocation3 + $0xe8] sm:$0xff]
      %v4976 = vld [vmem:[#allocation3 + $0xf0] sm:$0xff]
      %v4977 = vld [vmem:[#allocation3 + $0xf8] sm:$0xff]
      %v4978 = vld [vmem:[#allocation3 + $0x100] sm:$0xff]
      %v4979 = vld [vmem:[#allocation3 + $0x108] sm:$0xff]
      %v4980 = vld [vmem:[#allocation3 + $0x110] sm:$0xff]
      %v4981 = vld [vmem:[#allocation3 + $0x118] sm:$0xff]
      %v4982 = vld [vmem:[#allocation2 + $0x10] sm:$0x8]
      %v4983 = vld [vmem:[#allocation2 + $0x14] sm:$0xf]
      %v4984 = vld [vmem:[#allocation2 + $0x18] sm:$0xf]
      %v4985 = vld [vmem:[#allocation2 + $0x1c] sm:$0xf]
      %v4986 = vld [vmem:[#allocation2 + $0x20] sm:$0xf]
      %v4987 = vld [vmem:[#allocation2 + $0x24] sm:$0xf]
      %v4988 = vld [vmem:[#allocation2 + $0x28] sm:$0xf]
      %v4989 = vld [vmem:[#allocation2 + $0x2c] sm:$0xf]
      %v4990 = vld [vmem:[#allocation2 + $0x30] sm:$0xf]
      %v4991 = vld [vmem:[#allocation2 + $0x34] sm:$0xf]
      %v4992 = vld [vmem:[#allocation2 + $0x38] sm:$0xf]
      %v4993 = vld [vmem:[#allocation2 + $0x3c] sm:$0xf]
      %v4994 = vld [vmem:[#allocation2 + $0x40] sm:$0xf]
      %v4995 = vld [vmem:[#allocation2 + $0x44] sm:$0xf]
      %v4996 = vld [vmem:[#allocation2 + $0x48] sm:$0xf]
      %v4997 = vld [vmem:[#allocation2 + $0x4c] sm:$0xf]
      %v4998 = vld [vmem:[#allocation2 + $0x50] sm:$0xf]
      %v4999 = vld [vmem:[#allocation2 + $0x54] sm:$0xf]
      %v5000 = vld [vmem:[#allocation2 + $0x58] sm:$0xf]
      %v5001 = vld [vmem:[#allocation2 + $0x5c] sm:$0xf]
      %v5002 = vld [vmem:[#allocation2 + $0x60] sm:$0xf]
      %v5003 = vld [vmem:[#allocation2 + $0x64] sm:$0xf]
      %v5004 = vld [vmem:[#allocation2 + $0x68] sm:$0xf]
      %v5005 = vld [vmem:[#allocation2 + $0x6c] sm:$0xf]
      %v5006 = vld [vmem:[#allocation2 + $0x70] sm:$0xf]
      %v5007 = vld [vmem:[#allocation2 + $0x74] sm:$0xf]
      %v5008 = vld [vmem:[#allocation2 + $0x78] sm:$0xf]
      %v5009 = vld [vmem:[#allocation2 + $0x7c] sm:$0xf]
      %v5010 = vld [vmem:[#allocation2 + $0x80] sm:$0xf]
      %v5011 = vld [vmem:[#allocation2 + $0x84] sm:$0xf]
      %v5012 = vld [vmem:[#allocation2 + $0x88] sm:$0xf]
      %v5013 = vld [vmem:[#allocation2 + $0x8c] sm:$0xf]
      %v5014 = vld [vmem:[#allocation2 + $0x90] sm:$0xf]
      %v5015 = vld [vmem:[#allocation2 + $0x94] sm:$0xf]
      %v5016 = vld [vmem:[#allocation2 + $0x98] sm:$0xf]
      %v5017 = vld [vmem:[#allocation2 + $0x9c] sm:$0xf]
      %v5018 = vld [vmem:[#allocation2 + $0xa0] sm:$0x7]
      %v5019 = vld [vmem:[%s1 + $0x20] sm:$0xf]
      %v5057 = vunpack.c.l.b16 %v4982
      %v5058 = vunpack.c.l.b16 %v4983
      %v5059 = vunpack.c.l.b16 %v4984
      %v5060 = vunpack.c.l.b16 %v4985
      %v5061 = vunpack.c.l.b16 %v4986
      %v5062 = vunpack.c.l.b16 %v4987
      %v5063 = vunpack.c.l.b16 %v4988
      %v5064 = vunpack.c.l.b16 %v4989
      %v5065 = vunpack.c.l.b16 %v4990
      %v5066 = vunpack.c.l.b16 %v4991
      %v5067 = vunpack.c.l.b16 %v4992
      %v5068 = vunpack.c.l.b16 %v4993
      %v5069 = vunpack.c.l.b16 %v4994
      %v5070 = vunpack.c.l.b16 %v4995
      %v5071 = vunpack.c.l.b16 %v4996
      %v5072 = vunpack.c.l.b16 %v4997
      %v5073 = vunpack.c.l.b16 %v4998
      %v5074 = vunpack.c.l.b16 %v4999
      %v5075 = vunpack.c.l.b16 %v5000
      %v5076 = vunpack.c.l.b16 %v5001
      %v5077 = vunpack.c.l.b16 %v5002
      %v5078 = vunpack.c.l.b16 %v5003
      %v5079 = vunpack.c.l.b16 %v5004
      %v5080 = vunpack.c.l.b16 %v5005
      %v5081 = vunpack.c.l.b16 %v5006
      %v5082 = vunpack.c.l.b16 %v5007
      %v5083 = vunpack.c.l.b16 %v5008
      %v5084 = vunpack.c.l.b16 %v5009
      %v5085 = vunpack.c.l.b16 %v5010
      %v5086 = vunpack.c.l.b16 %v5011
      %v5087 = vunpack.c.l.b16 %v5012
      %v5088 = vunpack.c.l.b16 %v5013
      %v5089 = vunpack.c.l.b16 %v5014
      %v5090 = vunpack.c.l.b16 %v5015
      %v5091 = vunpack.c.l.b16 %v5016
      %v5092 = vunpack.c.l.b16 %v5017
      %v5093 = vunpack.c.l.b16 %v5018
      %v5094 = vpack.c.b16 %v5058, %v5057
      %v5095 = vpack.c.b16 %v5060, %v5059
      %v5096 = vpack.c.b16 %v5062, %v5061
      %v5097 = vpack.c.b16 %v5064, %v5063
      %v5098 = vpack.c.b16 %v5066, %v5065
      %v5099 = vpack.c.b16 %v5068, %v5067
      %v5100 = vpack.c.b16 %v5070, %v5069
      %v5101 = vpack.c.b16 %v5072, %v5071
      %v5102 = vpack.c.b16 %v5074, %v5073
      %v5103 = vpack.c.b16 %v5076, %v5075
      %v5104 = vpack.c.b16 %v5078, %v5077
      %v5105 = vpack.c.b16 %v5080, %v5079
      %v5106 = vpack.c.b16 %v5082, %v5081
      %v5107 = vpack.c.b16 %v5084, %v5083
      %v5108 = vpack.c.b16 %v5086, %v5085
      %v5109 = vpack.c.b16 %v5088, %v5087
      %v5110 = vpack.c.b16 %v5090, %v5089
      %v5111 = vpack.c.b16 %v5092, %v5091
      %v5112 = vpack.c.b16 %v5093, %v5093
      %vm5113 = vcmask 1044480
      %v5114 = vrot.slane %v5094, 3
      %v5115 = vrot.slane %v5095, 3
      %v5116 = vsel %vm5113, %v5114, %v5115
      %v5117 = vrot.slane %v5096, 3
      %v5118 = vsel %vm5113, %v5115, %v5117
      %v5119 = vrot.slane %v5097, 3
      %v5120 = vsel %vm5113, %v5117, %v5119
      %v5121 = vrot.slane %v5098, 3
      %v5122 = vsel %vm5113, %v5119, %v5121
      %v5123 = vrot.slane %v5099, 3
      %v5124 = vsel %vm5113, %v5121, %v5123
      %v5125 = vrot.slane %v5100, 3
      %v5126 = vsel %vm5113, %v5123, %v5125
      %v5127 = vrot.slane %v5101, 3
      %v5128 = vsel %vm5113, %v5125, %v5127
      %v5129 = vrot.slane %v5102, 3
      %v5130 = vsel %vm5113, %v5127, %v5129
      %v5131 = vrot.slane %v5103, 3
      %v5132 = vsel %vm5113, %v5129, %v5131
      %v5133 = vrot.slane %v5104, 3
      %v5134 = vsel %vm5113, %v5131, %v5133
      %v5135 = vrot.slane %v5105, 3
      %v5136 = vsel %vm5113, %v5133, %v5135
      %v5137 = vrot.slane %v5106, 3
      %v5138 = vsel %vm5113, %v5135, %v5137
      %v5139 = vrot.slane %v5107, 3
      %v5140 = vsel %vm5113, %v5137, %v5139
      %v5141 = vrot.slane %v5108, 3
      %v5142 = vsel %vm5113, %v5139, %v5141
      %v5143 = vrot.slane %v5109, 3
      %v5144 = vsel %vm5113, %v5141, %v5143
      %v5145 = vrot.slane %v5110, 3
      %v5146 = vsel %vm5113, %v5143, %v5145
      %v5147 = vrot.slane %v5111, 3
      %v5148 = vsel %vm5113, %v5145, %v5147
      %v5149 = vrot.slane %v5112, 3
      %v5150 = vsel %vm5113, %v5147, %v5149
      %v5152 = vsel %vm487, %v5116, 0
      %v5155 = vsel %vm487, %v5118, 0
      %v5158 = vsel %vm487, %v5120, 0
      %v5161 = vsel %vm487, %v5122, 0
      %v5164 = vsel %vm487, %v5124, 0
      %v5167 = vsel %vm487, %v5126, 0
      %v5170 = vsel %vm487, %v5128, 0
      %v5173 = vsel %vm487, %v5130, 0
      %v5176 = vsel %vm487, %v5132, 0
      %v5179 = vsel %vm487, %v5134, 0
      %v5182 = vsel %vm487, %v5136, 0
      %v5185 = vsel %vm487, %v5138, 0
      %v5188 = vsel %vm487, %v5140, 0
      %v5191 = vsel %vm487, %v5142, 0
      %v5194 = vsel %vm487, %v5144, 0
      %v5197 = vsel %vm487, %v5146, 0
      %v5200 = vsel %vm487, %v5148, 0
      %v5203 = vsel %vm487, %v5150, 0
      %v5206 = vsel %vm741, %v5019, 0
      %5208 = vmatprep.subr.bf16.mxu0 0
      %5209 = vmatpush1.bf16.msra.mxu0 %v5206
      %5210 = vmatprep.subr.bf16.mxu0 0
      %5211 = vmatpush1.bf16.msra.mxu0 0
      %5212 = vmatprep.subr.bf16.mxu0 0
      %5213 = vmatpush1.bf16.msra.mxu0 0
      %5214 = vmatprep.subr.bf16.mxu0 0
      %5215 = vmatpush1.bf16.msra.mxu0 0
      %5216 = vmatprep.subr.bf16.mxu0 0
      %5217 = vmatpush1.bf16.msra.mxu0 0
      %5218 = vmatprep.subr.bf16.mxu0 0
      %5219 = vmatpush1.bf16.msra.mxu0 0
      %5220 = vmatprep.subr.bf16.mxu0 0
      %5221 = vmatpush1.bf16.msra.mxu0 0
      %5222 = vmatprep.subr.bf16.mxu0 0
      %5223 = vmatpush1.bf16.msra.mxu0 0
      %5224 = vmatprep.subr.bf16.mxu0 0
      %5225 = vmatpush1.bf16.msra.mxu0 0
      %5226 = vmatprep.subr.bf16.mxu0 0
      %5227 = vmatpush1.bf16.msra.mxu0 0
      %5228 = vmatprep.subr.bf16.mxu0 0
      %5229 = vmatpush1.bf16.msra.mxu0 0
      %5230 = vmatprep.subr.bf16.mxu0 0
      %5231 = vmatpush1.bf16.msra.mxu0 0
      %5232 = vmatprep.subr.bf16.mxu0 0
      %5233 = vmatpush1.bf16.msra.mxu0 0
      %5234 = vmatprep.subr.bf16.mxu0 0
      %5235 = vmatpush1.bf16.msra.mxu0 0
      %5236 = vmatprep.subr.bf16.mxu0 0
      %5237 = vmatpush1.bf16.msra.mxu0 0
      %5238 = vmatprep.subr.bf16.mxu0 0
      %5239 = vmatpush1.bf16.msra.mxu0 0
      %5240 = vmatprep.mubr.bf16.mxu0 0
      %5241 = vmatmul.mubr.bf16.gmra.mrb[0].mxu0 %v5152
      %v5242 = vpop.f32.mrb[0].mxu0
      %v5243 = vadd.f32 0.0, %v5242
      %v5244 = vpop.f32.mrb[0].mxu0
      %v5245 = vpop.f32.mrb[0].mxu0
      %v5246 = vadd.f32 0.0, %v5245
      %v5247 = vpop.f32.mrb[0].mxu0
      %5248 = vmatprep.mubr.bf16.mxu0 0
      %5249 = vmatmul.mubr.bf16.gmra.mrb[0].mxu0 %v5155
      %v5250 = vpop.f32.mrb[0].mxu0
      %v5251 = vadd.f32 0.0, %v5250
      %v5252 = vpop.f32.mrb[0].mxu0
      %v5253 = vpop.f32.mrb[0].mxu0
      %v5254 = vadd.f32 0.0, %v5253
      %v5255 = vpop.f32.mrb[0].mxu0
      %5256 = vmatprep.mubr.bf16.mxu0 0
      %5257 = vmatmul.mubr.bf16.gmra.mrb[0].mxu0 %v5158
      %v5258 = vpop.f32.mrb[0].mxu0
      %v5259 = vadd.f32 0.0, %v5258
      %v5260 = vpop.f32.mrb[0].mxu0
      %v5261 = vpop.f32.mrb[0].mxu0
      %v5262 = vadd.f32 0.0, %v5261
      %v5263 = vpop.f32.mrb[0].mxu0
      %5264 = vmatprep.mubr.bf16.mxu0 0
      %5265 = vmatmul.mubr.bf16.gmra.mrb[0].mxu0 %v5161
      %v5266 = vpop.f32.mrb[0].mxu0
      %v5267 = vadd.f32 0.0, %v5266
      %v5268 = vpop.f32.mrb[0].mxu0
      %v5269 = vpop.f32.mrb[0].mxu0
      %v5270 = vadd.f32 0.0, %v5269
      %v5271 = vpop.f32.mrb[0].mxu0
      %5272 = vmatprep.mubr.bf16.mxu0 0
      %5273 = vmatmul.mubr.bf16.gmra.mrb[0].mxu0 %v5164
      %v5274 = vpop.f32.mrb[0].mxu0
      %v5275 = vadd.f32 0.0, %v5274
      %v5276 = vpop.f32.mrb[0].mxu0
      %v5277 = vpop.f32.mrb[0].mxu0
      %v5278 = vadd.f32 0.0, %v5277
      %v5279 = vpop.f32.mrb[0].mxu0
      %5280 = vmatprep.mubr.bf16.mxu0 0
      %5281 = vmatmul.mubr.bf16.gmra.mrb[0].mxu0 %v5167
      %v5282 = vpop.f32.mrb[0].mxu0
      %v5283 = vadd.f32 0.0, %v5282
      %v5284 = vpop.f32.mrb[0].mxu0
      %v5285 = vpop.f32.mrb[0].mxu0
      %v5286 = vadd.f32 0.0, %v5285
      %v5287 = vpop.f32.mrb[0].mxu0
      %5288 = vmatprep.mubr.bf16.mxu0 0
      %5289 = vmatmul.mubr.bf16.gmra.mrb[0].mxu0 %v5170
      %v5290 = vpop.f32.mrb[0].mxu0
      %v5291 = vadd.f32 0.0, %v5290
      %v5292 = vpop.f32.mrb[0].mxu0
      %v5293 = vpop.f32.mrb[0].mxu0
      %v5294 = vadd.f32 0.0, %v5293
      %v5295 = vpop.f32.mrb[0].mxu0
      %5296 = vmatprep.mubr.bf16.mxu0 0
      %5297 = vmatmul.mubr.bf16.gmra.mrb[0].mxu0 %v5173
      %v5298 = vpop.f32.mrb[0].mxu0
      %v5299 = vadd.f32 0.0, %v5298
      %v5300 = vpop.f32.mrb[0].mxu0
      %v5301 = vpop.f32.mrb[0].mxu0
      %v5302 = vadd.f32 0.0, %v5301
      %v5303 = vpop.f32.mrb[0].mxu0
      %5304 = vmatprep.mubr.bf16.mxu0 0
      %5305 = vmatmul.mubr.bf16.gmra.mrb[0].mxu0 %v5176
      %v5306 = vpop.f32.mrb[0].mxu0
      %v5307 = vadd.f32 0.0, %v5306
      %v5308 = vpop.f32.mrb[0].mxu0
      %v5309 = vpop.f32.mrb[0].mxu0
      %v5310 = vadd.f32 0.0, %v5309
      %v5311 = vpop.f32.mrb[0].mxu0
      %5312 = vmatprep.mubr.bf16.mxu0 0
      %5313 = vmatmul.mubr.bf16.gmra.mrb[0].mxu0 %v5179
      %v5314 = vpop.f32.mrb[0].mxu0
      %v5315 = vadd.f32 0.0, %v5314
      %v5316 = vpop.f32.mrb[0].mxu0
      %v5317 = vpop.f32.mrb[0].mxu0
      %v5318 = vadd.f32 0.0, %v5317
      %v5319 = vpop.f32.mrb[0].mxu0
      %5320 = vmatprep.mubr.bf16.mxu0 0
      %5321 = vmatmul.mubr.bf16.gmra.mrb[0].mxu0 %v5182
      %v5322 = vpop.f32.mrb[0].mxu0
      %v5323 = vadd.f32 0.0, %v5322
      %v5324 = vpop.f32.mrb[0].mxu0
      %v5325 = vpop.f32.mrb[0].mxu0
      %v5326 = vadd.f32 0.0, %v5325
      %v5327 = vpop.f32.mrb[0].mxu0
      %5328 = vmatprep.mubr.bf16.mxu0 0
      %5329 = vmatmul.mubr.bf16.gmra.mrb[0].mxu0 %v5185
      %v5330 = vpop.f32.mrb[0].mxu0
      %v5331 = vadd.f32 0.0, %v5330
      %v5332 = vpop.f32.mrb[0].mxu0
      %v5333 = vpop.f32.mrb[0].mxu0
      %v5334 = vadd.f32 0.0, %v5333
      %v5335 = vpop.f32.mrb[0].mxu0
      %5336 = vmatprep.mubr.bf16.mxu0 0
      %5337 = vmatmul.mubr.bf16.gmra.mrb[0].mxu0 %v5188
      %v5338 = vpop.f32.mrb[0].mxu0
      %v5339 = vadd.f32 0.0, %v5338
      %v5340 = vpop.f32.mrb[0].mxu0
      %v5341 = vpop.f32.mrb[0].mxu0
      %v5342 = vadd.f32 0.0, %v5341
      %v5343 = vpop.f32.mrb[0].mxu0
      %5344 = vmatprep.mubr.bf16.mxu0 0
      %5345 = vmatmul.mubr.bf16.gmra.mrb[0].mxu0 %v5191
      %v5346 = vpop.f32.mrb[0].mxu0
      %v5347 = vadd.f32 0.0, %v5346
      %v5348 = vpop.f32.mrb[0].mxu0
      %v5349 = vpop.f32.mrb[0].mxu0
      %v5350 = vadd.f32 0.0, %v5349
      %v5351 = vpop.f32.mrb[0].mxu0
      %5352 = vmatprep.mubr.bf16.mxu0 0
      %5353 = vmatmul.mubr.bf16.gmra.mrb[0].mxu0 %v5194
      %v5354 = vpop.f32.mrb[0].mxu0
      %v5355 = vadd.f32 0.0, %v5354
      %v5356 = vpop.f32.mrb[0].mxu0
      %v5357 = vpop.f32.mrb[0].mxu0
      %v5358 = vadd.f32 0.0, %v5357
      %v5359 = vpop.f32.mrb[0].mxu0
      %5360 = vmatprep.mubr.bf16.mxu0 0
      %5361 = vmatmul.mubr.bf16.gmra.mrb[0].mxu0 %v5197
      %v5362 = vpop.f32.mrb[0].mxu0
      %v5363 = vadd.f32 0.0, %v5362
      %v5364 = vpop.f32.mrb[0].mxu0
      %v5365 = vpop.f32.mrb[0].mxu0
      %v5366 = vadd.f32 0.0, %v5365
      %v5367 = vpop.f32.mrb[0].mxu0
      %5368 = vmatprep.mubr.bf16.mxu0 0
      %5369 = vmatmul.mubr.bf16.gmra.mrb[0].mxu0 %v5200
      %v5370 = vpop.f32.mrb[0].mxu0
      %v5371 = vadd.f32 0.0, %v5370
      %v5372 = vpop.f32.mrb[0].mxu0
      %v5373 = vpop.f32.mrb[0].mxu0
      %v5374 = vadd.f32 0.0, %v5373
      %v5375 = vpop.f32.mrb[0].mxu0
      %5376 = vmatprep.mubr.bf16.mxu0 0
      %5377 = vmatmul.mubr.bf16.gmra.mrb[0].mxu0 %v5203
      %v5378 = vpop.f32.mrb[0].mxu0
      %v5379 = vadd.f32 0.0, %v5378
      %v5380 = vpop.f32.mrb[0].mxu0
      %v5381 = vpop.f32.mrb[0].mxu0
      %v5382 = vadd.f32 0.0, %v5381
      %v5383 = vpop.f32.mrb[0].mxu0
      %5384 = vdwg.mxu0
      %v5385 = vadd.f32 %v4946, %v5243
      %v5386 = vadd.f32 %v4947, %v5246
      %v5387 = vadd.f32 %v4948, %v5251
      %v5388 = vadd.f32 %v4949, %v5254
      %v5389 = vadd.f32 %v4950, %v5259
      %v5390 = vadd.f32 %v4951, %v5262
      %v5391 = vadd.f32 %v4952, %v5267
      %v5392 = vadd.f32 %v4953, %v5270
      %v5393 = vadd.f32 %v4954, %v5275
      %v5394 = vadd.f32 %v4955, %v5278
      %v5395 = vadd.f32 %v4956, %v5283
      %v5396 = vadd.f32 %v4957, %v5286
      %v5397 = vadd.f32 %v4958, %v5291
      %v5398 = vadd.f32 %v4959, %v5294
      %v5399 = vadd.f32 %v4960, %v5299
      %v5400 = vadd.f32 %v4961, %v5302
      %v5401 = vadd.f32 %v4962, %v5307
      %v5402 = vadd.f32 %v4963, %v5310
      %v5403 = vadd.f32 %v4964, %v5315
      %v5404 = vadd.f32 %v4965, %v5318
      %v5405 = vadd.f32 %v4966, %v5323
      %v5406 = vadd.f32 %v4967, %v5326
      %v5407 = vadd.f32 %v4968, %v5331
      %v5408 = vadd.f32 %v4969, %v5334
      %v5409 = vadd.f32 %v4970, %v5339
      %v5410 = vadd.f32 %v4971, %v5342
      %v5411 = vadd.f32 %v4972, %v5347
      %v5412 = vadd.f32 %v4973, %v5350
      %v5413 = vadd.f32 %v4974, %v5355
      %v5414 = vadd.f32 %v4975, %v5358
      %v5415 = vadd.f32 %v4976, %v5363
      %v5416 = vadd.f32 %v4977, %v5366
      %v5417 = vadd.f32 %v4978, %v5371
      %v5418 = vadd.f32 %v4979, %v5374
      %v5419 = vadd.f32 %v4980, %v5379
      %v5420 = vadd.f32 %v4981, %v5382
      %5421 = vst.msk [vmem:[#allocation3] sm:$0xff] %vm487, %v5385
      %5422 = vst.msk [vmem:[#allocation3 + $0x8] sm:$0xff] %vm487, %v5386
      %5423 = vst.msk [vmem:[#allocation3 + $0x10] sm:$0xff] %vm487, %v5387
      %5424 = vst.msk [vmem:[#allocation3 + $0x18] sm:$0xff] %vm487, %v5388
      %5425 = vst.msk [vmem:[#allocation3 + $0x20] sm:$0xff] %vm487, %v5389
      %5426 = vst.msk [vmem:[#allocation3 + $0x28] sm:$0xff] %vm487, %v5390
      %5427 = vst.msk [vmem:[#allocation3 + $0x30] sm:$0xff] %vm487, %v5391
      %5428 = vst.msk [vmem:[#allocation3 + $0x38] sm:$0xff] %vm487, %v5392
      %5429 = vst.msk [vmem:[#allocation3 + $0x40] sm:$0xff] %vm487, %v5393
      %5430 = vst.msk [vmem:[#allocation3 + $0x48] sm:$0xff] %vm487, %v5394
      %5431 = vst.msk [vmem:[#allocation3 + $0x50] sm:$0xff] %vm487, %v5395
      %5432 = vst.msk [vmem:[#allocation3 + $0x58] sm:$0xff] %vm487, %v5396
      %5433 = vst.msk [vmem:[#allocation3 + $0x60] sm:$0xff] %vm487, %v5397
      %5434 = vst.msk [vmem:[#allocation3 + $0x68] sm:$0xff] %vm487, %v5398
      %5435 = vst.msk [vmem:[#allocation3 + $0x70] sm:$0xff] %vm487, %v5399
      %5436 = vst.msk [vmem:[#allocation3 + $0x78] sm:$0xff] %vm487, %v5400
      %5437 = vst.msk [vmem:[#allocation3 + $0x80] sm:$0xff] %vm487, %v5401
      %5438 = vst.msk [vmem:[#allocation3 + $0x88] sm:$0xff] %vm487, %v5402
      %5439 = vst.msk [vmem:[#allocation3 + $0x90] sm:$0xff] %vm487, %v5403
      %5440 = vst.msk [vmem:[#allocation3 + $0x98] sm:$0xff] %vm487, %v5404
      %5441 = vst.msk [vmem:[#allocation3 + $0xa0] sm:$0xff] %vm487, %v5405
      %5442 = vst.msk [vmem:[#allocation3 + $0xa8] sm:$0xff] %vm487, %v5406
      %5443 = vst.msk [vmem:[#allocation3 + $0xb0] sm:$0xff] %vm487, %v5407
      %5444 = vst.msk [vmem:[#allocation3 + $0xb8] sm:$0xff] %vm487, %v5408
      %5445 = vst.msk [vmem:[#allocation3 + $0xc0] sm:$0xff] %vm487, %v5409
      %5446 = vst.msk [vmem:[#allocation3 + $0xc8] sm:$0xff] %vm487, %v5410
      %5447 = vst.msk [vmem:[#allocation3 + $0xd0] sm:$0xff] %vm487, %v5411
      %5448 = vst.msk [vmem:[#allocation3 + $0xd8] sm:$0xff] %vm487, %v5412
      %5449 = vst.msk [vmem:[#allocation3 + $0xe0] sm:$0xff] %vm487, %v5413
      %5450 = vst.msk [vmem:[#allocation3 + $0xe8] sm:$0xff] %vm487, %v5414
      %5451 = vst.msk [vmem:[#allocation3 + $0xf0] sm:$0xff] %vm487, %v5415
      %5452 = vst.msk [vmem:[#allocation3 + $0xf8] sm:$0xff] %vm487, %v5416
      %5453 = vst.msk [vmem:[#allocation3 + $0x100] sm:$0xff] %vm487, %v5417
      %5454 = vst.msk [vmem:[#allocation3 + $0x108] sm:$0xff] %vm487, %v5418
      %5455 = vst.msk [vmem:[#allocation3 + $0x110] sm:$0xff] %vm487, %v5419
      %5456 = vst.msk [vmem:[#allocation3 + $0x118] sm:$0xff] %vm487, %v5420
      %v5457 = vld [vmem:[#allocation3] sm:$0xff]
      %v5458 = vld [vmem:[#allocation3 + $0x8] sm:$0xff]
      %v5459 = vld [vmem:[#allocation3 + $0x10] sm:$0xff]
      %v5460 = vld [vmem:[#allocation3 + $0x18] sm:$0xff]
      %v5461 = vld [vmem:[#allocation3 + $0x20] sm:$0xff]
      %v5462 = vld [vmem:[#allocation3 + $0x28] sm:$0xff]
      %v5463 = vld [vmem:[#allocation3 + $0x30] sm:$0xff]
      %v5464 = vld [vmem:[#allocation3 + $0x38] sm:$0xff]
      %v5465 = vld [vmem:[#allocation3 + $0x40] sm:$0xff]
      %v5466 = vld [vmem:[#allocation3 + $0x48] sm:$0xff]
      %v5467 = vld [vmem:[#allocation3 + $0x50] sm:$0xff]
      %v5468 = vld [vmem:[#allocation3 + $0x58] sm:$0xff]
      %v5469 = vld [vmem:[#allocation3 + $0x60] sm:$0xff]
      %v5470 = vld [vmem:[#allocation3 + $0x68] sm:$0xff]
      %v5471 = vld [vmem:[#allocation3 + $0x70] sm:$0xff]
      %v5472 = vld [vmem:[#allocation3 + $0x78] sm:$0xff]
      %v5473 = vld [vmem:[#allocation3 + $0x80] sm:$0xff]
      %v5474 = vld [vmem:[#allocation3 + $0x88] sm:$0xff]
      %v5475 = vld [vmem:[#allocation3 + $0x90] sm:$0xff]
      %v5476 = vld [vmem:[#allocation3 + $0x98] sm:$0xff]
      %v5477 = vld [vmem:[#allocation3 + $0xa0] sm:$0xff]
      %v5478 = vld [vmem:[#allocation3 + $0xa8] sm:$0xff]
      %v5479 = vld [vmem:[#allocation3 + $0xb0] sm:$0xff]
      %v5480 = vld [vmem:[#allocation3 + $0xb8] sm:$0xff]
      %v5481 = vld [vmem:[#allocation3 + $0xc0] sm:$0xff]
      %v5482 = vld [vmem:[#allocation3 + $0xc8] sm:$0xff]
      %v5483 = vld [vmem:[#allocation3 + $0xd0] sm:$0xff]
      %v5484 = vld [vmem:[#allocation3 + $0xd8] sm:$0xff]
      %v5485 = vld [vmem:[#allocation3 + $0xe0] sm:$0xff]
      %v5486 = vld [vmem:[#allocation3 + $0xe8] sm:$0xff]
      %v5487 = vld [vmem:[#allocation3 + $0xf0] sm:$0xff]
      %v5488 = vld [vmem:[#allocation3 + $0xf8] sm:$0xff]
      %v5489 = vld [vmem:[#allocation3 + $0x100] sm:$0xff]
      %v5490 = vld [vmem:[#allocation3 + $0x108] sm:$0xff]
      %v5491 = vld [vmem:[#allocation3 + $0x110] sm:$0xff]
      %v5492 = vld [vmem:[#allocation3 + $0x118] sm:$0xff]
      %v5493 = vpack.c.bf16 %v5458, %v5457
      %v5494 = vpack.c.bf16 %v5460, %v5459
      %v5495 = vpack.c.bf16 %v5462, %v5461
      %v5496 = vpack.c.bf16 %v5464, %v5463
      %v5497 = vpack.c.bf16 %v5466, %v5465
      %v5498 = vpack.c.bf16 %v5468, %v5467
      %v5499 = vpack.c.bf16 %v5470, %v5469
      %v5500 = vpack.c.bf16 %v5472, %v5471
      %v5501 = vpack.c.bf16 %v5474, %v5473
      %v5502 = vpack.c.bf16 %v5476, %v5475
      %v5503 = vpack.c.bf16 %v5478, %v5477
      %v5504 = vpack.c.bf16 %v5480, %v5479
      %v5505 = vpack.c.bf16 %v5482, %v5481
      %v5506 = vpack.c.bf16 %v5484, %v5483
      %v5507 = vpack.c.bf16 %v5486, %v5485
      %v5508 = vpack.c.bf16 %v5488, %v5487
      %v5509 = vpack.c.bf16 %v5490, %v5489
      %v5510 = vpack.c.bf16 %v5492, %v5491
      %v5529 = vunpack.c.l.b16 %v5493
      %v5530 = vunpack.c.h.b16 %v5493
      %v5531 = vunpack.c.l.b16 %v5494
      %v5532 = vunpack.c.h.b16 %v5494
      %v5533 = vunpack.c.l.b16 %v5495
      %v5534 = vunpack.c.h.b16 %v5495
      %v5535 = vunpack.c.l.b16 %v5496
      %v5536 = vunpack.c.h.b16 %v5496
      %v5537 = vunpack.c.l.b16 %v5497
      %v5538 = vunpack.c.h.b16 %v5497
      %v5539 = vunpack.c.l.b16 %v5498
      %v5540 = vunpack.c.h.b16 %v5498
      %v5541 = vunpack.c.l.b16 %v5499
      %v5542 = vunpack.c.h.b16 %v5499
      %v5543 = vunpack.c.l.b16 %v5500
      %v5544 = vunpack.c.h.b16 %v5500
      %v5545 = vunpack.c.l.b16 %v5501
      %v5546 = vunpack.c.h.b16 %v5501
      %v5547 = vunpack.c.l.b16 %v5502
      %v5548 = vunpack.c.h.b16 %v5502
      %v5549 = vunpack.c.l.b16 %v5503
      %v5550 = vunpack.c.h.b16 %v5503
      %v5551 = vunpack.c.l.b16 %v5504
      %v5552 = vunpack.c.h.b16 %v5504
      %v5553 = vunpack.c.l.b16 %v5505
      %v5554 = vunpack.c.h.b16 %v5505
      %v5555 = vunpack.c.l.b16 %v5506
      %v5556 = vunpack.c.h.b16 %v5506
      %v5557 = vunpack.c.l.b16 %v5507
      %v5558 = vunpack.c.h.b16 %v5507
      %v5559 = vunpack.c.l.b16 %v5508
      %v5560 = vunpack.c.h.b16 %v5508
      %v5561 = vunpack.c.l.b16 %v5509
      %v5562 = vunpack.c.h.b16 %v5509
      %v5563 = vunpack.c.l.b16 %v5510
      %v5564 = vunpack.c.h.b16 %v5510
      %v5565 = vpack.c.b16 %v5529, %v5529
      %v5566 = vpack.c.b16 %v5530, %v5530
      %v5567 = vpack.c.b16 %v5531, %v5531
      %v5568 = vpack.c.b16 %v5532, %v5532
      %v5569 = vpack.c.b16 %v5533, %v5533
      %v5570 = vpack.c.b16 %v5534, %v5534
      %v5571 = vpack.c.b16 %v5535, %v5535
      %v5572 = vpack.c.b16 %v5536, %v5536
      %v5573 = vpack.c.b16 %v5537, %v5537
      %v5574 = vpack.c.b16 %v5538, %v5538
      %v5575 = vpack.c.b16 %v5539, %v5539
      %v5576 = vpack.c.b16 %v5540, %v5540
      %v5577 = vpack.c.b16 %v5541, %v5541
      %v5578 = vpack.c.b16 %v5542, %v5542
      %v5579 = vpack.c.b16 %v5543, %v5543
      %v5580 = vpack.c.b16 %v5544, %v5544
      %v5581 = vpack.c.b16 %v5545, %v5545
      %v5582 = vpack.c.b16 %v5546, %v5546
      %v5583 = vpack.c.b16 %v5547, %v5547
      %v5584 = vpack.c.b16 %v5548, %v5548
      %v5585 = vpack.c.b16 %v5549, %v5549
      %v5586 = vpack.c.b16 %v5550, %v5550
      %v5587 = vpack.c.b16 %v5551, %v5551
      %v5588 = vpack.c.b16 %v5552, %v5552
      %v5589 = vpack.c.b16 %v5553, %v5553
      %v5590 = vpack.c.b16 %v5554, %v5554
      %v5591 = vpack.c.b16 %v5555, %v5555
      %v5592 = vpack.c.b16 %v5556, %v5556
      %v5593 = vpack.c.b16 %v5557, %v5557
      %v5594 = vpack.c.b16 %v5558, %v5558
      %v5595 = vpack.c.b16 %v5559, %v5559
      %v5596 = vpack.c.b16 %v5560, %v5560
      %v5597 = vpack.c.b16 %v5561, %v5561
      %v5598 = vpack.c.b16 %v5562, %v5562
      %v5599 = vpack.c.b16 %v5563, %v5563
      %v5600 = vpack.c.b16 %v5564, %v5564
      %5637 = vst.msk [vmem:[%s210] sm:$0xf] %vm220, %v5565
      %5638 = vst.msk [vmem:[%s210 + $0x4] sm:$0xf] %vm220, %v5566
      %5639 = vst.msk [vmem:[%s210 + $0x8] sm:$0xf] %vm220, %v5567
      %5640 = vst.msk [vmem:[%s210 + $0xc] sm:$0xf] %vm220, %v5568
      %5641 = vst.msk [vmem:[%s210 + $0x10] sm:$0xf] %vm220, %v5569
      %5642 = vst.msk [vmem:[%s210 + $0x14] sm:$0xf] %vm220, %v5570
      %5643 = vst.msk [vmem:[%s210 + $0x18] sm:$0xf] %vm220, %v5571
      %5644 = vst.msk [vmem:[%s210 + $0x1c] sm:$0xf] %vm220, %v5572
      %5645 = vst.msk [vmem:[%s210 + $0x20] sm:$0xf] %vm220, %v5573
      %5646 = vst.msk [vmem:[%s210 + $0x24] sm:$0xf] %vm220, %v5574
      %5647 = vst.msk [vmem:[%s210 + $0x28] sm:$0xf] %vm220, %v5575
      %5648 = vst.msk [vmem:[%s210 + $0x2c] sm:$0xf] %vm220, %v5576
      %5649 = vst.msk [vmem:[%s210 + $0x30] sm:$0xf] %vm220, %v5577
      %5650 = vst.msk [vmem:[%s210 + $0x34] sm:$0xf] %vm220, %v5578
      %5651 = vst.msk [vmem:[%s210 + $0x38] sm:$0xf] %vm220, %v5579
      %5652 = vst.msk [vmem:[%s210 + $0x3c] sm:$0xf] %vm220, %v5580
      %5653 = vst.msk [vmem:[%s210 + $0x40] sm:$0xf] %vm220, %v5581
      %5654 = vst.msk [vmem:[%s210 + $0x44] sm:$0xf] %vm220, %v5582
      %5655 = vst.msk [vmem:[%s210 + $0x48] sm:$0xf] %vm220, %v5583
      %5656 = vst.msk [vmem:[%s210 + $0x4c] sm:$0xf] %vm220, %v5584
      %5657 = vst.msk [vmem:[%s210 + $0x50] sm:$0xf] %vm220, %v5585
      %5658 = vst.msk [vmem:[%s210 + $0x54] sm:$0xf] %vm220, %v5586
      %5659 = vst.msk [vmem:[%s210 + $0x58] sm:$0xf] %vm220, %v5587
      %5660 = vst.msk [vmem:[%s210 + $0x5c] sm:$0xf] %vm220, %v5588
      %5661 = vst.msk [vmem:[%s210 + $0x60] sm:$0xf] %vm220, %v5589
      %5662 = vst.msk [vmem:[%s210 + $0x64] sm:$0xf] %vm220, %v5590
      %5663 = vst.msk [vmem:[%s210 + $0x68] sm:$0xf] %vm220, %v5591
      %5664 = vst.msk [vmem:[%s210 + $0x6c] sm:$0xf] %vm220, %v5592
      %5665 = vst.msk [vmem:[%s210 + $0x70] sm:$0xf] %vm220, %v5593
      %5666 = vst.msk [vmem:[%s210 + $0x74] sm:$0xf] %vm220, %v5594
      %5667 = vst.msk [vmem:[%s210 + $0x78] sm:$0xf] %vm220, %v5595
      %5668 = vst.msk [vmem:[%s210 + $0x7c] sm:$0xf] %vm220, %v5596
      %5669 = vst.msk [vmem:[%s210 + $0x80] sm:$0xf] %vm220, %v5597
      %5670 = vst.msk [vmem:[%s210 + $0x84] sm:$0xf] %vm220, %v5598
      %5671 = vst.msk [vmem:[%s210 + $0x88] sm:$0xf] %vm220, %v5599
      %5672 = vst.msk [vmem:[%s210 + $0x8c] sm:$0xf] %vm220, %v5600
      %v5673 = vlaneseq
      %v5674 = vshrl.u32 %v5673, 7
      %v5675 = vadd.s32 %v5674, 8
      %v5676 = vadd.s32 %v5674, 16
      %v5677 = vadd.s32 %v5674, 24
      %v5678 = vadd.s32 %v5674, 32
      %v5679 = vadd.s32 %v5674, 40
      %v5680 = vadd.s32 %v5674, 48
      %v5681 = vadd.s32 %v5674, 56
      %v5682 = vadd.s32 %v5674, 64
      %v5683 = vadd.s32 %v5674, 72
      %v5684 = vadd.s32 %v5674, 80
      %v5685 = vadd.s32 %v5674, 88
      %v5686 = vadd.s32 %v5674, 96
      %v5687 = vadd.s32 %v5674, 104
      %v5688 = vadd.s32 %v5674, 112
      %v5689 = vadd.s32 %v5674, 120
      %v5690 = vadd.s32 %v5674, 128
      %v5691 = vadd.s32 %v5674, 136
      %v5692 = vadd.s32 %v5674, 144
      %v5693 = vadd.s32 %v5674, 152
      %v5694 = vadd.s32 %v5674, 160
      %v5695 = vadd.s32 %v5674, 168
      %v5696 = vadd.s32 %v5674, 176
      %v5697 = vadd.s32 %v5674, 184
      %v5698 = vadd.s32 %v5674, 192
      %v5699 = vadd.s32 %v5674, 200
      %v5700 = vadd.s32 %v5674, 208
      %v5701 = vadd.s32 %v5674, 216
      %v5702 = vadd.s32 %v5674, 224
      %v5703 = vadd.s32 %v5674, 232
      %v5704 = vadd.s32 %v5674, 240
      %v5705 = vadd.s32 %v5674, 248
      %v5706 = vadd.s32 %v5674, 256
      %v5707 = vadd.s32 %v5674, 264
      %v5708 = vadd.s32 %v5674, 272
      %v5709 = vadd.s32 %v5674, 280
      %vm5710 = vcmp.lt.s32.totalorder %v5674, 0
      %v5711 = vsub.s32 0, %v5674
      %v5712 = vsel %vm5710, %v5711, %v5674
      %v5713 = vmul.u32.u64.compose %v5712, 3817748708
      %v5714 = vextract.low.u32 %v5713
      %v5715 = vextract.high.u32 %v5713
      %v5716 = vshrl.u32 %v5715, 4
      %v5717 = vmul.u32 %v5716, 18
      %v5718 = vsub.s32 %v5712, %v5717
      %v5719 = vsub.s32 0, %v5718
      %v5720 = vsel %vm5710, %v5719, %v5718
      %vm5721 = vcmp.lt.s32.totalorder %v5675, 0
      %v5722 = vsub.s32 0, %v5675
      %v5723 = vsel %vm5721, %v5722, %v5675
      %v5724 = vmul.u32.u64.compose %v5723, 3817748708
      %v5725 = vextract.low.u32 %v5724
      %v5726 = vextract.high.u32 %v5724
      %v5727 = vshrl.u32 %v5726, 4
      %v5728 = vmul.u32 %v5727, 18
      %v5729 = vsub.s32 %v5723, %v5728
      %v5730 = vsub.s32 0, %v5729
      %v5731 = vsel %vm5721, %v5730, %v5729
      %vm5732 = vcmp.lt.s32.totalorder %v5676, 0
      %v5733 = vsub.s32 0, %v5676
      %v5734 = vsel %vm5732, %v5733, %v5676
      %v5735 = vmul.u32.u64.compose %v5734, 3817748708
      %v5736 = vextract.low.u32 %v5735
      %v5737 = vextract.high.u32 %v5735
      %v5738 = vshrl.u32 %v5737, 4
      %v5739 = vmul.u32 %v5738, 18
      %v5740 = vsub.s32 %v5734, %v5739
      %v5741 = vsub.s32 0, %v5740
      %v5742 = vsel %vm5732, %v5741, %v5740
      %vm5743 = vcmp.lt.s32.totalorder %v5677, 0
      %v5744 = vsub.s32 0, %v5677
      %v5745 = vsel %vm5743, %v5744, %v5677
      %v5746 = vmul.u32.u64.compose %v5745, 3817748708
      %v5747 = vextract.low.u32 %v5746
      %v5748 = vextract.high.u32 %v5746
      %v5749 = vshrl.u32 %v5748, 4
      %v5750 = vmul.u32 %v5749, 18
      %v5751 = vsub.s32 %v5745, %v5750
      %v5752 = vsub.s32 0, %v5751
      %v5753 = vsel %vm5743, %v5752, %v5751
      %vm5754 = vcmp.lt.s32.totalorder %v5678, 0
      %v5755 = vsub.s32 0, %v5678
      %v5756 = vsel %vm5754, %v5755, %v5678
      %v5757 = vmul.u32.u64.compose %v5756, 3817748708
      %v5758 = vextract.low.u32 %v5757
      %v5759 = vextract.high.u32 %v5757
      %v5760 = vshrl.u32 %v5759, 4
      %v5761 = vmul.u32 %v5760, 18
      %v5762 = vsub.s32 %v5756, %v5761
      %v5763 = vsub.s32 0, %v5762
      %v5764 = vsel %vm5754, %v5763, %v5762
      %vm5765 = vcmp.lt.s32.totalorder %v5679, 0
      %v5766 = vsub.s32 0, %v5679
      %v5767 = vsel %vm5765, %v5766, %v5679
      %v5768 = vmul.u32.u64.compose %v5767, 3817748708
      %v5769 = vextract.low.u32 %v5768
      %v5770 = vextract.high.u32 %v5768
      %v5771 = vshrl.u32 %v5770, 4
      %v5772 = vmul.u32 %v5771, 18
      %v5773 = vsub.s32 %v5767, %v5772
      %v5774 = vsub.s32 0, %v5773
      %v5775 = vsel %vm5765, %v5774, %v5773
      %vm5776 = vcmp.lt.s32.totalorder %v5680, 0
      %v5777 = vsub.s32 0, %v5680
      %v5778 = vsel %vm5776, %v5777, %v5680
      %v5779 = vmul.u32.u64.compose %v5778, 3817748708
      %v5780 = vextract.low.u32 %v5779
      %v5781 = vextract.high.u32 %v5779
      %v5782 = vshrl.u32 %v5781, 4
      %v5783 = vmul.u32 %v5782, 18
      %v5784 = vsub.s32 %v5778, %v5783
      %v5785 = vsub.s32 0, %v5784
      %v5786 = vsel %vm5776, %v5785, %v5784
      %vm5787 = vcmp.lt.s32.totalorder %v5681, 0
      %v5788 = vsub.s32 0, %v5681
      %v5789 = vsel %vm5787, %v5788, %v5681
      %v5790 = vmul.u32.u64.compose %v5789, 3817748708
      %v5791 = vextract.low.u32 %v5790
      %v5792 = vextract.high.u32 %v5790
      %v5793 = vshrl.u32 %v5792, 4
      %v5794 = vmul.u32 %v5793, 18
      %v5795 = vsub.s32 %v5789, %v5794
      %v5796 = vsub.s32 0, %v5795
      %v5797 = vsel %vm5787, %v5796, %v5795
      %vm5798 = vcmp.lt.s32.totalorder %v5682, 0
      %v5799 = vsub.s32 0, %v5682
      %v5800 = vsel %vm5798, %v5799, %v5682
      %v5801 = vmul.u32.u64.compose %v5800, 3817748708
      %v5802 = vextract.low.u32 %v5801
      %v5803 = vextract.high.u32 %v5801
      %v5804 = vshrl.u32 %v5803, 4
      %v5805 = vmul.u32 %v5804, 18
      %v5806 = vsub.s32 %v5800, %v5805
      %v5807 = vsub.s32 0, %v5806
      %v5808 = vsel %vm5798, %v5807, %v5806
      %vm5809 = vcmp.lt.s32.totalorder %v5683, 0
      %v5810 = vsub.s32 0, %v5683
      %v5811 = vsel %vm5809, %v5810, %v5683
      %v5812 = vmul.u32.u64.compose %v5811, 3817748708
      %v5813 = vextract.low.u32 %v5812
      %v5814 = vextract.high.u32 %v5812
      %v5815 = vshrl.u32 %v5814, 4
      %v5816 = vmul.u32 %v5815, 18
      %v5817 = vsub.s32 %v5811, %v5816
      %v5818 = vsub.s32 0, %v5817
      %v5819 = vsel %vm5809, %v5818, %v5817
      %vm5820 = vcmp.lt.s32.totalorder %v5684, 0
      %v5821 = vsub.s32 0, %v5684
      %v5822 = vsel %vm5820, %v5821, %v5684
      %v5823 = vmul.u32.u64.compose %v5822, 3817748708
      %v5824 = vextract.low.u32 %v5823
      %v5825 = vextract.high.u32 %v5823
      %v5826 = vshrl.u32 %v5825, 4
      %v5827 = vmul.u32 %v5826, 18
      %v5828 = vsub.s32 %v5822, %v5827
      %v5829 = vsub.s32 0, %v5828
      %v5830 = vsel %vm5820, %v5829, %v5828
      %vm5831 = vcmp.lt.s32.totalorder %v5685, 0
      %v5832 = vsub.s32 0, %v5685
      %v5833 = vsel %vm5831, %v5832, %v5685
      %v5834 = vmul.u32.u64.compose %v5833, 3817748708
      %v5835 = vextract.low.u32 %v5834
      %v5836 = vextract.high.u32 %v5834
      %v5837 = vshrl.u32 %v5836, 4
      %v5838 = vmul.u32 %v5837, 18
      %v5839 = vsub.s32 %v5833, %v5838
      %v5840 = vsub.s32 0, %v5839
      %v5841 = vsel %vm5831, %v5840, %v5839
      %vm5842 = vcmp.lt.s32.totalorder %v5686, 0
      %v5843 = vsub.s32 0, %v5686
      %v5844 = vsel %vm5842, %v5843, %v5686
      %v5845 = vmul.u32.u64.compose %v5844, 3817748708
      %v5846 = vextract.low.u32 %v5845
      %v5847 = vextract.high.u32 %v5845
      %v5848 = vshrl.u32 %v5847, 4
      %v5849 = vmul.u32 %v5848, 18
      %v5850 = vsub.s32 %v5844, %v5849
      %v5851 = vsub.s32 0, %v5850
      %v5852 = vsel %vm5842, %v5851, %v5850
      %vm5853 = vcmp.lt.s32.totalorder %v5687, 0
      %v5854 = vsub.s32 0, %v5687
      %v5855 = vsel %vm5853, %v5854, %v5687
      %v5856 = vmul.u32.u64.compose %v5855, 3817748708
      %v5857 = vextract.low.u32 %v5856
      %v5858 = vextract.high.u32 %v5856
      %v5859 = vshrl.u32 %v5858, 4
      %v5860 = vmul.u32 %v5859, 18
      %v5861 = vsub.s32 %v5855, %v5860
      %v5862 = vsub.s32 0, %v5861
      %v5863 = vsel %vm5853, %v5862, %v5861
      %vm5864 = vcmp.lt.s32.totalorder %v5688, 0
      %v5865 = vsub.s32 0, %v5688
      %v5866 = vsel %vm5864, %v5865, %v5688
      %v5867 = vmul.u32.u64.compose %v5866, 3817748708
      %v5868 = vextract.low.u32 %v5867
      %v5869 = vextract.high.u32 %v5867
      %v5870 = vshrl.u32 %v5869, 4
      %v5871 = vmul.u32 %v5870, 18
      %v5872 = vsub.s32 %v5866, %v5871
      %v5873 = vsub.s32 0, %v5872
      %v5874 = vsel %vm5864, %v5873, %v5872
      %vm5875 = vcmp.lt.s32.totalorder %v5689, 0
      %v5876 = vsub.s32 0, %v5689
      %v5877 = vsel %vm5875, %v5876, %v5689
      %v5878 = vmul.u32.u64.compose %v5877, 3817748708
      %v5879 = vextract.low.u32 %v5878
      %v5880 = vextract.high.u32 %v5878
      %v5881 = vshrl.u32 %v5880, 4
      %v5882 = vmul.u32 %v5881, 18
      %v5883 = vsub.s32 %v5877, %v5882
      %v5884 = vsub.s32 0, %v5883
      %v5885 = vsel %vm5875, %v5884, %v5883
      %vm5886 = vcmp.lt.s32.totalorder %v5690, 0
      %v5887 = vsub.s32 0, %v5690
      %v5888 = vsel %vm5886, %v5887, %v5690
      %v5889 = vmul.u32.u64.compose %v5888, 3817748708
      %v5890 = vextract.low.u32 %v5889
      %v5891 = vextract.high.u32 %v5889
      %v5892 = vshrl.u32 %v5891, 4
      %v5893 = vmul.u32 %v5892, 18
      %v5894 = vsub.s32 %v5888, %v5893
      %v5895 = vsub.s32 0, %v5894
      %v5896 = vsel %vm5886, %v5895, %v5894
      %vm5897 = vcmp.lt.s32.totalorder %v5691, 0
      %v5898 = vsub.s32 0, %v5691
      %v5899 = vsel %vm5897, %v5898, %v5691
      %v5900 = vmul.u32.u64.compose %v5899, 3817748708
      %v5901 = vextract.low.u32 %v5900
      %v5902 = vextract.high.u32 %v5900
      %v5903 = vshrl.u32 %v5902, 4
      %v5904 = vmul.u32 %v5903, 18
      %v5905 = vsub.s32 %v5899, %v5904
      %v5906 = vsub.s32 0, %v5905
      %v5907 = vsel %vm5897, %v5906, %v5905
      %vm5908 = vcmp.lt.s32.totalorder %v5692, 0
      %v5909 = vsub.s32 0, %v5692
      %v5910 = vsel %vm5908, %v5909, %v5692
      %v5911 = vmul.u32.u64.compose %v5910, 3817748708
      %v5912 = vextract.low.u32 %v5911
      %v5913 = vextract.high.u32 %v5911
      %v5914 = vshrl.u32 %v5913, 4
      %v5915 = vmul.u32 %v5914, 18
      %v5916 = vsub.s32 %v5910, %v5915
      %v5917 = vsub.s32 0, %v5916
      %v5918 = vsel %vm5908, %v5917, %v5916
      %vm5919 = vcmp.lt.s32.totalorder %v5693, 0
      %v5920 = vsub.s32 0, %v5693
      %v5921 = vsel %vm5919, %v5920, %v5693
      %v5922 = vmul.u32.u64.compose %v5921, 3817748708
      %v5923 = vextract.low.u32 %v5922
      %v5924 = vextract.high.u32 %v5922
      %v5925 = vshrl.u32 %v5924, 4
      %v5926 = vmul.u32 %v5925, 18
      %v5927 = vsub.s32 %v5921, %v5926
      %v5928 = vsub.s32 0, %v5927
      %v5929 = vsel %vm5919, %v5928, %v5927
      %vm5930 = vcmp.lt.s32.totalorder %v5694, 0
      %v5931 = vsub.s32 0, %v5694
      %v5932 = vsel %vm5930, %v5931, %v5694
      %v5933 = vmul.u32.u64.compose %v5932, 3817748708
      %v5934 = vextract.low.u32 %v5933
      %v5935 = vextract.high.u32 %v5933
      %v5936 = vshrl.u32 %v5935, 4
      %v5937 = vmul.u32 %v5936, 18
      %v5938 = vsub.s32 %v5932, %v5937
      %v5939 = vsub.s32 0, %v5938
      %v5940 = vsel %vm5930, %v5939, %v5938
      %vm5941 = vcmp.lt.s32.totalorder %v5695, 0
      %v5942 = vsub.s32 0, %v5695
      %v5943 = vsel %vm5941, %v5942, %v5695
      %v5944 = vmul.u32.u64.compose %v5943, 3817748708
      %v5945 = vextract.low.u32 %v5944
      %v5946 = vextract.high.u32 %v5944
      %v5947 = vshrl.u32 %v5946, 4
      %v5948 = vmul.u32 %v5947, 18
      %v5949 = vsub.s32 %v5943, %v5948
      %v5950 = vsub.s32 0, %v5949
      %v5951 = vsel %vm5941, %v5950, %v5949
      %vm5952 = vcmp.lt.s32.totalorder %v5696, 0
      %v5953 = vsub.s32 0, %v5696
      %v5954 = vsel %vm5952, %v5953, %v5696
      %v5955 = vmul.u32.u64.compose %v5954, 3817748708
      %v5956 = vextract.low.u32 %v5955
      %v5957 = vextract.high.u32 %v5955
      %v5958 = vshrl.u32 %v5957, 4
      %v5959 = vmul.u32 %v5958, 18
      %v5960 = vsub.s32 %v5954, %v5959
      %v5961 = vsub.s32 0, %v5960
      %v5962 = vsel %vm5952, %v5961, %v5960
      %vm5963 = vcmp.lt.s32.totalorder %v5697, 0
      %v5964 = vsub.s32 0, %v5697
      %v5965 = vsel %vm5963, %v5964, %v5697
      %v5966 = vmul.u32.u64.compose %v5965, 3817748708
      %v5967 = vextract.low.u32 %v5966
      %v5968 = vextract.high.u32 %v5966
      %v5969 = vshrl.u32 %v5968, 4
      %v5970 = vmul.u32 %v5969, 18
      %v5971 = vsub.s32 %v5965, %v5970
      %v5972 = vsub.s32 0, %v5971
      %v5973 = vsel %vm5963, %v5972, %v5971
      %vm5974 = vcmp.lt.s32.totalorder %v5698, 0
      %v5975 = vsub.s32 0, %v5698
      %v5976 = vsel %vm5974, %v5975, %v5698
      %v5977 = vmul.u32.u64.compose %v5976, 3817748708
      %v5978 = vextract.low.u32 %v5977
      %v5979 = vextract.high.u32 %v5977
      %v5980 = vshrl.u32 %v5979, 4
      %v5981 = vmul.u32 %v5980, 18
      %v5982 = vsub.s32 %v5976, %v5981
      %v5983 = vsub.s32 0, %v5982
      %v5984 = vsel %vm5974, %v5983, %v5982
      %vm5985 = vcmp.lt.s32.totalorder %v5699, 0
      %v5986 = vsub.s32 0, %v5699
      %v5987 = vsel %vm5985, %v5986, %v5699
      %v5988 = vmul.u32.u64.compose %v5987, 3817748708
      %v5989 = vextract.low.u32 %v5988
      %v5990 = vextract.high.u32 %v5988
      %v5991 = vshrl.u32 %v5990, 4
      %v5992 = vmul.u32 %v5991, 18
      %v5993 = vsub.s32 %v5987, %v5992
      %v5994 = vsub.s32 0, %v5993
      %v5995 = vsel %vm5985, %v5994, %v5993
      %vm5996 = vcmp.lt.s32.totalorder %v5700, 0
      %v5997 = vsub.s32 0, %v5700
      %v5998 = vsel %vm5996, %v5997, %v5700
      %v5999 = vmul.u32.u64.compose %v5998, 3817748708
      %v6000 = vextract.low.u32 %v5999
      %v6001 = vextract.high.u32 %v5999
      %v6002 = vshrl.u32 %v6001, 4
      %v6003 = vmul.u32 %v6002, 18
      %v6004 = vsub.s32 %v5998, %v6003
      %v6005 = vsub.s32 0, %v6004
      %v6006 = vsel %vm5996, %v6005, %v6004
      %vm6007 = vcmp.lt.s32.totalorder %v5701, 0
      %v6008 = vsub.s32 0, %v5701
      %v6009 = vsel %vm6007, %v6008, %v5701
      %v6010 = vmul.u32.u64.compose %v6009, 3817748708
      %v6011 = vextract.low.u32 %v6010
      %v6012 = vextract.high.u32 %v6010
      %v6013 = vshrl.u32 %v6012, 4
      %v6014 = vmul.u32 %v6013, 18
      %v6015 = vsub.s32 %v6009, %v6014
      %v6016 = vsub.s32 0, %v6015
      %v6017 = vsel %vm6007, %v6016, %v6015
      %vm6018 = vcmp.lt.s32.totalorder %v5702, 0
      %v6019 = vsub.s32 0, %v5702
      %v6020 = vsel %vm6018, %v6019, %v5702
      %v6021 = vmul.u32.u64.compose %v6020, 3817748708
      %v6022 = vextract.low.u32 %v6021
      %v6023 = vextract.high.u32 %v6021
      %v6024 = vshrl.u32 %v6023, 4
      %v6025 = vmul.u32 %v6024, 18
      %v6026 = vsub.s32 %v6020, %v6025
      %v6027 = vsub.s32 0, %v6026
      %v6028 = vsel %vm6018, %v6027, %v6026
      %vm6029 = vcmp.lt.s32.totalorder %v5703, 0
      %v6030 = vsub.s32 0, %v5703
      %v6031 = vsel %vm6029, %v6030, %v5703
      %v6032 = vmul.u32.u64.compose %v6031, 3817748708
      %v6033 = vextract.low.u32 %v6032
      %v6034 = vextract.high.u32 %v6032
      %v6035 = vshrl.u32 %v6034, 4
      %v6036 = vmul.u32 %v6035, 18
      %v6037 = vsub.s32 %v6031, %v6036
      %v6038 = vsub.s32 0, %v6037
      %v6039 = vsel %vm6029, %v6038, %v6037
      %vm6040 = vcmp.lt.s32.totalorder %v5704, 0
      %v6041 = vsub.s32 0, %v5704
      %v6042 = vsel %vm6040, %v6041, %v5704
      %v6043 = vmul.u32.u64.compose %v6042, 3817748708
      %v6044 = vextract.low.u32 %v6043
      %v6045 = vextract.high.u32 %v6043
      %v6046 = vshrl.u32 %v6045, 4
      %v6047 = vmul.u32 %v6046, 18
      %v6048 = vsub.s32 %v6042, %v6047
      %v6049 = vsub.s32 0, %v6048
      %v6050 = vsel %vm6040, %v6049, %v6048
      %vm6051 = vcmp.lt.s32.totalorder %v5705, 0
      %v6052 = vsub.s32 0, %v5705
      %v6053 = vsel %vm6051, %v6052, %v5705
      %v6054 = vmul.u32.u64.compose %v6053, 3817748708
      %v6055 = vextract.low.u32 %v6054
      %v6056 = vextract.high.u32 %v6054
      %v6057 = vshrl.u32 %v6056, 4
      %v6058 = vmul.u32 %v6057, 18
      %v6059 = vsub.s32 %v6053, %v6058
      %v6060 = vsub.s32 0, %v6059
      %v6061 = vsel %vm6051, %v6060, %v6059
      %vm6062 = vcmp.lt.s32.totalorder %v5706, 0
      %v6063 = vsub.s32 0, %v5706
      %v6064 = vsel %vm6062, %v6063, %v5706
      %v6065 = vmul.u32.u64.compose %v6064, 3817748708
      %v6066 = vextract.low.u32 %v6065
      %v6067 = vextract.high.u32 %v6065
      %v6068 = vshrl.u32 %v6067, 4
      %v6069 = vmul.u32 %v6068, 18
      %v6070 = vsub.s32 %v6064, %v6069
      %v6071 = vsub.s32 0, %v6070
      %v6072 = vsel %vm6062, %v6071, %v6070
      %vm6073 = vcmp.lt.s32.totalorder %v5707, 0
      %v6074 = vsub.s32 0, %v5707
      %v6075 = vsel %vm6073, %v6074, %v5707
      %v6076 = vmul.u32.u64.compose %v6075, 3817748708
      %v6077 = vextract.low.u32 %v6076
      %v6078 = vextract.high.u32 %v6076
      %v6079 = vshrl.u32 %v6078, 4
      %v6080 = vmul.u32 %v6079, 18
      %v6081 = vsub.s32 %v6075, %v6080
      %v6082 = vsub.s32 0, %v6081
      %v6083 = vsel %vm6073, %v6082, %v6081
      %vm6084 = vcmp.lt.s32.totalorder %v5708, 0
      %v6085 = vsub.s32 0, %v5708
      %v6086 = vsel %vm6084, %v6085, %v5708
      %v6087 = vmul.u32.u64.compose %v6086, 3817748708
      %v6088 = vextract.low.u32 %v6087
      %v6089 = vextract.high.u32 %v6087
      %v6090 = vshrl.u32 %v6089, 4
      %v6091 = vmul.u32 %v6090, 18
      %v6092 = vsub.s32 %v6086, %v6091
      %v6093 = vsub.s32 0, %v6092
      %v6094 = vsel %vm6084, %v6093, %v6092
      %vm6095 = vcmp.lt.s32.totalorder %v5709, 0
      %v6096 = vsub.s32 0, %v5709
      %v6097 = vsel %vm6095, %v6096, %v5709
      %v6098 = vmul.u32.u64.compose %v6097, 3817748708
      %v6099 = vextract.low.u32 %v6098
      %v6100 = vextract.high.u32 %v6098
      %v6101 = vshrl.u32 %v6100, 4
      %v6102 = vmul.u32 %v6101, 18
      %v6103 = vsub.s32 %v6097, %v6102
      %v6104 = vsub.s32 0, %v6103
      %v6105 = vsel %vm6095, %v6104, %v6103
      %vm6106 = vcmp.ne.s32.totalorder %v5720, 0
      %vm6107 = vcmp.ne.s32.totalorder %v5731, 0
      %vm6108 = vcmp.ne.s32.totalorder %v5742, 0
      %vm6109 = vcmp.ne.s32.totalorder %v5753, 0
      %vm6110 = vcmp.ne.s32.totalorder %v5764, 0
      %vm6111 = vcmp.ne.s32.totalorder %v5775, 0
      %vm6112 = vcmp.ne.s32.totalorder %v5786, 0
      %vm6113 = vcmp.ne.s32.totalorder %v5797, 0
      %vm6114 = vcmp.ne.s32.totalorder %v5808, 0
      %vm6115 = vcmp.ne.s32.totalorder %v5819, 0
      %vm6116 = vcmp.ne.s32.totalorder %v5830, 0
      %vm6117 = vcmp.ne.s32.totalorder %v5841, 0
      %vm6118 = vcmp.ne.s32.totalorder %v5852, 0
      %vm6119 = vcmp.ne.s32.totalorder %v5863, 0
      %vm6120 = vcmp.ne.s32.totalorder %v5874, 0
      %vm6121 = vcmp.ne.s32.totalorder %v5885, 0
      %vm6122 = vcmp.ne.s32.totalorder %v5896, 0
      %vm6123 = vcmp.ne.s32.totalorder %v5907, 0
      %vm6124 = vcmp.ne.s32.totalorder %v5918, 0
      %vm6125 = vcmp.ne.s32.totalorder %v5929, 0
      %vm6126 = vcmp.ne.s32.totalorder %v5940, 0
      %vm6127 = vcmp.ne.s32.totalorder %v5951, 0
      %vm6128 = vcmp.ne.s32.totalorder %v5962, 0
      %vm6129 = vcmp.ne.s32.totalorder %v5973, 0
      %vm6130 = vcmp.ne.s32.totalorder %v5984, 0
      %vm6131 = vcmp.ne.s32.totalorder %v5995, 0
      %vm6132 = vcmp.ne.s32.totalorder %v6006, 0
      %vm6133 = vcmp.ne.s32.totalorder %v6017, 0
      %vm6134 = vcmp.ne.s32.totalorder %v6028, 0
      %vm6135 = vcmp.ne.s32.totalorder %v6039, 0
      %vm6136 = vcmp.ne.s32.totalorder %v6050, 0
      %vm6137 = vcmp.ne.s32.totalorder %v6061, 0
      %vm6138 = vcmp.ne.s32.totalorder %v6072, 0
      %vm6139 = vcmp.ne.s32.totalorder %v6083, 0
      %vm6140 = vcmp.ne.s32.totalorder %v6094, 0
      %vm6141 = vcmp.ne.s32.totalorder %v6105, 0
      %vm6142 = vcmp.lt.s32.totalorder %v5720, 0
      %vm6143 = vcmp.lt.s32.totalorder %v5731, 0
      %vm6144 = vcmp.lt.s32.totalorder %v5742, 0
      %vm6145 = vcmp.lt.s32.totalorder %v5753, 0
      %vm6146 = vcmp.lt.s32.totalorder %v5764, 0
      %vm6147 = vcmp.lt.s32.totalorder %v5775, 0
      %vm6148 = vcmp.lt.s32.totalorder %v5786, 0
      %vm6149 = vcmp.lt.s32.totalorder %v5797, 0
      %vm6150 = vcmp.lt.s32.totalorder %v5808, 0
      %vm6151 = vcmp.lt.s32.totalorder %v5819, 0
      %vm6152 = vcmp.lt.s32.totalorder %v5830, 0
      %vm6153 = vcmp.lt.s32.totalorder %v5841, 0
      %vm6154 = vcmp.lt.s32.totalorder %v5852, 0
      %vm6155 = vcmp.lt.s32.totalorder %v5863, 0
      %vm6156 = vcmp.lt.s32.totalorder %v5874, 0
      %vm6157 = vcmp.lt.s32.totalorder %v5885, 0
      %vm6158 = vcmp.lt.s32.totalorder %v5896, 0
      %vm6159 = vcmp.lt.s32.totalorder %v5907, 0
      %vm6160 = vcmp.lt.s32.totalorder %v5918, 0
      %vm6161 = vcmp.lt.s32.totalorder %v5929, 0
      %vm6162 = vcmp.lt.s32.totalorder %v5940, 0
      %vm6163 = vcmp.lt.s32.totalorder %v5951, 0
      %vm6164 = vcmp.lt.s32.totalorder %v5962, 0
      %vm6165 = vcmp.lt.s32.totalorder %v5973, 0
      %vm6166 = vcmp.lt.s32.totalorder %v5984, 0
      %vm6167 = vcmp.lt.s32.totalorder %v5995, 0
      %vm6168 = vcmp.lt.s32.totalorder %v6006, 0
      %vm6169 = vcmp.lt.s32.totalorder %v6017, 0
      %vm6170 = vcmp.lt.s32.totalorder %v6028, 0
      %vm6171 = vcmp.lt.s32.totalorder %v6039, 0
      %vm6172 = vcmp.lt.s32.totalorder %v6050, 0
      %vm6173 = vcmp.lt.s32.totalorder %v6061, 0
      %vm6174 = vcmp.lt.s32.totalorder %v6072, 0
      %vm6175 = vcmp.lt.s32.totalorder %v6083, 0
      %vm6176 = vcmp.lt.s32.totalorder %v6094, 0
      %vm6177 = vcmp.lt.s32.totalorder %v6105, 0
      %vm6178 = vmand %vm6142, %vm6106
      %vm6179 = vmand %vm6143, %vm6107
      %vm6180 = vmand %vm6144, %vm6108
      %vm6181 = vmand %vm6145, %vm6109
      %vm6182 = vmand %vm6146, %vm6110
      %vm6183 = vmand %vm6147, %vm6111
      %vm6184 = vmand %vm6148, %vm6112
      %vm6185 = vmand %vm6149, %vm6113
      %vm6186 = vmand %vm6150, %vm6114
      %vm6187 = vmand %vm6151, %vm6115
      %vm6188 = vmand %vm6152, %vm6116
      %vm6189 = vmand %vm6153, %vm6117
      %vm6190 = vmand %vm6154, %vm6118
      %vm6191 = vmand %vm6155, %vm6119
      %vm6192 = vmand %vm6156, %vm6120
      %vm6193 = vmand %vm6157, %vm6121
      %vm6194 = vmand %vm6158, %vm6122
      %vm6195 = vmand %vm6159, %vm6123
      %vm6196 = vmand %vm6160, %vm6124
      %vm6197 = vmand %vm6161, %vm6125
      %vm6198 = vmand %vm6162, %vm6126
      %vm6199 = vmand %vm6163, %vm6127
      %vm6200 = vmand %vm6164, %vm6128
      %vm6201 = vmand %vm6165, %vm6129
      %vm6202 = vmand %vm6166, %vm6130
      %vm6203 = vmand %vm6167, %vm6131
      %vm6204 = vmand %vm6168, %vm6132
      %vm6205 = vmand %vm6169, %vm6133
      %vm6206 = vmand %vm6170, %vm6134
      %vm6207 = vmand %vm6171, %vm6135
      %vm6208 = vmand %vm6172, %vm6136
      %vm6209 = vmand %vm6173, %vm6137
      %vm6210 = vmand %vm6174, %vm6138
      %vm6211 = vmand %vm6175, %vm6139
      %vm6212 = vmand %vm6176, %vm6140
      %vm6213 = vmand %vm6177, %vm6141
      %v6214 = vadd.s32 %v5720, 18
      %v6215 = vadd.s32 %v5731, 18
      %v6216 = vadd.s32 %v5742, 18
      %v6217 = vadd.s32 %v5753, 18
      %v6218 = vadd.s32 %v5764, 18
      %v6219 = vadd.s32 %v5775, 18
      %v6220 = vadd.s32 %v5786, 18
      %v6221 = vadd.s32 %v5797, 18
      %v6222 = vadd.s32 %v5808, 18
      %v6223 = vadd.s32 %v5819, 18
      %v6224 = vadd.s32 %v5830, 18
      %v6225 = vadd.s32 %v5841, 18
      %v6226 = vadd.s32 %v5852, 18
      %v6227 = vadd.s32 %v5863, 18
      %v6228 = vadd.s32 %v5874, 18
      %v6229 = vadd.s32 %v5885, 18
      %v6230 = vadd.s32 %v5896, 18
      %v6231 = vadd.s32 %v5907, 18
      %v6232 = vadd.s32 %v5918, 18
      %v6233 = vadd.s32 %v5929, 18
      %v6234 = vadd.s32 %v5940, 18
      %v6235 = vadd.s32 %v5951, 18
      %v6236 = vadd.s32 %v5962, 18
      %v6237 = vadd.s32 %v5973, 18
      %v6238 = vadd.s32 %v5984, 18
      %v6239 = vadd.s32 %v5995, 18
      %v6240 = vadd.s32 %v6006, 18
      %v6241 = vadd.s32 %v6017, 18
      %v6242 = vadd.s32 %v6028, 18
      %v6243 = vadd.s32 %v6039, 18
      %v6244 = vadd.s32 %v6050, 18
      %v6245 = vadd.s32 %v6061, 18
      %v6246 = vadd.s32 %v6072, 18
      %v6247 = vadd.s32 %v6083, 18
      %v6248 = vadd.s32 %v6094, 18
      %v6249 = vadd.s32 %v6105, 18
      %v6250 = vsel %vm6178, %v6214, %v5720
      %v6251 = vsel %vm6179, %v6215, %v5731
      %v6252 = vsel %vm6180, %v6216, %v5742
      %v6253 = vsel %vm6181, %v6217, %v5753
      %v6254 = vsel %vm6182, %v6218, %v5764
      %v6255 = vsel %vm6183, %v6219, %v5775
      %v6256 = vsel %vm6184, %v6220, %v5786
      %v6257 = vsel %vm6185, %v6221, %v5797
      %v6258 = vsel %vm6186, %v6222, %v5808
      %v6259 = vsel %vm6187, %v6223, %v5819
      %v6260 = vsel %vm6188, %v6224, %v5830
      %v6261 = vsel %vm6189, %v6225, %v5841
      %v6262 = vsel %vm6190, %v6226, %v5852
      %v6263 = vsel %vm6191, %v6227, %v5863
      %v6264 = vsel %vm6192, %v6228, %v5874
      %v6265 = vsel %vm6193, %v6229, %v5885
      %v6266 = vsel %vm6194, %v6230, %v5896
      %v6267 = vsel %vm6195, %v6231, %v5907
      %v6268 = vsel %vm6196, %v6232, %v5918
      %v6269 = vsel %vm6197, %v6233, %v5929
      %v6270 = vsel %vm6198, %v6234, %v5940
      %v6271 = vsel %vm6199, %v6235, %v5951
      %v6272 = vsel %vm6200, %v6236, %v5962
      %v6273 = vsel %vm6201, %v6237, %v5973
      %v6274 = vsel %vm6202, %v6238, %v5984
      %v6275 = vsel %vm6203, %v6239, %v5995
      %v6276 = vsel %vm6204, %v6240, %v6006
      %v6277 = vsel %vm6205, %v6241, %v6017
      %v6278 = vsel %vm6206, %v6242, %v6028
      %v6279 = vsel %vm6207, %v6243, %v6039
      %v6280 = vsel %vm6208, %v6244, %v6050
      %v6281 = vsel %vm6209, %v6245, %v6061
      %v6282 = vsel %vm6210, %v6246, %v6072
      %v6283 = vsel %vm6211, %v6247, %v6083
      %v6284 = vsel %vm6212, %v6248, %v6094
      %v6285 = vsel %vm6213, %v6249, %v6105
      %vm6286 = vcmp.lt.s32.totalorder %v6250, 16
      %vm6287 = vcmp.lt.s32.totalorder %v6251, 16
      %vm6288 = vcmp.lt.s32.totalorder %v6252, 16
      %vm6289 = vcmp.lt.s32.totalorder %v6253, 16
      %vm6290 = vcmp.lt.s32.totalorder %v6254, 16
      %vm6291 = vcmp.lt.s32.totalorder %v6255, 16
      %vm6292 = vcmp.lt.s32.totalorder %v6256, 16
      %vm6293 = vcmp.lt.s32.totalorder %v6257, 16
      %vm6294 = vcmp.lt.s32.totalorder %v6258, 16
      %vm6295 = vcmp.lt.s32.totalorder %v6259, 16
      %vm6296 = vcmp.lt.s32.totalorder %v6260, 16
      %vm6297 = vcmp.lt.s32.totalorder %v6261, 16
      %vm6298 = vcmp.lt.s32.totalorder %v6262, 16
      %vm6299 = vcmp.lt.s32.totalorder %v6263, 16
      %vm6300 = vcmp.lt.s32.totalorder %v6264, 16
      %vm6301 = vcmp.lt.s32.totalorder %v6265, 16
      %vm6302 = vcmp.lt.s32.totalorder %v6266, 16
      %vm6303 = vcmp.lt.s32.totalorder %v6267, 16
      %vm6304 = vcmp.lt.s32.totalorder %v6268, 16
      %vm6305 = vcmp.lt.s32.totalorder %v6269, 16
      %vm6306 = vcmp.lt.s32.totalorder %v6270, 16
      %vm6307 = vcmp.lt.s32.totalorder %v6271, 16
      %vm6308 = vcmp.lt.s32.totalorder %v6272, 16
      %vm6309 = vcmp.lt.s32.totalorder %v6273, 16
      %vm6310 = vcmp.lt.s32.totalorder %v6274, 16
      %vm6311 = vcmp.lt.s32.totalorder %v6275, 16
      %vm6312 = vcmp.lt.s32.totalorder %v6276, 16
      %vm6313 = vcmp.lt.s32.totalorder %v6277, 16
      %vm6314 = vcmp.lt.s32.totalorder %v6278, 16
      %vm6315 = vcmp.lt.s32.totalorder %v6279, 16
      %vm6316 = vcmp.lt.s32.totalorder %v6280, 16
      %vm6317 = vcmp.lt.s32.totalorder %v6281, 16
      %vm6318 = vcmp.lt.s32.totalorder %v6282, 16
      %vm6319 = vcmp.lt.s32.totalorder %v6283, 16
      %vm6320 = vcmp.lt.s32.totalorder %v6284, 16
      %vm6321 = vcmp.lt.s32.totalorder %v6285, 16
      %v6322 = vsel %vm6286, %v5457, 0.0
      %v6323 = vsel %vm6287, %v5458, 0.0
      %v6324 = vsel %vm6288, %v5459, 0.0
      %v6325 = vsel %vm6289, %v5460, 0.0
      %v6326 = vsel %vm6290, %v5461, 0.0
      %v6327 = vsel %vm6291, %v5462, 0.0
      %v6328 = vsel %vm6292, %v5463, 0.0
      %v6329 = vsel %vm6293, %v5464, 0.0
      %v6330 = vsel %vm6294, %v5465, 0.0
      %v6331 = vsel %vm6295, %v5466, 0.0
      %v6332 = vsel %vm6296, %v5467, 0.0
      %v6333 = vsel %vm6297, %v5468, 0.0
      %v6334 = vsel %vm6298, %v5469, 0.0
      %v6335 = vsel %vm6299, %v5470, 0.0
      %v6336 = vsel %vm6300, %v5471, 0.0
      %v6337 = vsel %vm6301, %v5472, 0.0
      %v6338 = vsel %vm6302, %v5473, 0.0
      %v6339 = vsel %vm6303, %v5474, 0.0
      %v6340 = vsel %vm6304, %v5475, 0.0
      %v6341 = vsel %vm6305, %v5476, 0.0
      %v6342 = vsel %vm6306, %v5477, 0.0
      %v6343 = vsel %vm6307, %v5478, 0.0
      %v6344 = vsel %vm6308, %v5479, 0.0
      %v6345 = vsel %vm6309, %v5480, 0.0
      %v6346 = vsel %vm6310, %v5481, 0.0
      %v6347 = vsel %vm6311, %v5482, 0.0
      %v6348 = vsel %vm6312, %v5483, 0.0
      %v6349 = vsel %vm6313, %v5484, 0.0
      %v6350 = vsel %vm6314, %v5485, 0.0
      %v6351 = vsel %vm6315, %v5486, 0.0
      %v6352 = vsel %vm6316, %v5487, 0.0
      %v6353 = vsel %vm6317, %v5488, 0.0
      %v6354 = vsel %vm6318, %v5489, 0.0
      %v6355 = vsel %vm6319, %v5490, 0.0
      %v6356 = vsel %vm6320, %v5491, 0.0
      %v6357 = vsel %vm6321, %v5492, 0.0
      %v6358 = vsel %vm487, %v6322, 0.0
      %v6359 = vsel %vm487, %v6323, 0.0
      %v6360 = vadd.f32 %v6358, %v6359
      %v6361 = vsel %vm487, %v6324, 0.0
      %v6362 = vadd.f32 %v6360, %v6361
      %v6363 = vsel %vm487, %v6325, 0.0
      %v6364 = vadd.f32 %v6362, %v6363
      %v6365 = vsel %vm487, %v6326, 0.0
      %v6366 = vadd.f32 %v6364, %v6365
      %v6367 = vsel %vm487, %v6327, 0.0
      %v6368 = vadd.f32 %v6366, %v6367
      %v6369 = vsel %vm487, %v6328, 0.0
      %v6370 = vadd.f32 %v6368, %v6369
      %v6371 = vsel %vm487, %v6329, 0.0
      %v6372 = vadd.f32 %v6370, %v6371
      %v6373 = vsel %vm487, %v6330, 0.0
      %v6374 = vadd.f32 %v6372, %v6373
      %v6375 = vsel %vm487, %v6331, 0.0
      %v6376 = vadd.f32 %v6374, %v6375
      %v6377 = vsel %vm487, %v6332, 0.0
      %v6378 = vadd.f32 %v6376, %v6377
      %v6379 = vsel %vm487, %v6333, 0.0
      %v6380 = vadd.f32 %v6378, %v6379
      %v6381 = vsel %vm487, %v6334, 0.0
      %v6382 = vadd.f32 %v6380, %v6381
      %v6383 = vsel %vm487, %v6335, 0.0
      %v6384 = vadd.f32 %v6382, %v6383
      %v6385 = vsel %vm487, %v6336, 0.0
      %v6386 = vadd.f32 %v6384, %v6385
      %v6387 = vsel %vm487, %v6337, 0.0
      %v6388 = vadd.f32 %v6386, %v6387
      %v6389 = vsel %vm487, %v6338, 0.0
      %v6390 = vadd.f32 %v6388, %v6389
      %v6391 = vsel %vm487, %v6339, 0.0
      %v6392 = vadd.f32 %v6390, %v6391
      %v6393 = vsel %vm487, %v6340, 0.0
      %v6394 = vadd.f32 %v6392, %v6393
      %v6395 = vsel %vm487, %v6341, 0.0
      %v6396 = vadd.f32 %v6394, %v6395
      %v6397 = vsel %vm487, %v6342, 0.0
      %v6398 = vadd.f32 %v6396, %v6397
      %v6399 = vsel %vm487, %v6343, 0.0
      %v6400 = vadd.f32 %v6398, %v6399
      %v6401 = vsel %vm487, %v6344, 0.0
      %v6402 = vadd.f32 %v6400, %v6401
      %v6403 = vsel %vm487, %v6345, 0.0
      %v6404 = vadd.f32 %v6402, %v6403
      %v6405 = vsel %vm487, %v6346, 0.0
      %v6406 = vadd.f32 %v6404, %v6405
      %v6407 = vsel %vm487, %v6347, 0.0
      %v6408 = vadd.f32 %v6406, %v6407
      %v6409 = vsel %vm487, %v6348, 0.0
      %v6410 = vadd.f32 %v6408, %v6409
      %v6411 = vsel %vm487, %v6349, 0.0
      %v6412 = vadd.f32 %v6410, %v6411
      %v6413 = vsel %vm487, %v6350, 0.0
      %v6414 = vadd.f32 %v6412, %v6413
      %v6415 = vsel %vm487, %v6351, 0.0
      %v6416 = vadd.f32 %v6414, %v6415
      %v6417 = vsel %vm487, %v6352, 0.0
      %v6418 = vadd.f32 %v6416, %v6417
      %v6419 = vsel %vm487, %v6353, 0.0
      %v6420 = vadd.f32 %v6418, %v6419
      %v6421 = vsel %vm487, %v6354, 0.0
      %v6422 = vadd.f32 %v6420, %v6421
      %v6423 = vsel %vm487, %v6355, 0.0
      %v6424 = vadd.f32 %v6422, %v6423
      %v6425 = vsel %vm487, %v6356, 0.0
      %v6426 = vadd.f32 %v6424, %v6425
      %v6427 = vsel %vm487, %v6357, 0.0
      %v6428 = vadd.f32 %v6426, %v6427
      %v6429 = vrot.slane %v6428, 4
      %v6430 = vadd.f32 %v6428, %v6429
      %v6431 = vrot.slane %v6430, 2
      %v6432 = vadd.f32 %v6430, %v6431
      %v6433 = vrot.slane %v6432, 1
      %v6434 = vadd.f32 %v6432, %v6433
      %v6435 = vmul.f32 %v6322, %v6322
      %v6436 = vmul.f32 %v6323, %v6323
      %v6437 = vmul.f32 %v6324, %v6324
      %v6438 = vmul.f32 %v6325, %v6325
      %v6439 = vmul.f32 %v6326, %v6326
      %v6440 = vmul.f32 %v6327, %v6327
      %v6441 = vmul.f32 %v6328, %v6328
      %v6442 = vmul.f32 %v6329, %v6329
      %v6443 = vmul.f32 %v6330, %v6330
      %v6444 = vmul.f32 %v6331, %v6331
      %v6445 = vmul.f32 %v6332, %v6332
      %v6446 = vmul.f32 %v6333, %v6333
      %v6447 = vmul.f32 %v6334, %v6334
      %v6448 = vmul.f32 %v6335, %v6335
      %v6449 = vmul.f32 %v6336, %v6336
      %v6450 = vmul.f32 %v6337, %v6337
      %v6451 = vmul.f32 %v6338, %v6338
      %v6452 = vmul.f32 %v6339, %v6339
      %v6453 = vmul.f32 %v6340, %v6340
      %v6454 = vmul.f32 %v6341, %v6341
      %v6455 = vmul.f32 %v6342, %v6342
      %v6456 = vmul.f32 %v6343, %v6343
      %v6457 = vmul.f32 %v6344, %v6344
      %v6458 = vmul.f32 %v6345, %v6345
      %v6459 = vmul.f32 %v6346, %v6346
      %v6460 = vmul.f32 %v6347, %v6347
      %v6461 = vmul.f32 %v6348, %v6348
      %v6462 = vmul.f32 %v6349, %v6349
      %v6463 = vmul.f32 %v6350, %v6350
      %v6464 = vmul.f32 %v6351, %v6351
      %v6465 = vmul.f32 %v6352, %v6352
      %v6466 = vmul.f32 %v6353, %v6353
      %v6467 = vmul.f32 %v6354, %v6354
      %v6468 = vmul.f32 %v6355, %v6355
      %v6469 = vmul.f32 %v6356, %v6356
      %v6470 = vmul.f32 %v6357, %v6357
      %v6471 = vsel %vm487, %v6435, 0.0
      %v6472 = vsel %vm487, %v6436, 0.0
      %v6473 = vadd.f32 %v6471, %v6472
      %v6474 = vsel %vm487, %v6437, 0.0
      %v6475 = vadd.f32 %v6473, %v6474
      %v6476 = vsel %vm487, %v6438, 0.0
      %v6477 = vadd.f32 %v6475, %v6476
      %v6478 = vsel %vm487, %v6439, 0.0
      %v6479 = vadd.f32 %v6477, %v6478
      %v6480 = vsel %vm487, %v6440, 0.0
      %v6481 = vadd.f32 %v6479, %v6480
      %v6482 = vsel %vm487, %v6441, 0.0
      %v6483 = vadd.f32 %v6481, %v6482
      %v6484 = vsel %vm487, %v6442, 0.0
      %v6485 = vadd.f32 %v6483, %v6484
      %v6486 = vsel %vm487, %v6443, 0.0
      %v6487 = vadd.f32 %v6485, %v6486
      %v6488 = vsel %vm487, %v6444, 0.0
      %v6489 = vadd.f32 %v6487, %v6488
      %v6490 = vsel %vm487, %v6445, 0.0
      %v6491 = vadd.f32 %v6489, %v6490
      %v6492 = vsel %vm487, %v6446, 0.0
      %v6493 = vadd.f32 %v6491, %v6492
      %v6494 = vsel %vm487, %v6447, 0.0
      %v6495 = vadd.f32 %v6493, %v6494
      %v6496 = vsel %vm487, %v6448, 0.0
      %v6497 = vadd.f32 %v6495, %v6496
      %v6498 = vsel %vm487, %v6449, 0.0
      %v6499 = vadd.f32 %v6497, %v6498
      %v6500 = vsel %vm487, %v6450, 0.0
      %v6501 = vadd.f32 %v6499, %v6500
      %v6502 = vsel %vm487, %v6451, 0.0
      %v6503 = vadd.f32 %v6501, %v6502
      %v6504 = vsel %vm487, %v6452, 0.0
      %v6505 = vadd.f32 %v6503, %v6504
      %v6506 = vsel %vm487, %v6453, 0.0
      %v6507 = vadd.f32 %v6505, %v6506
      %v6508 = vsel %vm487, %v6454, 0.0
      %v6509 = vadd.f32 %v6507, %v6508
      %v6510 = vsel %vm487, %v6455, 0.0
      %v6511 = vadd.f32 %v6509, %v6510
      %v6512 = vsel %vm487, %v6456, 0.0
      %v6513 = vadd.f32 %v6511, %v6512
      %v6514 = vsel %vm487, %v6457, 0.0
      %v6515 = vadd.f32 %v6513, %v6514
      %v6516 = vsel %vm487, %v6458, 0.0
      %v6517 = vadd.f32 %v6515, %v6516
      %v6518 = vsel %vm487, %v6459, 0.0
      %v6519 = vadd.f32 %v6517, %v6518
      %v6520 = vsel %vm487, %v6460, 0.0
      %v6521 = vadd.f32 %v6519, %v6520
      %v6522 = vsel %vm487, %v6461, 0.0
      %v6523 = vadd.f32 %v6521, %v6522
      %v6524 = vsel %vm487, %v6462, 0.0
      %v6525 = vadd.f32 %v6523, %v6524
      %v6526 = vsel %vm487, %v6463, 0.0
      %v6527 = vadd.f32 %v6525, %v6526
      %v6528 = vsel %vm487, %v6464, 0.0
      %v6529 = vadd.f32 %v6527, %v6528
      %v6530 = vsel %vm487, %v6465, 0.0
      %v6531 = vadd.f32 %v6529, %v6530
      %v6532 = vsel %vm487, %v6466, 0.0
      %v6533 = vadd.f32 %v6531, %v6532
      %v6534 = vsel %vm487, %v6467, 0.0
      %v6535 = vadd.f32 %v6533, %v6534
      %v6536 = vsel %vm487, %v6468, 0.0
      %v6537 = vadd.f32 %v6535, %v6536
      %v6538 = vsel %vm487, %v6469, 0.0
      %v6539 = vadd.f32 %v6537, %v6538
      %v6540 = vsel %vm487, %v6470, 0.0
      %v6541 = vadd.f32 %v6539, %v6540
      %v6542 = vrot.slane %v6541, 4
      %v6543 = vadd.f32 %v6541, %v6542
      %v6544 = vrot.slane %v6543, 2
      %v6545 = vadd.f32 %v6543, %v6544
      %v6546 = vrot.slane %v6545, 1
      %v6547 = vadd.f32 %v6545, %v6546
      %6548 = vst.msk [vmem:[%s214] sm:$0xff] %vm487, %v6434
      %6549 = vst.msk [vmem:[%s218] sm:$0xff] %vm487, %v6547
      %p6550 = scmp.lt.s32.totalorder %s16, 1
      %s6551 = scalar_select %p6550, %s16, 1
      %s6552 = smul.addr %s6551, 36
      %s6553 = smul.addr %s6552, 4
      %s6554 = scalar_lea.vmem %s2, %s6553
      %p6555 = scmp.lt.s32.totalorder %s16, 1
      %s6556 = scalar_select %p6555, %s16, 1
      %s6557 = smul.addr %s6556, 8
      %s6558 = scalar_lea.vmem %s3, %s6557
      %p6559 = scmp.lt.s32.totalorder %s16, 1
      %s6560 = scalar_select %p6559, %s16, 1
      %s6561 = smul.addr %s6560, 8
      %s6562 = scalar_lea.vmem %s4, %s6561
      // Predicated region
      $region29: #{skip_upsample_forward.6} parent=27 // pred_check
        %p6563 = pneg %p81
      $region30: #{skip_upsample_forward.6} parent=27 // pred_check_branch
        %6565 = sbr.rel (%p6563) target = $region32
      $region31: #{skip_upsample_forward.6} parent=27 // pred_region
        _
      $region32: #{skip_upsample_forward.6} parent=27 // pred_fallthru
        _
      // Predicated region
      $region33: #{skip_upsample_forward.6} parent=27 // pred_check
        %p6566 = pneg %p107
      $region34: #{skip_upsample_forward.6} parent=27 // pred_check_branch
        %6568 = sbr.rel (%p6566) target = $region36
      $region35: #{skip_upsample_forward.6} parent=27 // pred_region
        _
      $region36: #{skip_upsample_forward.6} parent=27 // pred_fallthru
        _
      // Predicated region
      $region37: #{skip_upsample_forward.6} parent=27 // pred_check
        %p6569 = pneg %p133
      $region38: #{skip_upsample_forward.6} parent=27 // pred_check_branch
        %6571 = sbr.rel (%p6569) target = $region40
      $region39: #{skip_upsample_forward.6} parent=27 // pred_region
        _
      $region40: #{skip_upsample_forward.6} parent=27 // pred_fallthru
        _
    $region28: #{skip_upsample_forward.6} parent=5 // pred_fallthru
      _
    %p6572 = scmp.le.s32.totalorder 2, %s11
    // Predicated region
    $region41: #{skip_upsample_forward.6} parent=5 // pred_check
      %p6573 = pneg %p6572
    $region42: #{skip_upsample_forward.6} parent=5 // pred_check_branch
      %6575 = sbr.rel (%p6573) target = $region44
    $region43: #{skip_upsample_forward.6} parent=5 // pred_region
      %s6576 = ssub.s32 %s11, 2
      // Predicated region
      $region45: #{skip_upsample_forward.6} parent=43 // pred_check
        %p6577 = pneg %p87
      $region46: #{skip_upsample_forward.6} parent=43 // pred_check_branch
        %6579 = sbr.rel (%p6577) target = $region48
      $region47: #{skip_upsample_forward.6} parent=43 // pred_region
        %p6580 = scmp.lt.s32.totalorder %s17, 1
        %s6581 = scalar_select %p6580, %s17, 1
        %s6582 = smul.addr %s6581, 36
        %s6583 = smul.addr %s6582, 4
        %s6584 = scalar_lea.vmem %s2, %s6583
      $region48: #{skip_upsample_forward.6} parent=43 // pred_fallthru
        _
      // Predicated region
      $region49: #{skip_upsample_forward.6} parent=43 // pred_check
        %p6585 = pneg %p113
      $region50: #{skip_upsample_forward.6} parent=43 // pred_check_branch
        %6587 = sbr.rel (%p6585) target = $region52
      $region51: #{skip_upsample_forward.6} parent=43 // pred_region
        %p6588 = scmp.lt.s32.totalorder %s17, 1
        %s6589 = scalar_select %p6588, %s17, 1
        %s6590 = smul.addr %s6589, 8
        %s6591 = scalar_lea.vmem %s3, %s6590
      $region52: #{skip_upsample_forward.6} parent=43 // pred_fallthru
        _
      // Predicated region
      $region53: #{skip_upsample_forward.6} parent=43 // pred_check
        %p6592 = pneg %p139
      $region54: #{skip_upsample_forward.6} parent=43 // pred_check_branch
        %6594 = sbr.rel (%p6592) target = $region56
      $region55: #{skip_upsample_forward.6} parent=43 // pred_region
        %p6595 = scmp.lt.s32.totalorder %s17, 1
        %s6596 = scalar_select %p6595, %s17, 1
        %s6597 = smul.addr %s6596, 8
        %s6598 = scalar_lea.vmem %s4, %s6597
      $region56: #{skip_upsample_forward.6} parent=43 // pred_fallthru
        _
    $region44: #{skip_upsample_forward.6} parent=5 // pred_fallthru
      _
  $region6: #{skip_upsample_forward.6} parent=0 // loop_footer
    %s15 = sadd.s32 1, %s11
  $region7: #{skip_upsample_forward.6} parent=0 // loop_footer_branch
    %10 = sbr.rel target = $region3
  $region8: #{skip_upsample_forward.6} parent=0 // loop_exit
    _

</llo_original>
